<compile_context>
chip_gen: v7x
topology: tpu7x:2x2x1
jax: 0.10.0
libtpu: 0.0.40
codegen_flags: <defaults>
</compile_context>

<pallas_src>
import functools

import jax
import jax.numpy as jnp
from jax import lax
from jax.experimental import pallas as pl
from jax.experimental.pallas import tpu as pltpu

_NEG_BIG = -1e30  # f32 sentinel for masked neighbor slots (mask math stays in f32)


def _round_up(a, b):
    return (a + b - 1) // b * b


# ----------------------------- Pallas kernels ------------------------------

def _pointconv_kernel(xj_ref, rel_ref, bias_ref, w1x_ref, w1p_ref, b1_ref,
                      w2_ref, b2_ref, o_ref):
    # xj_ref:  [T*K, Cin]  bf16   neighbor features, flattened over (tile, K)
    # rel_ref: [T*K, 3]    bf16   pos_j - pos_i
    # bias_ref:[T, K]      f32    0 for real edges, -1e30 for padded / invalid slots
    # o_ref:   [T, Cout]   f32    relu(max_k (Linear->Sigmoid->Linear)(cat[x_j, rel]))
    t, k = bias_ref.shape
    pre = (jnp.dot(xj_ref[...], w1x_ref[...], preferred_element_type=jnp.float32)
           + jnp.dot(rel_ref[...], w1p_ref[...], preferred_element_type=jnp.float32)
           + b1_ref[...])
    hid = jax.nn.sigmoid(pre)                                   # f32 (EUP)
    msg = (jnp.dot(hid.astype(w2_ref.dtype), w2_ref[...],
                   preferred_element_type=jnp.float32) + b2_ref[...])
    cout = msg.shape[-1]
    msg = msg.reshape(t, k, cout) + bias_ref[...][:, :, None]   # additive mask
    agg = jnp.max(msg, axis=1)                                  # PointNetConv 'max' aggr
    o_ref[...] = jnp.maximum(agg, 0.0)                          # F.relu(self.conv(...))


def pointconv_pallas(x_j, rel, mask, w1, b1, w2, b2, tile_s=64):
    # x_j: [S, K, Cin] f32, rel: [S, K, 3] f32, mask: [S, K] bool
    s, k, cin = x_j.shape
    hid = w1.shape[1]
    cout = w2.shape[1]

    # Tile over sampled points; keep blocks big (fewer grid steps, bigger DMAs).
    # NOTE(v7x): blocks here are <1 MiB even at tile_s=128, far under the 64 MiB VMEM.
    tile = min(tile_s, _round_up(s, 8))
    s_pad = _round_up(s, tile)
    if s_pad != s:
        pad = s_pad - s
        x_j = jnp.pad(x_j, ((0, pad), (0, 0), (0, 0)))
        rel = jnp.pad(rel, ((0, pad), (0, 0), (0, 0)))
        mask = jnp.pad(mask, ((0, pad), (0, 0)))

    bias = jnp.where(mask, 0.0, _NEG_BIG).astype(jnp.float32)
    # Split W1 so the x_j contraction stays lane-aligned (no lane-padded concat).
    w1x = w1[:cin].astype(jnp.bfloat16)
    w1p = w1[cin:].astype(jnp.bfloat16)
    w2b = w2.astype(jnp.bfloat16)
    xj2 = x_j.reshape(s_pad * k, cin).astype(jnp.bfloat16)
    rel2 = rel.reshape(s_pad * k, 3).astype(jnp.bfloat16)

    out = pl.pallas_call(
        _pointconv_kernel,
        out_shape=jax.ShapeDtypeStruct((s_pad, cout), jnp.float32),
        grid=(s_pad // tile,),
        in_specs=[
            pl.BlockSpec((tile * k, cin), lambda i: (i, 0)),
            pl.BlockSpec((tile * k, 3), lambda i: (i, 0)),
            pl.BlockSpec((tile, k), lambda i: (i, 0)),
            pl.BlockSpec((cin, hid), lambda i: (0, 0)),   # weights resident (constant map)
            pl.BlockSpec((3, hid), lambda i: (0, 0)),
            pl.BlockSpec((1, hid), lambda i: (0, 0)),
            pl.BlockSpec((hid, cout), lambda i: (0, 0)),
            pl.BlockSpec((1, cout), lambda i: (0, 0)),
        ],
        out_specs=pl.BlockSpec((tile, cout), lambda i: (i, 0)),
        compiler_params=pltpu.CompilerParams(
            dimension_semantics=("parallel",),
            vmem_limit_bytes=32 * 1024 * 1024),  # safe on v7x (64 MiB physical VMEM)
    )(xj2, rel2, bias, w1x, w1p, b1, w2b, b2)
    return out[:s]


def _global_fc_kernel(x_ref, pos_ref, wg1x_ref, wg1p_ref, bg1_ref, wg2_ref, bg2_ref,
                      wf1_ref, bf1_ref, wf2_ref, bf2_ref, o_ref):
    # Fused GlobalSAModule + fc + last_act for ONE graph per grid step.
    # x_ref: [1, n_g, C] bf16, pos_ref: [1, n_g, 3] bf16, o_ref: [1, 1, out_pad] f32
    x = x_ref[0]
    p = pos_ref[0]
    h = jax.nn.sigmoid(
        jnp.dot(x, wg1x_ref[...], preferred_element_type=jnp.float32)
        + jnp.dot(p, wg1p_ref[...], preferred_element_type=jnp.float32)
        + bg1_ref[...])
    f = (jnp.dot(h.astype(wg2_ref.dtype), wg2_ref[...],
                 preferred_element_type=jnp.float32) + bg2_ref[...])
    f = jnp.maximum(f, 0.0)                          # relu before pooling
    pooled = jnp.max(f, axis=0, keepdims=True)       # per-graph global max pool
    h2 = (jnp.dot(pooled.astype(wf1_ref.dtype), wf1_ref[...],
                  preferred_element_type=jnp.float32) + bf1_ref[...])
    out = (jnp.dot(h2.astype(wf2_ref.dtype), wf2_ref[...],
                   preferred_element_type=jnp.float32) + bf2_ref[...])
    o_ref[...] = jnp.maximum(out, 0.0).reshape(o_ref.shape)   # last_act relu


def global_fc_pallas(x, pos, num_graphs, gparams, fcparams, out_channels):
    # x: [G*n_g, C] f32, pos: [G*n_g, 3] f32 (graph-contiguous, equal-size graphs)
    wg1, bg1, wg2, bg2 = gparams
    wf1, bf1, wf2, bf2 = fcparams
    g = num_graphs
    n_g = x.shape[0] // g
    c = x.shape[1]
    hid1 = wg1.shape[1]
    hid2 = wg2.shape[1]
    fhid = wf1.shape[1]
    out_pad = _round_up(out_channels, 128)           # lane-dense padded output slab

    wf2p = jnp.zeros((wf2.shape[0], out_pad), jnp.float32).at[:, :out_channels].set(wf2)
    bf2p = jnp.zeros((1, out_pad), jnp.float32).at[:, :out_channels].set(bf2)

    xg = x.reshape(g, n_g, c).astype(jnp.bfloat16)
    pg = pos.reshape(g, n_g, 3).astype(jnp.bfloat16)

    out = pl.pallas_call(
        _global_fc_kernel,
        out_shape=jax.ShapeDtypeStruct((g, 1, out_pad), jnp.float32),
        grid=(g,),
        in_specs=[
            pl.BlockSpec((1, n_g, c), lambda i: (i, 0, 0)),
            pl.BlockSpec((1, n_g, 3), lambda i: (i, 0, 0)),
            pl.BlockSpec((c, hid1), lambda i: (0, 0)),
            pl.BlockSpec((3, hid1), lambda i: (0, 0)),
            pl.BlockSpec((1, hid1), lambda i: (0, 0)),
            pl.BlockSpec((hid1, hid2), lambda i: (0, 0)),
            pl.BlockSpec((1, hid2), lambda i: (0, 0)),
            pl.BlockSpec((hid2, fhid), lambda i: (0, 0)),
            pl.BlockSpec((1, fhid), lambda i: (0, 0)),
            pl.BlockSpec((fhid, out_pad), lambda i: (0, 0)),
            pl.BlockSpec((1, out_pad), lambda i: (0, 0)),
        ],
        out_specs=pl.BlockSpec((1, 1, out_pad), lambda i: (i, 0, 0)),
        compiler_params=pltpu.CompilerParams(
            dimension_semantics=("parallel",),       # G>=2 -> both TCs on v7x
            vmem_limit_bytes=32 * 1024 * 1024),
    )(xg, pg,
      wg1[:c].astype(jnp.bfloat16), wg1[c:].astype(jnp.bfloat16), bg1,
      wg2.astype(jnp.bfloat16), bg2,
      wf1.astype(jnp.bfloat16), bf1,
      wf2p.astype(jnp.bfloat16), bf2p)
    return out[:, 0, :out_channels]


# --------------------------- JAX glue (graph ops) ---------------------------

def fps_batched(pos_b, k):
    # pos_b: [B, n, 3] -> local sample indices [B, k] (farthest point sampling,
    # deterministic start at local index 0, selection order preserved like PyG fps).
    B, n, _ = pos_b.shape
    d0 = jnp.sum((pos_b - pos_b[:, :1, :]) ** 2, axis=-1)     # [B, n]
    sel0 = jnp.zeros((B, k), jnp.int32)

    def body(j, carry):
        sel, mind = carry
        nxt = jnp.argmax(mind, axis=1).astype(jnp.int32)      # [B]
        sel = sel.at[:, j].set(nxt)
        p = jnp.take_along_axis(pos_b, nxt[:, None, None].astype(jnp.int32), axis=1)
        d = jnp.sum((pos_b - p) ** 2, axis=-1)
        mind = jnp.minimum(mind, d)
        return sel, mind

    sel, _ = lax.fori_loop(1, k, body, (sel0, d0))
    return sel


def radius_neighbors(pos_x, batch_x, pos_y, batch_y, r, max_k):
    # For each query point y, up to max_k points of x within radius r and same graph.
    # Returns neighbor indices [S, max_k] and validity mask [S, max_k].
    d2 = jnp.sum((pos_y[:, None, :] - pos_x[None, :, :]) ** 2, axis=-1)   # [S, N]
    valid = (batch_y[:, None] == batch_x[None, :]) & (d2 <= r * r)
    n = pos_x.shape[0]
    score = jnp.where(valid, jnp.arange(n, dtype=jnp.int32)[None, :], n + 1)
    order = jnp.argsort(score, axis=1)[:, :max_k]                          # first valid indices
    mask = jnp.take_along_axis(valid, order, axis=1)
    nbr = jnp.where(mask, order, 0)
    return nbr, mask


def sa_module_apply(x, pos, batch, num_graphs, n_per_graph, ratio, r, params, tile_s=64):
    w1, b1, w2, b2 = params
    k = int(n_per_graph * ratio)
    pos_b = pos.reshape(num_graphs, n_per_graph, 3)
    loc = fps_batched(pos_b, k)                                            # [B, k] local ids
    idx = (loc + (jnp.arange(num_graphs, dtype=jnp.int32) * n_per_graph)[:, None]).reshape(-1)
    pos_i = pos[idx]
    batch_i = batch[idx]
    nbr, mask = radius_neighbors(pos, batch, pos_i, batch_i, r, 32)
    x_j = x[nbr]                                                           # [S, K, C]
    pos_j = pos[nbr]                                                       # [S, K, 3]
    rel = pos_j - pos_i[:, None, :]                                        # computed in f32
    out = pointconv_pallas(x_j.astype(jnp.float32), rel.astype(jnp.float32),
                           mask, w1, b1, w2, b2, tile_s=tile_s)
    return out, pos_i, batch_i, k


@functools.partial(jax.jit, static_argnums=(4, 5))
def feature_model_v3_forward(params, x, pos, batch, num_graphs, n_per_graph):
    # scaler (buffers are zeros/ones, but compute it like the module does)
    x = (x - params["scaler_mean"]) / params["scaler_std"]

    ratio = 0.25
    r = 2.0
    n = n_per_graph
    for i in range(len(params["sa"])):
        x, pos, batch, n = sa_module_apply(
            x, pos, batch, num_graphs, n, ratio, r, params["sa"][i], tile_s=64)
        r *= 2.0

    # GlobalSAModule + fc + last_act fused into one per-graph-grid kernel.
    out_ch = params["fc"][2].shape[1]
    return global_fc_pallas(x, pos, num_graphs, params["global"], params["fc"], out_ch)


# ----------------------------- parameter init ------------------------------

def _xavier(key, fan_in, fan_out):
    a = (6.0 / (fan_in + fan_out)) ** 0.5
    return jax.random.uniform(key, (fan_in, fan_out), jnp.float32, -a, a)


def init_params(key, in_channels, out_channels, num_sa=2):
    keys = iter(jax.random.split(key, 2 * num_sa + 4))
    hidden = 64
    c = in_channels
    sa = []
    for _ in range(num_sa):
        w1 = _xavier(next(keys), c + 3, hidden)
        b1 = jnp.zeros((1, hidden), jnp.float32)
        w2 = _xavier(next(keys), hidden, 2 * hidden)
        b2 = jnp.zeros((1, 2 * hidden), jnp.float32)
        sa.append((w1, b1, w2, b2))
        hidden *= 2
        c = hidden
    wg1 = _xavier(next(keys), c + 3, hidden)
    bg1 = jnp.zeros((1, hidden), jnp.float32)
    wg2 = _xavier(next(keys), hidden, 2 * hidden)
    bg2 = jnp.zeros((1, 2 * hidden), jnp.float32)
    wf1 = _xavier(next(keys), 2 * hidden, hidden)
    bf1 = jnp.zeros((1, hidden), jnp.float32)
    wf2 = _xavier(next(keys), hidden, out_channels)
    bf2 = jnp.zeros((1, out_channels), jnp.float32)
    return {
        "scaler_mean": jnp.zeros((1, in_channels), jnp.float32),
        "scaler_std": jnp.ones((1, in_channels), jnp.float32),
        "sa": sa,
        "global": (wg1, bg1, wg2, bg2),
        "fc": (wf1, bf1, wf2, bf2),
    }


# ---------------------------------- main ------------------------------------

if __name__ == "__main__":
    key = jax.random.PRNGKey(0)
    kx, kp, kparam = jax.random.split(key, 3)

    B = 2            # graphs in the batch
    n = 64           # points per graph (equal-size graphs)
    C = 4            # in_channels
    out_ch = 8       # out_channels

    x = jax.random.normal(kx, (B * n, C), jnp.float32)
    pos = jax.random.uniform(kp, (B * n, 3), jnp.float32, minval=0.0, maxval=4.0)
    batch = jnp.repeat(jnp.arange(B, dtype=jnp.int32), n)

    params = init_params(kparam, C, out_ch, num_sa=2)

    out = feature_model_v3_forward(params, x, pos, batch, B, n)
    out = jax.block_until_ready(out)

    assert out.shape == (B, out_ch), out.shape
    assert bool(jnp.all(jnp.isfinite(out)))
    print("KERNEL_OK")
</pallas_src>

<mosaic_0001>
module attributes {stable_mosaic.version = 11 : i64} {
  func.func @_pointconv_kernel(%arg0: i32, %arg1: memref<1024x4xbf16, #tpu.memory_space<vmem>>, %arg2: memref<1024x3xbf16, #tpu.memory_space<vmem>>, %arg3: memref<32x32xf32, #tpu.memory_space<vmem>>, %arg4: memref<4x64xbf16, #tpu.memory_space<vmem>>, %arg5: memref<3x64xbf16, #tpu.memory_space<vmem>>, %arg6: memref<1x64xf32, #tpu.memory_space<vmem>>, %arg7: memref<64x128xbf16, #tpu.memory_space<vmem>>, %arg8: memref<1x128xf32, #tpu.memory_space<vmem>>, %arg9: memref<32x128xf32, #tpu.memory_space<vmem>>) attributes {dimension_semantics = [#tpu.dimension_semantics<parallel>], iteration_bounds = array<i64: 1>, scalar_prefetch = 0 : i64, scratch_operands = 0 : i64, tpu.core_type = #tpu.core_type<tc>, window_params = [{transform_indices = @transform_0, window_bounds = array<i64: 1024, 4>}, {transform_indices = @transform_1, window_bounds = array<i64: 1024, 3>}, {transform_indices = @transform_2, window_bounds = array<i64: 32, 32>}, {pipeline_mode = #tpu.pipeline_mode<synchronous>, transform_indices = @transform_3, window_bounds = array<i64: 4, 64>}, {pipeline_mode = #tpu.pipeline_mode<synchronous>, transform_indices = @transform_4, window_bounds = array<i64: 3, 64>}, {pipeline_mode = #tpu.pipeline_mode<synchronous>, transform_indices = @transform_5, window_bounds = array<i64: 1, 64>}, {pipeline_mode = #tpu.pipeline_mode<synchronous>, transform_indices = @transform_6, window_bounds = array<i64: 64, 128>}, {pipeline_mode = #tpu.pipeline_mode<synchronous>, transform_indices = @transform_7, window_bounds = array<i64: 1, 128>}, {transform_indices = @transform_8, window_bounds = array<i64: 32, 128>}]} {
    %c0 = arith.constant 0 : index
    %c0_0 = arith.constant 0 : index
    %0 = vector.load %arg1[%c0, %c0_0] : memref<1024x4xbf16, #tpu.memory_space<vmem>>, vector<1024x4xbf16>
    %c0_1 = arith.constant 0 : index
    %c0_2 = arith.constant 0 : index
    %1 = vector.load %arg4[%c0_1, %c0_2] : memref<4x64xbf16, #tpu.memory_space<vmem>>, vector<4x64xbf16>
    %cst = arith.constant dense<0.000000e+00> : vector<1024x64xf32>
    %2 = tpu.matmul %0, %1, %cst {dimension_numbers = #tpu.dot_dimension_numbers<[1], [0], [0], [1], [0, 0, 1, 1], [], []>} : vector<1024x4xbf16>, vector<4x64xbf16>, vector<1024x64xf32> -> vector<1024x64xf32>
    %c0_3 = arith.constant 0 : index
    %c0_4 = arith.constant 0 : index
    %3 = vector.load %arg2[%c0_3, %c0_4] : memref<1024x3xbf16, #tpu.memory_space<vmem>>, vector<1024x3xbf16>
    %c0_5 = arith.constant 0 : index
    %c0_6 = arith.constant 0 : index
    %4 = vector.load %arg5[%c0_5, %c0_6] : memref<3x64xbf16, #tpu.memory_space<vmem>>, vector<3x64xbf16>
    %cst_7 = arith.constant dense<0.000000e+00> : vector<1024x64xf32>
    %5 = tpu.matmul %3, %4, %cst_7 {dimension_numbers = #tpu.dot_dimension_numbers<[1], [0], [0], [1], [0, 0, 1, 1], [], []>} : vector<1024x3xbf16>, vector<3x64xbf16>, vector<1024x64xf32> -> vector<1024x64xf32>
    %6 = arith.addf %2, %5 : vector<1024x64xf32>
    %c0_8 = arith.constant 0 : index
    %c0_9 = arith.constant 0 : index
    %7 = vector.load %arg6[%c0_8, %c0_9] : memref<1x64xf32, #tpu.memory_space<vmem>>, vector<1x64xf32>
    %8 = vector.broadcast %7 : vector<1x64xf32> to vector<1024x64xf32>
    %9 = arith.addf %6, %8 : vector<1024x64xf32>
    %10 = arith.negf %9 : vector<1024x64xf32>
    %11 = math.exp %10 : vector<1024x64xf32>
    %cst_10 = arith.constant 1.000000e+00 : f32
    %12 = vector.broadcast %cst_10 : f32 to vector<1024x64xf32>
    %13 = arith.addf %12, %11 : vector<1024x64xf32>
    %14 = arith.divf %12, %13 : vector<1024x64xf32>
    %15 = arith.truncf %14 : vector<1024x64xf32> to vector<1024x64xbf16>
    %c0_11 = arith.constant 0 : index
    %c0_12 = arith.constant 0 : index
    %16 = vector.load %arg7[%c0_11, %c0_12] : memref<64x128xbf16, #tpu.memory_space<vmem>>, vector<64x128xbf16>
    %cst_13 = arith.constant dense<0.000000e+00> : vector<1024x128xf32>
    %17 = tpu.matmul %15, %16, %cst_13 {dimension_numbers = #tpu.dot_dimension_numbers<[1], [0], [0], [1], [0, 0, 1, 1], [], []>} : vector<1024x64xbf16>, vector<64x128xbf16>, vector<1024x128xf32> -> vector<1024x128xf32>
    %c0_14 = arith.constant 0 : index
    %c0_15 = arith.constant 0 : index
    %18 = vector.load %arg8[%c0_14, %c0_15] : memref<1x128xf32, #tpu.memory_space<vmem>>, vector<1x128xf32>
    %19 = vector.broadcast %18 : vector<1x128xf32> to vector<1024x128xf32>
    %20 = arith.addf %17, %19 : vector<1024x128xf32>
    %21 = vector.shape_cast %20 : vector<1024x128xf32> to vector<32x32x128xf32>
    %c0_16 = arith.constant 0 : index
    %c0_17 = arith.constant 0 : index
    %22 = vector.load %arg3[%c0_16, %c0_17] : memref<32x32xf32, #tpu.memory_space<vmem>>, vector<32x32xf32>
    %23 = vector.shape_cast %22 : vector<32x32xf32> to vector<32x32x1xf32>
    %24 = vector.broadcast %23 : vector<32x32x1xf32> to vector<32x32x128xf32>
    %25 = arith.addf %21, %24 : vector<32x32x128xf32>
    %cst_18 = arith.constant dense<0xFF800000> : vector<32x128xf32>
    %26 = vector.multi_reduction <maximumf>, %25, %cst_18 [1] : vector<32x32x128xf32> to vector<32x128xf32>
    %cst_19 = arith.constant 0.000000e+00 : f32
    %27 = vector.broadcast %cst_19 : f32 to vector<32x128xf32>
    %28 = arith.maximumf %26, %27 : vector<32x128xf32>
    %c0_20 = arith.constant 0 : index
    %c0_21 = arith.constant 0 : index
    %29 = vector.load %arg9[%c0_20, %c0_21] : memref<32x128xf32, #tpu.memory_space<vmem>>, vector<32x128xf32>
    tpu.vector_store %arg9[%c0_20, %c0_21], %28 {strides = array<i32>} : memref<32x128xf32, #tpu.memory_space<vmem>>, vector<32x128xf32>,
    return
  }
  func.func @transform_0(%arg0: i32) -> (i32, i32) {
    %c0_i32 = arith.constant 0 : i32
    %c0_i32_0 = arith.constant 0 : i32
    return %arg0, %c0_i32 : i32, i32
  }
  func.func @transform_1(%arg0: i32) -> (i32, i32) {
    %c0_i32 = arith.constant 0 : i32
    %c0_i32_0 = arith.constant 0 : i32
    return %arg0, %c0_i32 : i32, i32
  }
  func.func @transform_2(%arg0: i32) -> (i32, i32) {
    %c0_i32 = arith.constant 0 : i32
    %c0_i32_0 = arith.constant 0 : i32
    return %arg0, %c0_i32 : i32, i32
  }
  func.func @transform_3(%arg0: i32) -> (i32, i32) {
    %c0_i32 = arith.constant 0 : i32
    %c0_i32_0 = arith.constant 0 : i32
    %c0_i32_1 = arith.constant 0 : i32
    return %c0_i32, %c0_i32_0 : i32, i32
  }
  func.func @transform_4(%arg0: i32) -> (i32, i32) {
    %c0_i32 = arith.constant 0 : i32
    %c0_i32_0 = arith.constant 0 : i32
    %c0_i32_1 = arith.constant 0 : i32
    return %c0_i32, %c0_i32_0 : i32, i32
  }
  func.func @transform_5(%arg0: i32) -> (i32, i32) {
    %c0_i32 = arith.constant 0 : i32
    %c0_i32_0 = arith.constant 0 : i32
    %c0_i32_1 = arith.constant 0 : i32
    return %c0_i32, %c0_i32_0 : i32, i32
  }
  func.func @transform_6(%arg0: i32) -> (i32, i32) {
    %c0_i32 = arith.constant 0 : i32
    %c0_i32_0 = arith.constant 0 : i32
    %c0_i32_1 = arith.constant 0 : i32
    return %c0_i32, %c0_i32_0 : i32, i32
  }
  func.func @transform_7(%arg0: i32) -> (i32, i32) {
    %c0_i32 = arith.constant 0 : i32
    %c0_i32_0 = arith.constant 0 : i32
    %c0_i32_1 = arith.constant 0 : i32
    return %c0_i32, %c0_i32_0 : i32, i32
  }
  func.func @transform_8(%arg0: i32) -> (i32, i32) {
    %c0_i32 = arith.constant 0 : i32
    %c0_i32_0 = arith.constant 0 : i32
    return %arg0, %c0_i32 : i32, i32
  }
}

module attributes {stable_mosaic.version = 11 : i64} {
  func.func @_pointconv_kernel(%arg0: i32, %arg1: memref<256x128xbf16, #tpu.memory_space<vmem>>, %arg2: memref<256x3xbf16, #tpu.memory_space<vmem>>, %arg3: memref<8x32xf32, #tpu.memory_space<vmem>>, %arg4: memref<128x128xbf16, #tpu.memory_space<vmem>>, %arg5: memref<3x128xbf16, #tpu.memory_space<vmem>>, %arg6: memref<1x128xf32, #tpu.memory_space<vmem>>, %arg7: memref<128x256xbf16, #tpu.memory_space<vmem>>, %arg8: memref<1x256xf32, #tpu.memory_space<vmem>>, %arg9: memref<8x256xf32, #tpu.memory_space<vmem>>) attributes {dimension_semantics = [#tpu.dimension_semantics<parallel>], iteration_bounds = array<i64: 1>, scalar_prefetch = 0 : i64, scratch_operands = 0 : i64, tpu.core_type = #tpu.core_type<tc>, window_params = [{transform_indices = @transform_0, window_bounds = array<i64: 256, 128>}, {transform_indices = @transform_1, window_bounds = array<i64: 256, 3>}, {transform_indices = @transform_2, window_bounds = array<i64: 8, 32>}, {pipeline_mode = #tpu.pipeline_mode<synchronous>, transform_indices = @transform_3, window_bounds = array<i64: 128, 128>}, {pipeline_mode = #tpu.pipeline_mode<synchronous>, transform_indices = @transform_4, window_bounds = array<i64: 3, 128>}, {pipeline_mode = #tpu.pipeline_mode<synchronous>, transform_indices = @transform_5, window_bounds = array<i64: 1, 128>}, {pipeline_mode = #tpu.pipeline_mode<synchronous>, transform_indices = @transform_6, window_bounds = array<i64: 128, 256>}, {pipeline_mode = #tpu.pipeline_mode<synchronous>, transform_indices = @transform_7, window_bounds = array<i64: 1, 256>}, {transform_indices = @transform_8, window_bounds = array<i64: 8, 256>}]} {
    %c0 = arith.constant 0 : index
    %c0_0 = arith.constant 0 : index
    %0 = vector.load %arg1[%c0, %c0_0] : memref<256x128xbf16, #tpu.memory_space<vmem>>, vector<256x128xbf16>
    %c0_1 = arith.constant 0 : index
    %c0_2 = arith.constant 0 : index
    %1 = vector.load %arg4[%c0_1, %c0_2] : memref<128x128xbf16, #tpu.memory_space<vmem>>, vector<128x128xbf16>
    %cst = arith.constant dense<0.000000e+00> : vector<256x128xf32>
    %2 = tpu.matmul %0, %1, %cst {dimension_numbers = #tpu.dot_dimension_numbers<[1], [0], [0], [1], [0, 0, 1, 1], [], []>} : vector<256x128xbf16>, vector<128x128xbf16>, vector<256x128xf32> -> vector<256x128xf32>
    %c0_3 = arith.constant 0 : index
    %c0_4 = arith.constant 0 : index
    %3 = vector.load %arg2[%c0_3, %c0_4] : memref<256x3xbf16, #tpu.memory_space<vmem>>, vector<256x3xbf16>
    %c0_5 = arith.constant 0 : index
    %c0_6 = arith.constant 0 : index
    %4 = vector.load %arg5[%c0_5, %c0_6] : memref<3x128xbf16, #tpu.memory_space<vmem>>, vector<3x128xbf16>
    %cst_7 = arith.constant dense<0.000000e+00> : vector<256x128xf32>
    %5 = tpu.matmul %3, %4, %cst_7 {dimension_numbers = #tpu.dot_dimension_numbers<[1], [0], [0], [1], [0, 0, 1, 1], [], []>} : vector<256x3xbf16>, vector<3x128xbf16>, vector<256x128xf32> -> vector<256x128xf32>
    %6 = arith.addf %2, %5 : vector<256x128xf32>
    %c0_8 = arith.constant 0 : index
    %c0_9 = arith.constant 0 : index
    %7 = vector.load %arg6[%c0_8, %c0_9] : memref<1x128xf32, #tpu.memory_space<vmem>>, vector<1x128xf32>
    %8 = vector.broadcast %7 : vector<1x128xf32> to vector<256x128xf32>
    %9 = arith.addf %6, %8 : vector<256x128xf32>
    %10 = arith.negf %9 : vector<256x128xf32>
    %11 = math.exp %10 : vector<256x128xf32>
    %cst_10 = arith.constant 1.000000e+00 : f32
    %12 = vector.broadcast %cst_10 : f32 to vector<256x128xf32>
    %13 = arith.addf %12, %11 : vector<256x128xf32>
    %14 = arith.divf %12, %13 : vector<256x128xf32>
    %15 = arith.truncf %14 : vector<256x128xf32> to vector<256x128xbf16>
    %c0_11 = arith.constant 0 : index
    %c0_12 = arith.constant 0 : index
    %16 = vector.load %arg7[%c0_11, %c0_12] : memref<128x256xbf16, #tpu.memory_space<vmem>>, vector<128x256xbf16>
    %cst_13 = arith.constant dense<0.000000e+00> : vector<256x256xf32>
    %17 = tpu.matmul %15, %16, %cst_13 {dimension_numbers = #tpu.dot_dimension_numbers<[1], [0], [0], [1], [0, 0, 1, 1], [], []>} : vector<256x128xbf16>, vector<128x256xbf16>, vector<256x256xf32> -> vector<256x256xf32>
    %c0_14 = arith.constant 0 : index
    %c0_15 = arith.constant 0 : index
    %18 = vector.load %arg8[%c0_14, %c0_15] : memref<1x256xf32, #tpu.memory_space<vmem>>, vector<1x256xf32>
    %19 = vector.broadcast %18 : vector<1x256xf32> to vector<256x256xf32>
    %20 = arith.addf %17, %19 : vector<256x256xf32>
    %21 = vector.shape_cast %20 : vector<256x256xf32> to vector<8x32x256xf32>
    %c0_16 = arith.constant 0 : index
    %c0_17 = arith.constant 0 : index
    %22 = vector.load %arg3[%c0_16, %c0_17] : memref<8x32xf32, #tpu.memory_space<vmem>>, vector<8x32xf32>
    %23 = vector.shape_cast %22 : vector<8x32xf32> to vector<8x32x1xf32>
    %24 = vector.broadcast %23 : vector<8x32x1xf32> to vector<8x32x256xf32>
    %25 = arith.addf %21, %24 : vector<8x32x256xf32>
    %cst_18 = arith.constant dense<0xFF800000> : vector<8x256xf32>
    %26 = vector.multi_reduction <maximumf>, %25, %cst_18 [1] : vector<8x32x256xf32> to vector<8x256xf32>
    %cst_19 = arith.constant 0.000000e+00 : f32
    %27 = vector.broadcast %cst_19 : f32 to vector<8x256xf32>
    %28 = arith.maximumf %26, %27 : vector<8x256xf32>
    %c0_20 = arith.constant 0 : index
    %c0_21 = arith.constant 0 : index
    %29 = vector.load %arg9[%c0_20, %c0_21] : memref<8x256xf32, #tpu.memory_space<vmem>>, vector<8x256xf32>
    tpu.vector_store %arg9[%c0_20, %c0_21], %28 {strides = array<i32>} : memref<8x256xf32, #tpu.memory_space<vmem>>, vector<8x256xf32>,
    return
  }
  func.func @transform_0(%arg0: i32) -> (i32, i32) {
    %c0_i32 = arith.constant 0 : i32
    %c0_i32_0 = arith.constant 0 : i32
    return %arg0, %c0_i32 : i32, i32
  }
  func.func @transform_1(%arg0: i32) -> (i32, i32) {
    %c0_i32 = arith.constant 0 : i32
    %c0_i32_0 = arith.constant 0 : i32
    return %arg0, %c0_i32 : i32, i32
  }
  func.func @transform_2(%arg0: i32) -> (i32, i32) {
    %c0_i32 = arith.constant 0 : i32
    %c0_i32_0 = arith.constant 0 : i32
    return %arg0, %c0_i32 : i32, i32
  }
  func.func @transform_3(%arg0: i32) -> (i32, i32) {
    %c0_i32 = arith.constant 0 : i32
    %c0_i32_0 = arith.constant 0 : i32
    %c0_i32_1 = arith.constant 0 : i32
    return %c0_i32, %c0_i32_0 : i32, i32
  }
  func.func @transform_4(%arg0: i32) -> (i32, i32) {
    %c0_i32 = arith.constant 0 : i32
    %c0_i32_0 = arith.constant 0 : i32
    %c0_i32_1 = arith.constant 0 : i32
    return %c0_i32, %c0_i32_0 : i32, i32
  }
  func.func @transform_5(%arg0: i32) -> (i32, i32) {
    %c0_i32 = arith.constant 0 : i32
    %c0_i32_0 = arith.constant 0 : i32
    %c0_i32_1 = arith.constant 0 : i32
    return %c0_i32, %c0_i32_0 : i32, i32
  }
  func.func @transform_6(%arg0: i32) -> (i32, i32) {
    %c0_i32 = arith.constant 0 : i32
    %c0_i32_0 = arith.constant 0 : i32
    %c0_i32_1 = arith.constant 0 : i32
    return %c0_i32, %c0_i32_0 : i32, i32
  }
  func.func @transform_7(%arg0: i32) -> (i32, i32) {
    %c0_i32 = arith.constant 0 : i32
    %c0_i32_0 = arith.constant 0 : i32
    %c0_i32_1 = arith.constant 0 : i32
    return %c0_i32, %c0_i32_0 : i32, i32
  }
  func.func @transform_8(%arg0: i32) -> (i32, i32) {
    %c0_i32 = arith.constant 0 : i32
    %c0_i32_0 = arith.constant 0 : i32
    return %arg0, %c0_i32 : i32, i32
  }
}

module attributes {stable_mosaic.version = 11 : i64} {
  func.func @_global_fc_kernel(%arg0: i32, %arg1: memref<1x4x256xbf16, #tpu.memory_space<vmem>>, %arg2: memref<1x4x3xbf16, #tpu.memory_space<vmem>>, %arg3: memref<256x256xbf16, #tpu.memory_space<vmem>>, %arg4: memref<3x256xbf16, #tpu.memory_space<vmem>>, %arg5: memref<1x256xf32, #tpu.memory_space<vmem>>, %arg6: memref<256x512xbf16, #tpu.memory_space<vmem>>, %arg7: memref<1x512xf32, #tpu.memory_space<vmem>>, %arg8: memref<512x256xbf16, #tpu.memory_space<vmem>>, %arg9: memref<1x256xf32, #tpu.memory_space<vmem>>, %arg10: memref<256x128xbf16, #tpu.memory_space<vmem>>, %arg11: memref<1x128xf32, #tpu.memory_space<vmem>>, %arg12: memref<1x1x128xf32, #tpu.memory_space<vmem>>) attributes {dimension_semantics = [#tpu.dimension_semantics<parallel>], iteration_bounds = array<i64: 2>, scalar_prefetch = 0 : i64, scratch_operands = 0 : i64, tpu.core_type = #tpu.core_type<tc>, window_params = [{transform_indices = @transform_0, window_bounds = array<i64: 1, 4, 256>}, {transform_indices = @transform_1, window_bounds = array<i64: 1, 4, 3>}, {pipeline_mode = #tpu.pipeline_mode<synchronous>, transform_indices = @transform_2, window_bounds = array<i64: 256, 256>}, {pipeline_mode = #tpu.pipeline_mode<synchronous>, transform_indices = @transform_3, window_bounds = array<i64: 3, 256>}, {pipeline_mode = #tpu.pipeline_mode<synchronous>, transform_indices = @transform_4, window_bounds = array<i64: 1, 256>}, {pipeline_mode = #tpu.pipeline_mode<synchronous>, transform_indices = @transform_5, window_bounds = array<i64: 256, 512>}, {pipeline_mode = #tpu.pipeline_mode<synchronous>, transform_indices = @transform_6, window_bounds = array<i64: 1, 512>}, {pipeline_mode = #tpu.pipeline_mode<synchronous>, transform_indices = @transform_7, window_bounds = array<i64: 512, 256>}, {pipeline_mode = #tpu.pipeline_mode<synchronous>, transform_indices = @transform_8, window_bounds = array<i64: 1, 256>}, {pipeline_mode = #tpu.pipeline_mode<synchronous>, transform_indices = @transform_9, window_bounds = array<i64: 256, 128>}, {pipeline_mode = #tpu.pipeline_mode<synchronous>, transform_indices = @transform_10, window_bounds = array<i64: 1, 128>}, {transform_indices = @transform_11, window_bounds = array<i64: 1, 1, 128>}]} {
    %c0 = arith.constant 0 : index
    %c0_0 = arith.constant 0 : index
    %c0_1 = arith.constant 0 : index
    %0 = vector.load %arg1[%c0, %c0_0, %c0_1] : memref<1x4x256xbf16, #tpu.memory_space<vmem>>, vector<1x4x256xbf16>
    %1 = vector.shape_cast %0 : vector<1x4x256xbf16> to vector<4x256xbf16>
    %c0_2 = arith.constant 0 : index
    %c0_3 = arith.constant 0 : index
    %c0_4 = arith.constant 0 : index
    %2 = vector.load %arg2[%c0_2, %c0_3, %c0_4] : memref<1x4x3xbf16, #tpu.memory_space<vmem>>, vector<1x4x3xbf16>
    %3 = vector.shape_cast %2 : vector<1x4x3xbf16> to vector<4x3xbf16>
    %c0_5 = arith.constant 0 : index
    %c0_6 = arith.constant 0 : index
    %4 = vector.load %arg3[%c0_5, %c0_6] : memref<256x256xbf16, #tpu.memory_space<vmem>>, vector<256x256xbf16>
    %cst = arith.constant dense<0.000000e+00> : vector<4x256xf32>
    %5 = tpu.matmul %1, %4, %cst {dimension_numbers = #tpu.dot_dimension_numbers<[1], [0], [0], [1], [0, 0, 1, 1], [], []>} : vector<4x256xbf16>, vector<256x256xbf16>, vector<4x256xf32> -> vector<4x256xf32>
    %c0_7 = arith.constant 0 : index
    %c0_8 = arith.constant 0 : index
    %6 = vector.load %arg4[%c0_7, %c0_8] : memref<3x256xbf16, #tpu.memory_space<vmem>>, vector<3x256xbf16>
    %cst_9 = arith.constant dense<0.000000e+00> : vector<4x256xf32>
    %7 = tpu.matmul %3, %6, %cst_9 {dimension_numbers = #tpu.dot_dimension_numbers<[1], [0], [0], [1], [0, 0, 1, 1], [], []>} : vector<4x3xbf16>, vector<3x256xbf16>, vector<4x256xf32> -> vector<4x256xf32>
    %8 = arith.addf %5, %7 : vector<4x256xf32>
    %c0_10 = arith.constant 0 : index
    %c0_11 = arith.constant 0 : index
    %9 = vector.load %arg5[%c0_10, %c0_11] : memref<1x256xf32, #tpu.memory_space<vmem>>, vector<1x256xf32>
    %10 = vector.broadcast %9 : vector<1x256xf32> to vector<4x256xf32>
    %11 = arith.addf %8, %10 : vector<4x256xf32>
    %12 = arith.negf %11 : vector<4x256xf32>
    %13 = math.exp %12 : vector<4x256xf32>
    %cst_12 = arith.constant 1.000000e+00 : f32
    %14 = vector.broadcast %cst_12 : f32 to vector<4x256xf32>
    %15 = arith.addf %14, %13 : vector<4x256xf32>
    %16 = arith.divf %14, %15 : vector<4x256xf32>
    %17 = arith.truncf %16 : vector<4x256xf32> to vector<4x256xbf16>
    %c0_13 = arith.constant 0 : index
    %c0_14 = arith.constant 0 : index
    %18 = vector.load %arg6[%c0_13, %c0_14] : memref<256x512xbf16, #tpu.memory_space<vmem>>, vector<256x512xbf16>
    %cst_15 = arith.constant dense<0.000000e+00> : vector<4x512xf32>
    %19 = tpu.matmul %17, %18, %cst_15 {dimension_numbers = #tpu.dot_dimension_numbers<[1], [0], [0], [1], [0, 0, 1, 1], [], []>} : vector<4x256xbf16>, vector<256x512xbf16>, vector<4x512xf32> -> vector<4x512xf32>
    %c0_16 = arith.constant 0 : index
    %c0_17 = arith.constant 0 : index
    %20 = vector.load %arg7[%c0_16, %c0_17] : memref<1x512xf32, #tpu.memory_space<vmem>>, vector<1x512xf32>
    %21 = vector.broadcast %20 : vector<1x512xf32> to vector<4x512xf32>
    %22 = arith.addf %19, %21 : vector<4x512xf32>
    %cst_18 = arith.constant 0.000000e+00 : f32
    %23 = vector.broadcast %cst_18 : f32 to vector<4x512xf32>
    %24 = arith.maximumf %22, %23 : vector<4x512xf32>
    %cst_19 = arith.constant dense<0xFF800000> : vector<512xf32>
    %25 = vector.multi_reduction <maximumf>, %24, %cst_19 [0] : vector<4x512xf32> to vector<512xf32>
    %26 = vector.shape_cast %25 : vector<512xf32> to vector<1x512xf32>
    %27 = arith.truncf %26 : vector<1x512xf32> to vector<1x512xbf16>
    %c0_20 = arith.constant 0 : index
    %c0_21 = arith.constant 0 : index
    %28 = vector.load %arg8[%c0_20, %c0_21] : memref<512x256xbf16, #tpu.memory_space<vmem>>, vector<512x256xbf16>
    %cst_22 = arith.constant dense<0.000000e+00> : vector<1x256xf32>
    %29 = tpu.matmul %27, %28, %cst_22 {dimension_numbers = #tpu.dot_dimension_numbers<[1], [0], [0], [1], [0, 0, 1, 1], [], []>} : vector<1x512xbf16>, vector<512x256xbf16>, vector<1x256xf32> -> vector<1x256xf32>
    %c0_23 = arith.constant 0 : index
    %c0_24 = arith.constant 0 : index
    %30 = vector.load %arg9[%c0_23, %c0_24] : memref<1x256xf32, #tpu.memory_space<vmem>>, vector<1x256xf32>
    %31 = arith.addf %29, %30 : vector<1x256xf32>
    %32 = arith.truncf %31 : vector<1x256xf32> to vector<1x256xbf16>
    %c0_25 = arith.constant 0 : index
    %c0_26 = arith.constant 0 : index
    %33 = vector.load %arg10[%c0_25, %c0_26] : memref<256x128xbf16, #tpu.memory_space<vmem>>, vector<256x128xbf16>
    %cst_27 = arith.constant dense<0.000000e+00> : vector<1x128xf32>
    %34 = tpu.matmul %32, %33, %cst_27 {dimension_numbers = #tpu.dot_dimension_numbers<[1], [0], [0], [1], [0, 0, 1, 1], [], []>} : vector<1x256xbf16>, vector<256x128xbf16>, vector<1x128xf32> -> vector<1x128xf32>
    %c0_28 = arith.constant 0 : index
    %c0_29 = arith.constant 0 : index
    %35 = vector.load %arg11[%c0_28, %c0_29] : memref<1x128xf32, #tpu.memory_space<vmem>>, vector<1x128xf32>
    %36 = arith.addf %34, %35 : vector<1x128xf32>
    %cst_30 = arith.constant 0.000000e+00 : f32
    %37 = vector.broadcast %cst_30 : f32 to vector<1x128xf32>
    %38 = arith.maximumf %36, %37 : vector<1x128xf32>
    %39 = vector.shape_cast %38 : vector<1x128xf32> to vector<1x1x128xf32>
    %c0_31 = arith.constant 0 : index
    %c0_32 = arith.constant 0 : index
    %c0_33 = arith.constant 0 : index
    %40 = vector.load %arg12[%c0_31, %c0_32, %c0_33] : memref<1x1x128xf32, #tpu.memory_space<vmem>>, vector<1x1x128xf32>
    tpu.vector_store %arg12[%c0_31, %c0_32, %c0_33], %39 {strides = array<i32>} : memref<1x1x128xf32, #tpu.memory_space<vmem>>, vector<1x1x128xf32>,
    return
  }
  func.func @transform_0(%arg0: i32) -> (i32, i32, i32) {
    %c0_i32 = arith.constant 0 : i32
    %c0_i32_0 = arith.constant 0 : i32
    %c0_i32_1 = arith.constant 0 : i32
    return %arg0, %c0_i32, %c0_i32_0 : i32, i32, i32
  }
  func.func @transform_1(%arg0: i32) -> (i32, i32, i32) {
    %c0_i32 = arith.constant 0 : i32
    %c0_i32_0 = arith.constant 0 : i32
    %c0_i32_1 = arith.constant 0 : i32
    return %arg0, %c0_i32, %c0_i32_0 : i32, i32, i32
  }
  func.func @transform_2(%arg0: i32) -> (i32, i32) {
    %c0_i32 = arith.constant 0 : i32
    %c0_i32_0 = arith.constant 0 : i32
    %c0_i32_1 = arith.constant 0 : i32
    return %c0_i32, %c0_i32_0 : i32, i32
  }
  func.func @transform_3(%arg0: i32) -> (i32, i32) {
    %c0_i32 = arith.constant 0 : i32
    %c0_i32_0 = arith.constant 0 : i32
    %c0_i32_1 = arith.constant 0 : i32
    return %c0_i32, %c0_i32_0 : i32, i32
  }
  func.func @transform_4(%arg0: i32) -> (i32, i32) {
    %c0_i32 = arith.constant 0 : i32
    %c0_i32_0 = arith.constant 0 : i32
    %c0_i32_1 = arith.constant 0 : i32
    return %c0_i32, %c0_i32_0 : i32, i32
  }
  func.func @transform_5(%arg0: i32) -> (i32, i32) {
    %c0_i32 = arith.constant 0 : i32
    %c0_i32_0 = arith.constant 0 : i32
    %c0_i32_1 = arith.constant 0 : i32
    return %c0_i32, %c0_i32_0 : i32, i32
  }
  func.func @transform_6(%arg0: i32) -> (i32, i32) {
    %c0_i32 = arith.constant 0 : i32
    %c0_i32_0 = arith.constant 0 : i32
    %c0_i32_1 = arith.constant 0 : i32
    return %c0_i32, %c0_i32_0 : i32, i32
  }
  func.func @transform_7(%arg0: i32) -> (i32, i32) {
    %c0_i32 = arith.constant 0 : i32
    %c0_i32_0 = arith.constant 0 : i32
    %c0_i32_1 = arith.constant 0 : i32
    return %c0_i32, %c0_i32_0 : i32, i32
  }
  func.func @transform_8(%arg0: i32) -> (i32, i32) {
    %c0_i32 = arith.constant 0 : i32
    %c0_i32_0 = arith.constant 0 : i32
    %c0_i32_1 = arith.constant 0 : i32
    return %c0_i32, %c0_i32_0 : i32, i32
  }
  func.func @transform_9(%arg0: i32) -> (i32, i32) {
    %c0_i32 = arith.constant 0 : i32
    %c0_i32_0 = arith.constant 0 : i32
    %c0_i32_1 = arith.constant 0 : i32
    return %c0_i32, %c0_i32_0 : i32, i32
  }
  func.func @transform_10(%arg0: i32) -> (i32, i32) {
    %c0_i32 = arith.constant 0 : i32
    %c0_i32_0 = arith.constant 0 : i32
    %c0_i32_1 = arith.constant 0 : i32
    return %c0_i32, %c0_i32_0 : i32, i32
  }
  func.func @transform_11(%arg0: i32) -> (i32, i32, i32) {
    %c0_i32 = arith.constant 0 : i32
    %c0_i32_0 = arith.constant 0 : i32
    %c0_i32_1 = arith.constant 0 : i32
    return %arg0, %c0_i32, %c0_i32_0 : i32, i32, i32
  }
}

</mosaic_0001>

<llo_original>
// kernel: feature_model_v3_forward.4
$region0: #{feature_model_v3_forward.4}
  #allocation0 [shape = 'u32[]', space=smem, size = 0x4, offset = 0x4, fixed_abs, tag = 'smem constant byte address 0x4 - core index']
  #allocation1 [shape = 'u32[144,128]{1,0:T(1,128)}', space=vmem, size = 0x12000, scoped, tag = 'internal scratch']
  %s0 = inlined_call_operand.vmem [shape: bf16[256,128], index: 0, kind: input, shape index: {}]
  %s1 = inlined_call_operand.vmem [shape: bf16[256,3], index: 1, kind: input, shape index: {}]
  %s2 = inlined_call_operand.vmem [shape: f32[8,32], index: 2, kind: input, shape index: {}]
  %s3 = inlined_call_operand.vmem [shape: bf16[128,128], index: 3, kind: input, shape index: {}]
  %s4 = inlined_call_operand.vmem [shape: bf16[3,128], index: 4, kind: input, shape index: {}]
  %s5 = inlined_call_operand.vmem [shape: f32[1,128], index: 5, kind: input, shape index: {}]
  %s6 = inlined_call_operand.vmem [shape: bf16[128,256], index: 6, kind: input, shape index: {}]
  %s7 = inlined_call_operand.vmem [shape: f32[1,256], index: 7, kind: input, shape index: {}]
  %s8 = inlined_call_operand.vmem [shape: f32[8,256], index: 8, kind: output, shape index: {}]
  %s9 = sld [smem:[#allocation0]]
  $region42: #{feature_model_v3_forward.4} parent=0
    _
  %s11 = ssub.s32 1, %s9
  %s12 = scalar_select 0, %s11, %s9
  // Predicated region
  $region2: #{feature_model_v3_forward.4} parent=0 // pred_check
    _
  $region3: #{feature_model_v3_forward.4} parent=0 // pred_check_branch
    %14 = sbr.rel (0) target = $region5
  $region4: #{feature_model_v3_forward.4} parent=0 // pred_region
    _
  $region5: #{feature_model_v3_forward.4} parent=0 // pred_fallthru
    _
  // Predicated region
  $region6: #{feature_model_v3_forward.4} parent=0 // pred_check
    _
  $region7: #{feature_model_v3_forward.4} parent=0 // pred_check_branch
    %16 = sbr.rel (0) target = $region9
  $region8: #{feature_model_v3_forward.4} parent=0 // pred_region
    _
  $region9: #{feature_model_v3_forward.4} parent=0 // pred_fallthru
    _
  // Predicated region
  $region10: #{feature_model_v3_forward.4} parent=0 // pred_check
    _
  $region11: #{feature_model_v3_forward.4} parent=0 // pred_check_branch
    %18 = sbr.rel (0) target = $region13
  $region12: #{feature_model_v3_forward.4} parent=0 // pred_region
    _
  $region13: #{feature_model_v3_forward.4} parent=0 // pred_fallthru
    _
  // Predicated region
  $region14: #{feature_model_v3_forward.4} parent=0 // pred_check
    _
  $region15: #{feature_model_v3_forward.4} parent=0 // pred_check_branch
    %20 = sbr.rel (0) target = $region17
  $region16: #{feature_model_v3_forward.4} parent=0 // pred_region
    _
  $region17: #{feature_model_v3_forward.4} parent=0 // pred_fallthru
    _
  // Predicated region
  $region18: #{feature_model_v3_forward.4} parent=0 // pred_check
    _
  $region19: #{feature_model_v3_forward.4} parent=0 // pred_check_branch
    %22 = sbr.rel (0) target = $region21
  $region20: #{feature_model_v3_forward.4} parent=0 // pred_region
    _
  $region21: #{feature_model_v3_forward.4} parent=0 // pred_fallthru
    _
  // Predicated region
  $region22: #{feature_model_v3_forward.4} parent=0 // pred_check
    _
  $region23: #{feature_model_v3_forward.4} parent=0 // pred_check_branch
    %24 = sbr.rel (0) target = $region25
  $region24: #{feature_model_v3_forward.4} parent=0 // pred_region
    _
  $region25: #{feature_model_v3_forward.4} parent=0 // pred_fallthru
    _
  // Predicated region
  $region26: #{feature_model_v3_forward.4} parent=0 // pred_check
    _
  $region27: #{feature_model_v3_forward.4} parent=0 // pred_check_branch
    %26 = sbr.rel (0) target = $region29
  $region28: #{feature_model_v3_forward.4} parent=0 // pred_region
    _
  $region29: #{feature_model_v3_forward.4} parent=0 // pred_fallthru
    _
  // Predicated region
  $region30: #{feature_model_v3_forward.4} parent=0 // pred_check
    _
  $region31: #{feature_model_v3_forward.4} parent=0 // pred_check_branch
    %28 = sbr.rel (0) target = $region33
  $region32: #{feature_model_v3_forward.4} parent=0 // pred_region
    _
  $region33: #{feature_model_v3_forward.4} parent=0 // pred_fallthru
    _
  %v30 = vld [vmem:[%s0] sm:$0xf]
  %v31 = vld [vmem:[%s0 + $0x4] sm:$0xf]
  %v32 = vld [vmem:[%s0 + $0x8] sm:$0xf]
  %v33 = vld [vmem:[%s0 + $0xc] sm:$0xf]
  %v34 = vld [vmem:[%s0 + $0x10] sm:$0xf]
  %v35 = vld [vmem:[%s0 + $0x14] sm:$0xf]
  %v36 = vld [vmem:[%s0 + $0x18] sm:$0xf]
  %v37 = vld [vmem:[%s0 + $0x1c] sm:$0xf]
  %v38 = vld [vmem:[%s0 + $0x20] sm:$0xf]
  %v39 = vld [vmem:[%s0 + $0x24] sm:$0xf]
  %v40 = vld [vmem:[%s0 + $0x28] sm:$0xf]
  %v41 = vld [vmem:[%s0 + $0x2c] sm:$0xf]
  %v42 = vld [vmem:[%s0 + $0x30] sm:$0xf]
  %v43 = vld [vmem:[%s0 + $0x34] sm:$0xf]
  %v44 = vld [vmem:[%s0 + $0x38] sm:$0xf]
  %v45 = vld [vmem:[%s0 + $0x3c] sm:$0xf]
  %v46 = vld [vmem:[%s0 + $0x40] sm:$0xf]
  %v47 = vld [vmem:[%s0 + $0x44] sm:$0xf]
  %v48 = vld [vmem:[%s0 + $0x48] sm:$0xf]
  %v49 = vld [vmem:[%s0 + $0x4c] sm:$0xf]
  %v50 = vld [vmem:[%s0 + $0x50] sm:$0xf]
  %v51 = vld [vmem:[%s0 + $0x54] sm:$0xf]
  %v52 = vld [vmem:[%s0 + $0x58] sm:$0xf]
  %v53 = vld [vmem:[%s0 + $0x5c] sm:$0xf]
  %v54 = vld [vmem:[%s0 + $0x60] sm:$0xf]
  %v55 = vld [vmem:[%s0 + $0x64] sm:$0xf]
  %v56 = vld [vmem:[%s0 + $0x68] sm:$0xf]
  %v57 = vld [vmem:[%s0 + $0x6c] sm:$0xf]
  %v58 = vld [vmem:[%s0 + $0x70] sm:$0xf]
  %v59 = vld [vmem:[%s0 + $0x74] sm:$0xf]
  %v60 = vld [vmem:[%s0 + $0x78] sm:$0xf]
  %v61 = vld [vmem:[%s0 + $0x7c] sm:$0xf]
  %v62 = vld [vmem:[%s3] sm:$0xf]
  %v63 = vld [vmem:[%s3 + $0x4] sm:$0xf]
  %v64 = vld [vmem:[%s3 + $0x8] sm:$0xf]
  %v65 = vld [vmem:[%s3 + $0xc] sm:$0xf]
  %v66 = vld [vmem:[%s3 + $0x10] sm:$0xf]
  %v67 = vld [vmem:[%s3 + $0x14] sm:$0xf]
  %v68 = vld [vmem:[%s3 + $0x18] sm:$0xf]
  %v69 = vld [vmem:[%s3 + $0x1c] sm:$0xf]
  %v70 = vld [vmem:[%s3 + $0x20] sm:$0xf]
  %v71 = vld [vmem:[%s3 + $0x24] sm:$0xf]
  %v72 = vld [vmem:[%s3 + $0x28] sm:$0xf]
  %v73 = vld [vmem:[%s3 + $0x2c] sm:$0xf]
  %v74 = vld [vmem:[%s3 + $0x30] sm:$0xf]
  %v75 = vld [vmem:[%s3 + $0x34] sm:$0xf]
  %v76 = vld [vmem:[%s3 + $0x38] sm:$0xf]
  %v77 = vld [vmem:[%s3 + $0x3c] sm:$0xf]
  %v78 = vld [vmem:[%s1] sm:$0xf]
  %v79 = vld [vmem:[%s1 + $0x4] sm:$0xf]
  %v80 = vld [vmem:[%s1 + $0x8] sm:$0xf]
  %v81 = vld [vmem:[%s1 + $0xc] sm:$0xf]
  %v82 = vld [vmem:[%s1 + $0x10] sm:$0xf]
  %v83 = vld [vmem:[%s1 + $0x14] sm:$0xf]
  %v84 = vld [vmem:[%s1 + $0x18] sm:$0xf]
  %v85 = vld [vmem:[%s1 + $0x1c] sm:$0xf]
  %v86 = vld [vmem:[%s1 + $0x20] sm:$0xf]
  %v87 = vld [vmem:[%s1 + $0x24] sm:$0xf]
  %v88 = vld [vmem:[%s1 + $0x28] sm:$0xf]
  %v89 = vld [vmem:[%s1 + $0x2c] sm:$0xf]
  %v90 = vld [vmem:[%s1 + $0x30] sm:$0xf]
  %v91 = vld [vmem:[%s1 + $0x34] sm:$0xf]
  %v92 = vld [vmem:[%s1 + $0x38] sm:$0xf]
  %v93 = vld [vmem:[%s1 + $0x3c] sm:$0xf]
  %v94 = vld [vmem:[%s1 + $0x40] sm:$0xf]
  %v95 = vld [vmem:[%s1 + $0x44] sm:$0xf]
  %v96 = vld [vmem:[%s1 + $0x48] sm:$0xf]
  %v97 = vld [vmem:[%s1 + $0x4c] sm:$0xf]
  %v98 = vld [vmem:[%s1 + $0x50] sm:$0xf]
  %v99 = vld [vmem:[%s1 + $0x54] sm:$0xf]
  %v100 = vld [vmem:[%s1 + $0x58] sm:$0xf]
  %v101 = vld [vmem:[%s1 + $0x5c] sm:$0xf]
  %v102 = vld [vmem:[%s1 + $0x60] sm:$0xf]
  %v103 = vld [vmem:[%s1 + $0x64] sm:$0xf]
  %v104 = vld [vmem:[%s1 + $0x68] sm:$0xf]
  %v105 = vld [vmem:[%s1 + $0x6c] sm:$0xf]
  %v106 = vld [vmem:[%s1 + $0x70] sm:$0xf]
  %v107 = vld [vmem:[%s1 + $0x74] sm:$0xf]
  %v108 = vld [vmem:[%s1 + $0x78] sm:$0xf]
  %v109 = vld [vmem:[%s1 + $0x7c] sm:$0xf]
  %v110 = vld [vmem:[%s4] sm:$0x3]
  %v143 = vunpack.c.l.b16 %v78
  %v144 = vunpack.c.l.b16 %v79
  %v145 = vunpack.c.l.b16 %v80
  %v146 = vunpack.c.l.b16 %v81
  %v147 = vunpack.c.l.b16 %v82
  %v148 = vunpack.c.l.b16 %v83
  %v149 = vunpack.c.l.b16 %v84
  %v150 = vunpack.c.l.b16 %v85
  %v151 = vunpack.c.l.b16 %v86
  %v152 = vunpack.c.l.b16 %v87
  %v153 = vunpack.c.l.b16 %v88
  %v154 = vunpack.c.l.b16 %v89
  %v155 = vunpack.c.l.b16 %v90
  %v156 = vunpack.c.l.b16 %v91
  %v157 = vunpack.c.l.b16 %v92
  %v158 = vunpack.c.l.b16 %v93
  %v159 = vunpack.c.l.b16 %v94
  %v160 = vunpack.c.l.b16 %v95
  %v161 = vunpack.c.l.b16 %v96
  %v162 = vunpack.c.l.b16 %v97
  %v163 = vunpack.c.l.b16 %v98
  %v164 = vunpack.c.l.b16 %v99
  %v165 = vunpack.c.l.b16 %v100
  %v166 = vunpack.c.l.b16 %v101
  %v167 = vunpack.c.l.b16 %v102
  %v168 = vunpack.c.l.b16 %v103
  %v169 = vunpack.c.l.b16 %v104
  %v170 = vunpack.c.l.b16 %v105
  %v171 = vunpack.c.l.b16 %v106
  %v172 = vunpack.c.l.b16 %v107
  %v173 = vunpack.c.l.b16 %v108
  %v174 = vunpack.c.l.b16 %v109
  %v175 = vpack.c.b16 %v144, %v143
  %v176 = vpack.c.b16 %v146, %v145
  %v177 = vpack.c.b16 %v148, %v147
  %v178 = vpack.c.b16 %v150, %v149
  %v179 = vpack.c.b16 %v152, %v151
  %v180 = vpack.c.b16 %v154, %v153
  %v181 = vpack.c.b16 %v156, %v155
  %v182 = vpack.c.b16 %v158, %v157
  %v183 = vpack.c.b16 %v160, %v159
  %v184 = vpack.c.b16 %v162, %v161
  %v185 = vpack.c.b16 %v164, %v163
  %v186 = vpack.c.b16 %v166, %v165
  %v187 = vpack.c.b16 %v168, %v167
  %v188 = vpack.c.b16 %v170, %v169
  %v189 = vpack.c.b16 %v172, %v171
  %v190 = vpack.c.b16 %v174, %v173
  %vm191 = vcmask 23552
  %v193 = vsel %vm191, %v175, 0
  %v196 = vsel %vm191, %v176, 0
  %v199 = vsel %vm191, %v177, 0
  %v202 = vsel %vm191, %v178, 0
  %v205 = vsel %vm191, %v179, 0
  %v208 = vsel %vm191, %v180, 0
  %v211 = vsel %vm191, %v181, 0
  %v214 = vsel %vm191, %v182, 0
  %v217 = vsel %vm191, %v183, 0
  %v220 = vsel %vm191, %v184, 0
  %v223 = vsel %vm191, %v185, 0
  %v226 = vsel %vm191, %v186, 0
  %v229 = vsel %vm191, %v187, 0
  %v232 = vsel %vm191, %v188, 0
  %v235 = vsel %vm191, %v189, 0
  %v238 = vsel %vm191, %v190, 0
  %vm240 = vcmask 1040384
  %vm241 = vcmask 1041408
  %v242 = vsel %vm240, 4294967295, 65535
  %v243 = vsel %vm241, %v242, 0
  %v245 = vand.u32 %v110, %v243
  %247 = vmatprep.subr.bf16.mxu0 0
  %248 = vmatpush1.bf16.msra.mxu0 %v245
  %249 = vmatprep.subr.bf16.mxu0 0
  %250 = vmatpush1.bf16.msra.mxu0 0
  %251 = vmatprep.subr.bf16.mxu0 0
  %252 = vmatpush1.bf16.msra.mxu0 0
  %253 = vmatprep.subr.bf16.mxu0 0
  %254 = vmatpush1.bf16.msra.mxu0 0
  %255 = vmatprep.subr.bf16.mxu0 0
  %256 = vmatpush1.bf16.msra.mxu0 0
  %257 = vmatprep.subr.bf16.mxu0 0
  %258 = vmatpush1.bf16.msra.mxu0 0
  %259 = vmatprep.subr.bf16.mxu0 0
  %260 = vmatpush1.bf16.msra.mxu0 0
  %261 = vmatprep.subr.bf16.mxu0 0
  %262 = vmatpush1.bf16.msra.mxu0 0
  %263 = vmatprep.subr.bf16.mxu0 0
  %264 = vmatpush1.bf16.msra.mxu0 0
  %265 = vmatprep.subr.bf16.mxu0 0
  %266 = vmatpush1.bf16.msra.mxu0 0
  %267 = vmatprep.subr.bf16.mxu0 0
  %268 = vmatpush1.bf16.msra.mxu0 0
  %269 = vmatprep.subr.bf16.mxu0 0
  %270 = vmatpush1.bf16.msra.mxu0 0
  %271 = vmatprep.subr.bf16.mxu0 0
  %272 = vmatpush1.bf16.msra.mxu0 0
  %273 = vmatprep.subr.bf16.mxu0 0
  %274 = vmatpush1.bf16.msra.mxu0 0
  %275 = vmatprep.subr.bf16.mxu0 0
  %276 = vmatpush1.bf16.msra.mxu0 0
  %277 = vmatprep.subr.bf16.mxu0 0
  %278 = vmatpush1.bf16.msra.mxu0 0
  %279 = vmatprep.mubr.bf16.mxu0 0
  %280 = vmatmul.mubr.bf16.gmra.mrb[0].mxu0 %v193
  %v281 = vpop.f32.mrb[0].mxu0
  %v282 = vadd.f32 0.0, %v281
  %v283 = vpop.f32.mrb[0].mxu0
  %v284 = vpop.f32.mrb[0].mxu0
  %v285 = vadd.f32 0.0, %v284
  %v286 = vpop.f32.mrb[0].mxu0
  %287 = vmatprep.mubr.bf16.mxu0 0
  %288 = vmatmul.mubr.bf16.gmra.mrb[0].mxu0 %v196
  %v289 = vpop.f32.mrb[0].mxu0
  %v290 = vadd.f32 0.0, %v289
  %v291 = vpop.f32.mrb[0].mxu0
  %v292 = vpop.f32.mrb[0].mxu0
  %v293 = vadd.f32 0.0, %v292
  %v294 = vpop.f32.mrb[0].mxu0
  %295 = vmatprep.mubr.bf16.mxu0 0
  %296 = vmatmul.mubr.bf16.gmra.mrb[0].mxu0 %v199
  %v297 = vpop.f32.mrb[0].mxu0
  %v298 = vadd.f32 0.0, %v297
  %v299 = vpop.f32.mrb[0].mxu0
  %v300 = vpop.f32.mrb[0].mxu0
  %v301 = vadd.f32 0.0, %v300
  %v302 = vpop.f32.mrb[0].mxu0
  %303 = vmatprep.mubr.bf16.mxu0 0
  %304 = vmatmul.mubr.bf16.gmra.mrb[0].mxu0 %v202
  %v305 = vpop.f32.mrb[0].mxu0
  %v306 = vadd.f32 0.0, %v305
  %v307 = vpop.f32.mrb[0].mxu0
  %v308 = vpop.f32.mrb[0].mxu0
  %v309 = vadd.f32 0.0, %v308
  %v310 = vpop.f32.mrb[0].mxu0
  %311 = vmatprep.mubr.bf16.mxu0 0
  %312 = vmatmul.mubr.bf16.gmra.mrb[0].mxu0 %v205
  %v313 = vpop.f32.mrb[0].mxu0
  %v314 = vadd.f32 0.0, %v313
  %v315 = vpop.f32.mrb[0].mxu0
  %v316 = vpop.f32.mrb[0].mxu0
  %v317 = vadd.f32 0.0, %v316
  %v318 = vpop.f32.mrb[0].mxu0
  %319 = vmatprep.mubr.bf16.mxu0 0
  %320 = vmatmul.mubr.bf16.gmra.mrb[0].mxu0 %v208
  %v321 = vpop.f32.mrb[0].mxu0
  %v322 = vadd.f32 0.0, %v321
  %v323 = vpop.f32.mrb[0].mxu0
  %v324 = vpop.f32.mrb[0].mxu0
  %v325 = vadd.f32 0.0, %v324
  %v326 = vpop.f32.mrb[0].mxu0
  %327 = vmatprep.mubr.bf16.mxu0 0
  %328 = vmatmul.mubr.bf16.gmra.mrb[0].mxu0 %v211
  %v329 = vpop.f32.mrb[0].mxu0
  %v330 = vadd.f32 0.0, %v329
  %v331 = vpop.f32.mrb[0].mxu0
  %v332 = vpop.f32.mrb[0].mxu0
  %v333 = vadd.f32 0.0, %v332
  %v334 = vpop.f32.mrb[0].mxu0
  %335 = vmatprep.mubr.bf16.mxu0 0
  %336 = vmatmul.mubr.bf16.gmra.mrb[0].mxu0 %v214
  %v337 = vpop.f32.mrb[0].mxu0
  %v338 = vadd.f32 0.0, %v337
  %v339 = vpop.f32.mrb[0].mxu0
  %v340 = vpop.f32.mrb[0].mxu0
  %v341 = vadd.f32 0.0, %v340
  %v342 = vpop.f32.mrb[0].mxu0
  %343 = vmatprep.mubr.bf16.mxu0 0
  %344 = vmatmul.mubr.bf16.gmra.mrb[0].mxu0 %v217
  %v345 = vpop.f32.mrb[0].mxu0
  %v346 = vadd.f32 0.0, %v345
  %v347 = vpop.f32.mrb[0].mxu0
  %v348 = vpop.f32.mrb[0].mxu0
  %v349 = vadd.f32 0.0, %v348
  %v350 = vpop.f32.mrb[0].mxu0
  %351 = vmatprep.mubr.bf16.mxu0 0
  %352 = vmatmul.mubr.bf16.gmra.mrb[0].mxu0 %v220
  %v353 = vpop.f32.mrb[0].mxu0
  %v354 = vadd.f32 0.0, %v353
  %v355 = vpop.f32.mrb[0].mxu0
  %v356 = vpop.f32.mrb[0].mxu0
  %v357 = vadd.f32 0.0, %v356
  %v358 = vpop.f32.mrb[0].mxu0
  %359 = vmatprep.mubr.bf16.mxu0 0
  %360 = vmatmul.mubr.bf16.gmra.mrb[0].mxu0 %v223
  %v361 = vpop.f32.mrb[0].mxu0
  %v362 = vadd.f32 0.0, %v361
  %v363 = vpop.f32.mrb[0].mxu0
  %v364 = vpop.f32.mrb[0].mxu0
  %v365 = vadd.f32 0.0, %v364
  %v366 = vpop.f32.mrb[0].mxu0
  %367 = vmatprep.mubr.bf16.mxu0 0
  %368 = vmatmul.mubr.bf16.gmra.mrb[0].mxu0 %v226
  %v369 = vpop.f32.mrb[0].mxu0
  %v370 = vadd.f32 0.0, %v369
  %v371 = vpop.f32.mrb[0].mxu0
  %v372 = vpop.f32.mrb[0].mxu0
  %v373 = vadd.f32 0.0, %v372
  %v374 = vpop.f32.mrb[0].mxu0
  %375 = vmatprep.mubr.bf16.mxu0 0
  %376 = vmatmul.mubr.bf16.gmra.mrb[0].mxu0 %v229
  %v377 = vpop.f32.mrb[0].mxu0
  %v378 = vadd.f32 0.0, %v377
  %v379 = vpop.f32.mrb[0].mxu0
  %v380 = vpop.f32.mrb[0].mxu0
  %v381 = vadd.f32 0.0, %v380
  %v382 = vpop.f32.mrb[0].mxu0
  %383 = vmatprep.mubr.bf16.mxu0 0
  %384 = vmatmul.mubr.bf16.gmra.mrb[0].mxu0 %v232
  %v385 = vpop.f32.mrb[0].mxu0
  %v386 = vadd.f32 0.0, %v385
  %v387 = vpop.f32.mrb[0].mxu0
  %v388 = vpop.f32.mrb[0].mxu0
  %v389 = vadd.f32 0.0, %v388
  %v390 = vpop.f32.mrb[0].mxu0
  %391 = vmatprep.mubr.bf16.mxu0 0
  %392 = vmatmul.mubr.bf16.gmra.mrb[0].mxu0 %v235
  %v393 = vpop.f32.mrb[0].mxu0
  %v394 = vadd.f32 0.0, %v393
  %v395 = vpop.f32.mrb[0].mxu0
  %v396 = vpop.f32.mrb[0].mxu0
  %v397 = vadd.f32 0.0, %v396
  %v398 = vpop.f32.mrb[0].mxu0
  %399 = vmatprep.mubr.bf16.mxu0 0
  %400 = vmatmul.mubr.bf16.gmra.mrb[0].mxu0 %v238
  %v401 = vpop.f32.mrb[0].mxu0
  %v402 = vadd.f32 0.0, %v401
  %v403 = vpop.f32.mrb[0].mxu0
  %v404 = vpop.f32.mrb[0].mxu0
  %v405 = vadd.f32 0.0, %v404
  %v406 = vpop.f32.mrb[0].mxu0
  %407 = vdwg.mxu0
  %v440 = vunpack.c.l.b16 %v30
  %v441 = vunpack.c.l.b16 %v31
  %v442 = vunpack.c.l.b16 %v32
  %v443 = vunpack.c.l.b16 %v33
  %v444 = vunpack.c.l.b16 %v34
  %v445 = vunpack.c.l.b16 %v35
  %v446 = vunpack.c.l.b16 %v36
  %v447 = vunpack.c.l.b16 %v37
  %v448 = vunpack.c.l.b16 %v38
  %v449 = vunpack.c.l.b16 %v39
  %v450 = vunpack.c.l.b16 %v40
  %v451 = vunpack.c.l.b16 %v41
  %v452 = vunpack.c.l.b16 %v42
  %v453 = vunpack.c.l.b16 %v43
  %v454 = vunpack.c.l.b16 %v44
  %v455 = vunpack.c.l.b16 %v45
  %v456 = vunpack.c.l.b16 %v46
  %v457 = vunpack.c.l.b16 %v47
  %v458 = vunpack.c.l.b16 %v48
  %v459 = vunpack.c.l.b16 %v49
  %v460 = vunpack.c.l.b16 %v50
  %v461 = vunpack.c.l.b16 %v51
  %v462 = vunpack.c.l.b16 %v52
  %v463 = vunpack.c.l.b16 %v53
  %v464 = vunpack.c.l.b16 %v54
  %v465 = vunpack.c.l.b16 %v55
  %v466 = vunpack.c.l.b16 %v56
  %v467 = vunpack.c.l.b16 %v57
  %v468 = vunpack.c.l.b16 %v58
  %v469 = vunpack.c.l.b16 %v59
  %v470 = vunpack.c.l.b16 %v60
  %v471 = vunpack.c.l.b16 %v61
  %v472 = vpack.c.b16 %v441, %v440
  %v473 = vpack.c.b16 %v443, %v442
  %v474 = vpack.c.b16 %v445, %v444
  %v475 = vpack.c.b16 %v447, %v446
  %v476 = vpack.c.b16 %v449, %v448
  %v477 = vpack.c.b16 %v451, %v450
  %v478 = vpack.c.b16 %v453, %v452
  %v479 = vpack.c.b16 %v455, %v454
  %v480 = vpack.c.b16 %v457, %v456
  %v481 = vpack.c.b16 %v459, %v458
  %v482 = vpack.c.b16 %v461, %v460
  %v483 = vpack.c.b16 %v463, %v462
  %v484 = vpack.c.b16 %v465, %v464
  %v485 = vpack.c.b16 %v467, %v466
  %v486 = vpack.c.b16 %v469, %v468
  %v487 = vpack.c.b16 %v471, %v470
  %v520 = vunpack.c.l.b16 %v62
  %v521 = vunpack.c.l.b16 %v63
  %v522 = vunpack.c.l.b16 %v64
  %v523 = vunpack.c.l.b16 %v65
  %v524 = vunpack.c.l.b16 %v66
  %v525 = vunpack.c.l.b16 %v67
  %v526 = vunpack.c.l.b16 %v68
  %v527 = vunpack.c.l.b16 %v69
  %v528 = vunpack.c.l.b16 %v70
  %v529 = vunpack.c.l.b16 %v71
  %v530 = vunpack.c.l.b16 %v72
  %v531 = vunpack.c.l.b16 %v73
  %v532 = vunpack.c.l.b16 %v74
  %v533 = vunpack.c.l.b16 %v75
  %v534 = vunpack.c.l.b16 %v76
  %v535 = vunpack.c.l.b16 %v77
  %v536 = vpack.c.b16 %v521, %v520
  %v537 = vpack.c.b16 %v523, %v522
  %v538 = vpack.c.b16 %v525, %v524
  %v539 = vpack.c.b16 %v527, %v526
  %v540 = vpack.c.b16 %v529, %v528
  %v541 = vpack.c.b16 %v531, %v530
  %v542 = vpack.c.b16 %v533, %v532
  %v543 = vpack.c.b16 %v535, %v534
  %552 = vmatprep.subr.bf16.mxu0 0
  %553 = vmatpush1.bf16.msra.mxu0 %v536
  %554 = vmatprep.subr.bf16.mxu0 0
  %555 = vmatpush1.bf16.msra.mxu0 %v537
  %556 = vmatprep.subr.bf16.mxu0 0
  %557 = vmatpush1.bf16.msra.mxu0 %v538
  %558 = vmatprep.subr.bf16.mxu0 0
  %559 = vmatpush1.bf16.msra.mxu0 %v539
  %560 = vmatprep.subr.bf16.mxu0 0
  %561 = vmatpush1.bf16.msra.mxu0 %v540
  %562 = vmatprep.subr.bf16.mxu0 0
  %563 = vmatpush1.bf16.msra.mxu0 %v541
  %564 = vmatprep.subr.bf16.mxu0 0
  %565 = vmatpush1.bf16.msra.mxu0 %v542
  %566 = vmatprep.subr.bf16.mxu0 0
  %567 = vmatpush1.bf16.msra.mxu0 %v543
  %568 = vmatprep.subr.bf16.mxu0 0
  %569 = vmatpush1.bf16.msra.mxu0 0
  %570 = vmatprep.subr.bf16.mxu0 0
  %571 = vmatpush1.bf16.msra.mxu0 0
  %572 = vmatprep.subr.bf16.mxu0 0
  %573 = vmatpush1.bf16.msra.mxu0 0
  %574 = vmatprep.subr.bf16.mxu0 0
  %575 = vmatpush1.bf16.msra.mxu0 0
  %576 = vmatprep.subr.bf16.mxu0 0
  %577 = vmatpush1.bf16.msra.mxu0 0
  %578 = vmatprep.subr.bf16.mxu0 0
  %579 = vmatpush1.bf16.msra.mxu0 0
  %580 = vmatprep.subr.bf16.mxu0 0
  %581 = vmatpush1.bf16.msra.mxu0 0
  %582 = vmatprep.subr.bf16.mxu0 0
  %583 = vmatpush1.bf16.msra.mxu0 0
  %584 = vmatprep.mubr.bf16.mxu0 0
  %585 = vmatmul.mubr.bf16.gmra.mrb[0].mxu0 %v472
  %v586 = vpop.f32.mrb[0].mxu0
  %v587 = vadd.f32 %v282, %v586
  %v588 = vpop.f32.mrb[0].mxu0
  %v589 = vpop.f32.mrb[0].mxu0
  %v590 = vadd.f32 %v285, %v589
  %v591 = vpop.f32.mrb[0].mxu0
  %592 = vmatprep.mubr.bf16.mxu0 0
  %593 = vmatmul.mubr.bf16.gmra.mrb[0].mxu0 %v473
  %v594 = vpop.f32.mrb[0].mxu0
  %v595 = vadd.f32 %v290, %v594
  %v596 = vpop.f32.mrb[0].mxu0
  %v597 = vpop.f32.mrb[0].mxu0
  %v598 = vadd.f32 %v293, %v597
  %v599 = vpop.f32.mrb[0].mxu0
  %600 = vmatprep.mubr.bf16.mxu0 0
  %601 = vmatmul.mubr.bf16.gmra.mrb[0].mxu0 %v474
  %v602 = vpop.f32.mrb[0].mxu0
  %v603 = vadd.f32 %v298, %v602
  %v604 = vpop.f32.mrb[0].mxu0
  %v605 = vpop.f32.mrb[0].mxu0
  %v606 = vadd.f32 %v301, %v605
  %v607 = vpop.f32.mrb[0].mxu0
  %608 = vmatprep.mubr.bf16.mxu0 0
  %609 = vmatmul.mubr.bf16.gmra.mrb[0].mxu0 %v475
  %v610 = vpop.f32.mrb[0].mxu0
  %v611 = vadd.f32 %v306, %v610
  %v612 = vpop.f32.mrb[0].mxu0
  %v613 = vpop.f32.mrb[0].mxu0
  %v614 = vadd.f32 %v309, %v613
  %v615 = vpop.f32.mrb[0].mxu0
  %616 = vmatprep.mubr.bf16.mxu0 0
  %617 = vmatmul.mubr.bf16.gmra.mrb[0].mxu0 %v476
  %v618 = vpop.f32.mrb[0].mxu0
  %v619 = vadd.f32 %v314, %v618
  %v620 = vpop.f32.mrb[0].mxu0
  %v621 = vpop.f32.mrb[0].mxu0
  %v622 = vadd.f32 %v317, %v621
  %v623 = vpop.f32.mrb[0].mxu0
  %624 = vmatprep.mubr.bf16.mxu0 0
  %625 = vmatmul.mubr.bf16.gmra.mrb[0].mxu0 %v477
  %v626 = vpop.f32.mrb[0].mxu0
  %v627 = vadd.f32 %v322, %v626
  %v628 = vpop.f32.mrb[0].mxu0
  %v629 = vpop.f32.mrb[0].mxu0
  %v630 = vadd.f32 %v325, %v629
  %v631 = vpop.f32.mrb[0].mxu0
  %632 = vmatprep.mubr.bf16.mxu0 0
  %633 = vmatmul.mubr.bf16.gmra.mrb[0].mxu0 %v478
  %v634 = vpop.f32.mrb[0].mxu0
  %v635 = vadd.f32 %v330, %v634
  %v636 = vpop.f32.mrb[0].mxu0
  %v637 = vpop.f32.mrb[0].mxu0
  %v638 = vadd.f32 %v333, %v637
  %v639 = vpop.f32.mrb[0].mxu0
  %640 = vmatprep.mubr.bf16.mxu0 0
  %641 = vmatmul.mubr.bf16.gmra.mrb[0].mxu0 %v479
  %v642 = vpop.f32.mrb[0].mxu0
  %v643 = vadd.f32 %v338, %v642
  %v644 = vpop.f32.mrb[0].mxu0
  %v645 = vpop.f32.mrb[0].mxu0
  %v646 = vadd.f32 %v341, %v645
  %v647 = vpop.f32.mrb[0].mxu0
  %648 = vmatprep.mubr.bf16.mxu0 0
  %649 = vmatmul.mubr.bf16.gmra.mrb[0].mxu0 %v480
  %v650 = vpop.f32.mrb[0].mxu0
  %v651 = vadd.f32 %v346, %v650
  %v652 = vpop.f32.mrb[0].mxu0
  %v653 = vpop.f32.mrb[0].mxu0
  %v654 = vadd.f32 %v349, %v653
  %v655 = vpop.f32.mrb[0].mxu0
  %656 = vmatprep.mubr.bf16.mxu0 0
  %657 = vmatmul.mubr.bf16.gmra.mrb[0].mxu0 %v481
  %v658 = vpop.f32.mrb[0].mxu0
  %v659 = vadd.f32 %v354, %v658
  %v660 = vpop.f32.mrb[0].mxu0
  %v661 = vpop.f32.mrb[0].mxu0
  %v662 = vadd.f32 %v357, %v661
  %v663 = vpop.f32.mrb[0].mxu0
  %664 = vmatprep.mubr.bf16.mxu0 0
  %665 = vmatmul.mubr.bf16.gmra.mrb[0].mxu0 %v482
  %v666 = vpop.f32.mrb[0].mxu0
  %v667 = vadd.f32 %v362, %v666
  %v668 = vpop.f32.mrb[0].mxu0
  %v669 = vpop.f32.mrb[0].mxu0
  %v670 = vadd.f32 %v365, %v669
  %v671 = vpop.f32.mrb[0].mxu0
  %672 = vmatprep.mubr.bf16.mxu0 0
  %673 = vmatmul.mubr.bf16.gmra.mrb[0].mxu0 %v483
  %v674 = vpop.f32.mrb[0].mxu0
  %v675 = vadd.f32 %v370, %v674
  %v676 = vpop.f32.mrb[0].mxu0
  %v677 = vpop.f32.mrb[0].mxu0
  %v678 = vadd.f32 %v373, %v677
  %v679 = vpop.f32.mrb[0].mxu0
  %680 = vmatprep.mubr.bf16.mxu0 0
  %681 = vmatmul.mubr.bf16.gmra.mrb[0].mxu0 %v484
  %v682 = vpop.f32.mrb[0].mxu0
  %v683 = vadd.f32 %v378, %v682
  %v684 = vpop.f32.mrb[0].mxu0
  %v685 = vpop.f32.mrb[0].mxu0
  %v686 = vadd.f32 %v381, %v685
  %v687 = vpop.f32.mrb[0].mxu0
  %688 = vmatprep.mubr.bf16.mxu0 0
  %689 = vmatmul.mubr.bf16.gmra.mrb[0].mxu0 %v485
  %v690 = vpop.f32.mrb[0].mxu0
  %v691 = vadd.f32 %v386, %v690
  %v692 = vpop.f32.mrb[0].mxu0
  %v693 = vpop.f32.mrb[0].mxu0
  %v694 = vadd.f32 %v389, %v693
  %v695 = vpop.f32.mrb[0].mxu0
  %696 = vmatprep.mubr.bf16.mxu0 0
  %697 = vmatmul.mubr.bf16.gmra.mrb[0].mxu0 %v486
  %v698 = vpop.f32.mrb[0].mxu0
  %v699 = vadd.f32 %v394, %v698
  %v700 = vpop.f32.mrb[0].mxu0
  %v701 = vpop.f32.mrb[0].mxu0
  %v702 = vadd.f32 %v397, %v701
  %v703 = vpop.f32.mrb[0].mxu0
  %704 = vmatprep.mubr.bf16.mxu0 0
  %705 = vmatmul.mubr.bf16.gmra.mrb[0].mxu0 %v487
  %v706 = vpop.f32.mrb[0].mxu0
  %v707 = vadd.f32 %v402, %v706
  %v708 = vpop.f32.mrb[0].mxu0
  %v709 = vpop.f32.mrb[0].mxu0
  %v710 = vadd.f32 %v405, %v709
  %v711 = vpop.f32.mrb[0].mxu0
  %712 = vdwg.mxu0
  %v713 = vld [vmem:[%s5] sm:$0x1]
  %v715 = vlaneseq
  %v716 = vshrl.u32 %v715, 7
  %v717 = vsub.s32 0, %v716
  %v718 = vrot.slane %v713, %v717
  %v720 = vadd.f32 %v587, %v718
  %v721 = vadd.f32 %v590, %v718
  %v722 = vadd.f32 %v595, %v718
  %v723 = vadd.f32 %v598, %v718
  %v724 = vadd.f32 %v603, %v718
  %v725 = vadd.f32 %v606, %v718
  %v726 = vadd.f32 %v611, %v718
  %v727 = vadd.f32 %v614, %v718
  %v728 = vadd.f32 %v619, %v718
  %v729 = vadd.f32 %v622, %v718
  %v730 = vadd.f32 %v627, %v718
  %v731 = vadd.f32 %v630, %v718
  %v732 = vadd.f32 %v635, %v718
  %v733 = vadd.f32 %v638, %v718
  %v734 = vadd.f32 %v643, %v718
  %v735 = vadd.f32 %v646, %v718
  %v736 = vadd.f32 %v651, %v718
  %v737 = vadd.f32 %v654, %v718
  %v738 = vadd.f32 %v659, %v718
  %v739 = vadd.f32 %v662, %v718
  %v740 = vadd.f32 %v667, %v718
  %v741 = vadd.f32 %v670, %v718
  %v742 = vadd.f32 %v675, %v718
  %v743 = vadd.f32 %v678, %v718
  %v744 = vadd.f32 %v683, %v718
  %v745 = vadd.f32 %v686, %v718
  %v746 = vadd.f32 %v691, %v718
  %v747 = vadd.f32 %v694, %v718
  %v748 = vadd.f32 %v699, %v718
  %v749 = vadd.f32 %v702, %v718
  %v750 = vadd.f32 %v707, %v718
  %v751 = vadd.f32 %v710, %v718
  %v752 = vxor.u32 %v720, 2147483648
  %v753 = vxor.u32 %v721, 2147483648
  %v754 = vxor.u32 %v722, 2147483648
  %v755 = vxor.u32 %v723, 2147483648
  %v756 = vxor.u32 %v724, 2147483648
  %v757 = vxor.u32 %v725, 2147483648
  %v758 = vxor.u32 %v726, 2147483648
  %v759 = vxor.u32 %v727, 2147483648
  %v760 = vxor.u32 %v728, 2147483648
  %v761 = vxor.u32 %v729, 2147483648
  %v762 = vxor.u32 %v730, 2147483648
  %v763 = vxor.u32 %v731, 2147483648
  %v764 = vxor.u32 %v732, 2147483648
  %v765 = vxor.u32 %v733, 2147483648
  %v766 = vxor.u32 %v734, 2147483648
  %v767 = vxor.u32 %v735, 2147483648
  %v768 = vxor.u32 %v736, 2147483648
  %v769 = vxor.u32 %v737, 2147483648
  %v770 = vxor.u32 %v738, 2147483648
  %v771 = vxor.u32 %v739, 2147483648
  %v772 = vxor.u32 %v740, 2147483648
  %v773 = vxor.u32 %v741, 2147483648
  %v774 = vxor.u32 %v742, 2147483648
  %v775 = vxor.u32 %v743, 2147483648
  %v776 = vxor.u32 %v744, 2147483648
  %v777 = vxor.u32 %v745, 2147483648
  %v778 = vxor.u32 %v746, 2147483648
  %v779 = vxor.u32 %v747, 2147483648
  %v780 = vxor.u32 %v748, 2147483648
  %v781 = vxor.u32 %v749, 2147483648
  %v782 = vxor.u32 %v750, 2147483648
  %v783 = vxor.u32 %v751, 2147483648
  %v784 = vmul.f32 %v752, 1.442695
  %v785 = vpow.pop %v784
  %v786 = vmul.f32 %v753, 1.442695
  %v787 = vpow.pop %v786
  %v788 = vmul.f32 %v754, 1.442695
  %v789 = vpow.pop %v788
  %v790 = vmul.f32 %v755, 1.442695
  %v791 = vpow.pop %v790
  %v792 = vmul.f32 %v756, 1.442695
  %v793 = vpow.pop %v792
  %v794 = vmul.f32 %v757, 1.442695
  %v795 = vpow.pop %v794
  %v796 = vmul.f32 %v758, 1.442695
  %v797 = vpow.pop %v796
  %v798 = vmul.f32 %v759, 1.442695
  %v799 = vpow.pop %v798
  %v800 = vmul.f32 %v760, 1.442695
  %v801 = vpow.pop %v800
  %v802 = vmul.f32 %v761, 1.442695
  %v803 = vpow.pop %v802
  %v804 = vmul.f32 %v762, 1.442695
  %v805 = vpow.pop %v804
  %v806 = vmul.f32 %v763, 1.442695
  %v807 = vpow.pop %v806
  %v808 = vmul.f32 %v764, 1.442695
  %v809 = vpow.pop %v808
  %v810 = vmul.f32 %v765, 1.442695
  %v811 = vpow.pop %v810
  %v812 = vmul.f32 %v766, 1.442695
  %v813 = vpow.pop %v812
  %v814 = vmul.f32 %v767, 1.442695
  %v815 = vpow.pop %v814
  %v816 = vmul.f32 %v768, 1.442695
  %v817 = vpow.pop %v816
  %v818 = vmul.f32 %v769, 1.442695
  %v819 = vpow.pop %v818
  %v820 = vmul.f32 %v770, 1.442695
  %v821 = vpow.pop %v820
  %v822 = vmul.f32 %v771, 1.442695
  %v823 = vpow.pop %v822
  %v824 = vmul.f32 %v772, 1.442695
  %v825 = vpow.pop %v824
  %v826 = vmul.f32 %v773, 1.442695
  %v827 = vpow.pop %v826
  %v828 = vmul.f32 %v774, 1.442695
  %v829 = vpow.pop %v828
  %v830 = vmul.f32 %v775, 1.442695
  %v831 = vpow.pop %v830
  %v832 = vmul.f32 %v776, 1.442695
  %v833 = vpow.pop %v832
  %v834 = vmul.f32 %v777, 1.442695
  %v835 = vpow.pop %v834
  %v836 = vmul.f32 %v778, 1.442695
  %v837 = vpow.pop %v836
  %v838 = vmul.f32 %v779, 1.442695
  %v839 = vpow.pop %v838
  %v840 = vmul.f32 %v780, 1.442695
  %v841 = vpow.pop %v840
  %v842 = vmul.f32 %v781, 1.442695
  %v843 = vpow.pop %v842
  %v844 = vmul.f32 %v782, 1.442695
  %v845 = vpow.pop %v844
  %v846 = vmul.f32 %v783, 1.442695
  %v847 = vpow.pop %v846
  %v848 = vadd.f32 %v785, 1.0
  %v849 = vadd.f32 %v787, 1.0
  %v850 = vadd.f32 %v789, 1.0
  %v851 = vadd.f32 %v791, 1.0
  %v852 = vadd.f32 %v793, 1.0
  %v853 = vadd.f32 %v795, 1.0
  %v854 = vadd.f32 %v797, 1.0
  %v855 = vadd.f32 %v799, 1.0
  %v856 = vadd.f32 %v801, 1.0
  %v857 = vadd.f32 %v803, 1.0
  %v858 = vadd.f32 %v805, 1.0
  %v859 = vadd.f32 %v807, 1.0
  %v860 = vadd.f32 %v809, 1.0
  %v861 = vadd.f32 %v811, 1.0
  %v862 = vadd.f32 %v813, 1.0
  %v863 = vadd.f32 %v815, 1.0
  %v864 = vadd.f32 %v817, 1.0
  %v865 = vadd.f32 %v819, 1.0
  %v866 = vadd.f32 %v821, 1.0
  %v867 = vadd.f32 %v823, 1.0
  %v868 = vadd.f32 %v825, 1.0
  %v869 = vadd.f32 %v827, 1.0
  %v870 = vadd.f32 %v829, 1.0
  %v871 = vadd.f32 %v831, 1.0
  %v872 = vadd.f32 %v833, 1.0
  %v873 = vadd.f32 %v835, 1.0
  %v874 = vadd.f32 %v837, 1.0
  %v875 = vadd.f32 %v839, 1.0
  %v876 = vadd.f32 %v841, 1.0
  %v877 = vadd.f32 %v843, 1.0
  %v878 = vadd.f32 %v845, 1.0
  %v879 = vadd.f32 %v847, 1.0
  %v880 = vrcp.pop %v848
  %v881 = vmul.f32 1.0, %v880
  %v882 = vrcp.pop %v849
  %v883 = vmul.f32 1.0, %v882
  %v884 = vrcp.pop %v850
  %v885 = vmul.f32 1.0, %v884
  %v886 = vrcp.pop %v851
  %v887 = vmul.f32 1.0, %v886
  %v888 = vrcp.pop %v852
  %v889 = vmul.f32 1.0, %v888
  %v890 = vrcp.pop %v853
  %v891 = vmul.f32 1.0, %v890
  %v892 = vrcp.pop %v854
  %v893 = vmul.f32 1.0, %v892
  %v894 = vrcp.pop %v855
  %v895 = vmul.f32 1.0, %v894
  %v896 = vrcp.pop %v856
  %v897 = vmul.f32 1.0, %v896
  %v898 = vrcp.pop %v857
  %v899 = vmul.f32 1.0, %v898
  %v900 = vrcp.pop %v858
  %v901 = vmul.f32 1.0, %v900
  %v902 = vrcp.pop %v859
  %v903 = vmul.f32 1.0, %v902
  %v904 = vrcp.pop %v860
  %v905 = vmul.f32 1.0, %v904
  %v906 = vrcp.pop %v861
  %v907 = vmul.f32 1.0, %v906
  %v908 = vrcp.pop %v862
  %v909 = vmul.f32 1.0, %v908
  %v910 = vrcp.pop %v863
  %v911 = vmul.f32 1.0, %v910
  %v912 = vrcp.pop %v864
  %v913 = vmul.f32 1.0, %v912
  %v914 = vrcp.pop %v865
  %v915 = vmul.f32 1.0, %v914
  %v916 = vrcp.pop %v866
  %v917 = vmul.f32 1.0, %v916
  %v918 = vrcp.pop %v867
  %v919 = vmul.f32 1.0, %v918
  %v920 = vrcp.pop %v868
  %v921 = vmul.f32 1.0, %v920
  %v922 = vrcp.pop %v869
  %v923 = vmul.f32 1.0, %v922
  %v924 = vrcp.pop %v870
  %v925 = vmul.f32 1.0, %v924
  %v926 = vrcp.pop %v871
  %v927 = vmul.f32 1.0, %v926
  %v928 = vrcp.pop %v872
  %v929 = vmul.f32 1.0, %v928
  %v930 = vrcp.pop %v873
  %v931 = vmul.f32 1.0, %v930
  %v932 = vrcp.pop %v874
  %v933 = vmul.f32 1.0, %v932
  %v934 = vrcp.pop %v875
  %v935 = vmul.f32 1.0, %v934
  %v936 = vrcp.pop %v876
  %v937 = vmul.f32 1.0, %v936
  %v938 = vrcp.pop %v877
  %v939 = vmul.f32 1.0, %v938
  %v940 = vrcp.pop %v878
  %v941 = vmul.f32 1.0, %v940
  %v942 = vrcp.pop %v879
  %v943 = vmul.f32 1.0, %v942
  %v944 = vpack.c.bf16 %v883, %v881
  %v945 = vpack.c.bf16 %v887, %v885
  %v946 = vpack.c.bf16 %v891, %v889
  %v947 = vpack.c.bf16 %v895, %v893
  %v948 = vpack.c.bf16 %v899, %v897
  %v949 = vpack.c.bf16 %v903, %v901
  %v950 = vpack.c.bf16 %v907, %v905
  %v951 = vpack.c.bf16 %v911, %v909
  %v952 = vpack.c.bf16 %v915, %v913
  %v953 = vpack.c.bf16 %v919, %v917
  %v954 = vpack.c.bf16 %v923, %v921
  %v955 = vpack.c.bf16 %v927, %v925
  %v956 = vpack.c.bf16 %v931, %v929
  %v957 = vpack.c.bf16 %v935, %v933
  %v958 = vpack.c.bf16 %v939, %v937
  %v959 = vpack.c.bf16 %v943, %v941
  %v960 = vld [vmem:[%s6] sm:$0xff]
  %v961 = vld [vmem:[%s6 + $0x8] sm:$0xff]
  %v962 = vld [vmem:[%s6 + $0x10] sm:$0xff]
  %v963 = vld [vmem:[%s6 + $0x18] sm:$0xff]
  %v964 = vld [vmem:[%s6 + $0x20] sm:$0xff]
  %v965 = vld [vmem:[%s6 + $0x28] sm:$0xff]
  %v966 = vld [vmem:[%s6 + $0x30] sm:$0xff]
  %v967 = vld [vmem:[%s6 + $0x38] sm:$0xff]
  %v968 = vld [vmem:[%s6 + $0x40] sm:$0xff]
  %v969 = vld [vmem:[%s6 + $0x48] sm:$0xff]
  %v970 = vld [vmem:[%s6 + $0x50] sm:$0xff]
  %v971 = vld [vmem:[%s6 + $0x58] sm:$0xff]
  %v972 = vld [vmem:[%s6 + $0x60] sm:$0xff]
  %v973 = vld [vmem:[%s6 + $0x68] sm:$0xff]
  %v974 = vld [vmem:[%s6 + $0x70] sm:$0xff]
  %v975 = vld [vmem:[%s6 + $0x78] sm:$0xff]
  %v976 = vld [vmem:[%s7] sm:$0x3]
  %v978 = vlaneseq
  %v979 = vshrl.u32 %v978, 7
  %v980 = vsub.s32 0, %v979
  %v981 = vrot.slane %v976, %v980
  %v982 = vlaneseq
  %v983 = vshrl.u32 %v982, 7
  %v984 = vsub.s32 1, %v983
  %v985 = vrot.slane %v976, %v984
  %v1004 = vunpack.c.l.b16 %v960
  %v1005 = vunpack.c.h.b16 %v960
  %v1006 = vunpack.c.l.b16 %v961
  %v1007 = vunpack.c.h.b16 %v961
  %v1008 = vunpack.c.l.b16 %v962
  %v1009 = vunpack.c.h.b16 %v962
  %v1010 = vunpack.c.l.b16 %v963
  %v1011 = vunpack.c.h.b16 %v963
  %v1012 = vunpack.c.l.b16 %v964
  %v1013 = vunpack.c.h.b16 %v964
  %v1014 = vunpack.c.l.b16 %v965
  %v1015 = vunpack.c.h.b16 %v965
  %v1016 = vunpack.c.l.b16 %v966
  %v1017 = vunpack.c.h.b16 %v966
  %v1018 = vunpack.c.l.b16 %v967
  %v1019 = vunpack.c.h.b16 %v967
  %v1020 = vunpack.c.l.b16 %v968
  %v1021 = vunpack.c.h.b16 %v968
  %v1022 = vunpack.c.l.b16 %v969
  %v1023 = vunpack.c.h.b16 %v969
  %v1024 = vunpack.c.l.b16 %v970
  %v1025 = vunpack.c.h.b16 %v970
  %v1026 = vunpack.c.l.b16 %v971
  %v1027 = vunpack.c.h.b16 %v971
  %v1028 = vunpack.c.l.b16 %v972
  %v1029 = vunpack.c.h.b16 %v972
  %v1030 = vunpack.c.l.b16 %v973
  %v1031 = vunpack.c.h.b16 %v973
  %v1032 = vunpack.c.l.b16 %v974
  %v1033 = vunpack.c.h.b16 %v974
  %v1034 = vunpack.c.l.b16 %v975
  %v1035 = vunpack.c.h.b16 %v975
  %v1036 = vpack.c.b16 %v1006, %v1004
  %v1037 = vpack.c.b16 %v1007, %v1005
  %v1038 = vpack.c.b16 %v1010, %v1008
  %v1039 = vpack.c.b16 %v1011, %v1009
  %v1040 = vpack.c.b16 %v1014, %v1012
  %v1041 = vpack.c.b16 %v1015, %v1013
  %v1042 = vpack.c.b16 %v1018, %v1016
  %v1043 = vpack.c.b16 %v1019, %v1017
  %v1044 = vpack.c.b16 %v1022, %v1020
  %v1045 = vpack.c.b16 %v1023, %v1021
  %v1046 = vpack.c.b16 %v1026, %v1024
  %v1047 = vpack.c.b16 %v1027, %v1025
  %v1048 = vpack.c.b16 %v1030, %v1028
  %v1049 = vpack.c.b16 %v1031, %v1029
  %v1050 = vpack.c.b16 %v1034, %v1032
  %v1051 = vpack.c.b16 %v1035, %v1033
  %1068 = vmatprep.subr.bf16.mxu0 %v1037
  %1069 = vmatpush1.bf16.msra.mxu0 %v1036
  %1070 = vmatprep.subr.bf16.mxu0 %v1039
  %1071 = vmatpush1.bf16.msra.mxu0 %v1038
  %1072 = vmatprep.subr.bf16.mxu0 %v1041
  %1073 = vmatpush1.bf16.msra.mxu0 %v1040
  %1074 = vmatprep.subr.bf16.mxu0 %v1043
  %1075 = vmatpush1.bf16.msra.mxu0 %v1042
  %1076 = vmatprep.subr.bf16.mxu0 %v1045
  %1077 = vmatpush1.bf16.msra.mxu0 %v1044
  %1078 = vmatprep.subr.bf16.mxu0 %v1047
  %1079 = vmatpush1.bf16.msra.mxu0 %v1046
  %1080 = vmatprep.subr.bf16.mxu0 %v1049
  %1081 = vmatpush1.bf16.msra.mxu0 %v1048
  %1082 = vmatprep.subr.bf16.mxu0 %v1051
  %1083 = vmatpush1.bf16.msra.mxu0 %v1050
  %1084 = vmatprep.subr.bf16.mxu0 0
  %1085 = vmatpush1.bf16.msra.mxu0 0
  %1086 = vmatprep.subr.bf16.mxu0 0
  %1087 = vmatpush1.bf16.msra.mxu0 0
  %1088 = vmatprep.subr.bf16.mxu0 0
  %1089 = vmatpush1.bf16.msra.mxu0 0
  %1090 = vmatprep.subr.bf16.mxu0 0
  %1091 = vmatpush1.bf16.msra.mxu0 0
  %1092 = vmatprep.subr.bf16.mxu0 0
  %1093 = vmatpush1.bf16.msra.mxu0 0
  %1094 = vmatprep.subr.bf16.mxu0 0
  %1095 = vmatpush1.bf16.msra.mxu0 0
  %1096 = vmatprep.subr.bf16.mxu0 0
  %1097 = vmatpush1.bf16.msra.mxu0 0
  %1098 = vmatprep.subr.bf16.mxu0 0
  %1099 = vmatpush1.bf16.msra.mxu0 0
  %1100 = vmatprep.mubr.bf16.mxu0 0
  %1101 = vmatmul.mubr.bf16.gmra.mrb[0].mxu0 %v944
  %v1102 = vpop.f32.mrb[0].mxu0
  %v1103 = vadd.f32 %v981, %v1102
  %v1104 = vpop.f32.mrb[0].mxu0
  %v1105 = vadd.f32 %v985, %v1104
  %v1106 = vpop.f32.mrb[0].mxu0
  %v1107 = vadd.f32 %v981, %v1106
  %v1108 = vpop.f32.mrb[0].mxu0
  %v1109 = vadd.f32 %v985, %v1108
  %1110 = vmatprep.mubr.bf16.mxu0 0
  %1111 = vmatmul.mubr.bf16.gmra.mrb[0].mxu0 %v945
  %v1112 = vpop.f32.mrb[0].mxu0
  %v1113 = vadd.f32 %v981, %v1112
  %v1114 = vpop.f32.mrb[0].mxu0
  %v1115 = vadd.f32 %v985, %v1114
  %v1116 = vpop.f32.mrb[0].mxu0
  %v1117 = vadd.f32 %v981, %v1116
  %v1118 = vpop.f32.mrb[0].mxu0
  %v1119 = vadd.f32 %v985, %v1118
  %1120 = vmatprep.mubr.bf16.mxu0 0
  %1121 = vmatmul.mubr.bf16.gmra.mrb[0].mxu0 %v946
  %v1122 = vpop.f32.mrb[0].mxu0
  %v1123 = vadd.f32 %v981, %v1122
  %v1124 = vpop.f32.mrb[0].mxu0
  %v1125 = vadd.f32 %v985, %v1124
  %v1126 = vpop.f32.mrb[0].mxu0
  %v1127 = vadd.f32 %v981, %v1126
  %v1128 = vpop.f32.mrb[0].mxu0
  %v1129 = vadd.f32 %v985, %v1128
  %1130 = vmatprep.mubr.bf16.mxu0 0
  %1131 = vmatmul.mubr.bf16.gmra.mrb[0].mxu0 %v947
  %v1132 = vpop.f32.mrb[0].mxu0
  %v1133 = vadd.f32 %v981, %v1132
  %v1134 = vpop.f32.mrb[0].mxu0
  %v1135 = vadd.f32 %v985, %v1134
  %v1136 = vpop.f32.mrb[0].mxu0
  %v1137 = vadd.f32 %v981, %v1136
  %v1138 = vpop.f32.mrb[0].mxu0
  %v1139 = vadd.f32 %v985, %v1138
  %1140 = vmatprep.mubr.bf16.mxu0 0
  %1141 = vmatmul.mubr.bf16.gmra.mrb[0].mxu0 %v948
  %v1142 = vpop.f32.mrb[0].mxu0
  %v1143 = vadd.f32 %v981, %v1142
  %v1144 = vpop.f32.mrb[0].mxu0
  %v1145 = vadd.f32 %v985, %v1144
  %v1146 = vpop.f32.mrb[0].mxu0
  %v1147 = vadd.f32 %v981, %v1146
  %v1148 = vpop.f32.mrb[0].mxu0
  %v1149 = vadd.f32 %v985, %v1148
  %1150 = vmatprep.mubr.bf16.mxu0 0
  %1151 = vmatmul.mubr.bf16.gmra.mrb[0].mxu0 %v949
  %v1152 = vpop.f32.mrb[0].mxu0
  %v1153 = vadd.f32 %v981, %v1152
  %v1154 = vpop.f32.mrb[0].mxu0
  %v1155 = vadd.f32 %v985, %v1154
  %v1156 = vpop.f32.mrb[0].mxu0
  %v1157 = vadd.f32 %v981, %v1156
  %v1158 = vpop.f32.mrb[0].mxu0
  %v1159 = vadd.f32 %v985, %v1158
  %1160 = vmatprep.mubr.bf16.mxu0 0
  %1161 = vmatmul.mubr.bf16.gmra.mrb[0].mxu0 %v950
  %v1162 = vpop.f32.mrb[0].mxu0
  %v1163 = vadd.f32 %v981, %v1162
  %v1164 = vpop.f32.mrb[0].mxu0
  %v1165 = vadd.f32 %v985, %v1164
  %v1166 = vpop.f32.mrb[0].mxu0
  %v1167 = vadd.f32 %v981, %v1166
  %v1168 = vpop.f32.mrb[0].mxu0
  %v1169 = vadd.f32 %v985, %v1168
  %1170 = vmatprep.mubr.bf16.mxu0 0
  %1171 = vmatmul.mubr.bf16.gmra.mrb[0].mxu0 %v951
  %v1172 = vpop.f32.mrb[0].mxu0
  %v1173 = vadd.f32 %v981, %v1172
  %v1174 = vpop.f32.mrb[0].mxu0
  %v1175 = vadd.f32 %v985, %v1174
  %v1176 = vpop.f32.mrb[0].mxu0
  %v1177 = vadd.f32 %v981, %v1176
  %v1178 = vpop.f32.mrb[0].mxu0
  %v1179 = vadd.f32 %v985, %v1178
  %1180 = vmatprep.mubr.bf16.mxu0 0
  %1181 = vmatmul.mubr.bf16.gmra.mrb[0].mxu0 %v952
  %v1182 = vpop.f32.mrb[0].mxu0
  %v1183 = vadd.f32 %v981, %v1182
  %v1184 = vpop.f32.mrb[0].mxu0
  %v1185 = vadd.f32 %v985, %v1184
  %v1186 = vpop.f32.mrb[0].mxu0
  %v1187 = vadd.f32 %v981, %v1186
  %v1188 = vpop.f32.mrb[0].mxu0
  %v1189 = vadd.f32 %v985, %v1188
  %1190 = vmatprep.mubr.bf16.mxu0 0
  %1191 = vmatmul.mubr.bf16.gmra.mrb[0].mxu0 %v953
  %v1192 = vpop.f32.mrb[0].mxu0
  %v1193 = vadd.f32 %v981, %v1192
  %v1194 = vpop.f32.mrb[0].mxu0
  %v1195 = vadd.f32 %v985, %v1194
  %v1196 = vpop.f32.mrb[0].mxu0
  %v1197 = vadd.f32 %v981, %v1196
  %v1198 = vpop.f32.mrb[0].mxu0
  %v1199 = vadd.f32 %v985, %v1198
  %1200 = vmatprep.mubr.bf16.mxu0 0
  %1201 = vmatmul.mubr.bf16.gmra.mrb[0].mxu0 %v954
  %v1202 = vpop.f32.mrb[0].mxu0
  %v1203 = vadd.f32 %v981, %v1202
  %v1204 = vpop.f32.mrb[0].mxu0
  %v1205 = vadd.f32 %v985, %v1204
  %v1206 = vpop.f32.mrb[0].mxu0
  %v1207 = vadd.f32 %v981, %v1206
  %v1208 = vpop.f32.mrb[0].mxu0
  %v1209 = vadd.f32 %v985, %v1208
  %1210 = vmatprep.mubr.bf16.mxu0 0
  %1211 = vmatmul.mubr.bf16.gmra.mrb[0].mxu0 %v955
  %v1212 = vpop.f32.mrb[0].mxu0
  %v1213 = vadd.f32 %v981, %v1212
  %v1214 = vpop.f32.mrb[0].mxu0
  %v1215 = vadd.f32 %v985, %v1214
  %v1216 = vpop.f32.mrb[0].mxu0
  %v1217 = vadd.f32 %v981, %v1216
  %v1218 = vpop.f32.mrb[0].mxu0
  %v1219 = vadd.f32 %v985, %v1218
  %1220 = vmatprep.mubr.bf16.mxu0 0
  %1221 = vmatmul.mubr.bf16.gmra.mrb[0].mxu0 %v956
  %v1222 = vpop.f32.mrb[0].mxu0
  %v1223 = vadd.f32 %v981, %v1222
  %v1224 = vpop.f32.mrb[0].mxu0
  %v1225 = vadd.f32 %v985, %v1224
  %v1226 = vpop.f32.mrb[0].mxu0
  %v1227 = vadd.f32 %v981, %v1226
  %v1228 = vpop.f32.mrb[0].mxu0
  %v1229 = vadd.f32 %v985, %v1228
  %1230 = vmatprep.mubr.bf16.mxu0 0
  %1231 = vmatmul.mubr.bf16.gmra.mrb[0].mxu0 %v957
  %v1232 = vpop.f32.mrb[0].mxu0
  %v1233 = vadd.f32 %v981, %v1232
  %v1234 = vpop.f32.mrb[0].mxu0
  %v1235 = vadd.f32 %v985, %v1234
  %v1236 = vpop.f32.mrb[0].mxu0
  %v1237 = vadd.f32 %v981, %v1236
  %v1238 = vpop.f32.mrb[0].mxu0
  %v1239 = vadd.f32 %v985, %v1238
  %1240 = vmatprep.mubr.bf16.mxu0 0
  %1241 = vmatmul.mubr.bf16.gmra.mrb[0].mxu0 %v958
  %v1242 = vpop.f32.mrb[0].mxu0
  %v1243 = vadd.f32 %v981, %v1242
  %v1244 = vpop.f32.mrb[0].mxu0
  %v1245 = vadd.f32 %v985, %v1244
  %v1246 = vpop.f32.mrb[0].mxu0
  %v1247 = vadd.f32 %v981, %v1246
  %v1248 = vpop.f32.mrb[0].mxu0
  %v1249 = vadd.f32 %v985, %v1248
  %1250 = vmatprep.mubr.bf16.mxu0 0
  %1251 = vmatmul.mubr.bf16.gmra.mrb[0].mxu0 %v959
  %v1252 = vpop.f32.mrb[0].mxu0
  %v1253 = vadd.f32 %v981, %v1252
  %v1254 = vpop.f32.mrb[0].mxu0
  %v1255 = vadd.f32 %v985, %v1254
  %v1256 = vpop.f32.mrb[0].mxu0
  %v1257 = vadd.f32 %v981, %v1256
  %v1258 = vpop.f32.mrb[0].mxu0
  %v1259 = vadd.f32 %v985, %v1258
  %1260 = vdwg.mxu0
  %v1261 = vld [vmem:[%s2] sm:$0xff]
  %v1262 = vlaneseq
  %v1263 = vshrl.u32 %v1262, 7
  %v1264 = vsub.s32 0, %v1263
  %v1265 = vrot.slane %v1261, %v1264
  %1267 = vbcast.lane.b32.xlu0 %v1265, 256
  %v1268 = vpop.permute.xlu0 %1267
  %s1270 = sor.u32 256, 8
  %1271 = vbcast.lane.b32.xlu0 %v1265, %s1270
  %v1272 = vpop.permute.xlu0 %1271
  %s1274 = sor.u32 256, 16
  %1275 = vbcast.lane.b32.xlu0 %v1265, %s1274
  %v1276 = vpop.permute.xlu0 %1275
  %s1278 = sor.u32 256, 24
  %1279 = vbcast.lane.b32.xlu0 %v1265, %s1278
  %v1280 = vpop.permute.xlu0 %1279
  %v1281 = vlaneseq
  %v1282 = vshrl.u32 %v1281, 7
  %v1283 = vsub.s32 1, %v1282
  %v1284 = vrot.slane %v1261, %v1283
  %1286 = vbcast.lane.b32.xlu0 %v1284, 256
  %v1287 = vpop.permute.xlu0 %1286
  %s1289 = sor.u32 256, 8
  %1290 = vbcast.lane.b32.xlu0 %v1284, %s1289
  %v1291 = vpop.permute.xlu0 %1290
  %s1293 = sor.u32 256, 16
  %1294 = vbcast.lane.b32.xlu0 %v1284, %s1293
  %v1295 = vpop.permute.xlu0 %1294
  %s1297 = sor.u32 256, 24
  %1298 = vbcast.lane.b32.xlu0 %v1284, %s1297
  %v1299 = vpop.permute.xlu0 %1298
  %v1300 = vlaneseq
  %v1301 = vshrl.u32 %v1300, 7
  %v1302 = vsub.s32 2, %v1301
  %v1303 = vrot.slane %v1261, %v1302
  %1305 = vbcast.lane.b32.xlu0 %v1303, 256
  %v1306 = vpop.permute.xlu0 %1305
  %s1308 = sor.u32 256, 8
  %1309 = vbcast.lane.b32.xlu0 %v1303, %s1308
  %v1310 = vpop.permute.xlu0 %1309
  %s1312 = sor.u32 256, 16
  %1313 = vbcast.lane.b32.xlu0 %v1303, %s1312
  %v1314 = vpop.permute.xlu0 %1313
  %s1316 = sor.u32 256, 24
  %1317 = vbcast.lane.b32.xlu0 %v1303, %s1316
  %v1318 = vpop.permute.xlu0 %1317
  %v1319 = vlaneseq
  %v1320 = vshrl.u32 %v1319, 7
  %v1321 = vsub.s32 3, %v1320
  %v1322 = vrot.slane %v1261, %v1321
  %1324 = vbcast.lane.b32.xlu0 %v1322, 256
  %v1325 = vpop.permute.xlu0 %1324
  %s1327 = sor.u32 256, 8
  %1328 = vbcast.lane.b32.xlu0 %v1322, %s1327
  %v1329 = vpop.permute.xlu0 %1328
  %s1331 = sor.u32 256, 16
  %1332 = vbcast.lane.b32.xlu0 %v1322, %s1331
  %v1333 = vpop.permute.xlu0 %1332
  %s1335 = sor.u32 256, 24
  %1336 = vbcast.lane.b32.xlu0 %v1322, %s1335
  %v1337 = vpop.permute.xlu0 %1336
  %v1338 = vlaneseq
  %v1339 = vshrl.u32 %v1338, 7
  %v1340 = vsub.s32 4, %v1339
  %v1341 = vrot.slane %v1261, %v1340
  %1343 = vbcast.lane.b32.xlu0 %v1341, 256
  %v1344 = vpop.permute.xlu0 %1343
  %s1346 = sor.u32 256, 8
  %1347 = vbcast.lane.b32.xlu0 %v1341, %s1346
  %v1348 = vpop.permute.xlu0 %1347
  %s1350 = sor.u32 256, 16
  %1351 = vbcast.lane.b32.xlu0 %v1341, %s1350
  %v1352 = vpop.permute.xlu0 %1351
  %s1354 = sor.u32 256, 24
  %1355 = vbcast.lane.b32.xlu0 %v1341, %s1354
  %v1356 = vpop.permute.xlu0 %1355
  %v1357 = vlaneseq
  %v1358 = vshrl.u32 %v1357, 7
  %v1359 = vsub.s32 5, %v1358
  %v1360 = vrot.slane %v1261, %v1359
  %1362 = vbcast.lane.b32.xlu0 %v1360, 256
  %v1363 = vpop.permute.xlu0 %1362
  %s1365 = sor.u32 256, 8
  %1366 = vbcast.lane.b32.xlu0 %v1360, %s1365
  %v1367 = vpop.permute.xlu0 %1366
  %s1369 = sor.u32 256, 16
  %1370 = vbcast.lane.b32.xlu0 %v1360, %s1369
  %v1371 = vpop.permute.xlu0 %1370
  %s1373 = sor.u32 256, 24
  %1374 = vbcast.lane.b32.xlu0 %v1360, %s1373
  %v1375 = vpop.permute.xlu0 %1374
  %v1376 = vlaneseq
  %v1377 = vshrl.u32 %v1376, 7
  %v1378 = vsub.s32 6, %v1377
  %v1379 = vrot.slane %v1261, %v1378
  %1381 = vbcast.lane.b32.xlu0 %v1379, 256
  %v1382 = vpop.permute.xlu0 %1381
  %s1384 = sor.u32 256, 8
  %1385 = vbcast.lane.b32.xlu0 %v1379, %s1384
  %v1386 = vpop.permute.xlu0 %1385
  %s1388 = sor.u32 256, 16
  %1389 = vbcast.lane.b32.xlu0 %v1379, %s1388
  %v1390 = vpop.permute.xlu0 %1389
  %s1392 = sor.u32 256, 24
  %1393 = vbcast.lane.b32.xlu0 %v1379, %s1392
  %v1394 = vpop.permute.xlu0 %1393
  %v1395 = vlaneseq
  %v1396 = vshrl.u32 %v1395, 7
  %v1397 = vsub.s32 7, %v1396
  %v1398 = vrot.slane %v1261, %v1397
  %1400 = vbcast.lane.b32.xlu0 %v1398, 256
  %v1401 = vpop.permute.xlu0 %1400
  %s1403 = sor.u32 256, 8
  %1404 = vbcast.lane.b32.xlu0 %v1398, %s1403
  %v1405 = vpop.permute.xlu0 %1404
  %s1407 = sor.u32 256, 16
  %1408 = vbcast.lane.b32.xlu0 %v1398, %s1407
  %v1409 = vpop.permute.xlu0 %1408
  %s1411 = sor.u32 256, 24
  %1412 = vbcast.lane.b32.xlu0 %v1398, %s1411
  %v1413 = vpop.permute.xlu0 %1412
  %v1414 = vadd.f32 %v1103, %v1268
  %v1415 = vadd.f32 %v1105, %v1268
  %v1416 = vadd.f32 %v1107, %v1272
  %v1417 = vadd.f32 %v1109, %v1272
  %v1418 = vadd.f32 %v1113, %v1276
  %v1419 = vadd.f32 %v1115, %v1276
  %v1420 = vadd.f32 %v1117, %v1280
  %v1421 = vadd.f32 %v1119, %v1280
  %v1422 = vadd.f32 %v1123, %v1287
  %v1423 = vadd.f32 %v1125, %v1287
  %v1424 = vadd.f32 %v1127, %v1291
  %v1425 = vadd.f32 %v1129, %v1291
  %v1426 = vadd.f32 %v1133, %v1295
  %v1427 = vadd.f32 %v1135, %v1295
  %v1428 = vadd.f32 %v1137, %v1299
  %v1429 = vadd.f32 %v1139, %v1299
  %v1430 = vadd.f32 %v1143, %v1306
  %v1431 = vadd.f32 %v1145, %v1306
  %v1432 = vadd.f32 %v1147, %v1310
  %v1433 = vadd.f32 %v1149, %v1310
  %v1434 = vadd.f32 %v1153, %v1314
  %v1435 = vadd.f32 %v1155, %v1314
  %v1436 = vadd.f32 %v1157, %v1318
  %v1437 = vadd.f32 %v1159, %v1318
  %v1438 = vadd.f32 %v1163, %v1325
  %v1439 = vadd.f32 %v1165, %v1325
  %v1440 = vadd.f32 %v1167, %v1329
  %v1441 = vadd.f32 %v1169, %v1329
  %v1442 = vadd.f32 %v1173, %v1333
  %v1443 = vadd.f32 %v1175, %v1333
  %v1444 = vadd.f32 %v1177, %v1337
  %v1445 = vadd.f32 %v1179, %v1337
  %v1446 = vadd.f32 %v1183, %v1344
  %v1447 = vadd.f32 %v1185, %v1344
  %v1448 = vadd.f32 %v1187, %v1348
  %v1449 = vadd.f32 %v1189, %v1348
  %v1450 = vadd.f32 %v1193, %v1352
  %v1451 = vadd.f32 %v1195, %v1352
  %v1452 = vadd.f32 %v1197, %v1356
  %v1453 = vadd.f32 %v1199, %v1356
  %v1454 = vadd.f32 %v1203, %v1363
  %v1455 = vadd.f32 %v1205, %v1363
  %v1456 = vadd.f32 %v1207, %v1367
  %v1457 = vadd.f32 %v1209, %v1367
  %v1458 = vadd.f32 %v1213, %v1371
  %v1459 = vadd.f32 %v1215, %v1371
  %v1460 = vadd.f32 %v1217, %v1375
  %v1461 = vadd.f32 %v1219, %v1375
  %v1462 = vadd.f32 %v1223, %v1382
  %v1463 = vadd.f32 %v1225, %v1382
  %v1464 = vadd.f32 %v1227, %v1386
  %v1465 = vadd.f32 %v1229, %v1386
  %v1466 = vadd.f32 %v1233, %v1390
  %v1467 = vadd.f32 %v1235, %v1390
  %v1468 = vadd.f32 %v1237, %v1394
  %v1469 = vadd.f32 %v1239, %v1394
  %v1470 = vadd.f32 %v1243, %v1401
  %v1471 = vadd.f32 %v1245, %v1401
  %v1472 = vadd.f32 %v1247, %v1405
  %v1473 = vadd.f32 %v1249, %v1405
  %v1474 = vadd.f32 %v1253, %v1409
  %v1475 = vadd.f32 %v1255, %v1409
  %v1476 = vadd.f32 %v1257, %v1413
  %v1477 = vadd.f32 %v1259, %v1413
  %v1478 = vmax.f32 %v1414, %v1416
  %v1479 = vmax.f32 %v1478, %v1418
  %v1480 = vmax.f32 %v1479, %v1420
  %v1481 = vrot.slane %v1480, 4
  %v1482 = vmax.f32 %v1480, %v1481
  %v1483 = vrot.slane %v1482, 2
  %v1484 = vmax.f32 %v1482, %v1483
  %v1485 = vrot.slane %v1484, 1
  %v1486 = vmax.f32 %v1484, %v1485
  %v1487 = vmax.f32 %v1415, %v1417
  %v1488 = vmax.f32 %v1487, %v1419
  %v1489 = vmax.f32 %v1488, %v1421
  %v1490 = vrot.slane %v1489, 4
  %v1491 = vmax.f32 %v1489, %v1490
  %v1492 = vrot.slane %v1491, 2
  %v1493 = vmax.f32 %v1491, %v1492
  %v1494 = vrot.slane %v1493, 1
  %v1495 = vmax.f32 %v1493, %v1494
  %v1496 = vmax.f32 %v1422, %v1424
  %v1497 = vmax.f32 %v1496, %v1426
  %v1498 = vmax.f32 %v1497, %v1428
  %v1499 = vrot.slane %v1498, 4
  %v1500 = vmax.f32 %v1498, %v1499
  %v1501 = vrot.slane %v1500, 2
  %v1502 = vmax.f32 %v1500, %v1501
  %v1503 = vrot.slane %v1502, 1
  %v1504 = vmax.f32 %v1502, %v1503
  %v1505 = vmax.f32 %v1423, %v1425
  %v1506 = vmax.f32 %v1505, %v1427
  %v1507 = vmax.f32 %v1506, %v1429
  %v1508 = vrot.slane %v1507, 4
  %v1509 = vmax.f32 %v1507, %v1508
  %v1510 = vrot.slane %v1509, 2
  %v1511 = vmax.f32 %v1509, %v1510
  %v1512 = vrot.slane %v1511, 1
  %v1513 = vmax.f32 %v1511, %v1512
  %v1514 = vmax.f32 %v1430, %v1432
  %v1515 = vmax.f32 %v1514, %v1434
  %v1516 = vmax.f32 %v1515, %v1436
  %v1517 = vrot.slane %v1516, 4
  %v1518 = vmax.f32 %v1516, %v1517
  %v1519 = vrot.slane %v1518, 2
  %v1520 = vmax.f32 %v1518, %v1519
  %v1521 = vrot.slane %v1520, 1
  %v1522 = vmax.f32 %v1520, %v1521
  %v1523 = vmax.f32 %v1431, %v1433
  %v1524 = vmax.f32 %v1523, %v1435
  %v1525 = vmax.f32 %v1524, %v1437
  %v1526 = vrot.slane %v1525, 4
  %v1527 = vmax.f32 %v1525, %v1526
  %v1528 = vrot.slane %v1527, 2
  %v1529 = vmax.f32 %v1527, %v1528
  %v1530 = vrot.slane %v1529, 1
  %v1531 = vmax.f32 %v1529, %v1530
  %v1532 = vmax.f32 %v1438, %v1440
  %v1533 = vmax.f32 %v1532, %v1442
  %v1534 = vmax.f32 %v1533, %v1444
  %v1535 = vrot.slane %v1534, 4
  %v1536 = vmax.f32 %v1534, %v1535
  %v1537 = vrot.slane %v1536, 2
  %v1538 = vmax.f32 %v1536, %v1537
  %v1539 = vrot.slane %v1538, 1
  %v1540 = vmax.f32 %v1538, %v1539
  %v1541 = vmax.f32 %v1439, %v1441
  %v1542 = vmax.f32 %v1541, %v1443
  %v1543 = vmax.f32 %v1542, %v1445
  %v1544 = vrot.slane %v1543, 4
  %v1545 = vmax.f32 %v1543, %v1544
  %v1546 = vrot.slane %v1545, 2
  %v1547 = vmax.f32 %v1545, %v1546
  %v1548 = vrot.slane %v1547, 1
  %v1549 = vmax.f32 %v1547, %v1548
  %v1550 = vmax.f32 %v1446, %v1448
  %v1551 = vmax.f32 %v1550, %v1450
  %v1552 = vmax.f32 %v1551, %v1452
  %v1553 = vrot.slane %v1552, 4
  %v1554 = vmax.f32 %v1552, %v1553
  %v1555 = vrot.slane %v1554, 2
  %v1556 = vmax.f32 %v1554, %v1555
  %v1557 = vrot.slane %v1556, 1
  %v1558 = vmax.f32 %v1556, %v1557
  %v1559 = vmax.f32 %v1447, %v1449
  %v1560 = vmax.f32 %v1559, %v1451
  %v1561 = vmax.f32 %v1560, %v1453
  %v1562 = vrot.slane %v1561, 4
  %v1563 = vmax.f32 %v1561, %v1562
  %v1564 = vrot.slane %v1563, 2
  %v1565 = vmax.f32 %v1563, %v1564
  %v1566 = vrot.slane %v1565, 1
  %v1567 = vmax.f32 %v1565, %v1566
  %v1568 = vmax.f32 %v1454, %v1456
  %v1569 = vmax.f32 %v1568, %v1458
  %v1570 = vmax.f32 %v1569, %v1460
  %v1571 = vrot.slane %v1570, 4
  %v1572 = vmax.f32 %v1570, %v1571
  %v1573 = vrot.slane %v1572, 2
  %v1574 = vmax.f32 %v1572, %v1573
  %v1575 = vrot.slane %v1574, 1
  %v1576 = vmax.f32 %v1574, %v1575
  %v1577 = vmax.f32 %v1455, %v1457
  %v1578 = vmax.f32 %v1577, %v1459
  %v1579 = vmax.f32 %v1578, %v1461
  %v1580 = vrot.slane %v1579, 4
  %v1581 = vmax.f32 %v1579, %v1580
  %v1582 = vrot.slane %v1581, 2
  %v1583 = vmax.f32 %v1581, %v1582
  %v1584 = vrot.slane %v1583, 1
  %v1585 = vmax.f32 %v1583, %v1584
  %v1586 = vmax.f32 %v1462, %v1464
  %v1587 = vmax.f32 %v1586, %v1466
  %v1588 = vmax.f32 %v1587, %v1468
  %v1589 = vrot.slane %v1588, 4
  %v1590 = vmax.f32 %v1588, %v1589
  %v1591 = vrot.slane %v1590, 2
  %v1592 = vmax.f32 %v1590, %v1591
  %v1593 = vrot.slane %v1592, 1
  %v1594 = vmax.f32 %v1592, %v1593
  %v1595 = vmax.f32 %v1463, %v1465
  %v1596 = vmax.f32 %v1595, %v1467
  %v1597 = vmax.f32 %v1596, %v1469
  %v1598 = vrot.slane %v1597, 4
  %v1599 = vmax.f32 %v1597, %v1598
  %v1600 = vrot.slane %v1599, 2
  %v1601 = vmax.f32 %v1599, %v1600
  %v1602 = vrot.slane %v1601, 1
  %v1603 = vmax.f32 %v1601, %v1602
  %v1604 = vmax.f32 %v1470, %v1472
  %v1605 = vmax.f32 %v1604, %v1474
  %v1606 = vmax.f32 %v1605, %v1476
  %v1607 = vrot.slane %v1606, 4
  %v1608 = vmax.f32 %v1606, %v1607
  %v1609 = vrot.slane %v1608, 2
  %v1610 = vmax.f32 %v1608, %v1609
  %v1611 = vrot.slane %v1610, 1
  %v1612 = vmax.f32 %v1610, %v1611
  %v1613 = vmax.f32 %v1471, %v1473
  %v1614 = vmax.f32 %v1613, %v1475
  %v1615 = vmax.f32 %v1614, %v1477
  %v1616 = vrot.slane %v1615, 4
  %v1617 = vmax.f32 %v1615, %v1616
  %v1618 = vrot.slane %v1617, 2
  %v1619 = vmax.f32 %v1617, %v1618
  %v1620 = vrot.slane %v1619, 1
  %v1621 = vmax.f32 %v1619, %v1620
  %v1622 = vmax.f32 %v1486, 0.0
  %v1623 = vmax.f32 %v1495, 0.0
  %v1624 = vmax.f32 %v1504, 0.0
  %v1625 = vmax.f32 %v1513, 0.0
  %v1626 = vmax.f32 %v1522, 0.0
  %v1627 = vmax.f32 %v1531, 0.0
  %v1628 = vmax.f32 %v1540, 0.0
  %v1629 = vmax.f32 %v1549, 0.0
  %v1630 = vmax.f32 %v1558, 0.0
  %v1631 = vmax.f32 %v1567, 0.0
  %v1632 = vmax.f32 %v1576, 0.0
  %v1633 = vmax.f32 %v1585, 0.0
  %v1634 = vmax.f32 %v1594, 0.0
  %v1635 = vmax.f32 %v1603, 0.0
  %v1636 = vmax.f32 %v1612, 0.0
  %v1637 = vmax.f32 %v1621, 0.0
  %vm1654 = vcmask 1041409
  %v1655 = vsel %vm1654, %v1624, %v1622
  %vm1656 = vcmask 1042434
  %v1657 = vsel %vm1656, %v1626, %v1655
  %vm1658 = vcmask 1043459
  %v1659 = vsel %vm1658, %v1628, %v1657
  %vm1660 = vcmask 1044484
  %v1661 = vsel %vm1660, %v1630, %v1659
  %vm1662 = vcmask 1045509
  %v1663 = vsel %vm1662, %v1632, %v1661
  %vm1664 = vcmask 1046534
  %v1665 = vsel %vm1664, %v1634, %v1663
  %vm1666 = vcmask 1047559
  %v1667 = vsel %vm1666, %v1636, %v1665
  %v1668 = vsel %vm1654, %v1625, %v1623
  %v1669 = vsel %vm1656, %v1627, %v1668
  %v1670 = vsel %vm1658, %v1629, %v1669
  %v1671 = vsel %vm1660, %v1631, %v1670
  %v1672 = vsel %vm1662, %v1633, %v1671
  %v1673 = vsel %vm1664, %v1635, %v1672
  %v1674 = vsel %vm1666, %v1637, %v1673
  %1677 = vst [vmem:[%s8] sm:$0xff] %v1667
  %1678 = vst [vmem:[%s8 + $0x8] sm:$0xff] %v1674
  // Predicated region
  $region34: #{feature_model_v3_forward.4} parent=0 // pred_check
    _
  $region35: #{feature_model_v3_forward.4} parent=0 // pred_check_branch
    %1680 = sbr.rel (0) target = $region37
  $region36: #{feature_model_v3_forward.4} parent=0 // pred_region
    _
  $region37: #{feature_model_v3_forward.4} parent=0 // pred_fallthru
    _
  // Predicated region
  $region38: #{feature_model_v3_forward.4} parent=0 // pred_check
    _
  $region39: #{feature_model_v3_forward.4} parent=0 // pred_check_branch
    %1682 = sbr.rel (0) target = $region41
  $region40: #{feature_model_v3_forward.4} parent=0 // pred_region
    _
  $region41: #{feature_model_v3_forward.4} parent=0 // pred_fallthru
    _

// kernel: feature_model_v3_forward.5
$region0: #{feature_model_v3_forward.5}
  #allocation0 [shape = 'u32[]', space=smem, size = 0x4, offset = 0x4, fixed_abs, tag = 'smem constant byte address 0x4 - core index']
  #allocation1 [shape = 'u32[144,128]{1,0:T(1,128)}', space=vmem, size = 0x12000, scoped, tag = 'internal scratch']
  %s0 = inlined_call_operand.vmem [shape: bf16[2,4,256], index: 0, kind: input, shape index: {}]
  %s1 = inlined_call_operand.vmem [shape: bf16[2,4,3], index: 1, kind: input, shape index: {}]
  %s2 = inlined_call_operand.vmem [shape: bf16[256,256], index: 2, kind: input, shape index: {}]
  %s3 = inlined_call_operand.vmem [shape: bf16[3,256], index: 3, kind: input, shape index: {}]
  %s4 = inlined_call_operand.vmem [shape: f32[1,256], index: 4, kind: input, shape index: {}]
  %s5 = inlined_call_operand.vmem [shape: bf16[256,512], index: 5, kind: input, shape index: {}]
  %s6 = inlined_call_operand.vmem [shape: f32[1,512], index: 6, kind: input, shape index: {}]
  %s7 = inlined_call_operand.vmem [shape: bf16[512,256], index: 7, kind: input, shape index: {}]
  %s8 = inlined_call_operand.vmem [shape: f32[1,256], index: 8, kind: input, shape index: {}]
  %s9 = inlined_call_operand.vmem [shape: bf16[256,128], index: 9, kind: input, shape index: {}]
  %s10 = inlined_call_operand.vmem [shape: f32[1,128], index: 10, kind: input, shape index: {}]
  %s11 = inlined_call_operand.hbm [shape: f32[2,1,128], index: 11, kind: output, shape index: {}]
  %s12 = sld [smem:[#allocation0]]
  $region77: #{feature_model_v3_forward.5} parent=0
    _
  %s14 = ssub.s32 1, %s12
  %s15 = scalar_select 0, %s14, %s12
  $region1: #{feature_model_v3_forward.5} parent=0
    #allocation2 [shape = 'u8[1024]{0}', space=vmem, size = 0x400, scoped, tag = 'output window, operand 0']
    #allocation3 [shape = 's32[2]{0}', space=sflag, size = 0x8, scoped, tag = 'scoped memory for feature_model_v3_forward.5']
    %16 = vsyncpa [#allocation3], 0
    %s17 = scalar_lea.sflag [#allocation3], 1
    %18 = vsyncpa %s17, 0
    loop: start=0, step=1, limit=4
    $region2: #{feature_model_v3_forward.5} parent=1 // loop_pre_header
      _
    $region3: #{feature_model_v3_forward.5} parent=1 // loop_header
      %s20 = sphi 0, %s24
      %p21 = scmp.ge.s32.totalorder %s20, 4
      %s30 = sphi 0, %s32
      %s33 = sphi 0, %s30
      %s34 = sphi 0, %s33
      %s50 = sphi 0, %s34
      %s56 = sphi 0, %s58
      %s59 = sphi 0, %s56
      %s60 = sphi 0, %s59
      %s76 = sphi 0, %s60
      %s80 = sphi 0, %s80
      %s82 = sphi 0, %s80
      %s83 = sphi 0, %s82
      %s97 = sphi 0, %s83
      %s101 = sphi 0, %s101
      %s103 = sphi 0, %s101
      %s104 = sphi 0, %s103
      %s118 = sphi 0, %s104
      %s122 = sphi 0, %s122
      %s124 = sphi 0, %s122
      %s125 = sphi 0, %s124
      %s139 = sphi 0, %s125
      %s143 = sphi 0, %s143
      %s145 = sphi 0, %s143
      %s146 = sphi 0, %s145
      %s160 = sphi 0, %s146
      %s164 = sphi 0, %s164
      %s166 = sphi 0, %s164
      %s167 = sphi 0, %s166
      %s181 = sphi 0, %s167
      %s185 = sphi 0, %s185
      %s187 = sphi 0, %s185
      %s188 = sphi 0, %s187
      %s202 = sphi 0, %s188
      %s206 = sphi 0, %s206
      %s208 = sphi 0, %s206
      %s209 = sphi 0, %s208
      %s223 = sphi 0, %s209
      %s227 = sphi 0, %s227
      %s229 = sphi 0, %s227
      %s230 = sphi 0, %s229
      %s244 = sphi 0, %s230
      %s248 = sphi 0, %s248
      %s250 = sphi 0, %s248
      %s251 = sphi 0, %s250
      %s265 = sphi 0, %s251
      %s271 = sphi 0, %s273
      %s274 = sphi 0, %s271
      %s275 = sphi 0, %s274
      %s291 = sphi 0, %s275
    $region4: #{feature_model_v3_forward.5} parent=1 // loop_header_branch
      %23 = sbr.rel (%p21) target = $region8
    $region5: #{feature_model_v3_forward.5} parent=1 // loop_body
      %s25 = ssub.s32 %s20, 1
      %s26 = ssub.s32 %s20, 2
      %s27 = sadd.s32 %s20, 1
      %s28 = ssub.s32 %s20, %s27
      %p29 = scmp.eq.s32.totalorder %s28, 0
      %s31 = sadd.s32 %s30, 1
      %s32 = scalar_select %p29, %s30, %s31
      %p35 = pneg %p29
      %p36 = scmp.eq.s32.totalorder %s20, 1
      %p37 = por %p35, %p36
      %p38 = scmp.ne.s32.totalorder %s30, %s33
      %p39 = scmp.eq.s32.totalorder %s20, 0
      %p40 = por %p38, %p39
      %p41 = scmp.ne.s32.totalorder %s30, %s33
      %p42 = scmp.eq.s32.totalorder %s25, 1
      %p43 = por %p41, %p42
      %p44 = scmp.ne.s32.totalorder %s33, %s34
      %p45 = scmp.eq.s32.totalorder %s25, 0
      %p46 = por %p44, %p45
      %p47 = scmp.ne.s32.totalorder %s33, %s34
      %p48 = scmp.eq.s32.totalorder %s26, 1
      %p49 = por %p47, %p48
      %p51 = scmp.ne.s32.totalorder %s34, %s50
      %p52 = scmp.eq.s32.totalorder %s26, 0
      %p53 = por %p51, %p52
      %s54 = ssub.s32 %s20, %s27
      %p55 = scmp.eq.s32.totalorder %s54, 0
      %s57 = sadd.s32 %s56, 1
      %s58 = scalar_select %p55, %s56, %s57
      %p61 = pneg %p55
      %p62 = scmp.eq.s32.totalorder %s20, 1
      %p63 = por %p61, %p62
      %p64 = scmp.ne.s32.totalorder %s56, %s59
      %p65 = scmp.eq.s32.totalorder %s20, 0
      %p66 = por %p64, %p65
      %p67 = scmp.ne.s32.totalorder %s56, %s59
      %p68 = scmp.eq.s32.totalorder %s25, 1
      %p69 = por %p67, %p68
      %p70 = scmp.ne.s32.totalorder %s59, %s60
      %p71 = scmp.eq.s32.totalorder %s25, 0
      %p72 = por %p70, %p71
      %p73 = scmp.ne.s32.totalorder %s59, %s60
      %p74 = scmp.eq.s32.totalorder %s26, 1
      %p75 = por %p73, %p74
      %p77 = scmp.ne.s32.totalorder %s60, %s76
      %p78 = scmp.eq.s32.totalorder %s26, 0
      %p79 = por %p77, %p78
      %s81 = sadd.s32 %s80, 1
      %p84 = scmp.eq.s32.totalorder %s20, 1
      %p85 = scmp.ne.s32.totalorder %s80, %s82
      %p86 = scmp.eq.s32.totalorder %s20, 0
      %p87 = por %p85, %p86
      %p88 = scmp.ne.s32.totalorder %s80, %s82
      %p89 = scmp.eq.s32.totalorder %s25, 1
      %p90 = por %p88, %p89
      %p91 = scmp.ne.s32.totalorder %s82, %s83
      %p92 = scmp.eq.s32.totalorder %s25, 0
      %p93 = por %p91, %p92
      %p94 = scmp.ne.s32.totalorder %s82, %s83
      %p95 = scmp.eq.s32.totalorder %s26, 1
      %p96 = por %p94, %p95
      %p98 = scmp.ne.s32.totalorder %s83, %s97
      %p99 = scmp.eq.s32.totalorder %s26, 0
      %p100 = por %p98, %p99
      %s102 = sadd.s32 %s101, 1
      %p105 = scmp.eq.s32.totalorder %s20, 1
      %p106 = scmp.ne.s32.totalorder %s101, %s103
      %p107 = scmp.eq.s32.totalorder %s20, 0
      %p108 = por %p106, %p107
      %p109 = scmp.ne.s32.totalorder %s101, %s103
      %p110 = scmp.eq.s32.totalorder %s25, 1
      %p111 = por %p109, %p110
      %p112 = scmp.ne.s32.totalorder %s103, %s104
      %p113 = scmp.eq.s32.totalorder %s25, 0
      %p114 = por %p112, %p113
      %p115 = scmp.ne.s32.totalorder %s103, %s104
      %p116 = scmp.eq.s32.totalorder %s26, 1
      %p117 = por %p115, %p116
      %p119 = scmp.ne.s32.totalorder %s104, %s118
      %p120 = scmp.eq.s32.totalorder %s26, 0
      %p121 = por %p119, %p120
      %s123 = sadd.s32 %s122, 1
      %p126 = scmp.eq.s32.totalorder %s20, 1
      %p127 = scmp.ne.s32.totalorder %s122, %s124
      %p128 = scmp.eq.s32.totalorder %s20, 0
      %p129 = por %p127, %p128
      %p130 = scmp.ne.s32.totalorder %s122, %s124
      %p131 = scmp.eq.s32.totalorder %s25, 1
      %p132 = por %p130, %p131
      %p133 = scmp.ne.s32.totalorder %s124, %s125
      %p134 = scmp.eq.s32.totalorder %s25, 0
      %p135 = por %p133, %p134
      %p136 = scmp.ne.s32.totalorder %s124, %s125
      %p137 = scmp.eq.s32.totalorder %s26, 1
      %p138 = por %p136, %p137
      %p140 = scmp.ne.s32.totalorder %s125, %s139
      %p141 = scmp.eq.s32.totalorder %s26, 0
      %p142 = por %p140, %p141
      %s144 = sadd.s32 %s143, 1
      %p147 = scmp.eq.s32.totalorder %s20, 1
      %p148 = scmp.ne.s32.totalorder %s143, %s145
      %p149 = scmp.eq.s32.totalorder %s20, 0
      %p150 = por %p148, %p149
      %p151 = scmp.ne.s32.totalorder %s143, %s145
      %p152 = scmp.eq.s32.totalorder %s25, 1
      %p153 = por %p151, %p152
      %p154 = scmp.ne.s32.totalorder %s145, %s146
      %p155 = scmp.eq.s32.totalorder %s25, 0
      %p156 = por %p154, %p155
      %p157 = scmp.ne.s32.totalorder %s145, %s146
      %p158 = scmp.eq.s32.totalorder %s26, 1
      %p159 = por %p157, %p158
      %p161 = scmp.ne.s32.totalorder %s146, %s160
      %p162 = scmp.eq.s32.totalorder %s26, 0
      %p163 = por %p161, %p162
      %s165 = sadd.s32 %s164, 1
      %p168 = scmp.eq.s32.totalorder %s20, 1
      %p169 = scmp.ne.s32.totalorder %s164, %s166
      %p170 = scmp.eq.s32.totalorder %s20, 0
      %p171 = por %p169, %p170
      %p172 = scmp.ne.s32.totalorder %s164, %s166
      %p173 = scmp.eq.s32.totalorder %s25, 1
      %p174 = por %p172, %p173
      %p175 = scmp.ne.s32.totalorder %s166, %s167
      %p176 = scmp.eq.s32.totalorder %s25, 0
      %p177 = por %p175, %p176
      %p178 = scmp.ne.s32.totalorder %s166, %s167
      %p179 = scmp.eq.s32.totalorder %s26, 1
      %p180 = por %p178, %p179
      %p182 = scmp.ne.s32.totalorder %s167, %s181
      %p183 = scmp.eq.s32.totalorder %s26, 0
      %p184 = por %p182, %p183
      %s186 = sadd.s32 %s185, 1
      %p189 = scmp.eq.s32.totalorder %s20, 1
      %p190 = scmp.ne.s32.totalorder %s185, %s187
      %p191 = scmp.eq.s32.totalorder %s20, 0
      %p192 = por %p190, %p191
      %p193 = scmp.ne.s32.totalorder %s185, %s187
      %p194 = scmp.eq.s32.totalorder %s25, 1
      %p195 = por %p193, %p194
      %p196 = scmp.ne.s32.totalorder %s187, %s188
      %p197 = scmp.eq.s32.totalorder %s25, 0
      %p198 = por %p196, %p197
      %p199 = scmp.ne.s32.totalorder %s187, %s188
      %p200 = scmp.eq.s32.totalorder %s26, 1
      %p201 = por %p199, %p200
      %p203 = scmp.ne.s32.totalorder %s188, %s202
      %p204 = scmp.eq.s32.totalorder %s26, 0
      %p205 = por %p203, %p204
      %s207 = sadd.s32 %s206, 1
      %p210 = scmp.eq.s32.totalorder %s20, 1
      %p211 = scmp.ne.s32.totalorder %s206, %s208
      %p212 = scmp.eq.s32.totalorder %s20, 0
      %p213 = por %p211, %p212
      %p214 = scmp.ne.s32.totalorder %s206, %s208
      %p215 = scmp.eq.s32.totalorder %s25, 1
      %p216 = por %p214, %p215
      %p217 = scmp.ne.s32.totalorder %s208, %s209
      %p218 = scmp.eq.s32.totalorder %s25, 0
      %p219 = por %p217, %p218
      %p220 = scmp.ne.s32.totalorder %s208, %s209
      %p221 = scmp.eq.s32.totalorder %s26, 1
      %p222 = por %p220, %p221
      %p224 = scmp.ne.s32.totalorder %s209, %s223
      %p225 = scmp.eq.s32.totalorder %s26, 0
      %p226 = por %p224, %p225
      %s228 = sadd.s32 %s227, 1
      %p231 = scmp.eq.s32.totalorder %s20, 1
      %p232 = scmp.ne.s32.totalorder %s227, %s229
      %p233 = scmp.eq.s32.totalorder %s20, 0
      %p234 = por %p232, %p233
      %p235 = scmp.ne.s32.totalorder %s227, %s229
      %p236 = scmp.eq.s32.totalorder %s25, 1
      %p237 = por %p235, %p236
      %p238 = scmp.ne.s32.totalorder %s229, %s230
      %p239 = scmp.eq.s32.totalorder %s25, 0
      %p240 = por %p238, %p239
      %p241 = scmp.ne.s32.totalorder %s229, %s230
      %p242 = scmp.eq.s32.totalorder %s26, 1
      %p243 = por %p241, %p242
      %p245 = scmp.ne.s32.totalorder %s230, %s244
      %p246 = scmp.eq.s32.totalorder %s26, 0
      %p247 = por %p245, %p246
      %s249 = sadd.s32 %s248, 1
      %p252 = scmp.eq.s32.totalorder %s20, 1
      %p253 = scmp.ne.s32.totalorder %s248, %s250
      %p254 = scmp.eq.s32.totalorder %s20, 0
      %p255 = por %p253, %p254
      %p256 = scmp.ne.s32.totalorder %s248, %s250
      %p257 = scmp.eq.s32.totalorder %s25, 1
      %p258 = por %p256, %p257
      %p259 = scmp.ne.s32.totalorder %s250, %s251
      %p260 = scmp.eq.s32.totalorder %s25, 0
      %p261 = por %p259, %p260
      %p262 = scmp.ne.s32.totalorder %s250, %s251
      %p263 = scmp.eq.s32.totalorder %s26, 1
      %p264 = por %p262, %p263
      %p266 = scmp.ne.s32.totalorder %s251, %s265
      %p267 = scmp.eq.s32.totalorder %s26, 0
      %p268 = por %p266, %p267
      %s269 = ssub.s32 %s20, %s27
      %p270 = scmp.eq.s32.totalorder %s269, 0
      %s272 = sadd.s32 %s271, 1
      %s273 = scalar_select %p270, %s271, %s272
      %p276 = pneg %p270
      %p277 = scmp.eq.s32.totalorder %s20, 1
      %p278 = por %p276, %p277
      %p279 = scmp.ne.s32.totalorder %s271, %s274
      %p280 = scmp.eq.s32.totalorder %s20, 0
      %p281 = por %p279, %p280
      %p282 = scmp.ne.s32.totalorder %s271, %s274
      %p283 = scmp.eq.s32.totalorder %s25, 1
      %p284 = por %p282, %p283
      %p285 = scmp.ne.s32.totalorder %s274, %s275
      %p286 = scmp.eq.s32.totalorder %s25, 0
      %p287 = por %p285, %p286
      %p288 = scmp.ne.s32.totalorder %s274, %s275
      %p289 = scmp.eq.s32.totalorder %s26, 1
      %p290 = por %p288, %p289
      %p292 = scmp.ne.s32.totalorder %s275, %s291
      %p293 = scmp.eq.s32.totalorder %s26, 0
      %p294 = por %p292, %p293
      %p295 = scmp.le.s32.totalorder 1, %s20
      %p296 = scmp.lt.s32.totalorder %s20, 3
      %p297 = pnand %p295, %p296
      %p298 = pneg %p297
      // Predicated region
      $region9: #{feature_model_v3_forward.5} parent=5 // pred_check
        _
      $region10: #{feature_model_v3_forward.5} parent=5 // pred_check_branch
        %300 = sbr.rel (%p297) target = $region12
      $region11: #{feature_model_v3_forward.5} parent=5 // pred_region
        %s301 = ssub.s32 %s20, 1
        // Predicated region
        $region13: #{feature_model_v3_forward.5} parent=11 // pred_check
          %p302 = pneg %p93
        $region14: #{feature_model_v3_forward.5} parent=11 // pred_check_branch
          %304 = sbr.rel (%p302) target = $region16
        $region15: #{feature_model_v3_forward.5} parent=11 // pred_region
          _
        $region16: #{feature_model_v3_forward.5} parent=11 // pred_fallthru
          _
        // Predicated region
        $region17: #{feature_model_v3_forward.5} parent=11 // pred_check
          %p305 = pneg %p114
        $region18: #{feature_model_v3_forward.5} parent=11 // pred_check_branch
          %307 = sbr.rel (%p305) target = $region20
        $region19: #{feature_model_v3_forward.5} parent=11 // pred_region
          _
        $region20: #{feature_model_v3_forward.5} parent=11 // pred_fallthru
          _
        // Predicated region
        $region21: #{feature_model_v3_forward.5} parent=11 // pred_check
          %p308 = pneg %p135
        $region22: #{feature_model_v3_forward.5} parent=11 // pred_check_branch
          %310 = sbr.rel (%p308) target = $region24
        $region23: #{feature_model_v3_forward.5} parent=11 // pred_region
          _
        $region24: #{feature_model_v3_forward.5} parent=11 // pred_fallthru
          _
        // Predicated region
        $region25: #{feature_model_v3_forward.5} parent=11 // pred_check
          %p311 = pneg %p156
        $region26: #{feature_model_v3_forward.5} parent=11 // pred_check_branch
          %313 = sbr.rel (%p311) target = $region28
        $region27: #{feature_model_v3_forward.5} parent=11 // pred_region
          _
        $region28: #{feature_model_v3_forward.5} parent=11 // pred_fallthru
          _
        // Predicated region
        $region29: #{feature_model_v3_forward.5} parent=11 // pred_check
          %p314 = pneg %p177
        $region30: #{feature_model_v3_forward.5} parent=11 // pred_check_branch
          %316 = sbr.rel (%p314) target = $region32
        $region31: #{feature_model_v3_forward.5} parent=11 // pred_region
          _
        $region32: #{feature_model_v3_forward.5} parent=11 // pred_fallthru
          _
        // Predicated region
        $region33: #{feature_model_v3_forward.5} parent=11 // pred_check
          %p317 = pneg %p198
        $region34: #{feature_model_v3_forward.5} parent=11 // pred_check_branch
          %319 = sbr.rel (%p317) target = $region36
        $region35: #{feature_model_v3_forward.5} parent=11 // pred_region
          _
        $region36: #{feature_model_v3_forward.5} parent=11 // pred_fallthru
          _
        // Predicated region
        $region37: #{feature_model_v3_forward.5} parent=11 // pred_check
          %p320 = pneg %p219
        $region38: #{feature_model_v3_forward.5} parent=11 // pred_check_branch
          %322 = sbr.rel (%p320) target = $region40
        $region39: #{feature_model_v3_forward.5} parent=11 // pred_region
          _
        $region40: #{feature_model_v3_forward.5} parent=11 // pred_fallthru
          _
        // Predicated region
        $region41: #{feature_model_v3_forward.5} parent=11 // pred_check
          %p323 = pneg %p240
        $region42: #{feature_model_v3_forward.5} parent=11 // pred_check_branch
          %325 = sbr.rel (%p323) target = $region44
        $region43: #{feature_model_v3_forward.5} parent=11 // pred_region
          _
        $region44: #{feature_model_v3_forward.5} parent=11 // pred_fallthru
          _
        // Predicated region
        $region45: #{feature_model_v3_forward.5} parent=11 // pred_check
          %p326 = pneg %p261
        $region46: #{feature_model_v3_forward.5} parent=11 // pred_check_branch
          %328 = sbr.rel (%p326) target = $region48
        $region47: #{feature_model_v3_forward.5} parent=11 // pred_region
          _
        $region48: #{feature_model_v3_forward.5} parent=11 // pred_fallthru
          _
      $region12: #{feature_model_v3_forward.5} parent=5 // pred_fallthru
        _
      %p329 = scmp.lt.s32.totalorder %s20, 2
      // Predicated region
      $region49: #{feature_model_v3_forward.5} parent=5 // pred_check
        %p330 = pneg %p329
      $region50: #{feature_model_v3_forward.5} parent=5 // pred_check_branch
        %332 = sbr.rel (%p330) target = $region52
      $region51: #{feature_model_v3_forward.5} parent=5 // pred_region
        // Predicated region
        $region53: #{feature_model_v3_forward.5} parent=51 // pred_check
          %p333 = pneg %p40
        $region54: #{feature_model_v3_forward.5} parent=51 // pred_check_branch
          %335 = sbr.rel (%p333) target = $region56
        $region55: #{feature_model_v3_forward.5} parent=51 // pred_region
          %p336 = scmp.lt.s32.totalorder %s20, 1
          %s337 = scalar_select %p336, %s20, 1
          %s338 = smul.addr %s337, 2
          %s339 = smul.addr %s338, 2
          %s340 = scalar_lea.vmem %s0, %s339
        $region56: #{feature_model_v3_forward.5} parent=51 // pred_fallthru
          _
        // Predicated region
        $region57: #{feature_model_v3_forward.5} parent=51 // pred_check
          %p341 = pneg %p66
        $region58: #{feature_model_v3_forward.5} parent=51 // pred_check_branch
          %343 = sbr.rel (%p341) target = $region60
        $region59: #{feature_model_v3_forward.5} parent=51 // pred_region
          %p344 = scmp.lt.s32.totalorder %s20, 1
          %s345 = scalar_select %p344, %s20, 1
          %s346 = smul.addr %s345, 2
          %s347 = scalar_lea.vmem %s1, %s346
        $region60: #{feature_model_v3_forward.5} parent=51 // pred_fallthru
          _
      $region52: #{feature_model_v3_forward.5} parent=5 // pred_fallthru
        _
      %p348 = scmp.le.s32.totalorder 1, %s20
      %p349 = scmp.lt.s32.totalorder %s20, 3
      %p350 = pnand %p348, %p349
      %p351 = pneg %p350
      // Predicated region
      $region61: #{feature_model_v3_forward.5} parent=5 // pred_check
        _
      $region62: #{feature_model_v3_forward.5} parent=5 // pred_check_branch
        %353 = sbr.rel (%p350) target = $region64
      $region63: #{feature_model_v3_forward.5} parent=5 // pred_region
        %s354 = ssub.s32 %s20, 1
        %p355 = scmp.lt.s32.totalorder %s25, 1
        %s356 = scalar_select %p355, %s25, 1
        %s357 = smul.addr %s356, 2
        %s358 = smul.addr %s357, 2
        %s359 = scalar_lea.vmem %s0, %s358
        %p360 = pneg %p46
        %p361 = pneg %p43
        %p362 = scmp.lt.s32.totalorder %s25, 1
        %s363 = scalar_select %p362, %s25, 1
        %s364 = smul.addr %s363, 2
        %s365 = scalar_lea.vmem %s1, %s364
        %p366 = pneg %p72
        %p367 = pneg %p69
        %p368 = pneg %p93
        %p369 = pneg %p90
        %p370 = pneg %p114
        %p371 = pneg %p111
        %p372 = pneg %p135
        %p373 = pneg %p132
        %p374 = pneg %p156
        %p375 = pneg %p153
        %p376 = pneg %p177
        %p377 = pneg %p174
        %p378 = pneg %p198
        %p379 = pneg %p195
        %p380 = pneg %p219
        %p381 = pneg %p216
        %p382 = pneg %p240
        %p383 = pneg %p237
        %p384 = pneg %p261
        %p385 = pneg %p258
        %p386 = pneg %p287
        %p387 = pneg %p284
        %s388 = sand.u32 %s274, 1
        %s389 = scalar_lea.sflag [#allocation3], %s388
        %s390 = sand.u32 %s274, 1
        %s391 = scalar_lea.vmem [#allocation2], %s390
        %p392 = scmp.lt.s32.totalorder %s25, 1
        %s393 = scalar_select %p392, %s25, 1
        %s394 = smul.addr %s393, 2
        %s395 = smul.addr %s394, 2
        %s396 = scalar_lea.vmem %s0, %s395
        %p397 = scmp.lt.s32.totalorder %s25, 1
        %s398 = scalar_select %p397, %s25, 1
        %s399 = smul.addr %s398, 2
        %s400 = scalar_lea.vmem %s1, %s399
        %v402 = vld [vmem:[%s396] sm:$0xf]
        %v403 = vld [vmem:[%s400] sm:$0x3]
        %v404 = vld [vmem:[%s2] sm:$0xff]
        %v405 = vld [vmem:[%s2 + $0x8] sm:$0xff]
        %v406 = vld [vmem:[%s2 + $0x10] sm:$0xff]
        %v407 = vld [vmem:[%s2 + $0x18] sm:$0xff]
        %v408 = vld [vmem:[%s2 + $0x20] sm:$0xff]
        %v409 = vld [vmem:[%s2 + $0x28] sm:$0xff]
        %v410 = vld [vmem:[%s2 + $0x30] sm:$0xff]
        %v411 = vld [vmem:[%s2 + $0x38] sm:$0xff]
        %v412 = vld [vmem:[%s2 + $0x40] sm:$0xff]
        %v413 = vld [vmem:[%s2 + $0x48] sm:$0xff]
        %v414 = vld [vmem:[%s2 + $0x50] sm:$0xff]
        %v415 = vld [vmem:[%s2 + $0x58] sm:$0xff]
        %v416 = vld [vmem:[%s2 + $0x60] sm:$0xff]
        %v417 = vld [vmem:[%s2 + $0x68] sm:$0xff]
        %v418 = vld [vmem:[%s2 + $0x70] sm:$0xff]
        %v419 = vld [vmem:[%s2 + $0x78] sm:$0xff]
        %v420 = vld [vmem:[%s2 + $0x80] sm:$0xff]
        %v421 = vld [vmem:[%s2 + $0x88] sm:$0xff]
        %v422 = vld [vmem:[%s2 + $0x90] sm:$0xff]
        %v423 = vld [vmem:[%s2 + $0x98] sm:$0xff]
        %v424 = vld [vmem:[%s2 + $0xa0] sm:$0xff]
        %v425 = vld [vmem:[%s2 + $0xa8] sm:$0xff]
        %v426 = vld [vmem:[%s2 + $0xb0] sm:$0xff]
        %v427 = vld [vmem:[%s2 + $0xb8] sm:$0xff]
        %v428 = vld [vmem:[%s2 + $0xc0] sm:$0xff]
        %v429 = vld [vmem:[%s2 + $0xc8] sm:$0xff]
        %v430 = vld [vmem:[%s2 + $0xd0] sm:$0xff]
        %v431 = vld [vmem:[%s2 + $0xd8] sm:$0xff]
        %v432 = vld [vmem:[%s2 + $0xe0] sm:$0xff]
        %v433 = vld [vmem:[%s2 + $0xe8] sm:$0xff]
        %v434 = vld [vmem:[%s2 + $0xf0] sm:$0xff]
        %v435 = vld [vmem:[%s2 + $0xf8] sm:$0xff]
        %v436 = vld [vmem:[%s3] sm:$0xf]
        %v439 = vunpack.c.l.s4 1983009808
        %v440 = vunpack.c.0.s8 %v439
        %v441 = vlaneseq
        %v442 = vshrl.u32 %v441, 7
        %v443 = vsub.s32 %v440, %v442
        %v444 = vrot.slane %v436, %v443
        %v445 = vcombine.high %v444, %v444
        %vm446 = vcmask 23552
        %v448 = vsel %vm446, %v403, 0
        %vm450 = vcmask 1040384
        %vm451 = vcmask 1041408
        %v452 = vsel %vm450, 4294967295, 65535
        %v453 = vsel %vm451, %v452, 0
        %v455 = vand.u32 %v444, %v453
        %v458 = vand.u32 %v445, %v453
        %460 = vmatprep.subr.bf16.mxu0 %v458
        %461 = vmatpush1.bf16.msra.mxu0 %v455
        %462 = vmatprep.subr.bf16.mxu0 0
        %463 = vmatpush1.bf16.msra.mxu0 0
        %464 = vmatprep.subr.bf16.mxu0 0
        %465 = vmatpush1.bf16.msra.mxu0 0
        %466 = vmatprep.subr.bf16.mxu0 0
        %467 = vmatpush1.bf16.msra.mxu0 0
        %468 = vmatprep.subr.bf16.mxu0 0
        %469 = vmatpush1.bf16.msra.mxu0 0
        %470 = vmatprep.subr.bf16.mxu0 0
        %471 = vmatpush1.bf16.msra.mxu0 0
        %472 = vmatprep.subr.bf16.mxu0 0
        %473 = vmatpush1.bf16.msra.mxu0 0
        %474 = vmatprep.subr.bf16.mxu0 0
        %475 = vmatpush1.bf16.msra.mxu0 0
        %476 = vmatprep.subr.bf16.mxu0 0
        %477 = vmatpush1.bf16.msra.mxu0 0
        %478 = vmatprep.subr.bf16.mxu0 0
        %479 = vmatpush1.bf16.msra.mxu0 0
        %480 = vmatprep.subr.bf16.mxu0 0
        %481 = vmatpush1.bf16.msra.mxu0 0
        %482 = vmatprep.subr.bf16.mxu0 0
        %483 = vmatpush1.bf16.msra.mxu0 0
        %484 = vmatprep.subr.bf16.mxu0 0
        %485 = vmatpush1.bf16.msra.mxu0 0
        %486 = vmatprep.subr.bf16.mxu0 0
        %487 = vmatpush1.bf16.msra.mxu0 0
        %488 = vmatprep.subr.bf16.mxu0 0
        %489 = vmatpush1.bf16.msra.mxu0 0
        %490 = vmatprep.subr.bf16.mxu0 0
        %491 = vmatpush1.bf16.msra.mxu0 0
        %492 = vmatprep.mubr.bf16.mxu0 0
        %493 = vmatmul.mubr.bf16.gmra.mrb[0].mxu0 %v448
        %v494 = vpop.f32.mrb[0].mxu0
        %v495 = vadd.f32 0.0, %v494
        %v496 = vpop.f32.mrb[0].mxu0
        %v497 = vadd.f32 0.0, %v496
        %v498 = vpop.f32.mrb[0].mxu0
        %v499 = vpop.f32.mrb[0].mxu0
        %500 = vdwg.mxu0
        %v503 = vunpack.c.l.s4 1983009808
        %v504 = vunpack.c.0.s8 %v503
        %v505 = vlaneseq
        %v506 = vshrl.u32 %v505, 7
        %v507 = vsub.s32 %v504, %v506
        %v508 = vrot.slane %v402, %v507
        %v509 = vcombine.high %v508, %v508
        %v544 = vunpack.c.l.b16 %v404
        %v545 = vunpack.c.h.b16 %v404
        %v546 = vunpack.c.l.b16 %v405
        %v547 = vunpack.c.h.b16 %v405
        %v548 = vunpack.c.l.b16 %v406
        %v549 = vunpack.c.h.b16 %v406
        %v550 = vunpack.c.l.b16 %v407
        %v551 = vunpack.c.h.b16 %v407
        %v552 = vunpack.c.l.b16 %v408
        %v553 = vunpack.c.h.b16 %v408
        %v554 = vunpack.c.l.b16 %v409
        %v555 = vunpack.c.h.b16 %v409
        %v556 = vunpack.c.l.b16 %v410
        %v557 = vunpack.c.h.b16 %v410
        %v558 = vunpack.c.l.b16 %v411
        %v559 = vunpack.c.h.b16 %v411
        %v560 = vunpack.c.l.b16 %v412
        %v561 = vunpack.c.h.b16 %v412
        %v562 = vunpack.c.l.b16 %v413
        %v563 = vunpack.c.h.b16 %v413
        %v564 = vunpack.c.l.b16 %v414
        %v565 = vunpack.c.h.b16 %v414
        %v566 = vunpack.c.l.b16 %v415
        %v567 = vunpack.c.h.b16 %v415
        %v568 = vunpack.c.l.b16 %v416
        %v569 = vunpack.c.h.b16 %v416
        %v570 = vunpack.c.l.b16 %v417
        %v571 = vunpack.c.h.b16 %v417
        %v572 = vunpack.c.l.b16 %v418
        %v573 = vunpack.c.h.b16 %v418
        %v574 = vunpack.c.l.b16 %v419
        %v575 = vunpack.c.h.b16 %v419
        %v576 = vunpack.c.l.b16 %v420
        %v577 = vunpack.c.h.b16 %v420
        %v578 = vunpack.c.l.b16 %v421
        %v579 = vunpack.c.h.b16 %v421
        %v580 = vunpack.c.l.b16 %v422
        %v581 = vunpack.c.h.b16 %v422
        %v582 = vunpack.c.l.b16 %v423
        %v583 = vunpack.c.h.b16 %v423
        %v584 = vunpack.c.l.b16 %v424
        %v585 = vunpack.c.h.b16 %v424
        %v586 = vunpack.c.l.b16 %v425
        %v587 = vunpack.c.h.b16 %v425
        %v588 = vunpack.c.l.b16 %v426
        %v589 = vunpack.c.h.b16 %v426
        %v590 = vunpack.c.l.b16 %v427
        %v591 = vunpack.c.h.b16 %v427
        %v592 = vunpack.c.l.b16 %v428
        %v593 = vunpack.c.h.b16 %v428
        %v594 = vunpack.c.l.b16 %v429
        %v595 = vunpack.c.h.b16 %v429
        %v596 = vunpack.c.l.b16 %v430
        %v597 = vunpack.c.h.b16 %v430
        %v598 = vunpack.c.l.b16 %v431
        %v599 = vunpack.c.h.b16 %v431
        %v600 = vunpack.c.l.b16 %v432
        %v601 = vunpack.c.h.b16 %v432
        %v602 = vunpack.c.l.b16 %v433
        %v603 = vunpack.c.h.b16 %v433
        %v604 = vunpack.c.l.b16 %v434
        %v605 = vunpack.c.h.b16 %v434
        %v606 = vunpack.c.l.b16 %v435
        %v607 = vunpack.c.h.b16 %v435
        %v608 = vpack.c.b16 %v546, %v544
        %v609 = vpack.c.b16 %v547, %v545
        %v610 = vpack.c.b16 %v550, %v548
        %v611 = vpack.c.b16 %v551, %v549
        %v612 = vpack.c.b16 %v554, %v552
        %v613 = vpack.c.b16 %v555, %v553
        %v614 = vpack.c.b16 %v558, %v556
        %v615 = vpack.c.b16 %v559, %v557
        %v616 = vpack.c.b16 %v562, %v560
        %v617 = vpack.c.b16 %v563, %v561
        %v618 = vpack.c.b16 %v566, %v564
        %v619 = vpack.c.b16 %v567, %v565
        %v620 = vpack.c.b16 %v570, %v568
        %v621 = vpack.c.b16 %v571, %v569
        %v622 = vpack.c.b16 %v574, %v572
        %v623 = vpack.c.b16 %v575, %v573
        %v624 = vpack.c.b16 %v578, %v576
        %v625 = vpack.c.b16 %v579, %v577
        %v626 = vpack.c.b16 %v582, %v580
        %v627 = vpack.c.b16 %v583, %v581
        %v628 = vpack.c.b16 %v586, %v584
        %v629 = vpack.c.b16 %v587, %v585
        %v630 = vpack.c.b16 %v590, %v588
        %v631 = vpack.c.b16 %v591, %v589
        %v632 = vpack.c.b16 %v594, %v592
        %v633 = vpack.c.b16 %v595, %v593
        %v634 = vpack.c.b16 %v598, %v596
        %v635 = vpack.c.b16 %v599, %v597
        %v636 = vpack.c.b16 %v602, %v600
        %v637 = vpack.c.b16 %v603, %v601
        %v638 = vpack.c.b16 %v606, %v604
        %v639 = vpack.c.b16 %v607, %v605
        %672 = vmatprep.subr.bf16.mxu0 %v609
        %673 = vmatpush1.bf16.msra.mxu0 %v608
        %674 = vmatprep.subr.bf16.mxu0 %v611
        %675 = vmatpush1.bf16.msra.mxu0 %v610
        %676 = vmatprep.subr.bf16.mxu0 %v613
        %677 = vmatpush1.bf16.msra.mxu0 %v612
        %678 = vmatprep.subr.bf16.mxu0 %v615
        %679 = vmatpush1.bf16.msra.mxu0 %v614
        %680 = vmatprep.subr.bf16.mxu0 %v617
        %681 = vmatpush1.bf16.msra.mxu0 %v616
        %682 = vmatprep.subr.bf16.mxu0 %v619
        %683 = vmatpush1.bf16.msra.mxu0 %v618
        %684 = vmatprep.subr.bf16.mxu0 %v621
        %685 = vmatpush1.bf16.msra.mxu0 %v620
        %686 = vmatprep.subr.bf16.mxu0 %v623
        %687 = vmatpush1.bf16.msra.mxu0 %v622
        %688 = vmatprep.subr.bf16.mxu0 %v625
        %689 = vmatpush1.bf16.msra.mxu0 %v624
        %690 = vmatprep.subr.bf16.mxu0 %v627
        %691 = vmatpush1.bf16.msra.mxu0 %v626
        %692 = vmatprep.subr.bf16.mxu0 %v629
        %693 = vmatpush1.bf16.msra.mxu0 %v628
        %694 = vmatprep.subr.bf16.mxu0 %v631
        %695 = vmatpush1.bf16.msra.mxu0 %v630
        %696 = vmatprep.subr.bf16.mxu0 %v633
        %697 = vmatpush1.bf16.msra.mxu0 %v632
        %698 = vmatprep.subr.bf16.mxu0 %v635
        %699 = vmatpush1.bf16.msra.mxu0 %v634
        %700 = vmatprep.subr.bf16.mxu0 %v637
        %701 = vmatpush1.bf16.msra.mxu0 %v636
        %702 = vmatprep.subr.bf16.mxu0 %v639
        %703 = vmatpush1.bf16.msra.mxu0 %v638
        %704 = vmatprep.mubr.bf16.mxu0 %v509
        %705 = vmatmul.mubr.bf16.gmra.mrb[0].mxu0 %v508
        %v706 = vpop.f32.mrb[0].mxu0
        %v707 = vadd.f32 %v495, %v706
        %v708 = vpop.f32.mrb[0].mxu0
        %v709 = vadd.f32 %v497, %v708
        %v710 = vpop.f32.mrb[0].mxu0
        %v711 = vpop.f32.mrb[0].mxu0
        %712 = vdwg.mxu0
        %v713 = vld [vmem:[%s4] sm:$0x3]
        %v715 = vlaneseq
        %v716 = vshrl.u32 %v715, 7
        %v717 = vsub.s32 0, %v716
        %v718 = vrot.slane %v713, %v717
        %v719 = vlaneseq
        %v720 = vshrl.u32 %v719, 7
        %v721 = vsub.s32 1, %v720
        %v722 = vrot.slane %v713, %v721
        %v725 = vadd.f32 %v707, %v718
        %v726 = vadd.f32 %v709, %v722
        %v727 = vxor.u32 %v725, 2147483648
        %v728 = vxor.u32 %v726, 2147483648
        %v729 = vmul.f32 %v727, 1.442695
        %v730 = vpow.pop %v729
        %v731 = vmul.f32 %v728, 1.442695
        %v732 = vpow.pop %v731
        %v733 = vadd.f32 %v730, 1.0
        %v734 = vadd.f32 %v732, 1.0
        %v735 = vrcp.pop %v733
        %v736 = vmul.f32 1.0, %v735
        %v737 = vrcp.pop %v734
        %v738 = vmul.f32 1.0, %v737
        %v739 = vpack.c.bf16 %v736, %v736
        %v740 = vpack.c.bf16 %v738, %v738
        %v741 = vld [vmem:[%s5] sm:$0xff]
        %v742 = vld [vmem:[%s5 + $0x8] sm:$0xff]
        %v743 = vld [vmem:[%s5 + $0x10] sm:$0xff]
        %v744 = vld [vmem:[%s5 + $0x18] sm:$0xff]
        %v745 = vld [vmem:[%s5 + $0x20] sm:$0xff]
        %v746 = vld [vmem:[%s5 + $0x28] sm:$0xff]
        %v747 = vld [vmem:[%s5 + $0x30] sm:$0xff]
        %v748 = vld [vmem:[%s5 + $0x38] sm:$0xff]
        %v749 = vld [vmem:[%s5 + $0x40] sm:$0xff]
        %v750 = vld [vmem:[%s5 + $0x48] sm:$0xff]
        %v751 = vld [vmem:[%s5 + $0x50] sm:$0xff]
        %v752 = vld [vmem:[%s5 + $0x58] sm:$0xff]
        %v753 = vld [vmem:[%s5 + $0x60] sm:$0xff]
        %v754 = vld [vmem:[%s5 + $0x68] sm:$0xff]
        %v755 = vld [vmem:[%s5 + $0x70] sm:$0xff]
        %v756 = vld [vmem:[%s5 + $0x78] sm:$0xff]
        %v757 = vld [vmem:[%s5 + $0x80] sm:$0xff]
        %v758 = vld [vmem:[%s5 + $0x88] sm:$0xff]
        %v759 = vld [vmem:[%s5 + $0x90] sm:$0xff]
        %v760 = vld [vmem:[%s5 + $0x98] sm:$0xff]
        %v761 = vld [vmem:[%s5 + $0xa0] sm:$0xff]
        %v762 = vld [vmem:[%s5 + $0xa8] sm:$0xff]
        %v763 = vld [vmem:[%s5 + $0xb0] sm:$0xff]
        %v764 = vld [vmem:[%s5 + $0xb8] sm:$0xff]
        %v765 = vld [vmem:[%s5 + $0xc0] sm:$0xff]
        %v766 = vld [vmem:[%s5 + $0xc8] sm:$0xff]
        %v767 = vld [vmem:[%s5 + $0xd0] sm:$0xff]
        %v768 = vld [vmem:[%s5 + $0xd8] sm:$0xff]
        %v769 = vld [vmem:[%s5 + $0xe0] sm:$0xff]
        %v770 = vld [vmem:[%s5 + $0xe8] sm:$0xff]
        %v771 = vld [vmem:[%s5 + $0xf0] sm:$0xff]
        %v772 = vld [vmem:[%s5 + $0xf8] sm:$0xff]
        %v773 = vld [vmem:[%s5 + $0x100] sm:$0xff]
        %v774 = vld [vmem:[%s5 + $0x108] sm:$0xff]
        %v775 = vld [vmem:[%s5 + $0x110] sm:$0xff]
        %v776 = vld [vmem:[%s5 + $0x118] sm:$0xff]
        %v777 = vld [vmem:[%s5 + $0x120] sm:$0xff]
        %v778 = vld [vmem:[%s5 + $0x128] sm:$0xff]
        %v779 = vld [vmem:[%s5 + $0x130] sm:$0xff]
        %v780 = vld [vmem:[%s5 + $0x138] sm:$0xff]
        %v781 = vld [vmem:[%s5 + $0x140] sm:$0xff]
        %v782 = vld [vmem:[%s5 + $0x148] sm:$0xff]
        %v783 = vld [vmem:[%s5 + $0x150] sm:$0xff]
        %v784 = vld [vmem:[%s5 + $0x158] sm:$0xff]
        %v785 = vld [vmem:[%s5 + $0x160] sm:$0xff]
        %v786 = vld [vmem:[%s5 + $0x168] sm:$0xff]
        %v787 = vld [vmem:[%s5 + $0x170] sm:$0xff]
        %v788 = vld [vmem:[%s5 + $0x178] sm:$0xff]
        %v789 = vld [vmem:[%s5 + $0x180] sm:$0xff]
        %v790 = vld [vmem:[%s5 + $0x188] sm:$0xff]
        %v791 = vld [vmem:[%s5 + $0x190] sm:$0xff]
        %v792 = vld [vmem:[%s5 + $0x198] sm:$0xff]
        %v793 = vld [vmem:[%s5 + $0x1a0] sm:$0xff]
        %v794 = vld [vmem:[%s5 + $0x1a8] sm:$0xff]
        %v795 = vld [vmem:[%s5 + $0x1b0] sm:$0xff]
        %v796 = vld [vmem:[%s5 + $0x1b8] sm:$0xff]
        %v797 = vld [vmem:[%s5 + $0x1c0] sm:$0xff]
        %v798 = vld [vmem:[%s5 + $0x1c8] sm:$0xff]
        %v799 = vld [vmem:[%s5 + $0x1d0] sm:$0xff]
        %v800 = vld [vmem:[%s5 + $0x1d8] sm:$0xff]
        %v801 = vld [vmem:[%s5 + $0x1e0] sm:$0xff]
        %v802 = vld [vmem:[%s5 + $0x1e8] sm:$0xff]
        %v803 = vld [vmem:[%s5 + $0x1f0] sm:$0xff]
        %v804 = vld [vmem:[%s5 + $0x1f8] sm:$0xff]
        %v805 = vld [vmem:[%s6] sm:$0xf]
        %v807 = vlaneseq
        %v808 = vshrl.u32 %v807, 7
        %v809 = vsub.s32 0, %v808
        %v810 = vrot.slane %v805, %v809
        %v811 = vlaneseq
        %v812 = vshrl.u32 %v811, 7
        %v813 = vsub.s32 1, %v812
        %v814 = vrot.slane %v805, %v813
        %v815 = vlaneseq
        %v816 = vshrl.u32 %v815, 7
        %v817 = vsub.s32 2, %v816
        %v818 = vrot.slane %v805, %v817
        %v819 = vlaneseq
        %v820 = vshrl.u32 %v819, 7
        %v821 = vsub.s32 3, %v820
        %v822 = vrot.slane %v805, %v821
        %v891 = vunpack.c.l.b16 %v741
        %v892 = vunpack.c.h.b16 %v741
        %v893 = vunpack.c.l.b16 %v742
        %v894 = vunpack.c.h.b16 %v742
        %v895 = vunpack.c.l.b16 %v743
        %v896 = vunpack.c.h.b16 %v743
        %v897 = vunpack.c.l.b16 %v744
        %v898 = vunpack.c.h.b16 %v744
        %v899 = vunpack.c.l.b16 %v745
        %v900 = vunpack.c.h.b16 %v745
        %v901 = vunpack.c.l.b16 %v746
        %v902 = vunpack.c.h.b16 %v746
        %v903 = vunpack.c.l.b16 %v747
        %v904 = vunpack.c.h.b16 %v747
        %v905 = vunpack.c.l.b16 %v748
        %v906 = vunpack.c.h.b16 %v748
        %v907 = vunpack.c.l.b16 %v749
        %v908 = vunpack.c.h.b16 %v749
        %v909 = vunpack.c.l.b16 %v750
        %v910 = vunpack.c.h.b16 %v750
        %v911 = vunpack.c.l.b16 %v751
        %v912 = vunpack.c.h.b16 %v751
        %v913 = vunpack.c.l.b16 %v752
        %v914 = vunpack.c.h.b16 %v752
        %v915 = vunpack.c.l.b16 %v753
        %v916 = vunpack.c.h.b16 %v753
        %v917 = vunpack.c.l.b16 %v754
        %v918 = vunpack.c.h.b16 %v754
        %v919 = vunpack.c.l.b16 %v755
        %v920 = vunpack.c.h.b16 %v755
        %v921 = vunpack.c.l.b16 %v756
        %v922 = vunpack.c.h.b16 %v756
        %v923 = vunpack.c.l.b16 %v757
        %v924 = vunpack.c.h.b16 %v757
        %v925 = vunpack.c.l.b16 %v758
        %v926 = vunpack.c.h.b16 %v758
        %v927 = vunpack.c.l.b16 %v759
        %v928 = vunpack.c.h.b16 %v759
        %v929 = vunpack.c.l.b16 %v760
        %v930 = vunpack.c.h.b16 %v760
        %v931 = vunpack.c.l.b16 %v761
        %v932 = vunpack.c.h.b16 %v761
        %v933 = vunpack.c.l.b16 %v762
        %v934 = vunpack.c.h.b16 %v762
        %v935 = vunpack.c.l.b16 %v763
        %v936 = vunpack.c.h.b16 %v763
        %v937 = vunpack.c.l.b16 %v764
        %v938 = vunpack.c.h.b16 %v764
        %v939 = vunpack.c.l.b16 %v765
        %v940 = vunpack.c.h.b16 %v765
        %v941 = vunpack.c.l.b16 %v766
        %v942 = vunpack.c.h.b16 %v766
        %v943 = vunpack.c.l.b16 %v767
        %v944 = vunpack.c.h.b16 %v767
        %v945 = vunpack.c.l.b16 %v768
        %v946 = vunpack.c.h.b16 %v768
        %v947 = vunpack.c.l.b16 %v769
        %v948 = vunpack.c.h.b16 %v769
        %v949 = vunpack.c.l.b16 %v770
        %v950 = vunpack.c.h.b16 %v770
        %v951 = vunpack.c.l.b16 %v771
        %v952 = vunpack.c.h.b16 %v771
        %v953 = vunpack.c.l.b16 %v772
        %v954 = vunpack.c.h.b16 %v772
        %v955 = vunpack.c.l.b16 %v773
        %v956 = vunpack.c.h.b16 %v773
        %v957 = vunpack.c.l.b16 %v774
        %v958 = vunpack.c.h.b16 %v774
        %v959 = vunpack.c.l.b16 %v775
        %v960 = vunpack.c.h.b16 %v775
        %v961 = vunpack.c.l.b16 %v776
        %v962 = vunpack.c.h.b16 %v776
        %v963 = vunpack.c.l.b16 %v777
        %v964 = vunpack.c.h.b16 %v777
        %v965 = vunpack.c.l.b16 %v778
        %v966 = vunpack.c.h.b16 %v778
        %v967 = vunpack.c.l.b16 %v779
        %v968 = vunpack.c.h.b16 %v779
        %v969 = vunpack.c.l.b16 %v780
        %v970 = vunpack.c.h.b16 %v780
        %v971 = vunpack.c.l.b16 %v781
        %v972 = vunpack.c.h.b16 %v781
        %v973 = vunpack.c.l.b16 %v782
        %v974 = vunpack.c.h.b16 %v782
        %v975 = vunpack.c.l.b16 %v783
        %v976 = vunpack.c.h.b16 %v783
        %v977 = vunpack.c.l.b16 %v784
        %v978 = vunpack.c.h.b16 %v784
        %v979 = vunpack.c.l.b16 %v785
        %v980 = vunpack.c.h.b16 %v785
        %v981 = vunpack.c.l.b16 %v786
        %v982 = vunpack.c.h.b16 %v786
        %v983 = vunpack.c.l.b16 %v787
        %v984 = vunpack.c.h.b16 %v787
        %v985 = vunpack.c.l.b16 %v788
        %v986 = vunpack.c.h.b16 %v788
        %v987 = vunpack.c.l.b16 %v789
        %v988 = vunpack.c.h.b16 %v789
        %v989 = vunpack.c.l.b16 %v790
        %v990 = vunpack.c.h.b16 %v790
        %v991 = vunpack.c.l.b16 %v791
        %v992 = vunpack.c.h.b16 %v791
        %v993 = vunpack.c.l.b16 %v792
        %v994 = vunpack.c.h.b16 %v792
        %v995 = vunpack.c.l.b16 %v793
        %v996 = vunpack.c.h.b16 %v793
        %v997 = vunpack.c.l.b16 %v794
        %v998 = vunpack.c.h.b16 %v794
        %v999 = vunpack.c.l.b16 %v795
        %v1000 = vunpack.c.h.b16 %v795
        %v1001 = vunpack.c.l.b16 %v796
        %v1002 = vunpack.c.h.b16 %v796
        %v1003 = vunpack.c.l.b16 %v797
        %v1004 = vunpack.c.h.b16 %v797
        %v1005 = vunpack.c.l.b16 %v798
        %v1006 = vunpack.c.h.b16 %v798
        %v1007 = vunpack.c.l.b16 %v799
        %v1008 = vunpack.c.h.b16 %v799
        %v1009 = vunpack.c.l.b16 %v800
        %v1010 = vunpack.c.h.b16 %v800
        %v1011 = vunpack.c.l.b16 %v801
        %v1012 = vunpack.c.h.b16 %v801
        %v1013 = vunpack.c.l.b16 %v802
        %v1014 = vunpack.c.h.b16 %v802
        %v1015 = vunpack.c.l.b16 %v803
        %v1016 = vunpack.c.h.b16 %v803
        %v1017 = vunpack.c.l.b16 %v804
        %v1018 = vunpack.c.h.b16 %v804
        %v1019 = vpack.c.b16 %v895, %v891
        %v1020 = vpack.c.b16 %v896, %v892
        %v1021 = vpack.c.b16 %v897, %v893
        %v1022 = vpack.c.b16 %v898, %v894
        %v1023 = vpack.c.b16 %v903, %v899
        %v1024 = vpack.c.b16 %v904, %v900
        %v1025 = vpack.c.b16 %v905, %v901
        %v1026 = vpack.c.b16 %v906, %v902
        %v1027 = vpack.c.b16 %v911, %v907
        %v1028 = vpack.c.b16 %v912, %v908
        %v1029 = vpack.c.b16 %v913, %v909
        %v1030 = vpack.c.b16 %v914, %v910
        %v1031 = vpack.c.b16 %v919, %v915
        %v1032 = vpack.c.b16 %v920, %v916
        %v1033 = vpack.c.b16 %v921, %v917
        %v1034 = vpack.c.b16 %v922, %v918
        %v1035 = vpack.c.b16 %v927, %v923
        %v1036 = vpack.c.b16 %v928, %v924
        %v1037 = vpack.c.b16 %v929, %v925
        %v1038 = vpack.c.b16 %v930, %v926
        %v1039 = vpack.c.b16 %v935, %v931
        %v1040 = vpack.c.b16 %v936, %v932
        %v1041 = vpack.c.b16 %v937, %v933
        %v1042 = vpack.c.b16 %v938, %v934
        %v1043 = vpack.c.b16 %v943, %v939
        %v1044 = vpack.c.b16 %v944, %v940
        %v1045 = vpack.c.b16 %v945, %v941
        %v1046 = vpack.c.b16 %v946, %v942
        %v1047 = vpack.c.b16 %v951, %v947
        %v1048 = vpack.c.b16 %v952, %v948
        %v1049 = vpack.c.b16 %v953, %v949
        %v1050 = vpack.c.b16 %v954, %v950
        %v1051 = vpack.c.b16 %v959, %v955
        %v1052 = vpack.c.b16 %v960, %v956
        %v1053 = vpack.c.b16 %v961, %v957
        %v1054 = vpack.c.b16 %v962, %v958
        %v1055 = vpack.c.b16 %v967, %v963
        %v1056 = vpack.c.b16 %v968, %v964
        %v1057 = vpack.c.b16 %v969, %v965
        %v1058 = vpack.c.b16 %v970, %v966
        %v1059 = vpack.c.b16 %v975, %v971
        %v1060 = vpack.c.b16 %v976, %v972
        %v1061 = vpack.c.b16 %v977, %v973
        %v1062 = vpack.c.b16 %v978, %v974
        %v1063 = vpack.c.b16 %v983, %v979
        %v1064 = vpack.c.b16 %v984, %v980
        %v1065 = vpack.c.b16 %v985, %v981
        %v1066 = vpack.c.b16 %v986, %v982
        %v1067 = vpack.c.b16 %v991, %v987
        %v1068 = vpack.c.b16 %v992, %v988
        %v1069 = vpack.c.b16 %v993, %v989
        %v1070 = vpack.c.b16 %v994, %v990
        %v1071 = vpack.c.b16 %v999, %v995
        %v1072 = vpack.c.b16 %v1000, %v996
        %v1073 = vpack.c.b16 %v1001, %v997
        %v1074 = vpack.c.b16 %v1002, %v998
        %v1075 = vpack.c.b16 %v1007, %v1003
        %v1076 = vpack.c.b16 %v1008, %v1004
        %v1077 = vpack.c.b16 %v1009, %v1005
        %v1078 = vpack.c.b16 %v1010, %v1006
        %v1079 = vpack.c.b16 %v1015, %v1011
        %v1080 = vpack.c.b16 %v1016, %v1012
        %v1081 = vpack.c.b16 %v1017, %v1013
        %v1082 = vpack.c.b16 %v1018, %v1014
        %1147 = vmatprep.subr.bf16.mxu0 %v1020
        %1148 = vmatpush1.bf16.msra.mxu0 %v1019
        %1149 = vmatprep.subr.bf16.mxu0 %v1024
        %1150 = vmatpush1.bf16.msra.mxu0 %v1023
        %1151 = vmatprep.subr.bf16.mxu0 %v1028
        %1152 = vmatpush1.bf16.msra.mxu0 %v1027
        %1153 = vmatprep.subr.bf16.mxu0 %v1032
        %1154 = vmatpush1.bf16.msra.mxu0 %v1031
        %1155 = vmatprep.subr.bf16.mxu0 %v1036
        %1156 = vmatpush1.bf16.msra.mxu0 %v1035
        %1157 = vmatprep.subr.bf16.mxu0 %v1040
        %1158 = vmatpush1.bf16.msra.mxu0 %v1039
        %1159 = vmatprep.subr.bf16.mxu0 %v1044
        %1160 = vmatpush1.bf16.msra.mxu0 %v1043
        %1161 = vmatprep.subr.bf16.mxu0 %v1048
        %1162 = vmatpush1.bf16.msra.mxu0 %v1047
        %1163 = vmatprep.subr.bf16.mxu0 %v1052
        %1164 = vmatpush1.bf16.msra.mxu0 %v1051
        %1165 = vmatprep.subr.bf16.mxu0 %v1056
        %1166 = vmatpush1.bf16.msra.mxu0 %v1055
        %1167 = vmatprep.subr.bf16.mxu0 %v1060
        %1168 = vmatpush1.bf16.msra.mxu0 %v1059
        %1169 = vmatprep.subr.bf16.mxu0 %v1064
        %1170 = vmatpush1.bf16.msra.mxu0 %v1063
        %1171 = vmatprep.subr.bf16.mxu0 %v1068
        %1172 = vmatpush1.bf16.msra.mxu0 %v1067
        %1173 = vmatprep.subr.bf16.mxu0 %v1072
        %1174 = vmatpush1.bf16.msra.mxu0 %v1071
        %1175 = vmatprep.subr.bf16.mxu0 %v1076
        %1176 = vmatpush1.bf16.msra.mxu0 %v1075
        %1177 = vmatprep.subr.bf16.mxu0 %v1080
        %1178 = vmatpush1.bf16.msra.mxu0 %v1079
        %1179 = vmatprep.mubr.bf16.mxu0 %v740
        %1180 = vmatmul.mubr.bf16.gmra.mrb[0].mxu0 %v739
        %v1181 = vpop.f32.mrb[0].mxu0
        %v1182 = vadd.f32 %v810, %v1181
        %v1183 = vpop.f32.mrb[0].mxu0
        %v1184 = vadd.f32 %v814, %v1183
        %v1185 = vpop.f32.mrb[0].mxu0
        %v1186 = vpop.f32.mrb[0].mxu0
        %1187 = vdwg.mxu0
        %1188 = vmatprep.subr.bf16.mxu0 %v1022
        %1189 = vmatpush1.bf16.msra.mxu0 %v1021
        %1190 = vmatprep.subr.bf16.mxu0 %v1026
        %1191 = vmatpush1.bf16.msra.mxu0 %v1025
        %1192 = vmatprep.subr.bf16.mxu0 %v1030
        %1193 = vmatpush1.bf16.msra.mxu0 %v1029
        %1194 = vmatprep.subr.bf16.mxu0 %v1034
        %1195 = vmatpush1.bf16.msra.mxu0 %v1033
        %1196 = vmatprep.subr.bf16.mxu0 %v1038
        %1197 = vmatpush1.bf16.msra.mxu0 %v1037
        %1198 = vmatprep.subr.bf16.mxu0 %v1042
        %1199 = vmatpush1.bf16.msra.mxu0 %v1041
        %1200 = vmatprep.subr.bf16.mxu0 %v1046
        %1201 = vmatpush1.bf16.msra.mxu0 %v1045
        %1202 = vmatprep.subr.bf16.mxu0 %v1050
        %1203 = vmatpush1.bf16.msra.mxu0 %v1049
        %1204 = vmatprep.subr.bf16.mxu0 %v1054
        %1205 = vmatpush1.bf16.msra.mxu0 %v1053
        %1206 = vmatprep.subr.bf16.mxu0 %v1058
        %1207 = vmatpush1.bf16.msra.mxu0 %v1057
        %1208 = vmatprep.subr.bf16.mxu0 %v1062
        %1209 = vmatpush1.bf16.msra.mxu0 %v1061
        %1210 = vmatprep.subr.bf16.mxu0 %v1066
        %1211 = vmatpush1.bf16.msra.mxu0 %v1065
        %1212 = vmatprep.subr.bf16.mxu0 %v1070
        %1213 = vmatpush1.bf16.msra.mxu0 %v1069
        %1214 = vmatprep.subr.bf16.mxu0 %v1074
        %1215 = vmatpush1.bf16.msra.mxu0 %v1073
        %1216 = vmatprep.subr.bf16.mxu0 %v1078
        %1217 = vmatpush1.bf16.msra.mxu0 %v1077
        %1218 = vmatprep.subr.bf16.mxu0 %v1082
        %1219 = vmatpush1.bf16.msra.mxu0 %v1081
        %1220 = vmatprep.mubr.bf16.mxu0 %v740
        %1221 = vmatmul.mubr.bf16.gmra.mrb[0].mxu0 %v739
        %v1222 = vpop.f32.mrb[0].mxu0
        %v1223 = vadd.f32 %v818, %v1222
        %v1224 = vpop.f32.mrb[0].mxu0
        %v1225 = vadd.f32 %v822, %v1224
        %v1226 = vpop.f32.mrb[0].mxu0
        %v1227 = vpop.f32.mrb[0].mxu0
        %1228 = vdwg.mxu0
        %v1229 = vmax.f32 %v1182, 0.0
        %v1230 = vmax.f32 %v1184, 0.0
        %v1231 = vmax.f32 %v1223, 0.0
        %v1232 = vmax.f32 %v1225, 0.0
        %vm1233 = vcmask 1043456
        %v1234 = vsel %vm1233, %v1229, -inf
        %v1235 = vrot.slane %v1234, 4
        %v1236 = vmax.f32 %v1234, %v1235
        %v1237 = vrot.slane %v1236, 2
        %v1238 = vmax.f32 %v1236, %v1237
        %v1239 = vrot.slane %v1238, 1
        %v1240 = vmax.f32 %v1238, %v1239
        %v1241 = vsel %vm1233, %v1230, -inf
        %v1242 = vrot.slane %v1241, 4
        %v1243 = vmax.f32 %v1241, %v1242
        %v1244 = vrot.slane %v1243, 2
        %v1245 = vmax.f32 %v1243, %v1244
        %v1246 = vrot.slane %v1245, 1
        %v1247 = vmax.f32 %v1245, %v1246
        %v1248 = vsel %vm1233, %v1231, -inf
        %v1249 = vrot.slane %v1248, 4
        %v1250 = vmax.f32 %v1248, %v1249
        %v1251 = vrot.slane %v1250, 2
        %v1252 = vmax.f32 %v1250, %v1251
        %v1253 = vrot.slane %v1252, 1
        %v1254 = vmax.f32 %v1252, %v1253
        %v1255 = vsel %vm1233, %v1232, -inf
        %v1256 = vrot.slane %v1255, 4
        %v1257 = vmax.f32 %v1255, %v1256
        %v1258 = vrot.slane %v1257, 2
        %v1259 = vmax.f32 %v1257, %v1258
        %v1260 = vrot.slane %v1259, 1
        %v1261 = vmax.f32 %v1259, %v1260
        %v1262 = vpack.c.bf16 %v1240, %v1240
        %v1263 = vpack.c.bf16 %v1247, %v1247
        %v1264 = vpack.c.bf16 %v1254, %v1254
        %v1265 = vpack.c.bf16 %v1261, %v1261
        %v1266 = vld [vmem:[%s7] sm:$0xff]
        %v1267 = vld [vmem:[%s7 + $0x8] sm:$0xff]
        %v1268 = vld [vmem:[%s7 + $0x10] sm:$0xff]
        %v1269 = vld [vmem:[%s7 + $0x18] sm:$0xff]
        %v1270 = vld [vmem:[%s7 + $0x20] sm:$0xff]
        %v1271 = vld [vmem:[%s7 + $0x28] sm:$0xff]
        %v1272 = vld [vmem:[%s7 + $0x30] sm:$0xff]
        %v1273 = vld [vmem:[%s7 + $0x38] sm:$0xff]
        %v1274 = vld [vmem:[%s7 + $0x40] sm:$0xff]
        %v1275 = vld [vmem:[%s7 + $0x48] sm:$0xff]
        %v1276 = vld [vmem:[%s7 + $0x50] sm:$0xff]
        %v1277 = vld [vmem:[%s7 + $0x58] sm:$0xff]
        %v1278 = vld [vmem:[%s7 + $0x60] sm:$0xff]
        %v1279 = vld [vmem:[%s7 + $0x68] sm:$0xff]
        %v1280 = vld [vmem:[%s7 + $0x70] sm:$0xff]
        %v1281 = vld [vmem:[%s7 + $0x78] sm:$0xff]
        %v1282 = vld [vmem:[%s7 + $0x80] sm:$0xff]
        %v1283 = vld [vmem:[%s7 + $0x88] sm:$0xff]
        %v1284 = vld [vmem:[%s7 + $0x90] sm:$0xff]
        %v1285 = vld [vmem:[%s7 + $0x98] sm:$0xff]
        %v1286 = vld [vmem:[%s7 + $0xa0] sm:$0xff]
        %v1287 = vld [vmem:[%s7 + $0xa8] sm:$0xff]
        %v1288 = vld [vmem:[%s7 + $0xb0] sm:$0xff]
        %v1289 = vld [vmem:[%s7 + $0xb8] sm:$0xff]
        %v1290 = vld [vmem:[%s7 + $0xc0] sm:$0xff]
        %v1291 = vld [vmem:[%s7 + $0xc8] sm:$0xff]
        %v1292 = vld [vmem:[%s7 + $0xd0] sm:$0xff]
        %v1293 = vld [vmem:[%s7 + $0xd8] sm:$0xff]
        %v1294 = vld [vmem:[%s7 + $0xe0] sm:$0xff]
        %v1295 = vld [vmem:[%s7 + $0xe8] sm:$0xff]
        %v1296 = vld [vmem:[%s7 + $0xf0] sm:$0xff]
        %v1297 = vld [vmem:[%s7 + $0xf8] sm:$0xff]
        %v1298 = vld [vmem:[%s7 + $0x100] sm:$0xff]
        %v1299 = vld [vmem:[%s7 + $0x108] sm:$0xff]
        %v1300 = vld [vmem:[%s7 + $0x110] sm:$0xff]
        %v1301 = vld [vmem:[%s7 + $0x118] sm:$0xff]
        %v1302 = vld [vmem:[%s7 + $0x120] sm:$0xff]
        %v1303 = vld [vmem:[%s7 + $0x128] sm:$0xff]
        %v1304 = vld [vmem:[%s7 + $0x130] sm:$0xff]
        %v1305 = vld [vmem:[%s7 + $0x138] sm:$0xff]
        %v1306 = vld [vmem:[%s7 + $0x140] sm:$0xff]
        %v1307 = vld [vmem:[%s7 + $0x148] sm:$0xff]
        %v1308 = vld [vmem:[%s7 + $0x150] sm:$0xff]
        %v1309 = vld [vmem:[%s7 + $0x158] sm:$0xff]
        %v1310 = vld [vmem:[%s7 + $0x160] sm:$0xff]
        %v1311 = vld [vmem:[%s7 + $0x168] sm:$0xff]
        %v1312 = vld [vmem:[%s7 + $0x170] sm:$0xff]
        %v1313 = vld [vmem:[%s7 + $0x178] sm:$0xff]
        %v1314 = vld [vmem:[%s7 + $0x180] sm:$0xff]
        %v1315 = vld [vmem:[%s7 + $0x188] sm:$0xff]
        %v1316 = vld [vmem:[%s7 + $0x190] sm:$0xff]
        %v1317 = vld [vmem:[%s7 + $0x198] sm:$0xff]
        %v1318 = vld [vmem:[%s7 + $0x1a0] sm:$0xff]
        %v1319 = vld [vmem:[%s7 + $0x1a8] sm:$0xff]
        %v1320 = vld [vmem:[%s7 + $0x1b0] sm:$0xff]
        %v1321 = vld [vmem:[%s7 + $0x1b8] sm:$0xff]
        %v1322 = vld [vmem:[%s7 + $0x1c0] sm:$0xff]
        %v1323 = vld [vmem:[%s7 + $0x1c8] sm:$0xff]
        %v1324 = vld [vmem:[%s7 + $0x1d0] sm:$0xff]
        %v1325 = vld [vmem:[%s7 + $0x1d8] sm:$0xff]
        %v1326 = vld [vmem:[%s7 + $0x1e0] sm:$0xff]
        %v1327 = vld [vmem:[%s7 + $0x1e8] sm:$0xff]
        %v1328 = vld [vmem:[%s7 + $0x1f0] sm:$0xff]
        %v1329 = vld [vmem:[%s7 + $0x1f8] sm:$0xff]
        %v1330 = vld [vmem:[%s8] sm:$0x3]
        %v1395 = vunpack.c.l.b16 %v1266
        %v1396 = vunpack.c.h.b16 %v1266
        %v1397 = vunpack.c.l.b16 %v1267
        %v1398 = vunpack.c.h.b16 %v1267
        %v1399 = vunpack.c.l.b16 %v1268
        %v1400 = vunpack.c.h.b16 %v1268
        %v1401 = vunpack.c.l.b16 %v1269
        %v1402 = vunpack.c.h.b16 %v1269
        %v1403 = vunpack.c.l.b16 %v1270
        %v1404 = vunpack.c.h.b16 %v1270
        %v1405 = vunpack.c.l.b16 %v1271
        %v1406 = vunpack.c.h.b16 %v1271
        %v1407 = vunpack.c.l.b16 %v1272
        %v1408 = vunpack.c.h.b16 %v1272
        %v1409 = vunpack.c.l.b16 %v1273
        %v1410 = vunpack.c.h.b16 %v1273
        %v1411 = vunpack.c.l.b16 %v1274
        %v1412 = vunpack.c.h.b16 %v1274
        %v1413 = vunpack.c.l.b16 %v1275
        %v1414 = vunpack.c.h.b16 %v1275
        %v1415 = vunpack.c.l.b16 %v1276
        %v1416 = vunpack.c.h.b16 %v1276
        %v1417 = vunpack.c.l.b16 %v1277
        %v1418 = vunpack.c.h.b16 %v1277
        %v1419 = vunpack.c.l.b16 %v1278
        %v1420 = vunpack.c.h.b16 %v1278
        %v1421 = vunpack.c.l.b16 %v1279
        %v1422 = vunpack.c.h.b16 %v1279
        %v1423 = vunpack.c.l.b16 %v1280
        %v1424 = vunpack.c.h.b16 %v1280
        %v1425 = vunpack.c.l.b16 %v1281
        %v1426 = vunpack.c.h.b16 %v1281
        %v1427 = vunpack.c.l.b16 %v1282
        %v1428 = vunpack.c.h.b16 %v1282
        %v1429 = vunpack.c.l.b16 %v1283
        %v1430 = vunpack.c.h.b16 %v1283
        %v1431 = vunpack.c.l.b16 %v1284
        %v1432 = vunpack.c.h.b16 %v1284
        %v1433 = vunpack.c.l.b16 %v1285
        %v1434 = vunpack.c.h.b16 %v1285
        %v1435 = vunpack.c.l.b16 %v1286
        %v1436 = vunpack.c.h.b16 %v1286
        %v1437 = vunpack.c.l.b16 %v1287
        %v1438 = vunpack.c.h.b16 %v1287
        %v1439 = vunpack.c.l.b16 %v1288
        %v1440 = vunpack.c.h.b16 %v1288
        %v1441 = vunpack.c.l.b16 %v1289
        %v1442 = vunpack.c.h.b16 %v1289
        %v1443 = vunpack.c.l.b16 %v1290
        %v1444 = vunpack.c.h.b16 %v1290
        %v1445 = vunpack.c.l.b16 %v1291
        %v1446 = vunpack.c.h.b16 %v1291
        %v1447 = vunpack.c.l.b16 %v1292
        %v1448 = vunpack.c.h.b16 %v1292
        %v1449 = vunpack.c.l.b16 %v1293
        %v1450 = vunpack.c.h.b16 %v1293
        %v1451 = vunpack.c.l.b16 %v1294
        %v1452 = vunpack.c.h.b16 %v1294
        %v1453 = vunpack.c.l.b16 %v1295
        %v1454 = vunpack.c.h.b16 %v1295
        %v1455 = vunpack.c.l.b16 %v1296
        %v1456 = vunpack.c.h.b16 %v1296
        %v1457 = vunpack.c.l.b16 %v1297
        %v1458 = vunpack.c.h.b16 %v1297
        %v1459 = vunpack.c.l.b16 %v1298
        %v1460 = vunpack.c.h.b16 %v1298
        %v1461 = vunpack.c.l.b16 %v1299
        %v1462 = vunpack.c.h.b16 %v1299
        %v1463 = vunpack.c.l.b16 %v1300
        %v1464 = vunpack.c.h.b16 %v1300
        %v1465 = vunpack.c.l.b16 %v1301
        %v1466 = vunpack.c.h.b16 %v1301
        %v1467 = vunpack.c.l.b16 %v1302
        %v1468 = vunpack.c.h.b16 %v1302
        %v1469 = vunpack.c.l.b16 %v1303
        %v1470 = vunpack.c.h.b16 %v1303
        %v1471 = vunpack.c.l.b16 %v1304
        %v1472 = vunpack.c.h.b16 %v1304
        %v1473 = vunpack.c.l.b16 %v1305
        %v1474 = vunpack.c.h.b16 %v1305
        %v1475 = vunpack.c.l.b16 %v1306
        %v1476 = vunpack.c.h.b16 %v1306
        %v1477 = vunpack.c.l.b16 %v1307
        %v1478 = vunpack.c.h.b16 %v1307
        %v1479 = vunpack.c.l.b16 %v1308
        %v1480 = vunpack.c.h.b16 %v1308
        %v1481 = vunpack.c.l.b16 %v1309
        %v1482 = vunpack.c.h.b16 %v1309
        %v1483 = vunpack.c.l.b16 %v1310
        %v1484 = vunpack.c.h.b16 %v1310
        %v1485 = vunpack.c.l.b16 %v1311
        %v1486 = vunpack.c.h.b16 %v1311
        %v1487 = vunpack.c.l.b16 %v1312
        %v1488 = vunpack.c.h.b16 %v1312
        %v1489 = vunpack.c.l.b16 %v1313
        %v1490 = vunpack.c.h.b16 %v1313
        %v1491 = vunpack.c.l.b16 %v1314
        %v1492 = vunpack.c.h.b16 %v1314
        %v1493 = vunpack.c.l.b16 %v1315
        %v1494 = vunpack.c.h.b16 %v1315
        %v1495 = vunpack.c.l.b16 %v1316
        %v1496 = vunpack.c.h.b16 %v1316
        %v1497 = vunpack.c.l.b16 %v1317
        %v1498 = vunpack.c.h.b16 %v1317
        %v1499 = vunpack.c.l.b16 %v1318
        %v1500 = vunpack.c.h.b16 %v1318
        %v1501 = vunpack.c.l.b16 %v1319
        %v1502 = vunpack.c.h.b16 %v1319
        %v1503 = vunpack.c.l.b16 %v1320
        %v1504 = vunpack.c.h.b16 %v1320
        %v1505 = vunpack.c.l.b16 %v1321
        %v1506 = vunpack.c.h.b16 %v1321
        %v1507 = vunpack.c.l.b16 %v1322
        %v1508 = vunpack.c.h.b16 %v1322
        %v1509 = vunpack.c.l.b16 %v1323
        %v1510 = vunpack.c.h.b16 %v1323
        %v1511 = vunpack.c.l.b16 %v1324
        %v1512 = vunpack.c.h.b16 %v1324
        %v1513 = vunpack.c.l.b16 %v1325
        %v1514 = vunpack.c.h.b16 %v1325
        %v1515 = vunpack.c.l.b16 %v1326
        %v1516 = vunpack.c.h.b16 %v1326
        %v1517 = vunpack.c.l.b16 %v1327
        %v1518 = vunpack.c.h.b16 %v1327
        %v1519 = vunpack.c.l.b16 %v1328
        %v1520 = vunpack.c.h.b16 %v1328
        %v1521 = vunpack.c.l.b16 %v1329
        %v1522 = vunpack.c.h.b16 %v1329
        %v1523 = vpack.c.b16 %v1397, %v1395
        %v1524 = vpack.c.b16 %v1398, %v1396
        %v1525 = vpack.c.b16 %v1401, %v1399
        %v1526 = vpack.c.b16 %v1402, %v1400
        %v1527 = vpack.c.b16 %v1405, %v1403
        %v1528 = vpack.c.b16 %v1406, %v1404
        %v1529 = vpack.c.b16 %v1409, %v1407
        %v1530 = vpack.c.b16 %v1410, %v1408
        %v1531 = vpack.c.b16 %v1413, %v1411
        %v1532 = vpack.c.b16 %v1414, %v1412
        %v1533 = vpack.c.b16 %v1417, %v1415
        %v1534 = vpack.c.b16 %v1418, %v1416
        %v1535 = vpack.c.b16 %v1421, %v1419
        %v1536 = vpack.c.b16 %v1422, %v1420
        %v1537 = vpack.c.b16 %v1425, %v1423
        %v1538 = vpack.c.b16 %v1426, %v1424
        %v1539 = vpack.c.b16 %v1429, %v1427
        %v1540 = vpack.c.b16 %v1430, %v1428
        %v1541 = vpack.c.b16 %v1433, %v1431
        %v1542 = vpack.c.b16 %v1434, %v1432
        %v1543 = vpack.c.b16 %v1437, %v1435
        %v1544 = vpack.c.b16 %v1438, %v1436
        %v1545 = vpack.c.b16 %v1441, %v1439
        %v1546 = vpack.c.b16 %v1442, %v1440
        %v1547 = vpack.c.b16 %v1445, %v1443
        %v1548 = vpack.c.b16 %v1446, %v1444
        %v1549 = vpack.c.b16 %v1449, %v1447
        %v1550 = vpack.c.b16 %v1450, %v1448
        %v1551 = vpack.c.b16 %v1453, %v1451
        %v1552 = vpack.c.b16 %v1454, %v1452
        %v1553 = vpack.c.b16 %v1457, %v1455
        %v1554 = vpack.c.b16 %v1458, %v1456
        %v1555 = vpack.c.b16 %v1461, %v1459
        %v1556 = vpack.c.b16 %v1462, %v1460
        %v1557 = vpack.c.b16 %v1465, %v1463
        %v1558 = vpack.c.b16 %v1466, %v1464
        %v1559 = vpack.c.b16 %v1469, %v1467
        %v1560 = vpack.c.b16 %v1470, %v1468
        %v1561 = vpack.c.b16 %v1473, %v1471
        %v1562 = vpack.c.b16 %v1474, %v1472
        %v1563 = vpack.c.b16 %v1477, %v1475
        %v1564 = vpack.c.b16 %v1478, %v1476
        %v1565 = vpack.c.b16 %v1481, %v1479
        %v1566 = vpack.c.b16 %v1482, %v1480
        %v1567 = vpack.c.b16 %v1485, %v1483
        %v1568 = vpack.c.b16 %v1486, %v1484
        %v1569 = vpack.c.b16 %v1489, %v1487
        %v1570 = vpack.c.b16 %v1490, %v1488
        %v1571 = vpack.c.b16 %v1493, %v1491
        %v1572 = vpack.c.b16 %v1494, %v1492
        %v1573 = vpack.c.b16 %v1497, %v1495
        %v1574 = vpack.c.b16 %v1498, %v1496
        %v1575 = vpack.c.b16 %v1501, %v1499
        %v1576 = vpack.c.b16 %v1502, %v1500
        %v1577 = vpack.c.b16 %v1505, %v1503
        %v1578 = vpack.c.b16 %v1506, %v1504
        %v1579 = vpack.c.b16 %v1509, %v1507
        %v1580 = vpack.c.b16 %v1510, %v1508
        %v1581 = vpack.c.b16 %v1513, %v1511
        %v1582 = vpack.c.b16 %v1514, %v1512
        %v1583 = vpack.c.b16 %v1517, %v1515
        %v1584 = vpack.c.b16 %v1518, %v1516
        %v1585 = vpack.c.b16 %v1521, %v1519
        %v1586 = vpack.c.b16 %v1522, %v1520
        %v1652 = vlaneseq
        %v1653 = vshrl.u32 %v1652, 7
        %v1654 = vsub.s32 0, %v1653
        %v1655 = vrot.slane %v1330, %v1654
        %v1656 = vlaneseq
        %v1657 = vshrl.u32 %v1656, 7
        %v1658 = vsub.s32 1, %v1657
        %v1659 = vrot.slane %v1330, %v1658
        %1662 = vmatprep.subr.bf16.mxu0 %v1524
        %1663 = vmatpush1.bf16.msra.mxu0 %v1523
        %1664 = vmatprep.subr.bf16.mxu0 %v1526
        %1665 = vmatpush1.bf16.msra.mxu0 %v1525
        %1666 = vmatprep.subr.bf16.mxu0 %v1528
        %1667 = vmatpush1.bf16.msra.mxu0 %v1527
        %1668 = vmatprep.subr.bf16.mxu0 %v1530
        %1669 = vmatpush1.bf16.msra.mxu0 %v1529
        %1670 = vmatprep.subr.bf16.mxu0 %v1532
        %1671 = vmatpush1.bf16.msra.mxu0 %v1531
        %1672 = vmatprep.subr.bf16.mxu0 %v1534
        %1673 = vmatpush1.bf16.msra.mxu0 %v1533
        %1674 = vmatprep.subr.bf16.mxu0 %v1536
        %1675 = vmatpush1.bf16.msra.mxu0 %v1535
        %1676 = vmatprep.subr.bf16.mxu0 %v1538
        %1677 = vmatpush1.bf16.msra.mxu0 %v1537
        %1678 = vmatprep.subr.bf16.mxu0 %v1540
        %1679 = vmatpush1.bf16.msra.mxu0 %v1539
        %1680 = vmatprep.subr.bf16.mxu0 %v1542
        %1681 = vmatpush1.bf16.msra.mxu0 %v1541
        %1682 = vmatprep.subr.bf16.mxu0 %v1544
        %1683 = vmatpush1.bf16.msra.mxu0 %v1543
        %1684 = vmatprep.subr.bf16.mxu0 %v1546
        %1685 = vmatpush1.bf16.msra.mxu0 %v1545
        %1686 = vmatprep.subr.bf16.mxu0 %v1548
        %1687 = vmatpush1.bf16.msra.mxu0 %v1547
        %1688 = vmatprep.subr.bf16.mxu0 %v1550
        %1689 = vmatpush1.bf16.msra.mxu0 %v1549
        %1690 = vmatprep.subr.bf16.mxu0 %v1552
        %1691 = vmatpush1.bf16.msra.mxu0 %v1551
        %1692 = vmatprep.subr.bf16.mxu0 %v1554
        %1693 = vmatpush1.bf16.msra.mxu0 %v1553
        %1694 = vmatprep.mubr.bf16.mxu0 %v1263
        %1695 = vmatmul.mubr.bf16.gmra.mrb[0].mxu0 %v1262
        %v1696 = vpop.f32.mrb[0].mxu0
        %v1697 = vadd.f32 %v1655, %v1696
        %v1698 = vpop.f32.mrb[0].mxu0
        %v1699 = vadd.f32 %v1659, %v1698
        %v1700 = vpop.f32.mrb[0].mxu0
        %v1701 = vpop.f32.mrb[0].mxu0
        %1702 = vdwg.mxu0
        %1703 = vmatprep.subr.bf16.mxu0 %v1556
        %1704 = vmatpush1.bf16.msra.mxu0 %v1555
        %1705 = vmatprep.subr.bf16.mxu0 %v1558
        %1706 = vmatpush1.bf16.msra.mxu0 %v1557
        %1707 = vmatprep.subr.bf16.mxu0 %v1560
        %1708 = vmatpush1.bf16.msra.mxu0 %v1559
        %1709 = vmatprep.subr.bf16.mxu0 %v1562
        %1710 = vmatpush1.bf16.msra.mxu0 %v1561
        %1711 = vmatprep.subr.bf16.mxu0 %v1564
        %1712 = vmatpush1.bf16.msra.mxu0 %v1563
        %1713 = vmatprep.subr.bf16.mxu0 %v1566
        %1714 = vmatpush1.bf16.msra.mxu0 %v1565
        %1715 = vmatprep.subr.bf16.mxu0 %v1568
        %1716 = vmatpush1.bf16.msra.mxu0 %v1567
        %1717 = vmatprep.subr.bf16.mxu0 %v1570
        %1718 = vmatpush1.bf16.msra.mxu0 %v1569
        %1719 = vmatprep.subr.bf16.mxu0 %v1572
        %1720 = vmatpush1.bf16.msra.mxu0 %v1571
        %1721 = vmatprep.subr.bf16.mxu0 %v1574
        %1722 = vmatpush1.bf16.msra.mxu0 %v1573
        %1723 = vmatprep.subr.bf16.mxu0 %v1576
        %1724 = vmatpush1.bf16.msra.mxu0 %v1575
        %1725 = vmatprep.subr.bf16.mxu0 %v1578
        %1726 = vmatpush1.bf16.msra.mxu0 %v1577
        %1727 = vmatprep.subr.bf16.mxu0 %v1580
        %1728 = vmatpush1.bf16.msra.mxu0 %v1579
        %1729 = vmatprep.subr.bf16.mxu0 %v1582
        %1730 = vmatpush1.bf16.msra.mxu0 %v1581
        %1731 = vmatprep.subr.bf16.mxu0 %v1584
        %1732 = vmatpush1.bf16.msra.mxu0 %v1583
        %1733 = vmatprep.subr.bf16.mxu0 %v1586
        %1734 = vmatpush1.bf16.msra.mxu0 %v1585
        %1735 = vmatprep.mubr.bf16.mxu0 %v1265
        %1736 = vmatmul.mubr.bf16.gmra.mrb[0].mxu0 %v1264
        %v1737 = vpop.f32.mrb[0].mxu0
        %v1738 = vadd.f32 %v1697, %v1737
        %v1739 = vpop.f32.mrb[0].mxu0
        %v1740 = vadd.f32 %v1699, %v1739
        %v1741 = vpop.f32.mrb[0].mxu0
        %v1742 = vpop.f32.mrb[0].mxu0
        %1743 = vdwg.mxu0
        %v1744 = vpack.c.bf16 %v1738, %v1738
        %v1745 = vpack.c.bf16 %v1740, %v1740
        %v1746 = vld [vmem:[%s9] sm:$0xf]
        %v1747 = vld [vmem:[%s9 + $0x4] sm:$0xf]
        %v1748 = vld [vmem:[%s9 + $0x8] sm:$0xf]
        %v1749 = vld [vmem:[%s9 + $0xc] sm:$0xf]
        %v1750 = vld [vmem:[%s9 + $0x10] sm:$0xf]
        %v1751 = vld [vmem:[%s9 + $0x14] sm:$0xf]
        %v1752 = vld [vmem:[%s9 + $0x18] sm:$0xf]
        %v1753 = vld [vmem:[%s9 + $0x1c] sm:$0xf]
        %v1754 = vld [vmem:[%s9 + $0x20] sm:$0xf]
        %v1755 = vld [vmem:[%s9 + $0x24] sm:$0xf]
        %v1756 = vld [vmem:[%s9 + $0x28] sm:$0xf]
        %v1757 = vld [vmem:[%s9 + $0x2c] sm:$0xf]
        %v1758 = vld [vmem:[%s9 + $0x30] sm:$0xf]
        %v1759 = vld [vmem:[%s9 + $0x34] sm:$0xf]
        %v1760 = vld [vmem:[%s9 + $0x38] sm:$0xf]
        %v1761 = vld [vmem:[%s9 + $0x3c] sm:$0xf]
        %v1762 = vld [vmem:[%s9 + $0x40] sm:$0xf]
        %v1763 = vld [vmem:[%s9 + $0x44] sm:$0xf]
        %v1764 = vld [vmem:[%s9 + $0x48] sm:$0xf]
        %v1765 = vld [vmem:[%s9 + $0x4c] sm:$0xf]
        %v1766 = vld [vmem:[%s9 + $0x50] sm:$0xf]
        %v1767 = vld [vmem:[%s9 + $0x54] sm:$0xf]
        %v1768 = vld [vmem:[%s9 + $0x58] sm:$0xf]
        %v1769 = vld [vmem:[%s9 + $0x5c] sm:$0xf]
        %v1770 = vld [vmem:[%s9 + $0x60] sm:$0xf]
        %v1771 = vld [vmem:[%s9 + $0x64] sm:$0xf]
        %v1772 = vld [vmem:[%s9 + $0x68] sm:$0xf]
        %v1773 = vld [vmem:[%s9 + $0x6c] sm:$0xf]
        %v1774 = vld [vmem:[%s9 + $0x70] sm:$0xf]
        %v1775 = vld [vmem:[%s9 + $0x74] sm:$0xf]
        %v1776 = vld [vmem:[%s9 + $0x78] sm:$0xf]
        %v1777 = vld [vmem:[%s9 + $0x7c] sm:$0xf]
        %v1778 = vld [vmem:[%s10] sm:$0x1]
        %v1811 = vunpack.c.l.b16 %v1746
        %v1812 = vunpack.c.l.b16 %v1747
        %v1813 = vunpack.c.l.b16 %v1748
        %v1814 = vunpack.c.l.b16 %v1749
        %v1815 = vunpack.c.l.b16 %v1750
        %v1816 = vunpack.c.l.b16 %v1751
        %v1817 = vunpack.c.l.b16 %v1752
        %v1818 = vunpack.c.l.b16 %v1753
        %v1819 = vunpack.c.l.b16 %v1754
        %v1820 = vunpack.c.l.b16 %v1755
        %v1821 = vunpack.c.l.b16 %v1756
        %v1822 = vunpack.c.l.b16 %v1757
        %v1823 = vunpack.c.l.b16 %v1758
        %v1824 = vunpack.c.l.b16 %v1759
        %v1825 = vunpack.c.l.b16 %v1760
        %v1826 = vunpack.c.l.b16 %v1761
        %v1827 = vunpack.c.l.b16 %v1762
        %v1828 = vunpack.c.l.b16 %v1763
        %v1829 = vunpack.c.l.b16 %v1764
        %v1830 = vunpack.c.l.b16 %v1765
        %v1831 = vunpack.c.l.b16 %v1766
        %v1832 = vunpack.c.l.b16 %v1767
        %v1833 = vunpack.c.l.b16 %v1768
        %v1834 = vunpack.c.l.b16 %v1769
        %v1835 = vunpack.c.l.b16 %v1770
        %v1836 = vunpack.c.l.b16 %v1771
        %v1837 = vunpack.c.l.b16 %v1772
        %v1838 = vunpack.c.l.b16 %v1773
        %v1839 = vunpack.c.l.b16 %v1774
        %v1840 = vunpack.c.l.b16 %v1775
        %v1841 = vunpack.c.l.b16 %v1776
        %v1842 = vunpack.c.l.b16 %v1777
        %v1843 = vpack.c.b16 %v1812, %v1811
        %v1844 = vpack.c.b16 %v1814, %v1813
        %v1845 = vpack.c.b16 %v1816, %v1815
        %v1846 = vpack.c.b16 %v1818, %v1817
        %v1847 = vpack.c.b16 %v1820, %v1819
        %v1848 = vpack.c.b16 %v1822, %v1821
        %v1849 = vpack.c.b16 %v1824, %v1823
        %v1850 = vpack.c.b16 %v1826, %v1825
        %v1851 = vpack.c.b16 %v1828, %v1827
        %v1852 = vpack.c.b16 %v1830, %v1829
        %v1853 = vpack.c.b16 %v1832, %v1831
        %v1854 = vpack.c.b16 %v1834, %v1833
        %v1855 = vpack.c.b16 %v1836, %v1835
        %v1856 = vpack.c.b16 %v1838, %v1837
        %v1857 = vpack.c.b16 %v1840, %v1839
        %v1858 = vpack.c.b16 %v1842, %v1841
        %1875 = vmatprep.subr.bf16.mxu0 0
        %1876 = vmatpush1.bf16.msra.mxu0 %v1843
        %1877 = vmatprep.subr.bf16.mxu0 0
        %1878 = vmatpush1.bf16.msra.mxu0 %v1844
        %1879 = vmatprep.subr.bf16.mxu0 0
        %1880 = vmatpush1.bf16.msra.mxu0 %v1845
        %1881 = vmatprep.subr.bf16.mxu0 0
        %1882 = vmatpush1.bf16.msra.mxu0 %v1846
        %1883 = vmatprep.subr.bf16.mxu0 0
        %1884 = vmatpush1.bf16.msra.mxu0 %v1847
        %1885 = vmatprep.subr.bf16.mxu0 0
        %1886 = vmatpush1.bf16.msra.mxu0 %v1848
        %1887 = vmatprep.subr.bf16.mxu0 0
        %1888 = vmatpush1.bf16.msra.mxu0 %v1849
        %1889 = vmatprep.subr.bf16.mxu0 0
        %1890 = vmatpush1.bf16.msra.mxu0 %v1850
        %1891 = vmatprep.subr.bf16.mxu0 0
        %1892 = vmatpush1.bf16.msra.mxu0 %v1851
        %1893 = vmatprep.subr.bf16.mxu0 0
        %1894 = vmatpush1.bf16.msra.mxu0 %v1852
        %1895 = vmatprep.subr.bf16.mxu0 0
        %1896 = vmatpush1.bf16.msra.mxu0 %v1853
        %1897 = vmatprep.subr.bf16.mxu0 0
        %1898 = vmatpush1.bf16.msra.mxu0 %v1854
        %1899 = vmatprep.subr.bf16.mxu0 0
        %1900 = vmatpush1.bf16.msra.mxu0 %v1855
        %1901 = vmatprep.subr.bf16.mxu0 0
        %1902 = vmatpush1.bf16.msra.mxu0 %v1856
        %1903 = vmatprep.subr.bf16.mxu0 0
        %1904 = vmatpush1.bf16.msra.mxu0 %v1857
        %1905 = vmatprep.subr.bf16.mxu0 0
        %1906 = vmatpush1.bf16.msra.mxu0 %v1858
        %1907 = vmatprep.mubr.bf16.mxu0 %v1745
        %1908 = vmatmul.mubr.bf16.gmra.mrb[0].mxu0 %v1744
        %v1909 = vpop.f32.mrb[0].mxu0
        %v1910 = vadd.f32 %v1778, %v1909
        %v1911 = vpop.f32.mrb[0].mxu0
        %v1912 = vpop.f32.mrb[0].mxu0
        %v1913 = vpop.f32.mrb[0].mxu0
        %1914 = vdwg.mxu0
        %v1915 = vmax.f32 %v1910, 0.0
        %1916 = vst [vmem:[%s391] sm:$0x1] %v1915
        %s1917 = sand.u32 %s274, 1
        %s1918 = scalar_lea.sflag [#allocation3], %s1917
        %s1919 = sand.u32 %s274, 1
        %s1920 = scalar_lea.vmem [#allocation2], %s1919
        // Predicated region
        $region65: #{feature_model_v3_forward.5} parent=63 // pred_check
          %p1921 = pneg %p284
        $region66: #{feature_model_v3_forward.5} parent=63 // pred_check_branch
          %1923 = sbr.rel (%p1921) target = $region68
        $region67: #{feature_model_v3_forward.5} parent=63 // pred_region
          %s1925 = ssub.s32 16, 16
          %1926 = vsyncadd %s1918, %s1925
          %s1927 = smul.addr %s25, 16
          %s1928 = scalar_lea.hbm %s11, %s1927
          %s1930 = sshll.u32 %s1920, 4
          %s1931 = int_to_ptr.vmem [resolvable:$true] %s1930
          %1933 = dma.vmem_to_hbm [thread:$0]  %s1931, 16, %s1928, %s1918
        $region68: #{feature_model_v3_forward.5} parent=63 // pred_fallthru
          _
      $region64: #{feature_model_v3_forward.5} parent=5 // pred_fallthru
        _
      %p1934 = scmp.le.s32.totalorder 2, %s20
      // Predicated region
      $region69: #{feature_model_v3_forward.5} parent=5 // pred_check
        %p1935 = pneg %p1934
      $region70: #{feature_model_v3_forward.5} parent=5 // pred_check_branch
        %1937 = sbr.rel (%p1935) target = $region72
      $region71: #{feature_model_v3_forward.5} parent=5 // pred_region
        %s1938 = ssub.s32 %s20, 2
        // Predicated region
        $region73: #{feature_model_v3_forward.5} parent=71 // pred_check
          %p1939 = pneg %p290
        $region74: #{feature_model_v3_forward.5} parent=71 // pred_check_branch
          %1941 = sbr.rel (%p1939) target = $region76
        $region75: #{feature_model_v3_forward.5} parent=71 // pred_region
          %s1942 = sand.u32 %s275, 1
          %s1943 = scalar_lea.sflag [#allocation3], %s1942
          %s1944 = sand.u32 %s275, 1
          %s1945 = scalar_lea.vmem [#allocation2], %s1944
          %1946 = dma.done %s1943, 16
        $region76: #{feature_model_v3_forward.5} parent=71 // pred_fallthru
          _
      $region72: #{feature_model_v3_forward.5} parent=5 // pred_fallthru
        _
    $region6: #{feature_model_v3_forward.5} parent=1 // loop_footer
      %s24 = sadd.s32 1, %s20
    $region7: #{feature_model_v3_forward.5} parent=1 // loop_footer_branch
      %19 = sbr.rel target = $region3
    $region8: #{feature_model_v3_forward.5} parent=1 // loop_exit
      _
    %1947 = vsyncpa [#allocation3], 1
    %s1948 = scalar_lea.sflag [#allocation3], 1
    %1949 = vsyncpa %s1948, 1

// kernel: feature_model_v3_forward.3
$region0: #{feature_model_v3_forward.3}
  #allocation0 [shape = 'u32[]', space=smem, size = 0x4, offset = 0x4, fixed_abs, tag = 'smem constant byte address 0x4 - core index']
  #allocation1 [shape = 'u32[144,128]{1,0:T(1,128)}', space=vmem, size = 0x12000, scoped, tag = 'internal scratch']
  %s0 = inlined_call_operand.vmem [shape: bf16[1024,4], index: 0, kind: input, shape index: {}]
  %s1 = inlined_call_operand.vmem [shape: bf16[1024,3], index: 1, kind: input, shape index: {}]
  %s2 = inlined_call_operand.vmem [shape: f32[32,32], index: 2, kind: input, shape index: {}]
  %s3 = inlined_call_operand.vmem [shape: bf16[4,64], index: 3, kind: input, shape index: {}]
  %s4 = inlined_call_operand.vmem [shape: bf16[3,64], index: 4, kind: input, shape index: {}]
  %s5 = inlined_call_operand.vmem [shape: f32[1,64], index: 5, kind: input, shape index: {}]
  %s6 = inlined_call_operand.vmem [shape: bf16[64,128], index: 6, kind: input, shape index: {}]
  %s7 = inlined_call_operand.vmem [shape: f32[1,128], index: 7, kind: input, shape index: {}]
  %s8 = inlined_call_operand.vmem [shape: f32[32,128], index: 8, kind: output, shape index: {}]
  %s9 = sld [smem:[#allocation0]]
  $region42: #{feature_model_v3_forward.3} parent=0
    _
  %s11 = ssub.s32 1, %s9
  %s12 = scalar_select 0, %s11, %s9
  // Predicated region
  $region2: #{feature_model_v3_forward.3} parent=0 // pred_check
    _
  $region3: #{feature_model_v3_forward.3} parent=0 // pred_check_branch
    %14 = sbr.rel (0) target = $region5
  $region4: #{feature_model_v3_forward.3} parent=0 // pred_region
    _
  $region5: #{feature_model_v3_forward.3} parent=0 // pred_fallthru
    _
  // Predicated region
  $region6: #{feature_model_v3_forward.3} parent=0 // pred_check
    _
  $region7: #{feature_model_v3_forward.3} parent=0 // pred_check_branch
    %16 = sbr.rel (0) target = $region9
  $region8: #{feature_model_v3_forward.3} parent=0 // pred_region
    _
  $region9: #{feature_model_v3_forward.3} parent=0 // pred_fallthru
    _
  // Predicated region
  $region10: #{feature_model_v3_forward.3} parent=0 // pred_check
    _
  $region11: #{feature_model_v3_forward.3} parent=0 // pred_check_branch
    %18 = sbr.rel (0) target = $region13
  $region12: #{feature_model_v3_forward.3} parent=0 // pred_region
    _
  $region13: #{feature_model_v3_forward.3} parent=0 // pred_fallthru
    _
  // Predicated region
  $region14: #{feature_model_v3_forward.3} parent=0 // pred_check
    _
  $region15: #{feature_model_v3_forward.3} parent=0 // pred_check_branch
    %20 = sbr.rel (0) target = $region17
  $region16: #{feature_model_v3_forward.3} parent=0 // pred_region
    _
  $region17: #{feature_model_v3_forward.3} parent=0 // pred_fallthru
    _
  // Predicated region
  $region18: #{feature_model_v3_forward.3} parent=0 // pred_check
    _
  $region19: #{feature_model_v3_forward.3} parent=0 // pred_check_branch
    %22 = sbr.rel (0) target = $region21
  $region20: #{feature_model_v3_forward.3} parent=0 // pred_region
    _
  $region21: #{feature_model_v3_forward.3} parent=0 // pred_fallthru
    _
  // Predicated region
  $region22: #{feature_model_v3_forward.3} parent=0 // pred_check
    _
  $region23: #{feature_model_v3_forward.3} parent=0 // pred_check_branch
    %24 = sbr.rel (0) target = $region25
  $region24: #{feature_model_v3_forward.3} parent=0 // pred_region
    _
  $region25: #{feature_model_v3_forward.3} parent=0 // pred_fallthru
    _
  // Predicated region
  $region26: #{feature_model_v3_forward.3} parent=0 // pred_check
    _
  $region27: #{feature_model_v3_forward.3} parent=0 // pred_check_branch
    %26 = sbr.rel (0) target = $region29
  $region28: #{feature_model_v3_forward.3} parent=0 // pred_region
    _
  $region29: #{feature_model_v3_forward.3} parent=0 // pred_fallthru
    _
  // Predicated region
  $region30: #{feature_model_v3_forward.3} parent=0 // pred_check
    _
  $region31: #{feature_model_v3_forward.3} parent=0 // pred_check_branch
    %28 = sbr.rel (0) target = $region33
  $region32: #{feature_model_v3_forward.3} parent=0 // pred_region
    _
  $region33: #{feature_model_v3_forward.3} parent=0 // pred_fallthru
    _
  %v30 = vld [vmem:[%s0] sm:$0xf]
  %v31 = vld [vmem:[%s0 + $0x4] sm:$0xf]
  %v32 = vld [vmem:[%s0 + $0x8] sm:$0xf]
  %v33 = vld [vmem:[%s0 + $0xc] sm:$0xf]
  %v34 = vld [vmem:[%s0 + $0x10] sm:$0xf]
  %v35 = vld [vmem:[%s0 + $0x14] sm:$0xf]
  %v36 = vld [vmem:[%s0 + $0x18] sm:$0xf]
  %v37 = vld [vmem:[%s0 + $0x1c] sm:$0xf]
  %v38 = vld [vmem:[%s0 + $0x20] sm:$0xf]
  %v39 = vld [vmem:[%s0 + $0x24] sm:$0xf]
  %v40 = vld [vmem:[%s0 + $0x28] sm:$0xf]
  %v41 = vld [vmem:[%s0 + $0x2c] sm:$0xf]
  %v42 = vld [vmem:[%s0 + $0x30] sm:$0xf]
  %v43 = vld [vmem:[%s0 + $0x34] sm:$0xf]
  %v44 = vld [vmem:[%s0 + $0x38] sm:$0xf]
  %v45 = vld [vmem:[%s0 + $0x3c] sm:$0xf]
  %v46 = vld [vmem:[%s0 + $0x40] sm:$0xf]
  %v47 = vld [vmem:[%s0 + $0x44] sm:$0xf]
  %v48 = vld [vmem:[%s0 + $0x48] sm:$0xf]
  %v49 = vld [vmem:[%s0 + $0x4c] sm:$0xf]
  %v50 = vld [vmem:[%s0 + $0x50] sm:$0xf]
  %v51 = vld [vmem:[%s0 + $0x54] sm:$0xf]
  %v52 = vld [vmem:[%s0 + $0x58] sm:$0xf]
  %v53 = vld [vmem:[%s0 + $0x5c] sm:$0xf]
  %v54 = vld [vmem:[%s0 + $0x60] sm:$0xf]
  %v55 = vld [vmem:[%s0 + $0x64] sm:$0xf]
  %v56 = vld [vmem:[%s0 + $0x68] sm:$0xf]
  %v57 = vld [vmem:[%s0 + $0x6c] sm:$0xf]
  %v58 = vld [vmem:[%s0 + $0x70] sm:$0xf]
  %v59 = vld [vmem:[%s0 + $0x74] sm:$0xf]
  %v60 = vld [vmem:[%s0 + $0x78] sm:$0xf]
  %v61 = vld [vmem:[%s0 + $0x7c] sm:$0xf]
  %v62 = vld [vmem:[%s0 + $0x80] sm:$0xf]
  %v63 = vld [vmem:[%s0 + $0x84] sm:$0xf]
  %v64 = vld [vmem:[%s0 + $0x88] sm:$0xf]
  %v65 = vld [vmem:[%s0 + $0x8c] sm:$0xf]
  %v66 = vld [vmem:[%s0 + $0x90] sm:$0xf]
  %v67 = vld [vmem:[%s0 + $0x94] sm:$0xf]
  %v68 = vld [vmem:[%s0 + $0x98] sm:$0xf]
  %v69 = vld [vmem:[%s0 + $0x9c] sm:$0xf]
  %v70 = vld [vmem:[%s0 + $0xa0] sm:$0xf]
  %v71 = vld [vmem:[%s0 + $0xa4] sm:$0xf]
  %v72 = vld [vmem:[%s0 + $0xa8] sm:$0xf]
  %v73 = vld [vmem:[%s0 + $0xac] sm:$0xf]
  %v74 = vld [vmem:[%s0 + $0xb0] sm:$0xf]
  %v75 = vld [vmem:[%s0 + $0xb4] sm:$0xf]
  %v76 = vld [vmem:[%s0 + $0xb8] sm:$0xf]
  %v77 = vld [vmem:[%s0 + $0xbc] sm:$0xf]
  %v78 = vld [vmem:[%s0 + $0xc0] sm:$0xf]
  %v79 = vld [vmem:[%s0 + $0xc4] sm:$0xf]
  %v80 = vld [vmem:[%s0 + $0xc8] sm:$0xf]
  %v81 = vld [vmem:[%s0 + $0xcc] sm:$0xf]
  %v82 = vld [vmem:[%s0 + $0xd0] sm:$0xf]
  %v83 = vld [vmem:[%s0 + $0xd4] sm:$0xf]
  %v84 = vld [vmem:[%s0 + $0xd8] sm:$0xf]
  %v85 = vld [vmem:[%s0 + $0xdc] sm:$0xf]
  %v86 = vld [vmem:[%s0 + $0xe0] sm:$0xf]
  %v87 = vld [vmem:[%s0 + $0xe4] sm:$0xf]
  %v88 = vld [vmem:[%s0 + $0xe8] sm:$0xf]
  %v89 = vld [vmem:[%s0 + $0xec] sm:$0xf]
  %v90 = vld [vmem:[%s0 + $0xf0] sm:$0xf]
  %v91 = vld [vmem:[%s0 + $0xf4] sm:$0xf]
  %v92 = vld [vmem:[%s0 + $0xf8] sm:$0xf]
  %v93 = vld [vmem:[%s0 + $0xfc] sm:$0xf]
  %v94 = vld [vmem:[%s0 + $0x100] sm:$0xf]
  %v95 = vld [vmem:[%s0 + $0x104] sm:$0xf]
  %v96 = vld [vmem:[%s0 + $0x108] sm:$0xf]
  %v97 = vld [vmem:[%s0 + $0x10c] sm:$0xf]
  %v98 = vld [vmem:[%s0 + $0x110] sm:$0xf]
  %v99 = vld [vmem:[%s0 + $0x114] sm:$0xf]
  %v100 = vld [vmem:[%s0 + $0x118] sm:$0xf]
  %v101 = vld [vmem:[%s0 + $0x11c] sm:$0xf]
  %v102 = vld [vmem:[%s0 + $0x120] sm:$0xf]
  %v103 = vld [vmem:[%s0 + $0x124] sm:$0xf]
  %v104 = vld [vmem:[%s0 + $0x128] sm:$0xf]
  %v105 = vld [vmem:[%s0 + $0x12c] sm:$0xf]
  %v106 = vld [vmem:[%s0 + $0x130] sm:$0xf]
  %v107 = vld [vmem:[%s0 + $0x134] sm:$0xf]
  %v108 = vld [vmem:[%s0 + $0x138] sm:$0xf]
  %v109 = vld [vmem:[%s0 + $0x13c] sm:$0xf]
  %v110 = vld [vmem:[%s0 + $0x140] sm:$0xf]
  %v111 = vld [vmem:[%s0 + $0x144] sm:$0xf]
  %v112 = vld [vmem:[%s0 + $0x148] sm:$0xf]
  %v113 = vld [vmem:[%s0 + $0x14c] sm:$0xf]
  %v114 = vld [vmem:[%s0 + $0x150] sm:$0xf]
  %v115 = vld [vmem:[%s0 + $0x154] sm:$0xf]
  %v116 = vld [vmem:[%s0 + $0x158] sm:$0xf]
  %v117 = vld [vmem:[%s0 + $0x15c] sm:$0xf]
  %v118 = vld [vmem:[%s0 + $0x160] sm:$0xf]
  %v119 = vld [vmem:[%s0 + $0x164] sm:$0xf]
  %v120 = vld [vmem:[%s0 + $0x168] sm:$0xf]
  %v121 = vld [vmem:[%s0 + $0x16c] sm:$0xf]
  %v122 = vld [vmem:[%s0 + $0x170] sm:$0xf]
  %v123 = vld [vmem:[%s0 + $0x174] sm:$0xf]
  %v124 = vld [vmem:[%s0 + $0x178] sm:$0xf]
  %v125 = vld [vmem:[%s0 + $0x17c] sm:$0xf]
  %v126 = vld [vmem:[%s0 + $0x180] sm:$0xf]
  %v127 = vld [vmem:[%s0 + $0x184] sm:$0xf]
  %v128 = vld [vmem:[%s0 + $0x188] sm:$0xf]
  %v129 = vld [vmem:[%s0 + $0x18c] sm:$0xf]
  %v130 = vld [vmem:[%s0 + $0x190] sm:$0xf]
  %v131 = vld [vmem:[%s0 + $0x194] sm:$0xf]
  %v132 = vld [vmem:[%s0 + $0x198] sm:$0xf]
  %v133 = vld [vmem:[%s0 + $0x19c] sm:$0xf]
  %v134 = vld [vmem:[%s0 + $0x1a0] sm:$0xf]
  %v135 = vld [vmem:[%s0 + $0x1a4] sm:$0xf]
  %v136 = vld [vmem:[%s0 + $0x1a8] sm:$0xf]
  %v137 = vld [vmem:[%s0 + $0x1ac] sm:$0xf]
  %v138 = vld [vmem:[%s0 + $0x1b0] sm:$0xf]
  %v139 = vld [vmem:[%s0 + $0x1b4] sm:$0xf]
  %v140 = vld [vmem:[%s0 + $0x1b8] sm:$0xf]
  %v141 = vld [vmem:[%s0 + $0x1bc] sm:$0xf]
  %v142 = vld [vmem:[%s0 + $0x1c0] sm:$0xf]
  %v143 = vld [vmem:[%s0 + $0x1c4] sm:$0xf]
  %v144 = vld [vmem:[%s0 + $0x1c8] sm:$0xf]
  %v145 = vld [vmem:[%s0 + $0x1cc] sm:$0xf]
  %v146 = vld [vmem:[%s0 + $0x1d0] sm:$0xf]
  %v147 = vld [vmem:[%s0 + $0x1d4] sm:$0xf]
  %v148 = vld [vmem:[%s0 + $0x1d8] sm:$0xf]
  %v149 = vld [vmem:[%s0 + $0x1dc] sm:$0xf]
  %v150 = vld [vmem:[%s0 + $0x1e0] sm:$0xf]
  %v151 = vld [vmem:[%s0 + $0x1e4] sm:$0xf]
  %v152 = vld [vmem:[%s0 + $0x1e8] sm:$0xf]
  %v153 = vld [vmem:[%s0 + $0x1ec] sm:$0xf]
  %v154 = vld [vmem:[%s0 + $0x1f0] sm:$0xf]
  %v155 = vld [vmem:[%s0 + $0x1f4] sm:$0xf]
  %v156 = vld [vmem:[%s0 + $0x1f8] sm:$0xf]
  %v157 = vld [vmem:[%s0 + $0x1fc] sm:$0xf]
  %v158 = vld [vmem:[%s3] sm:$0x3]
  %v159 = vld [vmem:[%s1] sm:$0xf]
  %v160 = vld [vmem:[%s1 + $0x4] sm:$0xf]
  %v161 = vld [vmem:[%s1 + $0x8] sm:$0xf]
  %v162 = vld [vmem:[%s1 + $0xc] sm:$0xf]
  %v163 = vld [vmem:[%s1 + $0x10] sm:$0xf]
  %v164 = vld [vmem:[%s1 + $0x14] sm:$0xf]
  %v165 = vld [vmem:[%s1 + $0x18] sm:$0xf]
  %v166 = vld [vmem:[%s1 + $0x1c] sm:$0xf]
  %v167 = vld [vmem:[%s1 + $0x20] sm:$0xf]
  %v168 = vld [vmem:[%s1 + $0x24] sm:$0xf]
  %v169 = vld [vmem:[%s1 + $0x28] sm:$0xf]
  %v170 = vld [vmem:[%s1 + $0x2c] sm:$0xf]
  %v171 = vld [vmem:[%s1 + $0x30] sm:$0xf]
  %v172 = vld [vmem:[%s1 + $0x34] sm:$0xf]
  %v173 = vld [vmem:[%s1 + $0x38] sm:$0xf]
  %v174 = vld [vmem:[%s1 + $0x3c] sm:$0xf]
  %v175 = vld [vmem:[%s1 + $0x40] sm:$0xf]
  %v176 = vld [vmem:[%s1 + $0x44] sm:$0xf]
  %v177 = vld [vmem:[%s1 + $0x48] sm:$0xf]
  %v178 = vld [vmem:[%s1 + $0x4c] sm:$0xf]
  %v179 = vld [vmem:[%s1 + $0x50] sm:$0xf]
  %v180 = vld [vmem:[%s1 + $0x54] sm:$0xf]
  %v181 = vld [vmem:[%s1 + $0x58] sm:$0xf]
  %v182 = vld [vmem:[%s1 + $0x5c] sm:$0xf]
  %v183 = vld [vmem:[%s1 + $0x60] sm:$0xf]
  %v184 = vld [vmem:[%s1 + $0x64] sm:$0xf]
  %v185 = vld [vmem:[%s1 + $0x68] sm:$0xf]
  %v186 = vld [vmem:[%s1 + $0x6c] sm:$0xf]
  %v187 = vld [vmem:[%s1 + $0x70] sm:$0xf]
  %v188 = vld [vmem:[%s1 + $0x74] sm:$0xf]
  %v189 = vld [vmem:[%s1 + $0x78] sm:$0xf]
  %v190 = vld [vmem:[%s1 + $0x7c] sm:$0xf]
  %v191 = vld [vmem:[%s1 + $0x80] sm:$0xf]
  %v192 = vld [vmem:[%s1 + $0x84] sm:$0xf]
  %v193 = vld [vmem:[%s1 + $0x88] sm:$0xf]
  %v194 = vld [vmem:[%s1 + $0x8c] sm:$0xf]
  %v195 = vld [vmem:[%s1 + $0x90] sm:$0xf]
  %v196 = vld [vmem:[%s1 + $0x94] sm:$0xf]
  %v197 = vld [vmem:[%s1 + $0x98] sm:$0xf]
  %v198 = vld [vmem:[%s1 + $0x9c] sm:$0xf]
  %v199 = vld [vmem:[%s1 + $0xa0] sm:$0xf]
  %v200 = vld [vmem:[%s1 + $0xa4] sm:$0xf]
  %v201 = vld [vmem:[%s1 + $0xa8] sm:$0xf]
  %v202 = vld [vmem:[%s1 + $0xac] sm:$0xf]
  %v203 = vld [vmem:[%s1 + $0xb0] sm:$0xf]
  %v204 = vld [vmem:[%s1 + $0xb4] sm:$0xf]
  %v205 = vld [vmem:[%s1 + $0xb8] sm:$0xf]
  %v206 = vld [vmem:[%s1 + $0xbc] sm:$0xf]
  %v207 = vld [vmem:[%s1 + $0xc0] sm:$0xf]
  %v208 = vld [vmem:[%s1 + $0xc4] sm:$0xf]
  %v209 = vld [vmem:[%s1 + $0xc8] sm:$0xf]
  %v210 = vld [vmem:[%s1 + $0xcc] sm:$0xf]
  %v211 = vld [vmem:[%s1 + $0xd0] sm:$0xf]
  %v212 = vld [vmem:[%s1 + $0xd4] sm:$0xf]
  %v213 = vld [vmem:[%s1 + $0xd8] sm:$0xf]
  %v214 = vld [vmem:[%s1 + $0xdc] sm:$0xf]
  %v215 = vld [vmem:[%s1 + $0xe0] sm:$0xf]
  %v216 = vld [vmem:[%s1 + $0xe4] sm:$0xf]
  %v217 = vld [vmem:[%s1 + $0xe8] sm:$0xf]
  %v218 = vld [vmem:[%s1 + $0xec] sm:$0xf]
  %v219 = vld [vmem:[%s1 + $0xf0] sm:$0xf]
  %v220 = vld [vmem:[%s1 + $0xf4] sm:$0xf]
  %v221 = vld [vmem:[%s1 + $0xf8] sm:$0xf]
  %v222 = vld [vmem:[%s1 + $0xfc] sm:$0xf]
  %v223 = vld [vmem:[%s1 + $0x100] sm:$0xf]
  %v224 = vld [vmem:[%s1 + $0x104] sm:$0xf]
  %v225 = vld [vmem:[%s1 + $0x108] sm:$0xf]
  %v226 = vld [vmem:[%s1 + $0x10c] sm:$0xf]
  %v227 = vld [vmem:[%s1 + $0x110] sm:$0xf]
  %v228 = vld [vmem:[%s1 + $0x114] sm:$0xf]
  %v229 = vld [vmem:[%s1 + $0x118] sm:$0xf]
  %v230 = vld [vmem:[%s1 + $0x11c] sm:$0xf]
  %v231 = vld [vmem:[%s1 + $0x120] sm:$0xf]
  %v232 = vld [vmem:[%s1 + $0x124] sm:$0xf]
  %v233 = vld [vmem:[%s1 + $0x128] sm:$0xf]
  %v234 = vld [vmem:[%s1 + $0x12c] sm:$0xf]
  %v235 = vld [vmem:[%s1 + $0x130] sm:$0xf]
  %v236 = vld [vmem:[%s1 + $0x134] sm:$0xf]
  %v237 = vld [vmem:[%s1 + $0x138] sm:$0xf]
  %v238 = vld [vmem:[%s1 + $0x13c] sm:$0xf]
  %v239 = vld [vmem:[%s1 + $0x140] sm:$0xf]
  %v240 = vld [vmem:[%s1 + $0x144] sm:$0xf]
  %v241 = vld [vmem:[%s1 + $0x148] sm:$0xf]
  %v242 = vld [vmem:[%s1 + $0x14c] sm:$0xf]
  %v243 = vld [vmem:[%s1 + $0x150] sm:$0xf]
  %v244 = vld [vmem:[%s1 + $0x154] sm:$0xf]
  %v245 = vld [vmem:[%s1 + $0x158] sm:$0xf]
  %v246 = vld [vmem:[%s1 + $0x15c] sm:$0xf]
  %v247 = vld [vmem:[%s1 + $0x160] sm:$0xf]
  %v248 = vld [vmem:[%s1 + $0x164] sm:$0xf]
  %v249 = vld [vmem:[%s1 + $0x168] sm:$0xf]
  %v250 = vld [vmem:[%s1 + $0x16c] sm:$0xf]
  %v251 = vld [vmem:[%s1 + $0x170] sm:$0xf]
  %v252 = vld [vmem:[%s1 + $0x174] sm:$0xf]
  %v253 = vld [vmem:[%s1 + $0x178] sm:$0xf]
  %v254 = vld [vmem:[%s1 + $0x17c] sm:$0xf]
  %v255 = vld [vmem:[%s1 + $0x180] sm:$0xf]
  %v256 = vld [vmem:[%s1 + $0x184] sm:$0xf]
  %v257 = vld [vmem:[%s1 + $0x188] sm:$0xf]
  %v258 = vld [vmem:[%s1 + $0x18c] sm:$0xf]
  %v259 = vld [vmem:[%s1 + $0x190] sm:$0xf]
  %v260 = vld [vmem:[%s1 + $0x194] sm:$0xf]
  %v261 = vld [vmem:[%s1 + $0x198] sm:$0xf]
  %v262 = vld [vmem:[%s1 + $0x19c] sm:$0xf]
  %v263 = vld [vmem:[%s1 + $0x1a0] sm:$0xf]
  %v264 = vld [vmem:[%s1 + $0x1a4] sm:$0xf]
  %v265 = vld [vmem:[%s1 + $0x1a8] sm:$0xf]
  %v266 = vld [vmem:[%s1 + $0x1ac] sm:$0xf]
  %v267 = vld [vmem:[%s1 + $0x1b0] sm:$0xf]
  %v268 = vld [vmem:[%s1 + $0x1b4] sm:$0xf]
  %v269 = vld [vmem:[%s1 + $0x1b8] sm:$0xf]
  %v270 = vld [vmem:[%s1 + $0x1bc] sm:$0xf]
  %v271 = vld [vmem:[%s1 + $0x1c0] sm:$0xf]
  %v272 = vld [vmem:[%s1 + $0x1c4] sm:$0xf]
  %v273 = vld [vmem:[%s1 + $0x1c8] sm:$0xf]
  %v274 = vld [vmem:[%s1 + $0x1cc] sm:$0xf]
  %v275 = vld [vmem:[%s1 + $0x1d0] sm:$0xf]
  %v276 = vld [vmem:[%s1 + $0x1d4] sm:$0xf]
  %v277 = vld [vmem:[%s1 + $0x1d8] sm:$0xf]
  %v278 = vld [vmem:[%s1 + $0x1dc] sm:$0xf]
  %v279 = vld [vmem:[%s1 + $0x1e0] sm:$0xf]
  %v280 = vld [vmem:[%s1 + $0x1e4] sm:$0xf]
  %v281 = vld [vmem:[%s1 + $0x1e8] sm:$0xf]
  %v282 = vld [vmem:[%s1 + $0x1ec] sm:$0xf]
  %v283 = vld [vmem:[%s1 + $0x1f0] sm:$0xf]
  %v284 = vld [vmem:[%s1 + $0x1f4] sm:$0xf]
  %v285 = vld [vmem:[%s1 + $0x1f8] sm:$0xf]
  %v286 = vld [vmem:[%s1 + $0x1fc] sm:$0xf]
  %v287 = vld [vmem:[%s4] sm:$0x3]
  %v416 = vunpack.c.l.b16 %v159
  %v417 = vunpack.c.l.b16 %v160
  %v418 = vunpack.c.l.b16 %v161
  %v419 = vunpack.c.l.b16 %v162
  %v420 = vunpack.c.l.b16 %v163
  %v421 = vunpack.c.l.b16 %v164
  %v422 = vunpack.c.l.b16 %v165
  %v423 = vunpack.c.l.b16 %v166
  %v424 = vunpack.c.l.b16 %v167
  %v425 = vunpack.c.l.b16 %v168
  %v426 = vunpack.c.l.b16 %v169
  %v427 = vunpack.c.l.b16 %v170
  %v428 = vunpack.c.l.b16 %v171
  %v429 = vunpack.c.l.b16 %v172
  %v430 = vunpack.c.l.b16 %v173
  %v431 = vunpack.c.l.b16 %v174
  %v432 = vunpack.c.l.b16 %v175
  %v433 = vunpack.c.l.b16 %v176
  %v434 = vunpack.c.l.b16 %v177
  %v435 = vunpack.c.l.b16 %v178
  %v436 = vunpack.c.l.b16 %v179
  %v437 = vunpack.c.l.b16 %v180
  %v438 = vunpack.c.l.b16 %v181
  %v439 = vunpack.c.l.b16 %v182
  %v440 = vunpack.c.l.b16 %v183
  %v441 = vunpack.c.l.b16 %v184
  %v442 = vunpack.c.l.b16 %v185
  %v443 = vunpack.c.l.b16 %v186
  %v444 = vunpack.c.l.b16 %v187
  %v445 = vunpack.c.l.b16 %v188
  %v446 = vunpack.c.l.b16 %v189
  %v447 = vunpack.c.l.b16 %v190
  %v448 = vunpack.c.l.b16 %v191
  %v449 = vunpack.c.l.b16 %v192
  %v450 = vunpack.c.l.b16 %v193
  %v451 = vunpack.c.l.b16 %v194
  %v452 = vunpack.c.l.b16 %v195
  %v453 = vunpack.c.l.b16 %v196
  %v454 = vunpack.c.l.b16 %v197
  %v455 = vunpack.c.l.b16 %v198
  %v456 = vunpack.c.l.b16 %v199
  %v457 = vunpack.c.l.b16 %v200
  %v458 = vunpack.c.l.b16 %v201
  %v459 = vunpack.c.l.b16 %v202
  %v460 = vunpack.c.l.b16 %v203
  %v461 = vunpack.c.l.b16 %v204
  %v462 = vunpack.c.l.b16 %v205
  %v463 = vunpack.c.l.b16 %v206
  %v464 = vunpack.c.l.b16 %v207
  %v465 = vunpack.c.l.b16 %v208
  %v466 = vunpack.c.l.b16 %v209
  %v467 = vunpack.c.l.b16 %v210
  %v468 = vunpack.c.l.b16 %v211
  %v469 = vunpack.c.l.b16 %v212
  %v470 = vunpack.c.l.b16 %v213
  %v471 = vunpack.c.l.b16 %v214
  %v472 = vunpack.c.l.b16 %v215
  %v473 = vunpack.c.l.b16 %v216
  %v474 = vunpack.c.l.b16 %v217
  %v475 = vunpack.c.l.b16 %v218
  %v476 = vunpack.c.l.b16 %v219
  %v477 = vunpack.c.l.b16 %v220
  %v478 = vunpack.c.l.b16 %v221
  %v479 = vunpack.c.l.b16 %v222
  %v480 = vunpack.c.l.b16 %v223
  %v481 = vunpack.c.l.b16 %v224
  %v482 = vunpack.c.l.b16 %v225
  %v483 = vunpack.c.l.b16 %v226
  %v484 = vunpack.c.l.b16 %v227
  %v485 = vunpack.c.l.b16 %v228
  %v486 = vunpack.c.l.b16 %v229
  %v487 = vunpack.c.l.b16 %v230
  %v488 = vunpack.c.l.b16 %v231
  %v489 = vunpack.c.l.b16 %v232
  %v490 = vunpack.c.l.b16 %v233
  %v491 = vunpack.c.l.b16 %v234
  %v492 = vunpack.c.l.b16 %v235
  %v493 = vunpack.c.l.b16 %v236
  %v494 = vunpack.c.l.b16 %v237
  %v495 = vunpack.c.l.b16 %v238
  %v496 = vunpack.c.l.b16 %v239
  %v497 = vunpack.c.l.b16 %v240
  %v498 = vunpack.c.l.b16 %v241
  %v499 = vunpack.c.l.b16 %v242
  %v500 = vunpack.c.l.b16 %v243
  %v501 = vunpack.c.l.b16 %v244
  %v502 = vunpack.c.l.b16 %v245
  %v503 = vunpack.c.l.b16 %v246
  %v504 = vunpack.c.l.b16 %v247
  %v505 = vunpack.c.l.b16 %v248
  %v506 = vunpack.c.l.b16 %v249
  %v507 = vunpack.c.l.b16 %v250
  %v508 = vunpack.c.l.b16 %v251
  %v509 = vunpack.c.l.b16 %v252
  %v510 = vunpack.c.l.b16 %v253
  %v511 = vunpack.c.l.b16 %v254
  %v512 = vunpack.c.l.b16 %v255
  %v513 = vunpack.c.l.b16 %v256
  %v514 = vunpack.c.l.b16 %v257
  %v515 = vunpack.c.l.b16 %v258
  %v516 = vunpack.c.l.b16 %v259
  %v517 = vunpack.c.l.b16 %v260
  %v518 = vunpack.c.l.b16 %v261
  %v519 = vunpack.c.l.b16 %v262
  %v520 = vunpack.c.l.b16 %v263
  %v521 = vunpack.c.l.b16 %v264
  %v522 = vunpack.c.l.b16 %v265
  %v523 = vunpack.c.l.b16 %v266
  %v524 = vunpack.c.l.b16 %v267
  %v525 = vunpack.c.l.b16 %v268
  %v526 = vunpack.c.l.b16 %v269
  %v527 = vunpack.c.l.b16 %v270
  %v528 = vunpack.c.l.b16 %v271
  %v529 = vunpack.c.l.b16 %v272
  %v530 = vunpack.c.l.b16 %v273
  %v531 = vunpack.c.l.b16 %v274
  %v532 = vunpack.c.l.b16 %v275
  %v533 = vunpack.c.l.b16 %v276
  %v534 = vunpack.c.l.b16 %v277
  %v535 = vunpack.c.l.b16 %v278
  %v536 = vunpack.c.l.b16 %v279
  %v537 = vunpack.c.l.b16 %v280
  %v538 = vunpack.c.l.b16 %v281
  %v539 = vunpack.c.l.b16 %v282
  %v540 = vunpack.c.l.b16 %v283
  %v541 = vunpack.c.l.b16 %v284
  %v542 = vunpack.c.l.b16 %v285
  %v543 = vunpack.c.l.b16 %v286
  %v544 = vpack.c.b16 %v417, %v416
  %v545 = vpack.c.b16 %v419, %v418
  %v546 = vpack.c.b16 %v421, %v420
  %v547 = vpack.c.b16 %v423, %v422
  %v548 = vpack.c.b16 %v425, %v424
  %v549 = vpack.c.b16 %v427, %v426
  %v550 = vpack.c.b16 %v429, %v428
  %v551 = vpack.c.b16 %v431, %v430
  %v552 = vpack.c.b16 %v433, %v432
  %v553 = vpack.c.b16 %v435, %v434
  %v554 = vpack.c.b16 %v437, %v436
  %v555 = vpack.c.b16 %v439, %v438
  %v556 = vpack.c.b16 %v441, %v440
  %v557 = vpack.c.b16 %v443, %v442
  %v558 = vpack.c.b16 %v445, %v444
  %v559 = vpack.c.b16 %v447, %v446
  %v560 = vpack.c.b16 %v449, %v448
  %v561 = vpack.c.b16 %v451, %v450
  %v562 = vpack.c.b16 %v453, %v452
  %v563 = vpack.c.b16 %v455, %v454
  %v564 = vpack.c.b16 %v457, %v456
  %v565 = vpack.c.b16 %v459, %v458
  %v566 = vpack.c.b16 %v461, %v460
  %v567 = vpack.c.b16 %v463, %v462
  %v568 = vpack.c.b16 %v465, %v464
  %v569 = vpack.c.b16 %v467, %v466
  %v570 = vpack.c.b16 %v469, %v468
  %v571 = vpack.c.b16 %v471, %v470
  %v572 = vpack.c.b16 %v473, %v472
  %v573 = vpack.c.b16 %v475, %v474
  %v574 = vpack.c.b16 %v477, %v476
  %v575 = vpack.c.b16 %v479, %v478
  %v576 = vpack.c.b16 %v481, %v480
  %v577 = vpack.c.b16 %v483, %v482
  %v578 = vpack.c.b16 %v485, %v484
  %v579 = vpack.c.b16 %v487, %v486
  %v580 = vpack.c.b16 %v489, %v488
  %v581 = vpack.c.b16 %v491, %v490
  %v582 = vpack.c.b16 %v493, %v492
  %v583 = vpack.c.b16 %v495, %v494
  %v584 = vpack.c.b16 %v497, %v496
  %v585 = vpack.c.b16 %v499, %v498
  %v586 = vpack.c.b16 %v501, %v500
  %v587 = vpack.c.b16 %v503, %v502
  %v588 = vpack.c.b16 %v505, %v504
  %v589 = vpack.c.b16 %v507, %v506
  %v590 = vpack.c.b16 %v509, %v508
  %v591 = vpack.c.b16 %v511, %v510
  %v592 = vpack.c.b16 %v513, %v512
  %v593 = vpack.c.b16 %v515, %v514
  %v594 = vpack.c.b16 %v517, %v516
  %v595 = vpack.c.b16 %v519, %v518
  %v596 = vpack.c.b16 %v521, %v520
  %v597 = vpack.c.b16 %v523, %v522
  %v598 = vpack.c.b16 %v525, %v524
  %v599 = vpack.c.b16 %v527, %v526
  %v600 = vpack.c.b16 %v529, %v528
  %v601 = vpack.c.b16 %v531, %v530
  %v602 = vpack.c.b16 %v533, %v532
  %v603 = vpack.c.b16 %v535, %v534
  %v604 = vpack.c.b16 %v537, %v536
  %v605 = vpack.c.b16 %v539, %v538
  %v606 = vpack.c.b16 %v541, %v540
  %v607 = vpack.c.b16 %v543, %v542
  %vm608 = vcmask 23552
  %v610 = vsel %vm608, %v544, 0
  %v613 = vsel %vm608, %v545, 0
  %v616 = vsel %vm608, %v546, 0
  %v619 = vsel %vm608, %v547, 0
  %v622 = vsel %vm608, %v548, 0
  %v625 = vsel %vm608, %v549, 0
  %v628 = vsel %vm608, %v550, 0
  %v631 = vsel %vm608, %v551, 0
  %v634 = vsel %vm608, %v552, 0
  %v637 = vsel %vm608, %v553, 0
  %v640 = vsel %vm608, %v554, 0
  %v643 = vsel %vm608, %v555, 0
  %v646 = vsel %vm608, %v556, 0
  %v649 = vsel %vm608, %v557, 0
  %v652 = vsel %vm608, %v558, 0
  %v655 = vsel %vm608, %v559, 0
  %v658 = vsel %vm608, %v560, 0
  %v661 = vsel %vm608, %v561, 0
  %v664 = vsel %vm608, %v562, 0
  %v667 = vsel %vm608, %v563, 0
  %v670 = vsel %vm608, %v564, 0
  %v673 = vsel %vm608, %v565, 0
  %v676 = vsel %vm608, %v566, 0
  %v679 = vsel %vm608, %v567, 0
  %v682 = vsel %vm608, %v568, 0
  %v685 = vsel %vm608, %v569, 0
  %v688 = vsel %vm608, %v570, 0
  %v691 = vsel %vm608, %v571, 0
  %v694 = vsel %vm608, %v572, 0
  %v697 = vsel %vm608, %v573, 0
  %v700 = vsel %vm608, %v574, 0
  %v703 = vsel %vm608, %v575, 0
  %v706 = vsel %vm608, %v576, 0
  %v709 = vsel %vm608, %v577, 0
  %v712 = vsel %vm608, %v578, 0
  %v715 = vsel %vm608, %v579, 0
  %v718 = vsel %vm608, %v580, 0
  %v721 = vsel %vm608, %v581, 0
  %v724 = vsel %vm608, %v582, 0
  %v727 = vsel %vm608, %v583, 0
  %v730 = vsel %vm608, %v584, 0
  %v733 = vsel %vm608, %v585, 0
  %v736 = vsel %vm608, %v586, 0
  %v739 = vsel %vm608, %v587, 0
  %v742 = vsel %vm608, %v588, 0
  %v745 = vsel %vm608, %v589, 0
  %v748 = vsel %vm608, %v590, 0
  %v751 = vsel %vm608, %v591, 0
  %v754 = vsel %vm608, %v592, 0
  %v757 = vsel %vm608, %v593, 0
  %v760 = vsel %vm608, %v594, 0
  %v763 = vsel %vm608, %v595, 0
  %v766 = vsel %vm608, %v596, 0
  %v769 = vsel %vm608, %v597, 0
  %v772 = vsel %vm608, %v598, 0
  %v775 = vsel %vm608, %v599, 0
  %v778 = vsel %vm608, %v600, 0
  %v781 = vsel %vm608, %v601, 0
  %v784 = vsel %vm608, %v602, 0
  %v787 = vsel %vm608, %v603, 0
  %v790 = vsel %vm608, %v604, 0
  %v793 = vsel %vm608, %v605, 0
  %v796 = vsel %vm608, %v606, 0
  %v799 = vsel %vm608, %v607, 0
  %vm801 = vcmask 1040384
  %vm802 = vcmask 1041408
  %v803 = vsel %vm801, 4294967295, 65535
  %v804 = vsel %vm802, %v803, 0
  %v806 = vand.u32 %v287, %v804
  %808 = vmatprep.subr.bf16.mxu0 0
  %809 = vmatpush1.bf16.msra.mxu0 %v806
  %810 = vmatprep.subr.bf16.mxu0 0
  %811 = vmatpush1.bf16.msra.mxu0 0
  %812 = vmatprep.subr.bf16.mxu0 0
  %813 = vmatpush1.bf16.msra.mxu0 0
  %814 = vmatprep.subr.bf16.mxu0 0
  %815 = vmatpush1.bf16.msra.mxu0 0
  %816 = vmatprep.subr.bf16.mxu0 0
  %817 = vmatpush1.bf16.msra.mxu0 0
  %818 = vmatprep.subr.bf16.mxu0 0
  %819 = vmatpush1.bf16.msra.mxu0 0
  %820 = vmatprep.subr.bf16.mxu0 0
  %821 = vmatpush1.bf16.msra.mxu0 0
  %822 = vmatprep.subr.bf16.mxu0 0
  %823 = vmatpush1.bf16.msra.mxu0 0
  %824 = vmatprep.subr.bf16.mxu0 0
  %825 = vmatpush1.bf16.msra.mxu0 0
  %826 = vmatprep.subr.bf16.mxu0 0
  %827 = vmatpush1.bf16.msra.mxu0 0
  %828 = vmatprep.subr.bf16.mxu0 0
  %829 = vmatpush1.bf16.msra.mxu0 0
  %830 = vmatprep.subr.bf16.mxu0 0
  %831 = vmatpush1.bf16.msra.mxu0 0
  %832 = vmatprep.subr.bf16.mxu0 0
  %833 = vmatpush1.bf16.msra.mxu0 0
  %834 = vmatprep.subr.bf16.mxu0 0
  %835 = vmatpush1.bf16.msra.mxu0 0
  %836 = vmatprep.subr.bf16.mxu0 0
  %837 = vmatpush1.bf16.msra.mxu0 0
  %838 = vmatprep.subr.bf16.mxu0 0
  %839 = vmatpush1.bf16.msra.mxu0 0
  %840 = vmatprep.mubr.bf16.mxu0 0
  %841 = vmatmul.mubr.bf16.gmra.mrb[0].mxu0 %v610
  %v842 = vpop.f32.mrb[0].mxu0
  %v843 = vadd.f32 0.0, %v842
  %v844 = vpop.f32.mrb[0].mxu0
  %v845 = vpop.f32.mrb[0].mxu0
  %v846 = vadd.f32 0.0, %v845
  %v847 = vpop.f32.mrb[0].mxu0
  %848 = vmatprep.mubr.bf16.mxu0 0
  %849 = vmatmul.mubr.bf16.gmra.mrb[0].mxu0 %v613
  %v850 = vpop.f32.mrb[0].mxu0
  %v851 = vadd.f32 0.0, %v850
  %v852 = vpop.f32.mrb[0].mxu0
  %v853 = vpop.f32.mrb[0].mxu0
  %v854 = vadd.f32 0.0, %v853
  %v855 = vpop.f32.mrb[0].mxu0
  %856 = vmatprep.mubr.bf16.mxu0 0
  %857 = vmatmul.mubr.bf16.gmra.mrb[0].mxu0 %v616
  %v858 = vpop.f32.mrb[0].mxu0
  %v859 = vadd.f32 0.0, %v858
  %v860 = vpop.f32.mrb[0].mxu0
  %v861 = vpop.f32.mrb[0].mxu0
  %v862 = vadd.f32 0.0, %v861
  %v863 = vpop.f32.mrb[0].mxu0
  %864 = vmatprep.mubr.bf16.mxu0 0
  %865 = vmatmul.mubr.bf16.gmra.mrb[0].mxu0 %v619
  %v866 = vpop.f32.mrb[0].mxu0
  %v867 = vadd.f32 0.0, %v866
  %v868 = vpop.f32.mrb[0].mxu0
  %v869 = vpop.f32.mrb[0].mxu0
  %v870 = vadd.f32 0.0, %v869
  %v871 = vpop.f32.mrb[0].mxu0
  %872 = vmatprep.mubr.bf16.mxu0 0
  %873 = vmatmul.mubr.bf16.gmra.mrb[0].mxu0 %v622
  %v874 = vpop.f32.mrb[0].mxu0
  %v875 = vadd.f32 0.0, %v874
  %v876 = vpop.f32.mrb[0].mxu0
  %v877 = vpop.f32.mrb[0].mxu0
  %v878 = vadd.f32 0.0, %v877
  %v879 = vpop.f32.mrb[0].mxu0
  %880 = vmatprep.mubr.bf16.mxu0 0
  %881 = vmatmul.mubr.bf16.gmra.mrb[0].mxu0 %v625
  %v882 = vpop.f32.mrb[0].mxu0
  %v883 = vadd.f32 0.0, %v882
  %v884 = vpop.f32.mrb[0].mxu0
  %v885 = vpop.f32.mrb[0].mxu0
  %v886 = vadd.f32 0.0, %v885
  %v887 = vpop.f32.mrb[0].mxu0
  %888 = vmatprep.mubr.bf16.mxu0 0
  %889 = vmatmul.mubr.bf16.gmra.mrb[0].mxu0 %v628
  %v890 = vpop.f32.mrb[0].mxu0
  %v891 = vadd.f32 0.0, %v890
  %v892 = vpop.f32.mrb[0].mxu0
  %v893 = vpop.f32.mrb[0].mxu0
  %v894 = vadd.f32 0.0, %v893
  %v895 = vpop.f32.mrb[0].mxu0
  %896 = vmatprep.mubr.bf16.mxu0 0
  %897 = vmatmul.mubr.bf16.gmra.mrb[0].mxu0 %v631
  %v898 = vpop.f32.mrb[0].mxu0
  %v899 = vadd.f32 0.0, %v898
  %v900 = vpop.f32.mrb[0].mxu0
  %v901 = vpop.f32.mrb[0].mxu0
  %v902 = vadd.f32 0.0, %v901
  %v903 = vpop.f32.mrb[0].mxu0
  %904 = vmatprep.mubr.bf16.mxu0 0
  %905 = vmatmul.mubr.bf16.gmra.mrb[0].mxu0 %v634
  %v906 = vpop.f32.mrb[0].mxu0
  %v907 = vadd.f32 0.0, %v906
  %v908 = vpop.f32.mrb[0].mxu0
  %v909 = vpop.f32.mrb[0].mxu0
  %v910 = vadd.f32 0.0, %v909
  %v911 = vpop.f32.mrb[0].mxu0
  %912 = vmatprep.mubr.bf16.mxu0 0
  %913 = vmatmul.mubr.bf16.gmra.mrb[0].mxu0 %v637
  %v914 = vpop.f32.mrb[0].mxu0
  %v915 = vadd.f32 0.0, %v914
  %v916 = vpop.f32.mrb[0].mxu0
  %v917 = vpop.f32.mrb[0].mxu0
  %v918 = vadd.f32 0.0, %v917
  %v919 = vpop.f32.mrb[0].mxu0
  %920 = vmatprep.mubr.bf16.mxu0 0
  %921 = vmatmul.mubr.bf16.gmra.mrb[0].mxu0 %v640
  %v922 = vpop.f32.mrb[0].mxu0
  %v923 = vadd.f32 0.0, %v922
  %v924 = vpop.f32.mrb[0].mxu0
  %v925 = vpop.f32.mrb[0].mxu0
  %v926 = vadd.f32 0.0, %v925
  %v927 = vpop.f32.mrb[0].mxu0
  %928 = vmatprep.mubr.bf16.mxu0 0
  %929 = vmatmul.mubr.bf16.gmra.mrb[0].mxu0 %v643
  %v930 = vpop.f32.mrb[0].mxu0
  %v931 = vadd.f32 0.0, %v930
  %v932 = vpop.f32.mrb[0].mxu0
  %v933 = vpop.f32.mrb[0].mxu0
  %v934 = vadd.f32 0.0, %v933
  %v935 = vpop.f32.mrb[0].mxu0
  %936 = vmatprep.mubr.bf16.mxu0 0
  %937 = vmatmul.mubr.bf16.gmra.mrb[0].mxu0 %v646
  %v938 = vpop.f32.mrb[0].mxu0
  %v939 = vadd.f32 0.0, %v938
  %v940 = vpop.f32.mrb[0].mxu0
  %v941 = vpop.f32.mrb[0].mxu0
  %v942 = vadd.f32 0.0, %v941
  %v943 = vpop.f32.mrb[0].mxu0
  %944 = vmatprep.mubr.bf16.mxu0 0
  %945 = vmatmul.mubr.bf16.gmra.mrb[0].mxu0 %v649
  %v946 = vpop.f32.mrb[0].mxu0
  %v947 = vadd.f32 0.0, %v946
  %v948 = vpop.f32.mrb[0].mxu0
  %v949 = vpop.f32.mrb[0].mxu0
  %v950 = vadd.f32 0.0, %v949
  %v951 = vpop.f32.mrb[0].mxu0
  %952 = vmatprep.mubr.bf16.mxu0 0
  %953 = vmatmul.mubr.bf16.gmra.mrb[0].mxu0 %v652
  %v954 = vpop.f32.mrb[0].mxu0
  %v955 = vadd.f32 0.0, %v954
  %v956 = vpop.f32.mrb[0].mxu0
  %v957 = vpop.f32.mrb[0].mxu0
  %v958 = vadd.f32 0.0, %v957
  %v959 = vpop.f32.mrb[0].mxu0
  %960 = vmatprep.mubr.bf16.mxu0 0
  %961 = vmatmul.mubr.bf16.gmra.mrb[0].mxu0 %v655
  %v962 = vpop.f32.mrb[0].mxu0
  %v963 = vadd.f32 0.0, %v962
  %v964 = vpop.f32.mrb[0].mxu0
  %v965 = vpop.f32.mrb[0].mxu0
  %v966 = vadd.f32 0.0, %v965
  %v967 = vpop.f32.mrb[0].mxu0
  %968 = vmatprep.mubr.bf16.mxu0 0
  %969 = vmatmul.mubr.bf16.gmra.mrb[0].mxu0 %v658
  %v970 = vpop.f32.mrb[0].mxu0
  %v971 = vadd.f32 0.0, %v970
  %v972 = vpop.f32.mrb[0].mxu0
  %v973 = vpop.f32.mrb[0].mxu0
  %v974 = vadd.f32 0.0, %v973
  %v975 = vpop.f32.mrb[0].mxu0
  %976 = vmatprep.mubr.bf16.mxu0 0
  %977 = vmatmul.mubr.bf16.gmra.mrb[0].mxu0 %v661
  %v978 = vpop.f32.mrb[0].mxu0
  %v979 = vadd.f32 0.0, %v978
  %v980 = vpop.f32.mrb[0].mxu0
  %v981 = vpop.f32.mrb[0].mxu0
  %v982 = vadd.f32 0.0, %v981
  %v983 = vpop.f32.mrb[0].mxu0
  %984 = vmatprep.mubr.bf16.mxu0 0
  %985 = vmatmul.mubr.bf16.gmra.mrb[0].mxu0 %v664
  %v986 = vpop.f32.mrb[0].mxu0
  %v987 = vadd.f32 0.0, %v986
  %v988 = vpop.f32.mrb[0].mxu0
  %v989 = vpop.f32.mrb[0].mxu0
  %v990 = vadd.f32 0.0, %v989
  %v991 = vpop.f32.mrb[0].mxu0
  %992 = vmatprep.mubr.bf16.mxu0 0
  %993 = vmatmul.mubr.bf16.gmra.mrb[0].mxu0 %v667
  %v994 = vpop.f32.mrb[0].mxu0
  %v995 = vadd.f32 0.0, %v994
  %v996 = vpop.f32.mrb[0].mxu0
  %v997 = vpop.f32.mrb[0].mxu0
  %v998 = vadd.f32 0.0, %v997
  %v999 = vpop.f32.mrb[0].mxu0
  %1000 = vmatprep.mubr.bf16.mxu0 0
  %1001 = vmatmul.mubr.bf16.gmra.mrb[0].mxu0 %v670
  %v1002 = vpop.f32.mrb[0].mxu0
  %v1003 = vadd.f32 0.0, %v1002
  %v1004 = vpop.f32.mrb[0].mxu0
  %v1005 = vpop.f32.mrb[0].mxu0
  %v1006 = vadd.f32 0.0, %v1005
  %v1007 = vpop.f32.mrb[0].mxu0
  %1008 = vmatprep.mubr.bf16.mxu0 0
  %1009 = vmatmul.mubr.bf16.gmra.mrb[0].mxu0 %v673
  %v1010 = vpop.f32.mrb[0].mxu0
  %v1011 = vadd.f32 0.0, %v1010
  %v1012 = vpop.f32.mrb[0].mxu0
  %v1013 = vpop.f32.mrb[0].mxu0
  %v1014 = vadd.f32 0.0, %v1013
  %v1015 = vpop.f32.mrb[0].mxu0
  %1016 = vmatprep.mubr.bf16.mxu0 0
  %1017 = vmatmul.mubr.bf16.gmra.mrb[0].mxu0 %v676
  %v1018 = vpop.f32.mrb[0].mxu0
  %v1019 = vadd.f32 0.0, %v1018
  %v1020 = vpop.f32.mrb[0].mxu0
  %v1021 = vpop.f32.mrb[0].mxu0
  %v1022 = vadd.f32 0.0, %v1021
  %v1023 = vpop.f32.mrb[0].mxu0
  %1024 = vmatprep.mubr.bf16.mxu0 0
  %1025 = vmatmul.mubr.bf16.gmra.mrb[0].mxu0 %v679
  %v1026 = vpop.f32.mrb[0].mxu0
  %v1027 = vadd.f32 0.0, %v1026
  %v1028 = vpop.f32.mrb[0].mxu0
  %v1029 = vpop.f32.mrb[0].mxu0
  %v1030 = vadd.f32 0.0, %v1029
  %v1031 = vpop.f32.mrb[0].mxu0
  %1032 = vmatprep.mubr.bf16.mxu0 0
  %1033 = vmatmul.mubr.bf16.gmra.mrb[0].mxu0 %v682
  %v1034 = vpop.f32.mrb[0].mxu0
  %v1035 = vadd.f32 0.0, %v1034
  %v1036 = vpop.f32.mrb[0].mxu0
  %v1037 = vpop.f32.mrb[0].mxu0
  %v1038 = vadd.f32 0.0, %v1037
  %v1039 = vpop.f32.mrb[0].mxu0
  %1040 = vmatprep.mubr.bf16.mxu0 0
  %1041 = vmatmul.mubr.bf16.gmra.mrb[0].mxu0 %v685
  %v1042 = vpop.f32.mrb[0].mxu0
  %v1043 = vadd.f32 0.0, %v1042
  %v1044 = vpop.f32.mrb[0].mxu0
  %v1045 = vpop.f32.mrb[0].mxu0
  %v1046 = vadd.f32 0.0, %v1045
  %v1047 = vpop.f32.mrb[0].mxu0
  %1048 = vmatprep.mubr.bf16.mxu0 0
  %1049 = vmatmul.mubr.bf16.gmra.mrb[0].mxu0 %v688
  %v1050 = vpop.f32.mrb[0].mxu0
  %v1051 = vadd.f32 0.0, %v1050
  %v1052 = vpop.f32.mrb[0].mxu0
  %v1053 = vpop.f32.mrb[0].mxu0
  %v1054 = vadd.f32 0.0, %v1053
  %v1055 = vpop.f32.mrb[0].mxu0
  %1056 = vmatprep.mubr.bf16.mxu0 0
  %1057 = vmatmul.mubr.bf16.gmra.mrb[0].mxu0 %v691
  %v1058 = vpop.f32.mrb[0].mxu0
  %v1059 = vadd.f32 0.0, %v1058
  %v1060 = vpop.f32.mrb[0].mxu0
  %v1061 = vpop.f32.mrb[0].mxu0
  %v1062 = vadd.f32 0.0, %v1061
  %v1063 = vpop.f32.mrb[0].mxu0
  %1064 = vmatprep.mubr.bf16.mxu0 0
  %1065 = vmatmul.mubr.bf16.gmra.mrb[0].mxu0 %v694
  %v1066 = vpop.f32.mrb[0].mxu0
  %v1067 = vadd.f32 0.0, %v1066
  %v1068 = vpop.f32.mrb[0].mxu0
  %v1069 = vpop.f32.mrb[0].mxu0
  %v1070 = vadd.f32 0.0, %v1069
  %v1071 = vpop.f32.mrb[0].mxu0
  %1072 = vmatprep.mubr.bf16.mxu0 0
  %1073 = vmatmul.mubr.bf16.gmra.mrb[0].mxu0 %v697
  %v1074 = vpop.f32.mrb[0].mxu0
  %v1075 = vadd.f32 0.0, %v1074
  %v1076 = vpop.f32.mrb[0].mxu0
  %v1077 = vpop.f32.mrb[0].mxu0
  %v1078 = vadd.f32 0.0, %v1077
  %v1079 = vpop.f32.mrb[0].mxu0
  %1080 = vmatprep.mubr.bf16.mxu0 0
  %1081 = vmatmul.mubr.bf16.gmra.mrb[0].mxu0 %v700
  %v1082 = vpop.f32.mrb[0].mxu0
  %v1083 = vadd.f32 0.0, %v1082
  %v1084 = vpop.f32.mrb[0].mxu0
  %v1085 = vpop.f32.mrb[0].mxu0
  %v1086 = vadd.f32 0.0, %v1085
  %v1087 = vpop.f32.mrb[0].mxu0
  %1088 = vmatprep.mubr.bf16.mxu0 0
  %1089 = vmatmul.mubr.bf16.gmra.mrb[0].mxu0 %v703
  %v1090 = vpop.f32.mrb[0].mxu0
  %v1091 = vadd.f32 0.0, %v1090
  %v1092 = vpop.f32.mrb[0].mxu0
  %v1093 = vpop.f32.mrb[0].mxu0
  %v1094 = vadd.f32 0.0, %v1093
  %v1095 = vpop.f32.mrb[0].mxu0
  %1096 = vmatprep.mubr.bf16.mxu0 0
  %1097 = vmatmul.mubr.bf16.gmra.mrb[0].mxu0 %v706
  %v1098 = vpop.f32.mrb[0].mxu0
  %v1099 = vadd.f32 0.0, %v1098
  %v1100 = vpop.f32.mrb[0].mxu0
  %v1101 = vpop.f32.mrb[0].mxu0
  %v1102 = vadd.f32 0.0, %v1101
  %v1103 = vpop.f32.mrb[0].mxu0
  %1104 = vmatprep.mubr.bf16.mxu0 0
  %1105 = vmatmul.mubr.bf16.gmra.mrb[0].mxu0 %v709
  %v1106 = vpop.f32.mrb[0].mxu0
  %v1107 = vadd.f32 0.0, %v1106
  %v1108 = vpop.f32.mrb[0].mxu0
  %v1109 = vpop.f32.mrb[0].mxu0
  %v1110 = vadd.f32 0.0, %v1109
  %v1111 = vpop.f32.mrb[0].mxu0
  %1112 = vmatprep.mubr.bf16.mxu0 0
  %1113 = vmatmul.mubr.bf16.gmra.mrb[0].mxu0 %v712
  %v1114 = vpop.f32.mrb[0].mxu0
  %v1115 = vadd.f32 0.0, %v1114
  %v1116 = vpop.f32.mrb[0].mxu0
  %v1117 = vpop.f32.mrb[0].mxu0
  %v1118 = vadd.f32 0.0, %v1117
  %v1119 = vpop.f32.mrb[0].mxu0
  %1120 = vmatprep.mubr.bf16.mxu0 0
  %1121 = vmatmul.mubr.bf16.gmra.mrb[0].mxu0 %v715
  %v1122 = vpop.f32.mrb[0].mxu0
  %v1123 = vadd.f32 0.0, %v1122
  %v1124 = vpop.f32.mrb[0].mxu0
  %v1125 = vpop.f32.mrb[0].mxu0
  %v1126 = vadd.f32 0.0, %v1125
  %v1127 = vpop.f32.mrb[0].mxu0
  %1128 = vmatprep.mubr.bf16.mxu0 0
  %1129 = vmatmul.mubr.bf16.gmra.mrb[0].mxu0 %v718
  %v1130 = vpop.f32.mrb[0].mxu0
  %v1131 = vadd.f32 0.0, %v1130
  %v1132 = vpop.f32.mrb[0].mxu0
  %v1133 = vpop.f32.mrb[0].mxu0
  %v1134 = vadd.f32 0.0, %v1133
  %v1135 = vpop.f32.mrb[0].mxu0
  %1136 = vmatprep.mubr.bf16.mxu0 0
  %1137 = vmatmul.mubr.bf16.gmra.mrb[0].mxu0 %v721
  %v1138 = vpop.f32.mrb[0].mxu0
  %v1139 = vadd.f32 0.0, %v1138
  %v1140 = vpop.f32.mrb[0].mxu0
  %v1141 = vpop.f32.mrb[0].mxu0
  %v1142 = vadd.f32 0.0, %v1141
  %v1143 = vpop.f32.mrb[0].mxu0
  %1144 = vmatprep.mubr.bf16.mxu0 0
  %1145 = vmatmul.mubr.bf16.gmra.mrb[0].mxu0 %v724
  %v1146 = vpop.f32.mrb[0].mxu0
  %v1147 = vadd.f32 0.0, %v1146
  %v1148 = vpop.f32.mrb[0].mxu0
  %v1149 = vpop.f32.mrb[0].mxu0
  %v1150 = vadd.f32 0.0, %v1149
  %v1151 = vpop.f32.mrb[0].mxu0
  %1152 = vmatprep.mubr.bf16.mxu0 0
  %1153 = vmatmul.mubr.bf16.gmra.mrb[0].mxu0 %v727
  %v1154 = vpop.f32.mrb[0].mxu0
  %v1155 = vadd.f32 0.0, %v1154
  %v1156 = vpop.f32.mrb[0].mxu0
  %v1157 = vpop.f32.mrb[0].mxu0
  %v1158 = vadd.f32 0.0, %v1157
  %v1159 = vpop.f32.mrb[0].mxu0
  %1160 = vmatprep.mubr.bf16.mxu0 0
  %1161 = vmatmul.mubr.bf16.gmra.mrb[0].mxu0 %v730
  %v1162 = vpop.f32.mrb[0].mxu0
  %v1163 = vadd.f32 0.0, %v1162
  %v1164 = vpop.f32.mrb[0].mxu0
  %v1165 = vpop.f32.mrb[0].mxu0
  %v1166 = vadd.f32 0.0, %v1165
  %v1167 = vpop.f32.mrb[0].mxu0
  %1168 = vmatprep.mubr.bf16.mxu0 0
  %1169 = vmatmul.mubr.bf16.gmra.mrb[0].mxu0 %v733
  %v1170 = vpop.f32.mrb[0].mxu0
  %v1171 = vadd.f32 0.0, %v1170
  %v1172 = vpop.f32.mrb[0].mxu0
  %v1173 = vpop.f32.mrb[0].mxu0
  %v1174 = vadd.f32 0.0, %v1173
  %v1175 = vpop.f32.mrb[0].mxu0
  %1176 = vmatprep.mubr.bf16.mxu0 0
  %1177 = vmatmul.mubr.bf16.gmra.mrb[0].mxu0 %v736
  %v1178 = vpop.f32.mrb[0].mxu0
  %v1179 = vadd.f32 0.0, %v1178
  %v1180 = vpop.f32.mrb[0].mxu0
  %v1181 = vpop.f32.mrb[0].mxu0
  %v1182 = vadd.f32 0.0, %v1181
  %v1183 = vpop.f32.mrb[0].mxu0
  %1184 = vmatprep.mubr.bf16.mxu0 0
  %1185 = vmatmul.mubr.bf16.gmra.mrb[0].mxu0 %v739
  %v1186 = vpop.f32.mrb[0].mxu0
  %v1187 = vadd.f32 0.0, %v1186
  %v1188 = vpop.f32.mrb[0].mxu0
  %v1189 = vpop.f32.mrb[0].mxu0
  %v1190 = vadd.f32 0.0, %v1189
  %v1191 = vpop.f32.mrb[0].mxu0
  %1192 = vmatprep.mubr.bf16.mxu0 0
  %1193 = vmatmul.mubr.bf16.gmra.mrb[0].mxu0 %v742
  %v1194 = vpop.f32.mrb[0].mxu0
  %v1195 = vadd.f32 0.0, %v1194
  %v1196 = vpop.f32.mrb[0].mxu0
  %v1197 = vpop.f32.mrb[0].mxu0
  %v1198 = vadd.f32 0.0, %v1197
  %v1199 = vpop.f32.mrb[0].mxu0
  %1200 = vmatprep.mubr.bf16.mxu0 0
  %1201 = vmatmul.mubr.bf16.gmra.mrb[0].mxu0 %v745
  %v1202 = vpop.f32.mrb[0].mxu0
  %v1203 = vadd.f32 0.0, %v1202
  %v1204 = vpop.f32.mrb[0].mxu0
  %v1205 = vpop.f32.mrb[0].mxu0
  %v1206 = vadd.f32 0.0, %v1205
  %v1207 = vpop.f32.mrb[0].mxu0
  %1208 = vmatprep.mubr.bf16.mxu0 0
  %1209 = vmatmul.mubr.bf16.gmra.mrb[0].mxu0 %v748
  %v1210 = vpop.f32.mrb[0].mxu0
  %v1211 = vadd.f32 0.0, %v1210
  %v1212 = vpop.f32.mrb[0].mxu0
  %v1213 = vpop.f32.mrb[0].mxu0
  %v1214 = vadd.f32 0.0, %v1213
  %v1215 = vpop.f32.mrb[0].mxu0
  %1216 = vmatprep.mubr.bf16.mxu0 0
  %1217 = vmatmul.mubr.bf16.gmra.mrb[0].mxu0 %v751
  %v1218 = vpop.f32.mrb[0].mxu0
  %v1219 = vadd.f32 0.0, %v1218
  %v1220 = vpop.f32.mrb[0].mxu0
  %v1221 = vpop.f32.mrb[0].mxu0
  %v1222 = vadd.f32 0.0, %v1221
  %v1223 = vpop.f32.mrb[0].mxu0
  %1224 = vmatprep.mubr.bf16.mxu0 0
  %1225 = vmatmul.mubr.bf16.gmra.mrb[0].mxu0 %v754
  %v1226 = vpop.f32.mrb[0].mxu0
  %v1227 = vadd.f32 0.0, %v1226
  %v1228 = vpop.f32.mrb[0].mxu0
  %v1229 = vpop.f32.mrb[0].mxu0
  %v1230 = vadd.f32 0.0, %v1229
  %v1231 = vpop.f32.mrb[0].mxu0
  %1232 = vmatprep.mubr.bf16.mxu0 0
  %1233 = vmatmul.mubr.bf16.gmra.mrb[0].mxu0 %v757
  %v1234 = vpop.f32.mrb[0].mxu0
  %v1235 = vadd.f32 0.0, %v1234
  %v1236 = vpop.f32.mrb[0].mxu0
  %v1237 = vpop.f32.mrb[0].mxu0
  %v1238 = vadd.f32 0.0, %v1237
  %v1239 = vpop.f32.mrb[0].mxu0
  %1240 = vmatprep.mubr.bf16.mxu0 0
  %1241 = vmatmul.mubr.bf16.gmra.mrb[0].mxu0 %v760
  %v1242 = vpop.f32.mrb[0].mxu0
  %v1243 = vadd.f32 0.0, %v1242
  %v1244 = vpop.f32.mrb[0].mxu0
  %v1245 = vpop.f32.mrb[0].mxu0
  %v1246 = vadd.f32 0.0, %v1245
  %v1247 = vpop.f32.mrb[0].mxu0
  %1248 = vmatprep.mubr.bf16.mxu0 0
  %1249 = vmatmul.mubr.bf16.gmra.mrb[0].mxu0 %v763
  %v1250 = vpop.f32.mrb[0].mxu0
  %v1251 = vadd.f32 0.0, %v1250
  %v1252 = vpop.f32.mrb[0].mxu0
  %v1253 = vpop.f32.mrb[0].mxu0
  %v1254 = vadd.f32 0.0, %v1253
  %v1255 = vpop.f32.mrb[0].mxu0
  %1256 = vmatprep.mubr.bf16.mxu0 0
  %1257 = vmatmul.mubr.bf16.gmra.mrb[0].mxu0 %v766
  %v1258 = vpop.f32.mrb[0].mxu0
  %v1259 = vadd.f32 0.0, %v1258
  %v1260 = vpop.f32.mrb[0].mxu0
  %v1261 = vpop.f32.mrb[0].mxu0
  %v1262 = vadd.f32 0.0, %v1261
  %v1263 = vpop.f32.mrb[0].mxu0
  %1264 = vmatprep.mubr.bf16.mxu0 0
  %1265 = vmatmul.mubr.bf16.gmra.mrb[0].mxu0 %v769
  %v1266 = vpop.f32.mrb[0].mxu0
  %v1267 = vadd.f32 0.0, %v1266
  %v1268 = vpop.f32.mrb[0].mxu0
  %v1269 = vpop.f32.mrb[0].mxu0
  %v1270 = vadd.f32 0.0, %v1269
  %v1271 = vpop.f32.mrb[0].mxu0
  %1272 = vmatprep.mubr.bf16.mxu0 0
  %1273 = vmatmul.mubr.bf16.gmra.mrb[0].mxu0 %v772
  %v1274 = vpop.f32.mrb[0].mxu0
  %v1275 = vadd.f32 0.0, %v1274
  %v1276 = vpop.f32.mrb[0].mxu0
  %v1277 = vpop.f32.mrb[0].mxu0
  %v1278 = vadd.f32 0.0, %v1277
  %v1279 = vpop.f32.mrb[0].mxu0
  %1280 = vmatprep.mubr.bf16.mxu0 0
  %1281 = vmatmul.mubr.bf16.gmra.mrb[0].mxu0 %v775
  %v1282 = vpop.f32.mrb[0].mxu0
  %v1283 = vadd.f32 0.0, %v1282
  %v1284 = vpop.f32.mrb[0].mxu0
  %v1285 = vpop.f32.mrb[0].mxu0
  %v1286 = vadd.f32 0.0, %v1285
  %v1287 = vpop.f32.mrb[0].mxu0
  %1288 = vmatprep.mubr.bf16.mxu0 0
  %1289 = vmatmul.mubr.bf16.gmra.mrb[0].mxu0 %v778
  %v1290 = vpop.f32.mrb[0].mxu0
  %v1291 = vadd.f32 0.0, %v1290
  %v1292 = vpop.f32.mrb[0].mxu0
  %v1293 = vpop.f32.mrb[0].mxu0
  %v1294 = vadd.f32 0.0, %v1293
  %v1295 = vpop.f32.mrb[0].mxu0
  %1296 = vmatprep.mubr.bf16.mxu0 0
  %1297 = vmatmul.mubr.bf16.gmra.mrb[0].mxu0 %v781
  %v1298 = vpop.f32.mrb[0].mxu0
  %v1299 = vadd.f32 0.0, %v1298
  %v1300 = vpop.f32.mrb[0].mxu0
  %v1301 = vpop.f32.mrb[0].mxu0
  %v1302 = vadd.f32 0.0, %v1301
  %v1303 = vpop.f32.mrb[0].mxu0
  %1304 = vmatprep.mubr.bf16.mxu0 0
  %1305 = vmatmul.mubr.bf16.gmra.mrb[0].mxu0 %v784
  %v1306 = vpop.f32.mrb[0].mxu0
  %v1307 = vadd.f32 0.0, %v1306
  %v1308 = vpop.f32.mrb[0].mxu0
  %v1309 = vpop.f32.mrb[0].mxu0
  %v1310 = vadd.f32 0.0, %v1309
  %v1311 = vpop.f32.mrb[0].mxu0
  %1312 = vmatprep.mubr.bf16.mxu0 0
  %1313 = vmatmul.mubr.bf16.gmra.mrb[0].mxu0 %v787
  %v1314 = vpop.f32.mrb[0].mxu0
  %v1315 = vadd.f32 0.0, %v1314
  %v1316 = vpop.f32.mrb[0].mxu0
  %v1317 = vpop.f32.mrb[0].mxu0
  %v1318 = vadd.f32 0.0, %v1317
  %v1319 = vpop.f32.mrb[0].mxu0
  %1320 = vmatprep.mubr.bf16.mxu0 0
  %1321 = vmatmul.mubr.bf16.gmra.mrb[0].mxu0 %v790
  %v1322 = vpop.f32.mrb[0].mxu0
  %v1323 = vadd.f32 0.0, %v1322
  %v1324 = vpop.f32.mrb[0].mxu0
  %v1325 = vpop.f32.mrb[0].mxu0
  %v1326 = vadd.f32 0.0, %v1325
  %v1327 = vpop.f32.mrb[0].mxu0
  %1328 = vmatprep.mubr.bf16.mxu0 0
  %1329 = vmatmul.mubr.bf16.gmra.mrb[0].mxu0 %v793
  %v1330 = vpop.f32.mrb[0].mxu0
  %v1331 = vadd.f32 0.0, %v1330
  %v1332 = vpop.f32.mrb[0].mxu0
  %v1333 = vpop.f32.mrb[0].mxu0
  %v1334 = vadd.f32 0.0, %v1333
  %v1335 = vpop.f32.mrb[0].mxu0
  %1336 = vmatprep.mubr.bf16.mxu0 0
  %1337 = vmatmul.mubr.bf16.gmra.mrb[0].mxu0 %v796
  %v1338 = vpop.f32.mrb[0].mxu0
  %v1339 = vadd.f32 0.0, %v1338
  %v1340 = vpop.f32.mrb[0].mxu0
  %v1341 = vpop.f32.mrb[0].mxu0
  %v1342 = vadd.f32 0.0, %v1341
  %v1343 = vpop.f32.mrb[0].mxu0
  %1344 = vmatprep.mubr.bf16.mxu0 0
  %1345 = vmatmul.mubr.bf16.gmra.mrb[0].mxu0 %v799
  %v1346 = vpop.f32.mrb[0].mxu0
  %v1347 = vadd.f32 0.0, %v1346
  %v1348 = vpop.f32.mrb[0].mxu0
  %v1349 = vpop.f32.mrb[0].mxu0
  %v1350 = vadd.f32 0.0, %v1349
  %v1351 = vpop.f32.mrb[0].mxu0
  %1352 = vdwg.mxu0
  %v1481 = vunpack.c.l.b16 %v30
  %v1482 = vunpack.c.l.b16 %v31
  %v1483 = vunpack.c.l.b16 %v32
  %v1484 = vunpack.c.l.b16 %v33
  %v1485 = vunpack.c.l.b16 %v34
  %v1486 = vunpack.c.l.b16 %v35
  %v1487 = vunpack.c.l.b16 %v36
  %v1488 = vunpack.c.l.b16 %v37
  %v1489 = vunpack.c.l.b16 %v38
  %v1490 = vunpack.c.l.b16 %v39
  %v1491 = vunpack.c.l.b16 %v40
  %v1492 = vunpack.c.l.b16 %v41
  %v1493 = vunpack.c.l.b16 %v42
  %v1494 = vunpack.c.l.b16 %v43
  %v1495 = vunpack.c.l.b16 %v44
  %v1496 = vunpack.c.l.b16 %v45
  %v1497 = vunpack.c.l.b16 %v46
  %v1498 = vunpack.c.l.b16 %v47
  %v1499 = vunpack.c.l.b16 %v48
  %v1500 = vunpack.c.l.b16 %v49
  %v1501 = vunpack.c.l.b16 %v50
  %v1502 = vunpack.c.l.b16 %v51
  %v1503 = vunpack.c.l.b16 %v52
  %v1504 = vunpack.c.l.b16 %v53
  %v1505 = vunpack.c.l.b16 %v54
  %v1506 = vunpack.c.l.b16 %v55
  %v1507 = vunpack.c.l.b16 %v56
  %v1508 = vunpack.c.l.b16 %v57
  %v1509 = vunpack.c.l.b16 %v58
  %v1510 = vunpack.c.l.b16 %v59
  %v1511 = vunpack.c.l.b16 %v60
  %v1512 = vunpack.c.l.b16 %v61
  %v1513 = vunpack.c.l.b16 %v62
  %v1514 = vunpack.c.l.b16 %v63
  %v1515 = vunpack.c.l.b16 %v64
  %v1516 = vunpack.c.l.b16 %v65
  %v1517 = vunpack.c.l.b16 %v66
  %v1518 = vunpack.c.l.b16 %v67
  %v1519 = vunpack.c.l.b16 %v68
  %v1520 = vunpack.c.l.b16 %v69
  %v1521 = vunpack.c.l.b16 %v70
  %v1522 = vunpack.c.l.b16 %v71
  %v1523 = vunpack.c.l.b16 %v72
  %v1524 = vunpack.c.l.b16 %v73
  %v1525 = vunpack.c.l.b16 %v74
  %v1526 = vunpack.c.l.b16 %v75
  %v1527 = vunpack.c.l.b16 %v76
  %v1528 = vunpack.c.l.b16 %v77
  %v1529 = vunpack.c.l.b16 %v78
  %v1530 = vunpack.c.l.b16 %v79
  %v1531 = vunpack.c.l.b16 %v80
  %v1532 = vunpack.c.l.b16 %v81
  %v1533 = vunpack.c.l.b16 %v82
  %v1534 = vunpack.c.l.b16 %v83
  %v1535 = vunpack.c.l.b16 %v84
  %v1536 = vunpack.c.l.b16 %v85
  %v1537 = vunpack.c.l.b16 %v86
  %v1538 = vunpack.c.l.b16 %v87
  %v1539 = vunpack.c.l.b16 %v88
  %v1540 = vunpack.c.l.b16 %v89
  %v1541 = vunpack.c.l.b16 %v90
  %v1542 = vunpack.c.l.b16 %v91
  %v1543 = vunpack.c.l.b16 %v92
  %v1544 = vunpack.c.l.b16 %v93
  %v1545 = vunpack.c.l.b16 %v94
  %v1546 = vunpack.c.l.b16 %v95
  %v1547 = vunpack.c.l.b16 %v96
  %v1548 = vunpack.c.l.b16 %v97
  %v1549 = vunpack.c.l.b16 %v98
  %v1550 = vunpack.c.l.b16 %v99
  %v1551 = vunpack.c.l.b16 %v100
  %v1552 = vunpack.c.l.b16 %v101
  %v1553 = vunpack.c.l.b16 %v102
  %v1554 = vunpack.c.l.b16 %v103
  %v1555 = vunpack.c.l.b16 %v104
  %v1556 = vunpack.c.l.b16 %v105
  %v1557 = vunpack.c.l.b16 %v106
  %v1558 = vunpack.c.l.b16 %v107
  %v1559 = vunpack.c.l.b16 %v108
  %v1560 = vunpack.c.l.b16 %v109
  %v1561 = vunpack.c.l.b16 %v110
  %v1562 = vunpack.c.l.b16 %v111
  %v1563 = vunpack.c.l.b16 %v112
  %v1564 = vunpack.c.l.b16 %v113
  %v1565 = vunpack.c.l.b16 %v114
  %v1566 = vunpack.c.l.b16 %v115
  %v1567 = vunpack.c.l.b16 %v116
  %v1568 = vunpack.c.l.b16 %v117
  %v1569 = vunpack.c.l.b16 %v118
  %v1570 = vunpack.c.l.b16 %v119
  %v1571 = vunpack.c.l.b16 %v120
  %v1572 = vunpack.c.l.b16 %v121
  %v1573 = vunpack.c.l.b16 %v122
  %v1574 = vunpack.c.l.b16 %v123
  %v1575 = vunpack.c.l.b16 %v124
  %v1576 = vunpack.c.l.b16 %v125
  %v1577 = vunpack.c.l.b16 %v126
  %v1578 = vunpack.c.l.b16 %v127
  %v1579 = vunpack.c.l.b16 %v128
  %v1580 = vunpack.c.l.b16 %v129
  %v1581 = vunpack.c.l.b16 %v130
  %v1582 = vunpack.c.l.b16 %v131
  %v1583 = vunpack.c.l.b16 %v132
  %v1584 = vunpack.c.l.b16 %v133
  %v1585 = vunpack.c.l.b16 %v134
  %v1586 = vunpack.c.l.b16 %v135
  %v1587 = vunpack.c.l.b16 %v136
  %v1588 = vunpack.c.l.b16 %v137
  %v1589 = vunpack.c.l.b16 %v138
  %v1590 = vunpack.c.l.b16 %v139
  %v1591 = vunpack.c.l.b16 %v140
  %v1592 = vunpack.c.l.b16 %v141
  %v1593 = vunpack.c.l.b16 %v142
  %v1594 = vunpack.c.l.b16 %v143
  %v1595 = vunpack.c.l.b16 %v144
  %v1596 = vunpack.c.l.b16 %v145
  %v1597 = vunpack.c.l.b16 %v146
  %v1598 = vunpack.c.l.b16 %v147
  %v1599 = vunpack.c.l.b16 %v148
  %v1600 = vunpack.c.l.b16 %v149
  %v1601 = vunpack.c.l.b16 %v150
  %v1602 = vunpack.c.l.b16 %v151
  %v1603 = vunpack.c.l.b16 %v152
  %v1604 = vunpack.c.l.b16 %v153
  %v1605 = vunpack.c.l.b16 %v154
  %v1606 = vunpack.c.l.b16 %v155
  %v1607 = vunpack.c.l.b16 %v156
  %v1608 = vunpack.c.l.b16 %v157
  %v1609 = vpack.c.b16 %v1482, %v1481
  %v1610 = vpack.c.b16 %v1484, %v1483
  %v1611 = vpack.c.b16 %v1486, %v1485
  %v1612 = vpack.c.b16 %v1488, %v1487
  %v1613 = vpack.c.b16 %v1490, %v1489
  %v1614 = vpack.c.b16 %v1492, %v1491
  %v1615 = vpack.c.b16 %v1494, %v1493
  %v1616 = vpack.c.b16 %v1496, %v1495
  %v1617 = vpack.c.b16 %v1498, %v1497
  %v1618 = vpack.c.b16 %v1500, %v1499
  %v1619 = vpack.c.b16 %v1502, %v1501
  %v1620 = vpack.c.b16 %v1504, %v1503
  %v1621 = vpack.c.b16 %v1506, %v1505
  %v1622 = vpack.c.b16 %v1508, %v1507
  %v1623 = vpack.c.b16 %v1510, %v1509
  %v1624 = vpack.c.b16 %v1512, %v1511
  %v1625 = vpack.c.b16 %v1514, %v1513
  %v1626 = vpack.c.b16 %v1516, %v1515
  %v1627 = vpack.c.b16 %v1518, %v1517
  %v1628 = vpack.c.b16 %v1520, %v1519
  %v1629 = vpack.c.b16 %v1522, %v1521
  %v1630 = vpack.c.b16 %v1524, %v1523
  %v1631 = vpack.c.b16 %v1526, %v1525
  %v1632 = vpack.c.b16 %v1528, %v1527
  %v1633 = vpack.c.b16 %v1530, %v1529
  %v1634 = vpack.c.b16 %v1532, %v1531
  %v1635 = vpack.c.b16 %v1534, %v1533
  %v1636 = vpack.c.b16 %v1536, %v1535
  %v1637 = vpack.c.b16 %v1538, %v1537
  %v1638 = vpack.c.b16 %v1540, %v1539
  %v1639 = vpack.c.b16 %v1542, %v1541
  %v1640 = vpack.c.b16 %v1544, %v1543
  %v1641 = vpack.c.b16 %v1546, %v1545
  %v1642 = vpack.c.b16 %v1548, %v1547
  %v1643 = vpack.c.b16 %v1550, %v1549
  %v1644 = vpack.c.b16 %v1552, %v1551
  %v1645 = vpack.c.b16 %v1554, %v1553
  %v1646 = vpack.c.b16 %v1556, %v1555
  %v1647 = vpack.c.b16 %v1558, %v1557
  %v1648 = vpack.c.b16 %v1560, %v1559
  %v1649 = vpack.c.b16 %v1562, %v1561
  %v1650 = vpack.c.b16 %v1564, %v1563
  %v1651 = vpack.c.b16 %v1566, %v1565
  %v1652 = vpack.c.b16 %v1568, %v1567
  %v1653 = vpack.c.b16 %v1570, %v1569
  %v1654 = vpack.c.b16 %v1572, %v1571
  %v1655 = vpack.c.b16 %v1574, %v1573
  %v1656 = vpack.c.b16 %v1576, %v1575
  %v1657 = vpack.c.b16 %v1578, %v1577
  %v1658 = vpack.c.b16 %v1580, %v1579
  %v1659 = vpack.c.b16 %v1582, %v1581
  %v1660 = vpack.c.b16 %v1584, %v1583
  %v1661 = vpack.c.b16 %v1586, %v1585
  %v1662 = vpack.c.b16 %v1588, %v1587
  %v1663 = vpack.c.b16 %v1590, %v1589
  %v1664 = vpack.c.b16 %v1592, %v1591
  %v1665 = vpack.c.b16 %v1594, %v1593
  %v1666 = vpack.c.b16 %v1596, %v1595
  %v1667 = vpack.c.b16 %v1598, %v1597
  %v1668 = vpack.c.b16 %v1600, %v1599
  %v1669 = vpack.c.b16 %v1602, %v1601
  %v1670 = vpack.c.b16 %v1604, %v1603
  %v1671 = vpack.c.b16 %v1606, %v1605
  %v1672 = vpack.c.b16 %v1608, %v1607
  %vm1673 = vcmask 31744
  %v1675 = vsel %vm1673, %v1609, 0
  %v1678 = vsel %vm1673, %v1610, 0
  %v1681 = vsel %vm1673, %v1611, 0
  %v1684 = vsel %vm1673, %v1612, 0
  %v1687 = vsel %vm1673, %v1613, 0
  %v1690 = vsel %vm1673, %v1614, 0
  %v1693 = vsel %vm1673, %v1615, 0
  %v1696 = vsel %vm1673, %v1616, 0
  %v1699 = vsel %vm1673, %v1617, 0
  %v1702 = vsel %vm1673, %v1618, 0
  %v1705 = vsel %vm1673, %v1619, 0
  %v1708 = vsel %vm1673, %v1620, 0
  %v1711 = vsel %vm1673, %v1621, 0
  %v1714 = vsel %vm1673, %v1622, 0
  %v1717 = vsel %vm1673, %v1623, 0
  %v1720 = vsel %vm1673, %v1624, 0
  %v1723 = vsel %vm1673, %v1625, 0
  %v1726 = vsel %vm1673, %v1626, 0
  %v1729 = vsel %vm1673, %v1627, 0
  %v1732 = vsel %vm1673, %v1628, 0
  %v1735 = vsel %vm1673, %v1629, 0
  %v1738 = vsel %vm1673, %v1630, 0
  %v1741 = vsel %vm1673, %v1631, 0
  %v1744 = vsel %vm1673, %v1632, 0
  %v1747 = vsel %vm1673, %v1633, 0
  %v1750 = vsel %vm1673, %v1634, 0
  %v1753 = vsel %vm1673, %v1635, 0
  %v1756 = vsel %vm1673, %v1636, 0
  %v1759 = vsel %vm1673, %v1637, 0
  %v1762 = vsel %vm1673, %v1638, 0
  %v1765 = vsel %vm1673, %v1639, 0
  %v1768 = vsel %vm1673, %v1640, 0
  %v1771 = vsel %vm1673, %v1641, 0
  %v1774 = vsel %vm1673, %v1642, 0
  %v1777 = vsel %vm1673, %v1643, 0
  %v1780 = vsel %vm1673, %v1644, 0
  %v1783 = vsel %vm1673, %v1645, 0
  %v1786 = vsel %vm1673, %v1646, 0
  %v1789 = vsel %vm1673, %v1647, 0
  %v1792 = vsel %vm1673, %v1648, 0
  %v1795 = vsel %vm1673, %v1649, 0
  %v1798 = vsel %vm1673, %v1650, 0
  %v1801 = vsel %vm1673, %v1651, 0
  %v1804 = vsel %vm1673, %v1652, 0
  %v1807 = vsel %vm1673, %v1653, 0
  %v1810 = vsel %vm1673, %v1654, 0
  %v1813 = vsel %vm1673, %v1655, 0
  %v1816 = vsel %vm1673, %v1656, 0
  %v1819 = vsel %vm1673, %v1657, 0
  %v1822 = vsel %vm1673, %v1658, 0
  %v1825 = vsel %vm1673, %v1659, 0
  %v1828 = vsel %vm1673, %v1660, 0
  %v1831 = vsel %vm1673, %v1661, 0
  %v1834 = vsel %vm1673, %v1662, 0
  %v1837 = vsel %vm1673, %v1663, 0
  %v1840 = vsel %vm1673, %v1664, 0
  %v1843 = vsel %vm1673, %v1665, 0
  %v1846 = vsel %vm1673, %v1666, 0
  %v1849 = vsel %vm1673, %v1667, 0
  %v1852 = vsel %vm1673, %v1668, 0
  %v1855 = vsel %vm1673, %v1669, 0
  %v1858 = vsel %vm1673, %v1670, 0
  %v1861 = vsel %vm1673, %v1671, 0
  %v1864 = vsel %vm1673, %v1672, 0
  %v1867 = vsel %vm802, %v158, 0
  %1869 = vmatprep.subr.bf16.mxu0 0
  %1870 = vmatpush1.bf16.msra.mxu0 %v1867
  %1871 = vmatprep.subr.bf16.mxu0 0
  %1872 = vmatpush1.bf16.msra.mxu0 0
  %1873 = vmatprep.subr.bf16.mxu0 0
  %1874 = vmatpush1.bf16.msra.mxu0 0
  %1875 = vmatprep.subr.bf16.mxu0 0
  %1876 = vmatpush1.bf16.msra.mxu0 0
  %1877 = vmatprep.subr.bf16.mxu0 0
  %1878 = vmatpush1.bf16.msra.mxu0 0
  %1879 = vmatprep.subr.bf16.mxu0 0
  %1880 = vmatpush1.bf16.msra.mxu0 0
  %1881 = vmatprep.subr.bf16.mxu0 0
  %1882 = vmatpush1.bf16.msra.mxu0 0
  %1883 = vmatprep.subr.bf16.mxu0 0
  %1884 = vmatpush1.bf16.msra.mxu0 0
  %1885 = vmatprep.subr.bf16.mxu0 0
  %1886 = vmatpush1.bf16.msra.mxu0 0
  %1887 = vmatprep.subr.bf16.mxu0 0
  %1888 = vmatpush1.bf16.msra.mxu0 0
  %1889 = vmatprep.subr.bf16.mxu0 0
  %1890 = vmatpush1.bf16.msra.mxu0 0
  %1891 = vmatprep.subr.bf16.mxu0 0
  %1892 = vmatpush1.bf16.msra.mxu0 0
  %1893 = vmatprep.subr.bf16.mxu0 0
  %1894 = vmatpush1.bf16.msra.mxu0 0
  %1895 = vmatprep.subr.bf16.mxu0 0
  %1896 = vmatpush1.bf16.msra.mxu0 0
  %1897 = vmatprep.subr.bf16.mxu0 0
  %1898 = vmatpush1.bf16.msra.mxu0 0
  %1899 = vmatprep.subr.bf16.mxu0 0
  %1900 = vmatpush1.bf16.msra.mxu0 0
  %1901 = vmatprep.mubr.bf16.mxu0 0
  %1902 = vmatmul.mubr.bf16.gmra.mrb[0].mxu0 %v1675
  %v1903 = vpop.f32.mrb[0].mxu0
  %v1904 = vadd.f32 %v843, %v1903
  %v1905 = vpop.f32.mrb[0].mxu0
  %v1906 = vpop.f32.mrb[0].mxu0
  %v1907 = vadd.f32 %v846, %v1906
  %v1908 = vpop.f32.mrb[0].mxu0
  %1909 = vmatprep.mubr.bf16.mxu0 0
  %1910 = vmatmul.mubr.bf16.gmra.mrb[0].mxu0 %v1678
  %v1911 = vpop.f32.mrb[0].mxu0
  %v1912 = vadd.f32 %v851, %v1911
  %v1913 = vpop.f32.mrb[0].mxu0
  %v1914 = vpop.f32.mrb[0].mxu0
  %v1915 = vadd.f32 %v854, %v1914
  %v1916 = vpop.f32.mrb[0].mxu0
  %1917 = vmatprep.mubr.bf16.mxu0 0
  %1918 = vmatmul.mubr.bf16.gmra.mrb[0].mxu0 %v1681
  %v1919 = vpop.f32.mrb[0].mxu0
  %v1920 = vadd.f32 %v859, %v1919
  %v1921 = vpop.f32.mrb[0].mxu0
  %v1922 = vpop.f32.mrb[0].mxu0
  %v1923 = vadd.f32 %v862, %v1922
  %v1924 = vpop.f32.mrb[0].mxu0
  %1925 = vmatprep.mubr.bf16.mxu0 0
  %1926 = vmatmul.mubr.bf16.gmra.mrb[0].mxu0 %v1684
  %v1927 = vpop.f32.mrb[0].mxu0
  %v1928 = vadd.f32 %v867, %v1927
  %v1929 = vpop.f32.mrb[0].mxu0
  %v1930 = vpop.f32.mrb[0].mxu0
  %v1931 = vadd.f32 %v870, %v1930
  %v1932 = vpop.f32.mrb[0].mxu0
  %1933 = vmatprep.mubr.bf16.mxu0 0
  %1934 = vmatmul.mubr.bf16.gmra.mrb[0].mxu0 %v1687
  %v1935 = vpop.f32.mrb[0].mxu0
  %v1936 = vadd.f32 %v875, %v1935
  %v1937 = vpop.f32.mrb[0].mxu0
  %v1938 = vpop.f32.mrb[0].mxu0
  %v1939 = vadd.f32 %v878, %v1938
  %v1940 = vpop.f32.mrb[0].mxu0
  %1941 = vmatprep.mubr.bf16.mxu0 0
  %1942 = vmatmul.mubr.bf16.gmra.mrb[0].mxu0 %v1690
  %v1943 = vpop.f32.mrb[0].mxu0
  %v1944 = vadd.f32 %v883, %v1943
  %v1945 = vpop.f32.mrb[0].mxu0
  %v1946 = vpop.f32.mrb[0].mxu0
  %v1947 = vadd.f32 %v886, %v1946
  %v1948 = vpop.f32.mrb[0].mxu0
  %1949 = vmatprep.mubr.bf16.mxu0 0
  %1950 = vmatmul.mubr.bf16.gmra.mrb[0].mxu0 %v1693
  %v1951 = vpop.f32.mrb[0].mxu0
  %v1952 = vadd.f32 %v891, %v1951
  %v1953 = vpop.f32.mrb[0].mxu0
  %v1954 = vpop.f32.mrb[0].mxu0
  %v1955 = vadd.f32 %v894, %v1954
  %v1956 = vpop.f32.mrb[0].mxu0
  %1957 = vmatprep.mubr.bf16.mxu0 0
  %1958 = vmatmul.mubr.bf16.gmra.mrb[0].mxu0 %v1696
  %v1959 = vpop.f32.mrb[0].mxu0
  %v1960 = vadd.f32 %v899, %v1959
  %v1961 = vpop.f32.mrb[0].mxu0
  %v1962 = vpop.f32.mrb[0].mxu0
  %v1963 = vadd.f32 %v902, %v1962
  %v1964 = vpop.f32.mrb[0].mxu0
  %1965 = vmatprep.mubr.bf16.mxu0 0
  %1966 = vmatmul.mubr.bf16.gmra.mrb[0].mxu0 %v1699
  %v1967 = vpop.f32.mrb[0].mxu0
  %v1968 = vadd.f32 %v907, %v1967
  %v1969 = vpop.f32.mrb[0].mxu0
  %v1970 = vpop.f32.mrb[0].mxu0
  %v1971 = vadd.f32 %v910, %v1970
  %v1972 = vpop.f32.mrb[0].mxu0
  %1973 = vmatprep.mubr.bf16.mxu0 0
  %1974 = vmatmul.mubr.bf16.gmra.mrb[0].mxu0 %v1702
  %v1975 = vpop.f32.mrb[0].mxu0
  %v1976 = vadd.f32 %v915, %v1975
  %v1977 = vpop.f32.mrb[0].mxu0
  %v1978 = vpop.f32.mrb[0].mxu0
  %v1979 = vadd.f32 %v918, %v1978
  %v1980 = vpop.f32.mrb[0].mxu0
  %1981 = vmatprep.mubr.bf16.mxu0 0
  %1982 = vmatmul.mubr.bf16.gmra.mrb[0].mxu0 %v1705
  %v1983 = vpop.f32.mrb[0].mxu0
  %v1984 = vadd.f32 %v923, %v1983
  %v1985 = vpop.f32.mrb[0].mxu0
  %v1986 = vpop.f32.mrb[0].mxu0
  %v1987 = vadd.f32 %v926, %v1986
  %v1988 = vpop.f32.mrb[0].mxu0
  %1989 = vmatprep.mubr.bf16.mxu0 0
  %1990 = vmatmul.mubr.bf16.gmra.mrb[0].mxu0 %v1708
  %v1991 = vpop.f32.mrb[0].mxu0
  %v1992 = vadd.f32 %v931, %v1991
  %v1993 = vpop.f32.mrb[0].mxu0
  %v1994 = vpop.f32.mrb[0].mxu0
  %v1995 = vadd.f32 %v934, %v1994
  %v1996 = vpop.f32.mrb[0].mxu0
  %1997 = vmatprep.mubr.bf16.mxu0 0
  %1998 = vmatmul.mubr.bf16.gmra.mrb[0].mxu0 %v1711
  %v1999 = vpop.f32.mrb[0].mxu0
  %v2000 = vadd.f32 %v939, %v1999
  %v2001 = vpop.f32.mrb[0].mxu0
  %v2002 = vpop.f32.mrb[0].mxu0
  %v2003 = vadd.f32 %v942, %v2002
  %v2004 = vpop.f32.mrb[0].mxu0
  %2005 = vmatprep.mubr.bf16.mxu0 0
  %2006 = vmatmul.mubr.bf16.gmra.mrb[0].mxu0 %v1714
  %v2007 = vpop.f32.mrb[0].mxu0
  %v2008 = vadd.f32 %v947, %v2007
  %v2009 = vpop.f32.mrb[0].mxu0
  %v2010 = vpop.f32.mrb[0].mxu0
  %v2011 = vadd.f32 %v950, %v2010
  %v2012 = vpop.f32.mrb[0].mxu0
  %2013 = vmatprep.mubr.bf16.mxu0 0
  %2014 = vmatmul.mubr.bf16.gmra.mrb[0].mxu0 %v1717
  %v2015 = vpop.f32.mrb[0].mxu0
  %v2016 = vadd.f32 %v955, %v2015
  %v2017 = vpop.f32.mrb[0].mxu0
  %v2018 = vpop.f32.mrb[0].mxu0
  %v2019 = vadd.f32 %v958, %v2018
  %v2020 = vpop.f32.mrb[0].mxu0
  %2021 = vmatprep.mubr.bf16.mxu0 0
  %2022 = vmatmul.mubr.bf16.gmra.mrb[0].mxu0 %v1720
  %v2023 = vpop.f32.mrb[0].mxu0
  %v2024 = vadd.f32 %v963, %v2023
  %v2025 = vpop.f32.mrb[0].mxu0
  %v2026 = vpop.f32.mrb[0].mxu0
  %v2027 = vadd.f32 %v966, %v2026
  %v2028 = vpop.f32.mrb[0].mxu0
  %2029 = vmatprep.mubr.bf16.mxu0 0
  %2030 = vmatmul.mubr.bf16.gmra.mrb[0].mxu0 %v1723
  %v2031 = vpop.f32.mrb[0].mxu0
  %v2032 = vadd.f32 %v971, %v2031
  %v2033 = vpop.f32.mrb[0].mxu0
  %v2034 = vpop.f32.mrb[0].mxu0
  %v2035 = vadd.f32 %v974, %v2034
  %v2036 = vpop.f32.mrb[0].mxu0
  %2037 = vmatprep.mubr.bf16.mxu0 0
  %2038 = vmatmul.mubr.bf16.gmra.mrb[0].mxu0 %v1726
  %v2039 = vpop.f32.mrb[0].mxu0
  %v2040 = vadd.f32 %v979, %v2039
  %v2041 = vpop.f32.mrb[0].mxu0
  %v2042 = vpop.f32.mrb[0].mxu0
  %v2043 = vadd.f32 %v982, %v2042
  %v2044 = vpop.f32.mrb[0].mxu0
  %2045 = vmatprep.mubr.bf16.mxu0 0
  %2046 = vmatmul.mubr.bf16.gmra.mrb[0].mxu0 %v1729
  %v2047 = vpop.f32.mrb[0].mxu0
  %v2048 = vadd.f32 %v987, %v2047
  %v2049 = vpop.f32.mrb[0].mxu0
  %v2050 = vpop.f32.mrb[0].mxu0
  %v2051 = vadd.f32 %v990, %v2050
  %v2052 = vpop.f32.mrb[0].mxu0
  %2053 = vmatprep.mubr.bf16.mxu0 0
  %2054 = vmatmul.mubr.bf16.gmra.mrb[0].mxu0 %v1732
  %v2055 = vpop.f32.mrb[0].mxu0
  %v2056 = vadd.f32 %v995, %v2055
  %v2057 = vpop.f32.mrb[0].mxu0
  %v2058 = vpop.f32.mrb[0].mxu0
  %v2059 = vadd.f32 %v998, %v2058
  %v2060 = vpop.f32.mrb[0].mxu0
  %2061 = vmatprep.mubr.bf16.mxu0 0
  %2062 = vmatmul.mubr.bf16.gmra.mrb[0].mxu0 %v1735
  %v2063 = vpop.f32.mrb[0].mxu0
  %v2064 = vadd.f32 %v1003, %v2063
  %v2065 = vpop.f32.mrb[0].mxu0
  %v2066 = vpop.f32.mrb[0].mxu0
  %v2067 = vadd.f32 %v1006, %v2066
  %v2068 = vpop.f32.mrb[0].mxu0
  %2069 = vmatprep.mubr.bf16.mxu0 0
  %2070 = vmatmul.mubr.bf16.gmra.mrb[0].mxu0 %v1738
  %v2071 = vpop.f32.mrb[0].mxu0
  %v2072 = vadd.f32 %v1011, %v2071
  %v2073 = vpop.f32.mrb[0].mxu0
  %v2074 = vpop.f32.mrb[0].mxu0
  %v2075 = vadd.f32 %v1014, %v2074
  %v2076 = vpop.f32.mrb[0].mxu0
  %2077 = vmatprep.mubr.bf16.mxu0 0
  %2078 = vmatmul.mubr.bf16.gmra.mrb[0].mxu0 %v1741
  %v2079 = vpop.f32.mrb[0].mxu0
  %v2080 = vadd.f32 %v1019, %v2079
  %v2081 = vpop.f32.mrb[0].mxu0
  %v2082 = vpop.f32.mrb[0].mxu0
  %v2083 = vadd.f32 %v1022, %v2082
  %v2084 = vpop.f32.mrb[0].mxu0
  %2085 = vmatprep.mubr.bf16.mxu0 0
  %2086 = vmatmul.mubr.bf16.gmra.mrb[0].mxu0 %v1744
  %v2087 = vpop.f32.mrb[0].mxu0
  %v2088 = vadd.f32 %v1027, %v2087
  %v2089 = vpop.f32.mrb[0].mxu0
  %v2090 = vpop.f32.mrb[0].mxu0
  %v2091 = vadd.f32 %v1030, %v2090
  %v2092 = vpop.f32.mrb[0].mxu0
  %2093 = vmatprep.mubr.bf16.mxu0 0
  %2094 = vmatmul.mubr.bf16.gmra.mrb[0].mxu0 %v1747
  %v2095 = vpop.f32.mrb[0].mxu0
  %v2096 = vadd.f32 %v1035, %v2095
  %v2097 = vpop.f32.mrb[0].mxu0
  %v2098 = vpop.f32.mrb[0].mxu0
  %v2099 = vadd.f32 %v1038, %v2098
  %v2100 = vpop.f32.mrb[0].mxu0
  %2101 = vmatprep.mubr.bf16.mxu0 0
  %2102 = vmatmul.mubr.bf16.gmra.mrb[0].mxu0 %v1750
  %v2103 = vpop.f32.mrb[0].mxu0
  %v2104 = vadd.f32 %v1043, %v2103
  %v2105 = vpop.f32.mrb[0].mxu0
  %v2106 = vpop.f32.mrb[0].mxu0
  %v2107 = vadd.f32 %v1046, %v2106
  %v2108 = vpop.f32.mrb[0].mxu0
  %2109 = vmatprep.mubr.bf16.mxu0 0
  %2110 = vmatmul.mubr.bf16.gmra.mrb[0].mxu0 %v1753
  %v2111 = vpop.f32.mrb[0].mxu0
  %v2112 = vadd.f32 %v1051, %v2111
  %v2113 = vpop.f32.mrb[0].mxu0
  %v2114 = vpop.f32.mrb[0].mxu0
  %v2115 = vadd.f32 %v1054, %v2114
  %v2116 = vpop.f32.mrb[0].mxu0
  %2117 = vmatprep.mubr.bf16.mxu0 0
  %2118 = vmatmul.mubr.bf16.gmra.mrb[0].mxu0 %v1756
  %v2119 = vpop.f32.mrb[0].mxu0
  %v2120 = vadd.f32 %v1059, %v2119
  %v2121 = vpop.f32.mrb[0].mxu0
  %v2122 = vpop.f32.mrb[0].mxu0
  %v2123 = vadd.f32 %v1062, %v2122
  %v2124 = vpop.f32.mrb[0].mxu0
  %2125 = vmatprep.mubr.bf16.mxu0 0
  %2126 = vmatmul.mubr.bf16.gmra.mrb[0].mxu0 %v1759
  %v2127 = vpop.f32.mrb[0].mxu0
  %v2128 = vadd.f32 %v1067, %v2127
  %v2129 = vpop.f32.mrb[0].mxu0
  %v2130 = vpop.f32.mrb[0].mxu0
  %v2131 = vadd.f32 %v1070, %v2130
  %v2132 = vpop.f32.mrb[0].mxu0
  %2133 = vmatprep.mubr.bf16.mxu0 0
  %2134 = vmatmul.mubr.bf16.gmra.mrb[0].mxu0 %v1762
  %v2135 = vpop.f32.mrb[0].mxu0
  %v2136 = vadd.f32 %v1075, %v2135
  %v2137 = vpop.f32.mrb[0].mxu0
  %v2138 = vpop.f32.mrb[0].mxu0
  %v2139 = vadd.f32 %v1078, %v2138
  %v2140 = vpop.f32.mrb[0].mxu0
  %2141 = vmatprep.mubr.bf16.mxu0 0
  %2142 = vmatmul.mubr.bf16.gmra.mrb[0].mxu0 %v1765
  %v2143 = vpop.f32.mrb[0].mxu0
  %v2144 = vadd.f32 %v1083, %v2143
  %v2145 = vpop.f32.mrb[0].mxu0
  %v2146 = vpop.f32.mrb[0].mxu0
  %v2147 = vadd.f32 %v1086, %v2146
  %v2148 = vpop.f32.mrb[0].mxu0
  %2149 = vmatprep.mubr.bf16.mxu0 0
  %2150 = vmatmul.mubr.bf16.gmra.mrb[0].mxu0 %v1768
  %v2151 = vpop.f32.mrb[0].mxu0
  %v2152 = vadd.f32 %v1091, %v2151
  %v2153 = vpop.f32.mrb[0].mxu0
  %v2154 = vpop.f32.mrb[0].mxu0
  %v2155 = vadd.f32 %v1094, %v2154
  %v2156 = vpop.f32.mrb[0].mxu0
  %2157 = vmatprep.mubr.bf16.mxu0 0
  %2158 = vmatmul.mubr.bf16.gmra.mrb[0].mxu0 %v1771
  %v2159 = vpop.f32.mrb[0].mxu0
  %v2160 = vadd.f32 %v1099, %v2159
  %v2161 = vpop.f32.mrb[0].mxu0
  %v2162 = vpop.f32.mrb[0].mxu0
  %v2163 = vadd.f32 %v1102, %v2162
  %v2164 = vpop.f32.mrb[0].mxu0
  %2165 = vmatprep.mubr.bf16.mxu0 0
  %2166 = vmatmul.mubr.bf16.gmra.mrb[0].mxu0 %v1774
  %v2167 = vpop.f32.mrb[0].mxu0
  %v2168 = vadd.f32 %v1107, %v2167
  %v2169 = vpop.f32.mrb[0].mxu0
  %v2170 = vpop.f32.mrb[0].mxu0
  %v2171 = vadd.f32 %v1110, %v2170
  %v2172 = vpop.f32.mrb[0].mxu0
  %2173 = vmatprep.mubr.bf16.mxu0 0
  %2174 = vmatmul.mubr.bf16.gmra.mrb[0].mxu0 %v1777
  %v2175 = vpop.f32.mrb[0].mxu0
  %v2176 = vadd.f32 %v1115, %v2175
  %v2177 = vpop.f32.mrb[0].mxu0
  %v2178 = vpop.f32.mrb[0].mxu0
  %v2179 = vadd.f32 %v1118, %v2178
  %v2180 = vpop.f32.mrb[0].mxu0
  %2181 = vmatprep.mubr.bf16.mxu0 0
  %2182 = vmatmul.mubr.bf16.gmra.mrb[0].mxu0 %v1780
  %v2183 = vpop.f32.mrb[0].mxu0
  %v2184 = vadd.f32 %v1123, %v2183
  %v2185 = vpop.f32.mrb[0].mxu0
  %v2186 = vpop.f32.mrb[0].mxu0
  %v2187 = vadd.f32 %v1126, %v2186
  %v2188 = vpop.f32.mrb[0].mxu0
  %2189 = vmatprep.mubr.bf16.mxu0 0
  %2190 = vmatmul.mubr.bf16.gmra.mrb[0].mxu0 %v1783
  %v2191 = vpop.f32.mrb[0].mxu0
  %v2192 = vadd.f32 %v1131, %v2191
  %v2193 = vpop.f32.mrb[0].mxu0
  %v2194 = vpop.f32.mrb[0].mxu0
  %v2195 = vadd.f32 %v1134, %v2194
  %v2196 = vpop.f32.mrb[0].mxu0
  %2197 = vmatprep.mubr.bf16.mxu0 0
  %2198 = vmatmul.mubr.bf16.gmra.mrb[0].mxu0 %v1786
  %v2199 = vpop.f32.mrb[0].mxu0
  %v2200 = vadd.f32 %v1139, %v2199
  %v2201 = vpop.f32.mrb[0].mxu0
  %v2202 = vpop.f32.mrb[0].mxu0
  %v2203 = vadd.f32 %v1142, %v2202
  %v2204 = vpop.f32.mrb[0].mxu0
  %2205 = vmatprep.mubr.bf16.mxu0 0
  %2206 = vmatmul.mubr.bf16.gmra.mrb[0].mxu0 %v1789
  %v2207 = vpop.f32.mrb[0].mxu0
  %v2208 = vadd.f32 %v1147, %v2207
  %v2209 = vpop.f32.mrb[0].mxu0
  %v2210 = vpop.f32.mrb[0].mxu0
  %v2211 = vadd.f32 %v1150, %v2210
  %v2212 = vpop.f32.mrb[0].mxu0
  %2213 = vmatprep.mubr.bf16.mxu0 0
  %2214 = vmatmul.mubr.bf16.gmra.mrb[0].mxu0 %v1792
  %v2215 = vpop.f32.mrb[0].mxu0
  %v2216 = vadd.f32 %v1155, %v2215
  %v2217 = vpop.f32.mrb[0].mxu0
  %v2218 = vpop.f32.mrb[0].mxu0
  %v2219 = vadd.f32 %v1158, %v2218
  %v2220 = vpop.f32.mrb[0].mxu0
  %2221 = vmatprep.mubr.bf16.mxu0 0
  %2222 = vmatmul.mubr.bf16.gmra.mrb[0].mxu0 %v1795
  %v2223 = vpop.f32.mrb[0].mxu0
  %v2224 = vadd.f32 %v1163, %v2223
  %v2225 = vpop.f32.mrb[0].mxu0
  %v2226 = vpop.f32.mrb[0].mxu0
  %v2227 = vadd.f32 %v1166, %v2226
  %v2228 = vpop.f32.mrb[0].mxu0
  %2229 = vmatprep.mubr.bf16.mxu0 0
  %2230 = vmatmul.mubr.bf16.gmra.mrb[0].mxu0 %v1798
  %v2231 = vpop.f32.mrb[0].mxu0
  %v2232 = vadd.f32 %v1171, %v2231
  %v2233 = vpop.f32.mrb[0].mxu0
  %v2234 = vpop.f32.mrb[0].mxu0
  %v2235 = vadd.f32 %v1174, %v2234
  %v2236 = vpop.f32.mrb[0].mxu0
  %2237 = vmatprep.mubr.bf16.mxu0 0
  %2238 = vmatmul.mubr.bf16.gmra.mrb[0].mxu0 %v1801
  %v2239 = vpop.f32.mrb[0].mxu0
  %v2240 = vadd.f32 %v1179, %v2239
  %v2241 = vpop.f32.mrb[0].mxu0
  %v2242 = vpop.f32.mrb[0].mxu0
  %v2243 = vadd.f32 %v1182, %v2242
  %v2244 = vpop.f32.mrb[0].mxu0
  %2245 = vmatprep.mubr.bf16.mxu0 0
  %2246 = vmatmul.mubr.bf16.gmra.mrb[0].mxu0 %v1804
  %v2247 = vpop.f32.mrb[0].mxu0
  %v2248 = vadd.f32 %v1187, %v2247
  %v2249 = vpop.f32.mrb[0].mxu0
  %v2250 = vpop.f32.mrb[0].mxu0
  %v2251 = vadd.f32 %v1190, %v2250
  %v2252 = vpop.f32.mrb[0].mxu0
  %2253 = vmatprep.mubr.bf16.mxu0 0
  %2254 = vmatmul.mubr.bf16.gmra.mrb[0].mxu0 %v1807
  %v2255 = vpop.f32.mrb[0].mxu0
  %v2256 = vadd.f32 %v1195, %v2255
  %v2257 = vpop.f32.mrb[0].mxu0
  %v2258 = vpop.f32.mrb[0].mxu0
  %v2259 = vadd.f32 %v1198, %v2258
  %v2260 = vpop.f32.mrb[0].mxu0
  %2261 = vmatprep.mubr.bf16.mxu0 0
  %2262 = vmatmul.mubr.bf16.gmra.mrb[0].mxu0 %v1810
  %v2263 = vpop.f32.mrb[0].mxu0
  %v2264 = vadd.f32 %v1203, %v2263
  %v2265 = vpop.f32.mrb[0].mxu0
  %v2266 = vpop.f32.mrb[0].mxu0
  %v2267 = vadd.f32 %v1206, %v2266
  %v2268 = vpop.f32.mrb[0].mxu0
  %2269 = vmatprep.mubr.bf16.mxu0 0
  %2270 = vmatmul.mubr.bf16.gmra.mrb[0].mxu0 %v1813
  %v2271 = vpop.f32.mrb[0].mxu0
  %v2272 = vadd.f32 %v1211, %v2271
  %v2273 = vpop.f32.mrb[0].mxu0
  %v2274 = vpop.f32.mrb[0].mxu0
  %v2275 = vadd.f32 %v1214, %v2274
  %v2276 = vpop.f32.mrb[0].mxu0
  %2277 = vmatprep.mubr.bf16.mxu0 0
  %2278 = vmatmul.mubr.bf16.gmra.mrb[0].mxu0 %v1816
  %v2279 = vpop.f32.mrb[0].mxu0
  %v2280 = vadd.f32 %v1219, %v2279
  %v2281 = vpop.f32.mrb[0].mxu0
  %v2282 = vpop.f32.mrb[0].mxu0
  %v2283 = vadd.f32 %v1222, %v2282
  %v2284 = vpop.f32.mrb[0].mxu0
  %2285 = vmatprep.mubr.bf16.mxu0 0
  %2286 = vmatmul.mubr.bf16.gmra.mrb[0].mxu0 %v1819
  %v2287 = vpop.f32.mrb[0].mxu0
  %v2288 = vadd.f32 %v1227, %v2287
  %v2289 = vpop.f32.mrb[0].mxu0
  %v2290 = vpop.f32.mrb[0].mxu0
  %v2291 = vadd.f32 %v1230, %v2290
  %v2292 = vpop.f32.mrb[0].mxu0
  %2293 = vmatprep.mubr.bf16.mxu0 0
  %2294 = vmatmul.mubr.bf16.gmra.mrb[0].mxu0 %v1822
  %v2295 = vpop.f32.mrb[0].mxu0
  %v2296 = vadd.f32 %v1235, %v2295
  %v2297 = vpop.f32.mrb[0].mxu0
  %v2298 = vpop.f32.mrb[0].mxu0
  %v2299 = vadd.f32 %v1238, %v2298
  %v2300 = vpop.f32.mrb[0].mxu0
  %2301 = vmatprep.mubr.bf16.mxu0 0
  %2302 = vmatmul.mubr.bf16.gmra.mrb[0].mxu0 %v1825
  %v2303 = vpop.f32.mrb[0].mxu0
  %v2304 = vadd.f32 %v1243, %v2303
  %v2305 = vpop.f32.mrb[0].mxu0
  %v2306 = vpop.f32.mrb[0].mxu0
  %v2307 = vadd.f32 %v1246, %v2306
  %v2308 = vpop.f32.mrb[0].mxu0
  %2309 = vmatprep.mubr.bf16.mxu0 0
  %2310 = vmatmul.mubr.bf16.gmra.mrb[0].mxu0 %v1828
  %v2311 = vpop.f32.mrb[0].mxu0
  %v2312 = vadd.f32 %v1251, %v2311
  %v2313 = vpop.f32.mrb[0].mxu0
  %v2314 = vpop.f32.mrb[0].mxu0
  %v2315 = vadd.f32 %v1254, %v2314
  %v2316 = vpop.f32.mrb[0].mxu0
  %2317 = vmatprep.mubr.bf16.mxu0 0
  %2318 = vmatmul.mubr.bf16.gmra.mrb[0].mxu0 %v1831
  %v2319 = vpop.f32.mrb[0].mxu0
  %v2320 = vadd.f32 %v1259, %v2319
  %v2321 = vpop.f32.mrb[0].mxu0
  %v2322 = vpop.f32.mrb[0].mxu0
  %v2323 = vadd.f32 %v1262, %v2322
  %v2324 = vpop.f32.mrb[0].mxu0
  %2325 = vmatprep.mubr.bf16.mxu0 0
  %2326 = vmatmul.mubr.bf16.gmra.mrb[0].mxu0 %v1834
  %v2327 = vpop.f32.mrb[0].mxu0
  %v2328 = vadd.f32 %v1267, %v2327
  %v2329 = vpop.f32.mrb[0].mxu0
  %v2330 = vpop.f32.mrb[0].mxu0
  %v2331 = vadd.f32 %v1270, %v2330
  %v2332 = vpop.f32.mrb[0].mxu0
  %2333 = vmatprep.mubr.bf16.mxu0 0
  %2334 = vmatmul.mubr.bf16.gmra.mrb[0].mxu0 %v1837
  %v2335 = vpop.f32.mrb[0].mxu0
  %v2336 = vadd.f32 %v1275, %v2335
  %v2337 = vpop.f32.mrb[0].mxu0
  %v2338 = vpop.f32.mrb[0].mxu0
  %v2339 = vadd.f32 %v1278, %v2338
  %v2340 = vpop.f32.mrb[0].mxu0
  %2341 = vmatprep.mubr.bf16.mxu0 0
  %2342 = vmatmul.mubr.bf16.gmra.mrb[0].mxu0 %v1840
  %v2343 = vpop.f32.mrb[0].mxu0
  %v2344 = vadd.f32 %v1283, %v2343
  %v2345 = vpop.f32.mrb[0].mxu0
  %v2346 = vpop.f32.mrb[0].mxu0
  %v2347 = vadd.f32 %v1286, %v2346
  %v2348 = vpop.f32.mrb[0].mxu0
  %2349 = vmatprep.mubr.bf16.mxu0 0
  %2350 = vmatmul.mubr.bf16.gmra.mrb[0].mxu0 %v1843
  %v2351 = vpop.f32.mrb[0].mxu0
  %v2352 = vadd.f32 %v1291, %v2351
  %v2353 = vpop.f32.mrb[0].mxu0
  %v2354 = vpop.f32.mrb[0].mxu0
  %v2355 = vadd.f32 %v1294, %v2354
  %v2356 = vpop.f32.mrb[0].mxu0
  %2357 = vmatprep.mubr.bf16.mxu0 0
  %2358 = vmatmul.mubr.bf16.gmra.mrb[0].mxu0 %v1846
  %v2359 = vpop.f32.mrb[0].mxu0
  %v2360 = vadd.f32 %v1299, %v2359
  %v2361 = vpop.f32.mrb[0].mxu0
  %v2362 = vpop.f32.mrb[0].mxu0
  %v2363 = vadd.f32 %v1302, %v2362
  %v2364 = vpop.f32.mrb[0].mxu0
  %2365 = vmatprep.mubr.bf16.mxu0 0
  %2366 = vmatmul.mubr.bf16.gmra.mrb[0].mxu0 %v1849
  %v2367 = vpop.f32.mrb[0].mxu0
  %v2368 = vadd.f32 %v1307, %v2367
  %v2369 = vpop.f32.mrb[0].mxu0
  %v2370 = vpop.f32.mrb[0].mxu0
  %v2371 = vadd.f32 %v1310, %v2370
  %v2372 = vpop.f32.mrb[0].mxu0
  %2373 = vmatprep.mubr.bf16.mxu0 0
  %2374 = vmatmul.mubr.bf16.gmra.mrb[0].mxu0 %v1852
  %v2375 = vpop.f32.mrb[0].mxu0
  %v2376 = vadd.f32 %v1315, %v2375
  %v2377 = vpop.f32.mrb[0].mxu0
  %v2378 = vpop.f32.mrb[0].mxu0
  %v2379 = vadd.f32 %v1318, %v2378
  %v2380 = vpop.f32.mrb[0].mxu0
  %2381 = vmatprep.mubr.bf16.mxu0 0
  %2382 = vmatmul.mubr.bf16.gmra.mrb[0].mxu0 %v1855
  %v2383 = vpop.f32.mrb[0].mxu0
  %v2384 = vadd.f32 %v1323, %v2383
  %v2385 = vpop.f32.mrb[0].mxu0
  %v2386 = vpop.f32.mrb[0].mxu0
  %v2387 = vadd.f32 %v1326, %v2386
  %v2388 = vpop.f32.mrb[0].mxu0
  %2389 = vmatprep.mubr.bf16.mxu0 0
  %2390 = vmatmul.mubr.bf16.gmra.mrb[0].mxu0 %v1858
  %v2391 = vpop.f32.mrb[0].mxu0
  %v2392 = vadd.f32 %v1331, %v2391
  %v2393 = vpop.f32.mrb[0].mxu0
  %v2394 = vpop.f32.mrb[0].mxu0
  %v2395 = vadd.f32 %v1334, %v2394
  %v2396 = vpop.f32.mrb[0].mxu0
  %2397 = vmatprep.mubr.bf16.mxu0 0
  %2398 = vmatmul.mubr.bf16.gmra.mrb[0].mxu0 %v1861
  %v2399 = vpop.f32.mrb[0].mxu0
  %v2400 = vadd.f32 %v1339, %v2399
  %v2401 = vpop.f32.mrb[0].mxu0
  %v2402 = vpop.f32.mrb[0].mxu0
  %v2403 = vadd.f32 %v1342, %v2402
  %v2404 = vpop.f32.mrb[0].mxu0
  %2405 = vmatprep.mubr.bf16.mxu0 0
  %2406 = vmatmul.mubr.bf16.gmra.mrb[0].mxu0 %v1864
  %v2407 = vpop.f32.mrb[0].mxu0
  %v2408 = vadd.f32 %v1347, %v2407
  %v2409 = vpop.f32.mrb[0].mxu0
  %v2410 = vpop.f32.mrb[0].mxu0
  %v2411 = vadd.f32 %v1350, %v2410
  %v2412 = vpop.f32.mrb[0].mxu0
  %2413 = vdwg.mxu0
  %v2414 = vld [vmem:[%s5] sm:$0x1]
  %v2416 = vlaneseq
  %v2417 = vshrl.u32 %v2416, 7
  %v2418 = vsub.s32 0, %v2417
  %v2419 = vrot.slane %v2414, %v2418
  %v2421 = vadd.f32 %v1904, %v2419
  %v2422 = vadd.f32 %v1907, %v2419
  %v2423 = vadd.f32 %v1912, %v2419
  %v2424 = vadd.f32 %v1915, %v2419
  %v2425 = vadd.f32 %v1920, %v2419
  %v2426 = vadd.f32 %v1923, %v2419
  %v2427 = vadd.f32 %v1928, %v2419
  %v2428 = vadd.f32 %v1931, %v2419
  %v2429 = vadd.f32 %v1936, %v2419
  %v2430 = vadd.f32 %v1939, %v2419
  %v2431 = vadd.f32 %v1944, %v2419
  %v2432 = vadd.f32 %v1947, %v2419
  %v2433 = vadd.f32 %v1952, %v2419
  %v2434 = vadd.f32 %v1955, %v2419
  %v2435 = vadd.f32 %v1960, %v2419
  %v2436 = vadd.f32 %v1963, %v2419
  %v2437 = vadd.f32 %v1968, %v2419
  %v2438 = vadd.f32 %v1971, %v2419
  %v2439 = vadd.f32 %v1976, %v2419
  %v2440 = vadd.f32 %v1979, %v2419
  %v2441 = vadd.f32 %v1984, %v2419
  %v2442 = vadd.f32 %v1987, %v2419
  %v2443 = vadd.f32 %v1992, %v2419
  %v2444 = vadd.f32 %v1995, %v2419
  %v2445 = vadd.f32 %v2000, %v2419
  %v2446 = vadd.f32 %v2003, %v2419
  %v2447 = vadd.f32 %v2008, %v2419
  %v2448 = vadd.f32 %v2011, %v2419
  %v2449 = vadd.f32 %v2016, %v2419
  %v2450 = vadd.f32 %v2019, %v2419
  %v2451 = vadd.f32 %v2024, %v2419
  %v2452 = vadd.f32 %v2027, %v2419
  %v2453 = vadd.f32 %v2032, %v2419
  %v2454 = vadd.f32 %v2035, %v2419
  %v2455 = vadd.f32 %v2040, %v2419
  %v2456 = vadd.f32 %v2043, %v2419
  %v2457 = vadd.f32 %v2048, %v2419
  %v2458 = vadd.f32 %v2051, %v2419
  %v2459 = vadd.f32 %v2056, %v2419
  %v2460 = vadd.f32 %v2059, %v2419
  %v2461 = vadd.f32 %v2064, %v2419
  %v2462 = vadd.f32 %v2067, %v2419
  %v2463 = vadd.f32 %v2072, %v2419
  %v2464 = vadd.f32 %v2075, %v2419
  %v2465 = vadd.f32 %v2080, %v2419
  %v2466 = vadd.f32 %v2083, %v2419
  %v2467 = vadd.f32 %v2088, %v2419
  %v2468 = vadd.f32 %v2091, %v2419
  %v2469 = vadd.f32 %v2096, %v2419
  %v2470 = vadd.f32 %v2099, %v2419
  %v2471 = vadd.f32 %v2104, %v2419
  %v2472 = vadd.f32 %v2107, %v2419
  %v2473 = vadd.f32 %v2112, %v2419
  %v2474 = vadd.f32 %v2115, %v2419
  %v2475 = vadd.f32 %v2120, %v2419
  %v2476 = vadd.f32 %v2123, %v2419
  %v2477 = vadd.f32 %v2128, %v2419
  %v2478 = vadd.f32 %v2131, %v2419
  %v2479 = vadd.f32 %v2136, %v2419
  %v2480 = vadd.f32 %v2139, %v2419
  %v2481 = vadd.f32 %v2144, %v2419
  %v2482 = vadd.f32 %v2147, %v2419
  %v2483 = vadd.f32 %v2152, %v2419
  %v2484 = vadd.f32 %v2155, %v2419
  %v2485 = vadd.f32 %v2160, %v2419
  %v2486 = vadd.f32 %v2163, %v2419
  %v2487 = vadd.f32 %v2168, %v2419
  %v2488 = vadd.f32 %v2171, %v2419
  %v2489 = vadd.f32 %v2176, %v2419
  %v2490 = vadd.f32 %v2179, %v2419
  %v2491 = vadd.f32 %v2184, %v2419
  %v2492 = vadd.f32 %v2187, %v2419
  %v2493 = vadd.f32 %v2192, %v2419
  %v2494 = vadd.f32 %v2195, %v2419
  %v2495 = vadd.f32 %v2200, %v2419
  %v2496 = vadd.f32 %v2203, %v2419
  %v2497 = vadd.f32 %v2208, %v2419
  %v2498 = vadd.f32 %v2211, %v2419
  %v2499 = vadd.f32 %v2216, %v2419
  %v2500 = vadd.f32 %v2219, %v2419
  %v2501 = vadd.f32 %v2224, %v2419
  %v2502 = vadd.f32 %v2227, %v2419
  %v2503 = vadd.f32 %v2232, %v2419
  %v2504 = vadd.f32 %v2235, %v2419
  %v2505 = vadd.f32 %v2240, %v2419
  %v2506 = vadd.f32 %v2243, %v2419
  %v2507 = vadd.f32 %v2248, %v2419
  %v2508 = vadd.f32 %v2251, %v2419
  %v2509 = vadd.f32 %v2256, %v2419
  %v2510 = vadd.f32 %v2259, %v2419
  %v2511 = vadd.f32 %v2264, %v2419
  %v2512 = vadd.f32 %v2267, %v2419
  %v2513 = vadd.f32 %v2272, %v2419
  %v2514 = vadd.f32 %v2275, %v2419
  %v2515 = vadd.f32 %v2280, %v2419
  %v2516 = vadd.f32 %v2283, %v2419
  %v2517 = vadd.f32 %v2288, %v2419
  %v2518 = vadd.f32 %v2291, %v2419
  %v2519 = vadd.f32 %v2296, %v2419
  %v2520 = vadd.f32 %v2299, %v2419
  %v2521 = vadd.f32 %v2304, %v2419
  %v2522 = vadd.f32 %v2307, %v2419
  %v2523 = vadd.f32 %v2312, %v2419
  %v2524 = vadd.f32 %v2315, %v2419
  %v2525 = vadd.f32 %v2320, %v2419
  %v2526 = vadd.f32 %v2323, %v2419
  %v2527 = vadd.f32 %v2328, %v2419
  %v2528 = vadd.f32 %v2331, %v2419
  %v2529 = vadd.f32 %v2336, %v2419
  %v2530 = vadd.f32 %v2339, %v2419
  %v2531 = vadd.f32 %v2344, %v2419
  %v2532 = vadd.f32 %v2347, %v2419
  %v2533 = vadd.f32 %v2352, %v2419
  %v2534 = vadd.f32 %v2355, %v2419
  %v2535 = vadd.f32 %v2360, %v2419
  %v2536 = vadd.f32 %v2363, %v2419
  %v2537 = vadd.f32 %v2368, %v2419
  %v2538 = vadd.f32 %v2371, %v2419
  %v2539 = vadd.f32 %v2376, %v2419
  %v2540 = vadd.f32 %v2379, %v2419
  %v2541 = vadd.f32 %v2384, %v2419
  %v2542 = vadd.f32 %v2387, %v2419
  %v2543 = vadd.f32 %v2392, %v2419
  %v2544 = vadd.f32 %v2395, %v2419
  %v2545 = vadd.f32 %v2400, %v2419
  %v2546 = vadd.f32 %v2403, %v2419
  %v2547 = vadd.f32 %v2408, %v2419
  %v2548 = vadd.f32 %v2411, %v2419
  %v2549 = vxor.u32 %v2421, 2147483648
  %v2550 = vxor.u32 %v2422, 2147483648
  %v2551 = vxor.u32 %v2423, 2147483648
  %v2552 = vxor.u32 %v2424, 2147483648
  %v2553 = vxor.u32 %v2425, 2147483648
  %v2554 = vxor.u32 %v2426, 2147483648
  %v2555 = vxor.u32 %v2427, 2147483648
  %v2556 = vxor.u32 %v2428, 2147483648
  %v2557 = vxor.u32 %v2429, 2147483648
  %v2558 = vxor.u32 %v2430, 2147483648
  %v2559 = vxor.u32 %v2431, 2147483648
  %v2560 = vxor.u32 %v2432, 2147483648
  %v2561 = vxor.u32 %v2433, 2147483648
  %v2562 = vxor.u32 %v2434, 2147483648
  %v2563 = vxor.u32 %v2435, 2147483648
  %v2564 = vxor.u32 %v2436, 2147483648
  %v2565 = vxor.u32 %v2437, 2147483648
  %v2566 = vxor.u32 %v2438, 2147483648
  %v2567 = vxor.u32 %v2439, 2147483648
  %v2568 = vxor.u32 %v2440, 2147483648
  %v2569 = vxor.u32 %v2441, 2147483648
  %v2570 = vxor.u32 %v2442, 2147483648
  %v2571 = vxor.u32 %v2443, 2147483648
  %v2572 = vxor.u32 %v2444, 2147483648
  %v2573 = vxor.u32 %v2445, 2147483648
  %v2574 = vxor.u32 %v2446, 2147483648
  %v2575 = vxor.u32 %v2447, 2147483648
  %v2576 = vxor.u32 %v2448, 2147483648
  %v2577 = vxor.u32 %v2449, 2147483648
  %v2578 = vxor.u32 %v2450, 2147483648
  %v2579 = vxor.u32 %v2451, 2147483648
  %v2580 = vxor.u32 %v2452, 2147483648
  %v2581 = vxor.u32 %v2453, 2147483648
  %v2582 = vxor.u32 %v2454, 2147483648
  %v2583 = vxor.u32 %v2455, 2147483648
  %v2584 = vxor.u32 %v2456, 2147483648
  %v2585 = vxor.u32 %v2457, 2147483648
  %v2586 = vxor.u32 %v2458, 2147483648
  %v2587 = vxor.u32 %v2459, 2147483648
  %v2588 = vxor.u32 %v2460, 2147483648
  %v2589 = vxor.u32 %v2461, 2147483648
  %v2590 = vxor.u32 %v2462, 2147483648
  %v2591 = vxor.u32 %v2463, 2147483648
  %v2592 = vxor.u32 %v2464, 2147483648
  %v2593 = vxor.u32 %v2465, 2147483648
  %v2594 = vxor.u32 %v2466, 2147483648
  %v2595 = vxor.u32 %v2467, 2147483648
  %v2596 = vxor.u32 %v2468, 2147483648
  %v2597 = vxor.u32 %v2469, 2147483648
  %v2598 = vxor.u32 %v2470, 2147483648
  %v2599 = vxor.u32 %v2471, 2147483648
  %v2600 = vxor.u32 %v2472, 2147483648
  %v2601 = vxor.u32 %v2473, 2147483648
  %v2602 = vxor.u32 %v2474, 2147483648
  %v2603 = vxor.u32 %v2475, 2147483648
  %v2604 = vxor.u32 %v2476, 2147483648
  %v2605 = vxor.u32 %v2477, 2147483648
  %v2606 = vxor.u32 %v2478, 2147483648
  %v2607 = vxor.u32 %v2479, 2147483648
  %v2608 = vxor.u32 %v2480, 2147483648
  %v2609 = vxor.u32 %v2481, 2147483648
  %v2610 = vxor.u32 %v2482, 2147483648
  %v2611 = vxor.u32 %v2483, 2147483648
  %v2612 = vxor.u32 %v2484, 2147483648
  %v2613 = vxor.u32 %v2485, 2147483648
  %v2614 = vxor.u32 %v2486, 2147483648
  %v2615 = vxor.u32 %v2487, 2147483648
  %v2616 = vxor.u32 %v2488, 2147483648
  %v2617 = vxor.u32 %v2489, 2147483648
  %v2618 = vxor.u32 %v2490, 2147483648
  %v2619 = vxor.u32 %v2491, 2147483648
  %v2620 = vxor.u32 %v2492, 2147483648
  %v2621 = vxor.u32 %v2493, 2147483648
  %v2622 = vxor.u32 %v2494, 2147483648
  %v2623 = vxor.u32 %v2495, 2147483648
  %v2624 = vxor.u32 %v2496, 2147483648
  %v2625 = vxor.u32 %v2497, 2147483648
  %v2626 = vxor.u32 %v2498, 2147483648
  %v2627 = vxor.u32 %v2499, 2147483648
  %v2628 = vxor.u32 %v2500, 2147483648
  %v2629 = vxor.u32 %v2501, 2147483648
  %v2630 = vxor.u32 %v2502, 2147483648
  %v2631 = vxor.u32 %v2503, 2147483648
  %v2632 = vxor.u32 %v2504, 2147483648
  %v2633 = vxor.u32 %v2505, 2147483648
  %v2634 = vxor.u32 %v2506, 2147483648
  %v2635 = vxor.u32 %v2507, 2147483648
  %v2636 = vxor.u32 %v2508, 2147483648
  %v2637 = vxor.u32 %v2509, 2147483648
  %v2638 = vxor.u32 %v2510, 2147483648
  %v2639 = vxor.u32 %v2511, 2147483648
  %v2640 = vxor.u32 %v2512, 2147483648
  %v2641 = vxor.u32 %v2513, 2147483648
  %v2642 = vxor.u32 %v2514, 2147483648
  %v2643 = vxor.u32 %v2515, 2147483648
  %v2644 = vxor.u32 %v2516, 2147483648
  %v2645 = vxor.u32 %v2517, 2147483648
  %v2646 = vxor.u32 %v2518, 2147483648
  %v2647 = vxor.u32 %v2519, 2147483648
  %v2648 = vxor.u32 %v2520, 2147483648
  %v2649 = vxor.u32 %v2521, 2147483648
  %v2650 = vxor.u32 %v2522, 2147483648
  %v2651 = vxor.u32 %v2523, 2147483648
  %v2652 = vxor.u32 %v2524, 2147483648
  %v2653 = vxor.u32 %v2525, 2147483648
  %v2654 = vxor.u32 %v2526, 2147483648
  %v2655 = vxor.u32 %v2527, 2147483648
  %v2656 = vxor.u32 %v2528, 2147483648
  %v2657 = vxor.u32 %v2529, 2147483648
  %v2658 = vxor.u32 %v2530, 2147483648
  %v2659 = vxor.u32 %v2531, 2147483648
  %v2660 = vxor.u32 %v2532, 2147483648
  %v2661 = vxor.u32 %v2533, 2147483648
  %v2662 = vxor.u32 %v2534, 2147483648
  %v2663 = vxor.u32 %v2535, 2147483648
  %v2664 = vxor.u32 %v2536, 2147483648
  %v2665 = vxor.u32 %v2537, 2147483648
  %v2666 = vxor.u32 %v2538, 2147483648
  %v2667 = vxor.u32 %v2539, 2147483648
  %v2668 = vxor.u32 %v2540, 2147483648
  %v2669 = vxor.u32 %v2541, 2147483648
  %v2670 = vxor.u32 %v2542, 2147483648
  %v2671 = vxor.u32 %v2543, 2147483648
  %v2672 = vxor.u32 %v2544, 2147483648
  %v2673 = vxor.u32 %v2545, 2147483648
  %v2674 = vxor.u32 %v2546, 2147483648
  %v2675 = vxor.u32 %v2547, 2147483648
  %v2676 = vxor.u32 %v2548, 2147483648
  %v2677 = vmul.f32 %v2549, 1.442695
  %v2678 = vpow.pop %v2677
  %v2679 = vmul.f32 %v2550, 1.442695
  %v2680 = vpow.pop %v2679
  %v2681 = vmul.f32 %v2551, 1.442695
  %v2682 = vpow.pop %v2681
  %v2683 = vmul.f32 %v2552, 1.442695
  %v2684 = vpow.pop %v2683
  %v2685 = vmul.f32 %v2553, 1.442695
  %v2686 = vpow.pop %v2685
  %v2687 = vmul.f32 %v2554, 1.442695
  %v2688 = vpow.pop %v2687
  %v2689 = vmul.f32 %v2555, 1.442695
  %v2690 = vpow.pop %v2689
  %v2691 = vmul.f32 %v2556, 1.442695
  %v2692 = vpow.pop %v2691
  %v2693 = vmul.f32 %v2557, 1.442695
  %v2694 = vpow.pop %v2693
  %v2695 = vmul.f32 %v2558, 1.442695
  %v2696 = vpow.pop %v2695
  %v2697 = vmul.f32 %v2559, 1.442695
  %v2698 = vpow.pop %v2697
  %v2699 = vmul.f32 %v2560, 1.442695
  %v2700 = vpow.pop %v2699
  %v2701 = vmul.f32 %v2561, 1.442695
  %v2702 = vpow.pop %v2701
  %v2703 = vmul.f32 %v2562, 1.442695
  %v2704 = vpow.pop %v2703
  %v2705 = vmul.f32 %v2563, 1.442695
  %v2706 = vpow.pop %v2705
  %v2707 = vmul.f32 %v2564, 1.442695
  %v2708 = vpow.pop %v2707
  %v2709 = vmul.f32 %v2565, 1.442695
  %v2710 = vpow.pop %v2709
  %v2711 = vmul.f32 %v2566, 1.442695
  %v2712 = vpow.pop %v2711
  %v2713 = vmul.f32 %v2567, 1.442695
  %v2714 = vpow.pop %v2713
  %v2715 = vmul.f32 %v2568, 1.442695
  %v2716 = vpow.pop %v2715
  %v2717 = vmul.f32 %v2569, 1.442695
  %v2718 = vpow.pop %v2717
  %v2719 = vmul.f32 %v2570, 1.442695
  %v2720 = vpow.pop %v2719
  %v2721 = vmul.f32 %v2571, 1.442695
  %v2722 = vpow.pop %v2721
  %v2723 = vmul.f32 %v2572, 1.442695
  %v2724 = vpow.pop %v2723
  %v2725 = vmul.f32 %v2573, 1.442695
  %v2726 = vpow.pop %v2725
  %v2727 = vmul.f32 %v2574, 1.442695
  %v2728 = vpow.pop %v2727
  %v2729 = vmul.f32 %v2575, 1.442695
  %v2730 = vpow.pop %v2729
  %v2731 = vmul.f32 %v2576, 1.442695
  %v2732 = vpow.pop %v2731
  %v2733 = vmul.f32 %v2577, 1.442695
  %v2734 = vpow.pop %v2733
  %v2735 = vmul.f32 %v2578, 1.442695
  %v2736 = vpow.pop %v2735
  %v2737 = vmul.f32 %v2579, 1.442695
  %v2738 = vpow.pop %v2737
  %v2739 = vmul.f32 %v2580, 1.442695
  %v2740 = vpow.pop %v2739
  %v2741 = vmul.f32 %v2581, 1.442695
  %v2742 = vpow.pop %v2741
  %v2743 = vmul.f32 %v2582, 1.442695
  %v2744 = vpow.pop %v2743
  %v2745 = vmul.f32 %v2583, 1.442695
  %v2746 = vpow.pop %v2745
  %v2747 = vmul.f32 %v2584, 1.442695
  %v2748 = vpow.pop %v2747
  %v2749 = vmul.f32 %v2585, 1.442695
  %v2750 = vpow.pop %v2749
  %v2751 = vmul.f32 %v2586, 1.442695
  %v2752 = vpow.pop %v2751
  %v2753 = vmul.f32 %v2587, 1.442695
  %v2754 = vpow.pop %v2753
  %v2755 = vmul.f32 %v2588, 1.442695
  %v2756 = vpow.pop %v2755
  %v2757 = vmul.f32 %v2589, 1.442695
  %v2758 = vpow.pop %v2757
  %v2759 = vmul.f32 %v2590, 1.442695
  %v2760 = vpow.pop %v2759
  %v2761 = vmul.f32 %v2591, 1.442695
  %v2762 = vpow.pop %v2761
  %v2763 = vmul.f32 %v2592, 1.442695
  %v2764 = vpow.pop %v2763
  %v2765 = vmul.f32 %v2593, 1.442695
  %v2766 = vpow.pop %v2765
  %v2767 = vmul.f32 %v2594, 1.442695
  %v2768 = vpow.pop %v2767
  %v2769 = vmul.f32 %v2595, 1.442695
  %v2770 = vpow.pop %v2769
  %v2771 = vmul.f32 %v2596, 1.442695
  %v2772 = vpow.pop %v2771
  %v2773 = vmul.f32 %v2597, 1.442695
  %v2774 = vpow.pop %v2773
  %v2775 = vmul.f32 %v2598, 1.442695
  %v2776 = vpow.pop %v2775
  %v2777 = vmul.f32 %v2599, 1.442695
  %v2778 = vpow.pop %v2777
  %v2779 = vmul.f32 %v2600, 1.442695
  %v2780 = vpow.pop %v2779
  %v2781 = vmul.f32 %v2601, 1.442695
  %v2782 = vpow.pop %v2781
  %v2783 = vmul.f32 %v2602, 1.442695
  %v2784 = vpow.pop %v2783
  %v2785 = vmul.f32 %v2603, 1.442695
  %v2786 = vpow.pop %v2785
  %v2787 = vmul.f32 %v2604, 1.442695
  %v2788 = vpow.pop %v2787
  %v2789 = vmul.f32 %v2605, 1.442695
  %v2790 = vpow.pop %v2789
  %v2791 = vmul.f32 %v2606, 1.442695
  %v2792 = vpow.pop %v2791
  %v2793 = vmul.f32 %v2607, 1.442695
  %v2794 = vpow.pop %v2793
  %v2795 = vmul.f32 %v2608, 1.442695
  %v2796 = vpow.pop %v2795
  %v2797 = vmul.f32 %v2609, 1.442695
  %v2798 = vpow.pop %v2797
  %v2799 = vmul.f32 %v2610, 1.442695
  %v2800 = vpow.pop %v2799
  %v2801 = vmul.f32 %v2611, 1.442695
  %v2802 = vpow.pop %v2801
  %v2803 = vmul.f32 %v2612, 1.442695
  %v2804 = vpow.pop %v2803
  %v2805 = vmul.f32 %v2613, 1.442695
  %v2806 = vpow.pop %v2805
  %v2807 = vmul.f32 %v2614, 1.442695
  %v2808 = vpow.pop %v2807
  %v2809 = vmul.f32 %v2615, 1.442695
  %v2810 = vpow.pop %v2809
  %v2811 = vmul.f32 %v2616, 1.442695
  %v2812 = vpow.pop %v2811
  %v2813 = vmul.f32 %v2617, 1.442695
  %v2814 = vpow.pop %v2813
  %v2815 = vmul.f32 %v2618, 1.442695
  %v2816 = vpow.pop %v2815
  %v2817 = vmul.f32 %v2619, 1.442695
  %v2818 = vpow.pop %v2817
  %v2819 = vmul.f32 %v2620, 1.442695
  %v2820 = vpow.pop %v2819
  %v2821 = vmul.f32 %v2621, 1.442695
  %v2822 = vpow.pop %v2821
  %v2823 = vmul.f32 %v2622, 1.442695
  %v2824 = vpow.pop %v2823
  %v2825 = vmul.f32 %v2623, 1.442695
  %v2826 = vpow.pop %v2825
  %v2827 = vmul.f32 %v2624, 1.442695
  %v2828 = vpow.pop %v2827
  %v2829 = vmul.f32 %v2625, 1.442695
  %v2830 = vpow.pop %v2829
  %v2831 = vmul.f32 %v2626, 1.442695
  %v2832 = vpow.pop %v2831
  %v2833 = vmul.f32 %v2627, 1.442695
  %v2834 = vpow.pop %v2833
  %v2835 = vmul.f32 %v2628, 1.442695
  %v2836 = vpow.pop %v2835
  %v2837 = vmul.f32 %v2629, 1.442695
  %v2838 = vpow.pop %v2837
  %v2839 = vmul.f32 %v2630, 1.442695
  %v2840 = vpow.pop %v2839
  %v2841 = vmul.f32 %v2631, 1.442695
  %v2842 = vpow.pop %v2841
  %v2843 = vmul.f32 %v2632, 1.442695
  %v2844 = vpow.pop %v2843
  %v2845 = vmul.f32 %v2633, 1.442695
  %v2846 = vpow.pop %v2845
  %v2847 = vmul.f32 %v2634, 1.442695
  %v2848 = vpow.pop %v2847
  %v2849 = vmul.f32 %v2635, 1.442695
  %v2850 = vpow.pop %v2849
  %v2851 = vmul.f32 %v2636, 1.442695
  %v2852 = vpow.pop %v2851
  %v2853 = vmul.f32 %v2637, 1.442695
  %v2854 = vpow.pop %v2853
  %v2855 = vmul.f32 %v2638, 1.442695
  %v2856 = vpow.pop %v2855
  %v2857 = vmul.f32 %v2639, 1.442695
  %v2858 = vpow.pop %v2857
  %v2859 = vmul.f32 %v2640, 1.442695
  %v2860 = vpow.pop %v2859
  %v2861 = vmul.f32 %v2641, 1.442695
  %v2862 = vpow.pop %v2861
  %v2863 = vmul.f32 %v2642, 1.442695
  %v2864 = vpow.pop %v2863
  %v2865 = vmul.f32 %v2643, 1.442695
  %v2866 = vpow.pop %v2865
  %v2867 = vmul.f32 %v2644, 1.442695
  %v2868 = vpow.pop %v2867
  %v2869 = vmul.f32 %v2645, 1.442695
  %v2870 = vpow.pop %v2869
  %v2871 = vmul.f32 %v2646, 1.442695
  %v2872 = vpow.pop %v2871
  %v2873 = vmul.f32 %v2647, 1.442695
  %v2874 = vpow.pop %v2873
  %v2875 = vmul.f32 %v2648, 1.442695
  %v2876 = vpow.pop %v2875
  %v2877 = vmul.f32 %v2649, 1.442695
  %v2878 = vpow.pop %v2877
  %v2879 = vmul.f32 %v2650, 1.442695
  %v2880 = vpow.pop %v2879
  %v2881 = vmul.f32 %v2651, 1.442695
  %v2882 = vpow.pop %v2881
  %v2883 = vmul.f32 %v2652, 1.442695
  %v2884 = vpow.pop %v2883
  %v2885 = vmul.f32 %v2653, 1.442695
  %v2886 = vpow.pop %v2885
  %v2887 = vmul.f32 %v2654, 1.442695
  %v2888 = vpow.pop %v2887
  %v2889 = vmul.f32 %v2655, 1.442695
  %v2890 = vpow.pop %v2889
  %v2891 = vmul.f32 %v2656, 1.442695
  %v2892 = vpow.pop %v2891
  %v2893 = vmul.f32 %v2657, 1.442695
  %v2894 = vpow.pop %v2893
  %v2895 = vmul.f32 %v2658, 1.442695
  %v2896 = vpow.pop %v2895
  %v2897 = vmul.f32 %v2659, 1.442695
  %v2898 = vpow.pop %v2897
  %v2899 = vmul.f32 %v2660, 1.442695
  %v2900 = vpow.pop %v2899
  %v2901 = vmul.f32 %v2661, 1.442695
  %v2902 = vpow.pop %v2901
  %v2903 = vmul.f32 %v2662, 1.442695
  %v2904 = vpow.pop %v2903
  %v2905 = vmul.f32 %v2663, 1.442695
  %v2906 = vpow.pop %v2905
  %v2907 = vmul.f32 %v2664, 1.442695
  %v2908 = vpow.pop %v2907
  %v2909 = vmul.f32 %v2665, 1.442695
  %v2910 = vpow.pop %v2909
  %v2911 = vmul.f32 %v2666, 1.442695
  %v2912 = vpow.pop %v2911
  %v2913 = vmul.f32 %v2667, 1.442695
  %v2914 = vpow.pop %v2913
  %v2915 = vmul.f32 %v2668, 1.442695
  %v2916 = vpow.pop %v2915
  %v2917 = vmul.f32 %v2669, 1.442695
  %v2918 = vpow.pop %v2917
  %v2919 = vmul.f32 %v2670, 1.442695
  %v2920 = vpow.pop %v2919
  %v2921 = vmul.f32 %v2671, 1.442695
  %v2922 = vpow.pop %v2921
  %v2923 = vmul.f32 %v2672, 1.442695
  %v2924 = vpow.pop %v2923
  %v2925 = vmul.f32 %v2673, 1.442695
  %v2926 = vpow.pop %v2925
  %v2927 = vmul.f32 %v2674, 1.442695
  %v2928 = vpow.pop %v2927
  %v2929 = vmul.f32 %v2675, 1.442695
  %v2930 = vpow.pop %v2929
  %v2931 = vmul.f32 %v2676, 1.442695
  %v2932 = vpow.pop %v2931
  %v2933 = vadd.f32 %v2678, 1.0
  %v2934 = vadd.f32 %v2680, 1.0
  %v2935 = vadd.f32 %v2682, 1.0
  %v2936 = vadd.f32 %v2684, 1.0
  %v2937 = vadd.f32 %v2686, 1.0
  %v2938 = vadd.f32 %v2688, 1.0
  %v2939 = vadd.f32 %v2690, 1.0
  %v2940 = vadd.f32 %v2692, 1.0
  %v2941 = vadd.f32 %v2694, 1.0
  %v2942 = vadd.f32 %v2696, 1.0
  %v2943 = vadd.f32 %v2698, 1.0
  %v2944 = vadd.f32 %v2700, 1.0
  %v2945 = vadd.f32 %v2702, 1.0
  %v2946 = vadd.f32 %v2704, 1.0
  %v2947 = vadd.f32 %v2706, 1.0
  %v2948 = vadd.f32 %v2708, 1.0
  %v2949 = vadd.f32 %v2710, 1.0
  %v2950 = vadd.f32 %v2712, 1.0
  %v2951 = vadd.f32 %v2714, 1.0
  %v2952 = vadd.f32 %v2716, 1.0
  %v2953 = vadd.f32 %v2718, 1.0
  %v2954 = vadd.f32 %v2720, 1.0
  %v2955 = vadd.f32 %v2722, 1.0
  %v2956 = vadd.f32 %v2724, 1.0
  %v2957 = vadd.f32 %v2726, 1.0
  %v2958 = vadd.f32 %v2728, 1.0
  %v2959 = vadd.f32 %v2730, 1.0
  %v2960 = vadd.f32 %v2732, 1.0
  %v2961 = vadd.f32 %v2734, 1.0
  %v2962 = vadd.f32 %v2736, 1.0
  %v2963 = vadd.f32 %v2738, 1.0
  %v2964 = vadd.f32 %v2740, 1.0
  %v2965 = vadd.f32 %v2742, 1.0
  %v2966 = vadd.f32 %v2744, 1.0
  %v2967 = vadd.f32 %v2746, 1.0
  %v2968 = vadd.f32 %v2748, 1.0
  %v2969 = vadd.f32 %v2750, 1.0
  %v2970 = vadd.f32 %v2752, 1.0
  %v2971 = vadd.f32 %v2754, 1.0
  %v2972 = vadd.f32 %v2756, 1.0
  %v2973 = vadd.f32 %v2758, 1.0
  %v2974 = vadd.f32 %v2760, 1.0
  %v2975 = vadd.f32 %v2762, 1.0
  %v2976 = vadd.f32 %v2764, 1.0
  %v2977 = vadd.f32 %v2766, 1.0
  %v2978 = vadd.f32 %v2768, 1.0
  %v2979 = vadd.f32 %v2770, 1.0
  %v2980 = vadd.f32 %v2772, 1.0
  %v2981 = vadd.f32 %v2774, 1.0
  %v2982 = vadd.f32 %v2776, 1.0
  %v2983 = vadd.f32 %v2778, 1.0
  %v2984 = vadd.f32 %v2780, 1.0
  %v2985 = vadd.f32 %v2782, 1.0
  %v2986 = vadd.f32 %v2784, 1.0
  %v2987 = vadd.f32 %v2786, 1.0
  %v2988 = vadd.f32 %v2788, 1.0
  %v2989 = vadd.f32 %v2790, 1.0
  %v2990 = vadd.f32 %v2792, 1.0
  %v2991 = vadd.f32 %v2794, 1.0
  %v2992 = vadd.f32 %v2796, 1.0
  %v2993 = vadd.f32 %v2798, 1.0
  %v2994 = vadd.f32 %v2800, 1.0
  %v2995 = vadd.f32 %v2802, 1.0
  %v2996 = vadd.f32 %v2804, 1.0
  %v2997 = vadd.f32 %v2806, 1.0
  %v2998 = vadd.f32 %v2808, 1.0
  %v2999 = vadd.f32 %v2810, 1.0
  %v3000 = vadd.f32 %v2812, 1.0
  %v3001 = vadd.f32 %v2814, 1.0
  %v3002 = vadd.f32 %v2816, 1.0
  %v3003 = vadd.f32 %v2818, 1.0
  %v3004 = vadd.f32 %v2820, 1.0
  %v3005 = vadd.f32 %v2822, 1.0
  %v3006 = vadd.f32 %v2824, 1.0
  %v3007 = vadd.f32 %v2826, 1.0
  %v3008 = vadd.f32 %v2828, 1.0
  %v3009 = vadd.f32 %v2830, 1.0
  %v3010 = vadd.f32 %v2832, 1.0
  %v3011 = vadd.f32 %v2834, 1.0
  %v3012 = vadd.f32 %v2836, 1.0
  %v3013 = vadd.f32 %v2838, 1.0
  %v3014 = vadd.f32 %v2840, 1.0
  %v3015 = vadd.f32 %v2842, 1.0
  %v3016 = vadd.f32 %v2844, 1.0
  %v3017 = vadd.f32 %v2846, 1.0
  %v3018 = vadd.f32 %v2848, 1.0
  %v3019 = vadd.f32 %v2850, 1.0
  %v3020 = vadd.f32 %v2852, 1.0
  %v3021 = vadd.f32 %v2854, 1.0
  %v3022 = vadd.f32 %v2856, 1.0
  %v3023 = vadd.f32 %v2858, 1.0
  %v3024 = vadd.f32 %v2860, 1.0
  %v3025 = vadd.f32 %v2862, 1.0
  %v3026 = vadd.f32 %v2864, 1.0
  %v3027 = vadd.f32 %v2866, 1.0
  %v3028 = vadd.f32 %v2868, 1.0
  %v3029 = vadd.f32 %v2870, 1.0
  %v3030 = vadd.f32 %v2872, 1.0
  %v3031 = vadd.f32 %v2874, 1.0
  %v3032 = vadd.f32 %v2876, 1.0
  %v3033 = vadd.f32 %v2878, 1.0
  %v3034 = vadd.f32 %v2880, 1.0
  %v3035 = vadd.f32 %v2882, 1.0
  %v3036 = vadd.f32 %v2884, 1.0
  %v3037 = vadd.f32 %v2886, 1.0
  %v3038 = vadd.f32 %v2888, 1.0
  %v3039 = vadd.f32 %v2890, 1.0
  %v3040 = vadd.f32 %v2892, 1.0
  %v3041 = vadd.f32 %v2894, 1.0
  %v3042 = vadd.f32 %v2896, 1.0
  %v3043 = vadd.f32 %v2898, 1.0
  %v3044 = vadd.f32 %v2900, 1.0
  %v3045 = vadd.f32 %v2902, 1.0
  %v3046 = vadd.f32 %v2904, 1.0
  %v3047 = vadd.f32 %v2906, 1.0
  %v3048 = vadd.f32 %v2908, 1.0
  %v3049 = vadd.f32 %v2910, 1.0
  %v3050 = vadd.f32 %v2912, 1.0
  %v3051 = vadd.f32 %v2914, 1.0
  %v3052 = vadd.f32 %v2916, 1.0
  %v3053 = vadd.f32 %v2918, 1.0
  %v3054 = vadd.f32 %v2920, 1.0
  %v3055 = vadd.f32 %v2922, 1.0
  %v3056 = vadd.f32 %v2924, 1.0
  %v3057 = vadd.f32 %v2926, 1.0
  %v3058 = vadd.f32 %v2928, 1.0
  %v3059 = vadd.f32 %v2930, 1.0
  %v3060 = vadd.f32 %v2932, 1.0
  %v3061 = vrcp.pop %v2933
  %v3062 = vmul.f32 1.0, %v3061
  %v3063 = vrcp.pop %v2934
  %v3064 = vmul.f32 1.0, %v3063
  %v3065 = vrcp.pop %v2935
  %v3066 = vmul.f32 1.0, %v3065
  %v3067 = vrcp.pop %v2936
  %v3068 = vmul.f32 1.0, %v3067
  %v3069 = vrcp.pop %v2937
  %v3070 = vmul.f32 1.0, %v3069
  %v3071 = vrcp.pop %v2938
  %v3072 = vmul.f32 1.0, %v3071
  %v3073 = vrcp.pop %v2939
  %v3074 = vmul.f32 1.0, %v3073
  %v3075 = vrcp.pop %v2940
  %v3076 = vmul.f32 1.0, %v3075
  %v3077 = vrcp.pop %v2941
  %v3078 = vmul.f32 1.0, %v3077
  %v3079 = vrcp.pop %v2942
  %v3080 = vmul.f32 1.0, %v3079
  %v3081 = vrcp.pop %v2943
  %v3082 = vmul.f32 1.0, %v3081
  %v3083 = vrcp.pop %v2944
  %v3084 = vmul.f32 1.0, %v3083
  %v3085 = vrcp.pop %v2945
  %v3086 = vmul.f32 1.0, %v3085
  %v3087 = vrcp.pop %v2946
  %v3088 = vmul.f32 1.0, %v3087
  %v3089 = vrcp.pop %v2947
  %v3090 = vmul.f32 1.0, %v3089
  %v3091 = vrcp.pop %v2948
  %v3092 = vmul.f32 1.0, %v3091
  %v3093 = vrcp.pop %v2949
  %v3094 = vmul.f32 1.0, %v3093
  %v3095 = vrcp.pop %v2950
  %v3096 = vmul.f32 1.0, %v3095
  %v3097 = vrcp.pop %v2951
  %v3098 = vmul.f32 1.0, %v3097
  %v3099 = vrcp.pop %v2952
  %v3100 = vmul.f32 1.0, %v3099
  %v3101 = vrcp.pop %v2953
  %v3102 = vmul.f32 1.0, %v3101
  %v3103 = vrcp.pop %v2954
  %v3104 = vmul.f32 1.0, %v3103
  %v3105 = vrcp.pop %v2955
  %v3106 = vmul.f32 1.0, %v3105
  %v3107 = vrcp.pop %v2956
  %v3108 = vmul.f32 1.0, %v3107
  %v3109 = vrcp.pop %v2957
  %v3110 = vmul.f32 1.0, %v3109
  %v3111 = vrcp.pop %v2958
  %v3112 = vmul.f32 1.0, %v3111
  %v3113 = vrcp.pop %v2959
  %v3114 = vmul.f32 1.0, %v3113
  %v3115 = vrcp.pop %v2960
  %v3116 = vmul.f32 1.0, %v3115
  %v3117 = vrcp.pop %v2961
  %v3118 = vmul.f32 1.0, %v3117
  %v3119 = vrcp.pop %v2962
  %v3120 = vmul.f32 1.0, %v3119
  %v3121 = vrcp.pop %v2963
  %v3122 = vmul.f32 1.0, %v3121
  %v3123 = vrcp.pop %v2964
  %v3124 = vmul.f32 1.0, %v3123
  %v3125 = vrcp.pop %v2965
  %v3126 = vmul.f32 1.0, %v3125
  %v3127 = vrcp.pop %v2966
  %v3128 = vmul.f32 1.0, %v3127
  %v3129 = vrcp.pop %v2967
  %v3130 = vmul.f32 1.0, %v3129
  %v3131 = vrcp.pop %v2968
  %v3132 = vmul.f32 1.0, %v3131
  %v3133 = vrcp.pop %v2969
  %v3134 = vmul.f32 1.0, %v3133
  %v3135 = vrcp.pop %v2970
  %v3136 = vmul.f32 1.0, %v3135
  %v3137 = vrcp.pop %v2971
  %v3138 = vmul.f32 1.0, %v3137
  %v3139 = vrcp.pop %v2972
  %v3140 = vmul.f32 1.0, %v3139
  %v3141 = vrcp.pop %v2973
  %v3142 = vmul.f32 1.0, %v3141
  %v3143 = vrcp.pop %v2974
  %v3144 = vmul.f32 1.0, %v3143
  %v3145 = vrcp.pop %v2975
  %v3146 = vmul.f32 1.0, %v3145
  %v3147 = vrcp.pop %v2976
  %v3148 = vmul.f32 1.0, %v3147
  %v3149 = vrcp.pop %v2977
  %v3150 = vmul.f32 1.0, %v3149
  %v3151 = vrcp.pop %v2978
  %v3152 = vmul.f32 1.0, %v3151
  %v3153 = vrcp.pop %v2979
  %v3154 = vmul.f32 1.0, %v3153
  %v3155 = vrcp.pop %v2980
  %v3156 = vmul.f32 1.0, %v3155
  %v3157 = vrcp.pop %v2981
  %v3158 = vmul.f32 1.0, %v3157
  %v3159 = vrcp.pop %v2982
  %v3160 = vmul.f32 1.0, %v3159
  %v3161 = vrcp.pop %v2983
  %v3162 = vmul.f32 1.0, %v3161
  %v3163 = vrcp.pop %v2984
  %v3164 = vmul.f32 1.0, %v3163
  %v3165 = vrcp.pop %v2985
  %v3166 = vmul.f32 1.0, %v3165
  %v3167 = vrcp.pop %v2986
  %v3168 = vmul.f32 1.0, %v3167
  %v3169 = vrcp.pop %v2987
  %v3170 = vmul.f32 1.0, %v3169
  %v3171 = vrcp.pop %v2988
  %v3172 = vmul.f32 1.0, %v3171
  %v3173 = vrcp.pop %v2989
  %v3174 = vmul.f32 1.0, %v3173
  %v3175 = vrcp.pop %v2990
  %v3176 = vmul.f32 1.0, %v3175
  %v3177 = vrcp.pop %v2991
  %v3178 = vmul.f32 1.0, %v3177
  %v3179 = vrcp.pop %v2992
  %v3180 = vmul.f32 1.0, %v3179
  %v3181 = vrcp.pop %v2993
  %v3182 = vmul.f32 1.0, %v3181
  %v3183 = vrcp.pop %v2994
  %v3184 = vmul.f32 1.0, %v3183
  %v3185 = vrcp.pop %v2995
  %v3186 = vmul.f32 1.0, %v3185
  %v3187 = vrcp.pop %v2996
  %v3188 = vmul.f32 1.0, %v3187
  %v3189 = vrcp.pop %v2997
  %v3190 = vmul.f32 1.0, %v3189
  %v3191 = vrcp.pop %v2998
  %v3192 = vmul.f32 1.0, %v3191
  %v3193 = vrcp.pop %v2999
  %v3194 = vmul.f32 1.0, %v3193
  %v3195 = vrcp.pop %v3000
  %v3196 = vmul.f32 1.0, %v3195
  %v3197 = vrcp.pop %v3001
  %v3198 = vmul.f32 1.0, %v3197
  %v3199 = vrcp.pop %v3002
  %v3200 = vmul.f32 1.0, %v3199
  %v3201 = vrcp.pop %v3003
  %v3202 = vmul.f32 1.0, %v3201
  %v3203 = vrcp.pop %v3004
  %v3204 = vmul.f32 1.0, %v3203
  %v3205 = vrcp.pop %v3005
  %v3206 = vmul.f32 1.0, %v3205
  %v3207 = vrcp.pop %v3006
  %v3208 = vmul.f32 1.0, %v3207
  %v3209 = vrcp.pop %v3007
  %v3210 = vmul.f32 1.0, %v3209
  %v3211 = vrcp.pop %v3008
  %v3212 = vmul.f32 1.0, %v3211
  %v3213 = vrcp.pop %v3009
  %v3214 = vmul.f32 1.0, %v3213
  %v3215 = vrcp.pop %v3010
  %v3216 = vmul.f32 1.0, %v3215
  %v3217 = vrcp.pop %v3011
  %v3218 = vmul.f32 1.0, %v3217
  %v3219 = vrcp.pop %v3012
  %v3220 = vmul.f32 1.0, %v3219
  %v3221 = vrcp.pop %v3013
  %v3222 = vmul.f32 1.0, %v3221
  %v3223 = vrcp.pop %v3014
  %v3224 = vmul.f32 1.0, %v3223
  %v3225 = vrcp.pop %v3015
  %v3226 = vmul.f32 1.0, %v3225
  %v3227 = vrcp.pop %v3016
  %v3228 = vmul.f32 1.0, %v3227
  %v3229 = vrcp.pop %v3017
  %v3230 = vmul.f32 1.0, %v3229
  %v3231 = vrcp.pop %v3018
  %v3232 = vmul.f32 1.0, %v3231
  %v3233 = vrcp.pop %v3019
  %v3234 = vmul.f32 1.0, %v3233
  %v3235 = vrcp.pop %v3020
  %v3236 = vmul.f32 1.0, %v3235
  %v3237 = vrcp.pop %v3021
  %v3238 = vmul.f32 1.0, %v3237
  %v3239 = vrcp.pop %v3022
  %v3240 = vmul.f32 1.0, %v3239
  %v3241 = vrcp.pop %v3023
  %v3242 = vmul.f32 1.0, %v3241
  %v3243 = vrcp.pop %v3024
  %v3244 = vmul.f32 1.0, %v3243
  %v3245 = vrcp.pop %v3025
  %v3246 = vmul.f32 1.0, %v3245
  %v3247 = vrcp.pop %v3026
  %v3248 = vmul.f32 1.0, %v3247
  %v3249 = vrcp.pop %v3027
  %v3250 = vmul.f32 1.0, %v3249
  %v3251 = vrcp.pop %v3028
  %v3252 = vmul.f32 1.0, %v3251
  %v3253 = vrcp.pop %v3029
  %v3254 = vmul.f32 1.0, %v3253
  %v3255 = vrcp.pop %v3030
  %v3256 = vmul.f32 1.0, %v3255
  %v3257 = vrcp.pop %v3031
  %v3258 = vmul.f32 1.0, %v3257
  %v3259 = vrcp.pop %v3032
  %v3260 = vmul.f32 1.0, %v3259
  %v3261 = vrcp.pop %v3033
  %v3262 = vmul.f32 1.0, %v3261
  %v3263 = vrcp.pop %v3034
  %v3264 = vmul.f32 1.0, %v3263
  %v3265 = vrcp.pop %v3035
  %v3266 = vmul.f32 1.0, %v3265
  %v3267 = vrcp.pop %v3036
  %v3268 = vmul.f32 1.0, %v3267
  %v3269 = vrcp.pop %v3037
  %v3270 = vmul.f32 1.0, %v3269
  %v3271 = vrcp.pop %v3038
  %v3272 = vmul.f32 1.0, %v3271
  %v3273 = vrcp.pop %v3039
  %v3274 = vmul.f32 1.0, %v3273
  %v3275 = vrcp.pop %v3040
  %v3276 = vmul.f32 1.0, %v3275
  %v3277 = vrcp.pop %v3041
  %v3278 = vmul.f32 1.0, %v3277
  %v3279 = vrcp.pop %v3042
  %v3280 = vmul.f32 1.0, %v3279
  %v3281 = vrcp.pop %v3043
  %v3282 = vmul.f32 1.0, %v3281
  %v3283 = vrcp.pop %v3044
  %v3284 = vmul.f32 1.0, %v3283
  %v3285 = vrcp.pop %v3045
  %v3286 = vmul.f32 1.0, %v3285
  %v3287 = vrcp.pop %v3046
  %v3288 = vmul.f32 1.0, %v3287
  %v3289 = vrcp.pop %v3047
  %v3290 = vmul.f32 1.0, %v3289
  %v3291 = vrcp.pop %v3048
  %v3292 = vmul.f32 1.0, %v3291
  %v3293 = vrcp.pop %v3049
  %v3294 = vmul.f32 1.0, %v3293
  %v3295 = vrcp.pop %v3050
  %v3296 = vmul.f32 1.0, %v3295
  %v3297 = vrcp.pop %v3051
  %v3298 = vmul.f32 1.0, %v3297
  %v3299 = vrcp.pop %v3052
  %v3300 = vmul.f32 1.0, %v3299
  %v3301 = vrcp.pop %v3053
  %v3302 = vmul.f32 1.0, %v3301
  %v3303 = vrcp.pop %v3054
  %v3304 = vmul.f32 1.0, %v3303
  %v3305 = vrcp.pop %v3055
  %v3306 = vmul.f32 1.0, %v3305
  %v3307 = vrcp.pop %v3056
  %v3308 = vmul.f32 1.0, %v3307
  %v3309 = vrcp.pop %v3057
  %v3310 = vmul.f32 1.0, %v3309
  %v3311 = vrcp.pop %v3058
  %v3312 = vmul.f32 1.0, %v3311
  %v3313 = vrcp.pop %v3059
  %v3314 = vmul.f32 1.0, %v3313
  %v3315 = vrcp.pop %v3060
  %v3316 = vmul.f32 1.0, %v3315
  %v3317 = vpack.c.bf16 %v3064, %v3062
  %v3318 = vpack.c.bf16 %v3068, %v3066
  %v3319 = vpack.c.bf16 %v3072, %v3070
  %v3320 = vpack.c.bf16 %v3076, %v3074
  %v3321 = vpack.c.bf16 %v3080, %v3078
  %v3322 = vpack.c.bf16 %v3084, %v3082
  %v3323 = vpack.c.bf16 %v3088, %v3086
  %v3324 = vpack.c.bf16 %v3092, %v3090
  %v3325 = vpack.c.bf16 %v3096, %v3094
  %v3326 = vpack.c.bf16 %v3100, %v3098
  %v3327 = vpack.c.bf16 %v3104, %v3102
  %v3328 = vpack.c.bf16 %v3108, %v3106
  %v3329 = vpack.c.bf16 %v3112, %v3110
  %v3330 = vpack.c.bf16 %v3116, %v3114
  %v3331 = vpack.c.bf16 %v3120, %v3118
  %v3332 = vpack.c.bf16 %v3124, %v3122
  %v3333 = vpack.c.bf16 %v3128, %v3126
  %v3334 = vpack.c.bf16 %v3132, %v3130
  %v3335 = vpack.c.bf16 %v3136, %v3134
  %v3336 = vpack.c.bf16 %v3140, %v3138
  %v3337 = vpack.c.bf16 %v3144, %v3142
  %v3338 = vpack.c.bf16 %v3148, %v3146
  %v3339 = vpack.c.bf16 %v3152, %v3150
  %v3340 = vpack.c.bf16 %v3156, %v3154
  %v3341 = vpack.c.bf16 %v3160, %v3158
  %v3342 = vpack.c.bf16 %v3164, %v3162
  %v3343 = vpack.c.bf16 %v3168, %v3166
  %v3344 = vpack.c.bf16 %v3172, %v3170
  %v3345 = vpack.c.bf16 %v3176, %v3174
  %v3346 = vpack.c.bf16 %v3180, %v3178
  %v3347 = vpack.c.bf16 %v3184, %v3182
  %v3348 = vpack.c.bf16 %v3188, %v3186
  %v3349 = vpack.c.bf16 %v3192, %v3190
  %v3350 = vpack.c.bf16 %v3196, %v3194
  %v3351 = vpack.c.bf16 %v3200, %v3198
  %v3352 = vpack.c.bf16 %v3204, %v3202
  %v3353 = vpack.c.bf16 %v3208, %v3206
  %v3354 = vpack.c.bf16 %v3212, %v3210
  %v3355 = vpack.c.bf16 %v3216, %v3214
  %v3356 = vpack.c.bf16 %v3220, %v3218
  %v3357 = vpack.c.bf16 %v3224, %v3222
  %v3358 = vpack.c.bf16 %v3228, %v3226
  %v3359 = vpack.c.bf16 %v3232, %v3230
  %v3360 = vpack.c.bf16 %v3236, %v3234
  %v3361 = vpack.c.bf16 %v3240, %v3238
  %v3362 = vpack.c.bf16 %v3244, %v3242
  %v3363 = vpack.c.bf16 %v3248, %v3246
  %v3364 = vpack.c.bf16 %v3252, %v3250
  %v3365 = vpack.c.bf16 %v3256, %v3254
  %v3366 = vpack.c.bf16 %v3260, %v3258
  %v3367 = vpack.c.bf16 %v3264, %v3262
  %v3368 = vpack.c.bf16 %v3268, %v3266
  %v3369 = vpack.c.bf16 %v3272, %v3270
  %v3370 = vpack.c.bf16 %v3276, %v3274
  %v3371 = vpack.c.bf16 %v3280, %v3278
  %v3372 = vpack.c.bf16 %v3284, %v3282
  %v3373 = vpack.c.bf16 %v3288, %v3286
  %v3374 = vpack.c.bf16 %v3292, %v3290
  %v3375 = vpack.c.bf16 %v3296, %v3294
  %v3376 = vpack.c.bf16 %v3300, %v3298
  %v3377 = vpack.c.bf16 %v3304, %v3302
  %v3378 = vpack.c.bf16 %v3308, %v3306
  %v3379 = vpack.c.bf16 %v3312, %v3310
  %v3380 = vpack.c.bf16 %v3316, %v3314
  %v3381 = vld [vmem:[%s6] sm:$0xf]
  %v3382 = vld [vmem:[%s6 + $0x4] sm:$0xf]
  %v3383 = vld [vmem:[%s6 + $0x8] sm:$0xf]
  %v3384 = vld [vmem:[%s6 + $0xc] sm:$0xf]
  %v3385 = vld [vmem:[%s6 + $0x10] sm:$0xf]
  %v3386 = vld [vmem:[%s6 + $0x14] sm:$0xf]
  %v3387 = vld [vmem:[%s6 + $0x18] sm:$0xf]
  %v3388 = vld [vmem:[%s6 + $0x1c] sm:$0xf]
  %v3389 = vld [vmem:[%s7] sm:$0x1]
  %v3391 = vlaneseq
  %v3392 = vshrl.u32 %v3391, 7
  %v3393 = vsub.s32 0, %v3392
  %v3394 = vrot.slane %v3389, %v3393
  %v3404 = vunpack.c.l.b16 %v3381
  %v3405 = vunpack.c.l.b16 %v3382
  %v3406 = vunpack.c.l.b16 %v3383
  %v3407 = vunpack.c.l.b16 %v3384
  %v3408 = vunpack.c.l.b16 %v3385
  %v3409 = vunpack.c.l.b16 %v3386
  %v3410 = vunpack.c.l.b16 %v3387
  %v3411 = vunpack.c.l.b16 %v3388
  %v3412 = vpack.c.b16 %v3405, %v3404
  %v3413 = vpack.c.b16 %v3407, %v3406
  %v3414 = vpack.c.b16 %v3409, %v3408
  %v3415 = vpack.c.b16 %v3411, %v3410
  %vm3420 = vcmask 523264
  %v3422 = vsel %vm3420, %v3317, 0
  %v3425 = vsel %vm3420, %v3318, 0
  %v3428 = vsel %vm3420, %v3319, 0
  %v3431 = vsel %vm3420, %v3320, 0
  %v3434 = vsel %vm3420, %v3321, 0
  %v3437 = vsel %vm3420, %v3322, 0
  %v3440 = vsel %vm3420, %v3323, 0
  %v3443 = vsel %vm3420, %v3324, 0
  %v3446 = vsel %vm3420, %v3325, 0
  %v3449 = vsel %vm3420, %v3326, 0
  %v3452 = vsel %vm3420, %v3327, 0
  %v3455 = vsel %vm3420, %v3328, 0
  %v3458 = vsel %vm3420, %v3329, 0
  %v3461 = vsel %vm3420, %v3330, 0
  %v3464 = vsel %vm3420, %v3331, 0
  %v3467 = vsel %vm3420, %v3332, 0
  %v3470 = vsel %vm3420, %v3333, 0
  %v3473 = vsel %vm3420, %v3334, 0
  %v3476 = vsel %vm3420, %v3335, 0
  %v3479 = vsel %vm3420, %v3336, 0
  %v3482 = vsel %vm3420, %v3337, 0
  %v3485 = vsel %vm3420, %v3338, 0
  %v3488 = vsel %vm3420, %v3339, 0
  %v3491 = vsel %vm3420, %v3340, 0
  %v3494 = vsel %vm3420, %v3341, 0
  %v3497 = vsel %vm3420, %v3342, 0
  %v3500 = vsel %vm3420, %v3343, 0
  %v3503 = vsel %vm3420, %v3344, 0
  %v3506 = vsel %vm3420, %v3345, 0
  %v3509 = vsel %vm3420, %v3346, 0
  %v3512 = vsel %vm3420, %v3347, 0
  %v3515 = vsel %vm3420, %v3348, 0
  %v3518 = vsel %vm3420, %v3349, 0
  %v3521 = vsel %vm3420, %v3350, 0
  %v3524 = vsel %vm3420, %v3351, 0
  %v3527 = vsel %vm3420, %v3352, 0
  %v3530 = vsel %vm3420, %v3353, 0
  %v3533 = vsel %vm3420, %v3354, 0
  %v3536 = vsel %vm3420, %v3355, 0
  %v3539 = vsel %vm3420, %v3356, 0
  %v3542 = vsel %vm3420, %v3357, 0
  %v3545 = vsel %vm3420, %v3358, 0
  %v3548 = vsel %vm3420, %v3359, 0
  %v3551 = vsel %vm3420, %v3360, 0
  %v3554 = vsel %vm3420, %v3361, 0
  %v3557 = vsel %vm3420, %v3362, 0
  %v3560 = vsel %vm3420, %v3363, 0
  %v3563 = vsel %vm3420, %v3364, 0
  %v3566 = vsel %vm3420, %v3365, 0
  %v3569 = vsel %vm3420, %v3366, 0
  %v3572 = vsel %vm3420, %v3367, 0
  %v3575 = vsel %vm3420, %v3368, 0
  %v3578 = vsel %vm3420, %v3369, 0
  %v3581 = vsel %vm3420, %v3370, 0
  %v3584 = vsel %vm3420, %v3371, 0
  %v3587 = vsel %vm3420, %v3372, 0
  %v3590 = vsel %vm3420, %v3373, 0
  %v3593 = vsel %vm3420, %v3374, 0
  %v3596 = vsel %vm3420, %v3375, 0
  %v3599 = vsel %vm3420, %v3376, 0
  %v3602 = vsel %vm3420, %v3377, 0
  %v3605 = vsel %vm3420, %v3378, 0
  %v3608 = vsel %vm3420, %v3379, 0
  %v3611 = vsel %vm3420, %v3380, 0
  %3613 = vmatprep.subr.bf16.mxu0 0
  %3614 = vmatpush1.bf16.msra.mxu0 %v3412
  %3615 = vmatprep.subr.bf16.mxu0 0
  %3616 = vmatpush1.bf16.msra.mxu0 %v3413
  %3617 = vmatprep.subr.bf16.mxu0 0
  %3618 = vmatpush1.bf16.msra.mxu0 %v3414
  %3619 = vmatprep.subr.bf16.mxu0 0
  %3620 = vmatpush1.bf16.msra.mxu0 %v3415
  %3621 = vmatprep.subr.bf16.mxu0 0
  %3622 = vmatpush1.bf16.msra.mxu0 0
  %3623 = vmatprep.subr.bf16.mxu0 0
  %3624 = vmatpush1.bf16.msra.mxu0 0
  %3625 = vmatprep.subr.bf16.mxu0 0
  %3626 = vmatpush1.bf16.msra.mxu0 0
  %3627 = vmatprep.subr.bf16.mxu0 0
  %3628 = vmatpush1.bf16.msra.mxu0 0
  %3629 = vmatprep.subr.bf16.mxu0 0
  %3630 = vmatpush1.bf16.msra.mxu0 0
  %3631 = vmatprep.subr.bf16.mxu0 0
  %3632 = vmatpush1.bf16.msra.mxu0 0
  %3633 = vmatprep.subr.bf16.mxu0 0
  %3634 = vmatpush1.bf16.msra.mxu0 0
  %3635 = vmatprep.subr.bf16.mxu0 0
  %3636 = vmatpush1.bf16.msra.mxu0 0
  %3637 = vmatprep.subr.bf16.mxu0 0
  %3638 = vmatpush1.bf16.msra.mxu0 0
  %3639 = vmatprep.subr.bf16.mxu0 0
  %3640 = vmatpush1.bf16.msra.mxu0 0
  %3641 = vmatprep.subr.bf16.mxu0 0
  %3642 = vmatpush1.bf16.msra.mxu0 0
  %3643 = vmatprep.subr.bf16.mxu0 0
  %3644 = vmatpush1.bf16.msra.mxu0 0
  %3645 = vmatprep.mubr.bf16.mxu0 0
  %3646 = vmatmul.mubr.bf16.gmra.mrb[0].mxu0 %v3422
  %v3647 = vpop.f32.mrb[0].mxu0
  %v3648 = vadd.f32 %v3394, %v3647
  %v3649 = vpop.f32.mrb[0].mxu0
  %v3650 = vpop.f32.mrb[0].mxu0
  %v3651 = vadd.f32 %v3394, %v3650
  %v3652 = vpop.f32.mrb[0].mxu0
  %3653 = vmatprep.mubr.bf16.mxu0 0
  %3654 = vmatmul.mubr.bf16.gmra.mrb[0].mxu0 %v3425
  %v3655 = vpop.f32.mrb[0].mxu0
  %v3656 = vadd.f32 %v3394, %v3655
  %v3657 = vpop.f32.mrb[0].mxu0
  %v3658 = vpop.f32.mrb[0].mxu0
  %v3659 = vadd.f32 %v3394, %v3658
  %v3660 = vpop.f32.mrb[0].mxu0
  %3661 = vmatprep.mubr.bf16.mxu0 0
  %3662 = vmatmul.mubr.bf16.gmra.mrb[0].mxu0 %v3428
  %v3663 = vpop.f32.mrb[0].mxu0
  %v3664 = vadd.f32 %v3394, %v3663
  %v3665 = vpop.f32.mrb[0].mxu0
  %v3666 = vpop.f32.mrb[0].mxu0
  %v3667 = vadd.f32 %v3394, %v3666
  %v3668 = vpop.f32.mrb[0].mxu0
  %3669 = vmatprep.mubr.bf16.mxu0 0
  %3670 = vmatmul.mubr.bf16.gmra.mrb[0].mxu0 %v3431
  %v3671 = vpop.f32.mrb[0].mxu0
  %v3672 = vadd.f32 %v3394, %v3671
  %v3673 = vpop.f32.mrb[0].mxu0
  %v3674 = vpop.f32.mrb[0].mxu0
  %v3675 = vadd.f32 %v3394, %v3674
  %v3676 = vpop.f32.mrb[0].mxu0
  %3677 = vmatprep.mubr.bf16.mxu0 0
  %3678 = vmatmul.mubr.bf16.gmra.mrb[0].mxu0 %v3434
  %v3679 = vpop.f32.mrb[0].mxu0
  %v3680 = vadd.f32 %v3394, %v3679
  %v3681 = vpop.f32.mrb[0].mxu0
  %v3682 = vpop.f32.mrb[0].mxu0
  %v3683 = vadd.f32 %v3394, %v3682
  %v3684 = vpop.f32.mrb[0].mxu0
  %3685 = vmatprep.mubr.bf16.mxu0 0
  %3686 = vmatmul.mubr.bf16.gmra.mrb[0].mxu0 %v3437
  %v3687 = vpop.f32.mrb[0].mxu0
  %v3688 = vadd.f32 %v3394, %v3687
  %v3689 = vpop.f32.mrb[0].mxu0
  %v3690 = vpop.f32.mrb[0].mxu0
  %v3691 = vadd.f32 %v3394, %v3690
  %v3692 = vpop.f32.mrb[0].mxu0
  %3693 = vmatprep.mubr.bf16.mxu0 0
  %3694 = vmatmul.mubr.bf16.gmra.mrb[0].mxu0 %v3440
  %v3695 = vpop.f32.mrb[0].mxu0
  %v3696 = vadd.f32 %v3394, %v3695
  %v3697 = vpop.f32.mrb[0].mxu0
  %v3698 = vpop.f32.mrb[0].mxu0
  %v3699 = vadd.f32 %v3394, %v3698
  %v3700 = vpop.f32.mrb[0].mxu0
  %3701 = vmatprep.mubr.bf16.mxu0 0
  %3702 = vmatmul.mubr.bf16.gmra.mrb[0].mxu0 %v3443
  %v3703 = vpop.f32.mrb[0].mxu0
  %v3704 = vadd.f32 %v3394, %v3703
  %v3705 = vpop.f32.mrb[0].mxu0
  %v3706 = vpop.f32.mrb[0].mxu0
  %v3707 = vadd.f32 %v3394, %v3706
  %v3708 = vpop.f32.mrb[0].mxu0
  %3709 = vmatprep.mubr.bf16.mxu0 0
  %3710 = vmatmul.mubr.bf16.gmra.mrb[0].mxu0 %v3446
  %v3711 = vpop.f32.mrb[0].mxu0
  %v3712 = vadd.f32 %v3394, %v3711
  %v3713 = vpop.f32.mrb[0].mxu0
  %v3714 = vpop.f32.mrb[0].mxu0
  %v3715 = vadd.f32 %v3394, %v3714
  %v3716 = vpop.f32.mrb[0].mxu0
  %3717 = vmatprep.mubr.bf16.mxu0 0
  %3718 = vmatmul.mubr.bf16.gmra.mrb[0].mxu0 %v3449
  %v3719 = vpop.f32.mrb[0].mxu0
  %v3720 = vadd.f32 %v3394, %v3719
  %v3721 = vpop.f32.mrb[0].mxu0
  %v3722 = vpop.f32.mrb[0].mxu0
  %v3723 = vadd.f32 %v3394, %v3722
  %v3724 = vpop.f32.mrb[0].mxu0
  %3725 = vmatprep.mubr.bf16.mxu0 0
  %3726 = vmatmul.mubr.bf16.gmra.mrb[0].mxu0 %v3452
  %v3727 = vpop.f32.mrb[0].mxu0
  %v3728 = vadd.f32 %v3394, %v3727
  %v3729 = vpop.f32.mrb[0].mxu0
  %v3730 = vpop.f32.mrb[0].mxu0
  %v3731 = vadd.f32 %v3394, %v3730
  %v3732 = vpop.f32.mrb[0].mxu0
  %3733 = vmatprep.mubr.bf16.mxu0 0
  %3734 = vmatmul.mubr.bf16.gmra.mrb[0].mxu0 %v3455
  %v3735 = vpop.f32.mrb[0].mxu0
  %v3736 = vadd.f32 %v3394, %v3735
  %v3737 = vpop.f32.mrb[0].mxu0
  %v3738 = vpop.f32.mrb[0].mxu0
  %v3739 = vadd.f32 %v3394, %v3738
  %v3740 = vpop.f32.mrb[0].mxu0
  %3741 = vmatprep.mubr.bf16.mxu0 0
  %3742 = vmatmul.mubr.bf16.gmra.mrb[0].mxu0 %v3458
  %v3743 = vpop.f32.mrb[0].mxu0
  %v3744 = vadd.f32 %v3394, %v3743
  %v3745 = vpop.f32.mrb[0].mxu0
  %v3746 = vpop.f32.mrb[0].mxu0
  %v3747 = vadd.f32 %v3394, %v3746
  %v3748 = vpop.f32.mrb[0].mxu0
  %3749 = vmatprep.mubr.bf16.mxu0 0
  %3750 = vmatmul.mubr.bf16.gmra.mrb[0].mxu0 %v3461
  %v3751 = vpop.f32.mrb[0].mxu0
  %v3752 = vadd.f32 %v3394, %v3751
  %v3753 = vpop.f32.mrb[0].mxu0
  %v3754 = vpop.f32.mrb[0].mxu0
  %v3755 = vadd.f32 %v3394, %v3754
  %v3756 = vpop.f32.mrb[0].mxu0
  %3757 = vmatprep.mubr.bf16.mxu0 0
  %3758 = vmatmul.mubr.bf16.gmra.mrb[0].mxu0 %v3464
  %v3759 = vpop.f32.mrb[0].mxu0
  %v3760 = vadd.f32 %v3394, %v3759
  %v3761 = vpop.f32.mrb[0].mxu0
  %v3762 = vpop.f32.mrb[0].mxu0
  %v3763 = vadd.f32 %v3394, %v3762
  %v3764 = vpop.f32.mrb[0].mxu0
  %3765 = vmatprep.mubr.bf16.mxu0 0
  %3766 = vmatmul.mubr.bf16.gmra.mrb[0].mxu0 %v3467
  %v3767 = vpop.f32.mrb[0].mxu0
  %v3768 = vadd.f32 %v3394, %v3767
  %v3769 = vpop.f32.mrb[0].mxu0
  %v3770 = vpop.f32.mrb[0].mxu0
  %v3771 = vadd.f32 %v3394, %v3770
  %v3772 = vpop.f32.mrb[0].mxu0
  %3773 = vmatprep.mubr.bf16.mxu0 0
  %3774 = vmatmul.mubr.bf16.gmra.mrb[0].mxu0 %v3470
  %v3775 = vpop.f32.mrb[0].mxu0
  %v3776 = vadd.f32 %v3394, %v3775
  %v3777 = vpop.f32.mrb[0].mxu0
  %v3778 = vpop.f32.mrb[0].mxu0
  %v3779 = vadd.f32 %v3394, %v3778
  %v3780 = vpop.f32.mrb[0].mxu0
  %3781 = vmatprep.mubr.bf16.mxu0 0
  %3782 = vmatmul.mubr.bf16.gmra.mrb[0].mxu0 %v3473
  %v3783 = vpop.f32.mrb[0].mxu0
  %v3784 = vadd.f32 %v3394, %v3783
  %v3785 = vpop.f32.mrb[0].mxu0
  %v3786 = vpop.f32.mrb[0].mxu0
  %v3787 = vadd.f32 %v3394, %v3786
  %v3788 = vpop.f32.mrb[0].mxu0
  %3789 = vmatprep.mubr.bf16.mxu0 0
  %3790 = vmatmul.mubr.bf16.gmra.mrb[0].mxu0 %v3476
  %v3791 = vpop.f32.mrb[0].mxu0
  %v3792 = vadd.f32 %v3394, %v3791
  %v3793 = vpop.f32.mrb[0].mxu0
  %v3794 = vpop.f32.mrb[0].mxu0
  %v3795 = vadd.f32 %v3394, %v3794
  %v3796 = vpop.f32.mrb[0].mxu0
  %3797 = vmatprep.mubr.bf16.mxu0 0
  %3798 = vmatmul.mubr.bf16.gmra.mrb[0].mxu0 %v3479
  %v3799 = vpop.f32.mrb[0].mxu0
  %v3800 = vadd.f32 %v3394, %v3799
  %v3801 = vpop.f32.mrb[0].mxu0
  %v3802 = vpop.f32.mrb[0].mxu0
  %v3803 = vadd.f32 %v3394, %v3802
  %v3804 = vpop.f32.mrb[0].mxu0
  %3805 = vmatprep.mubr.bf16.mxu0 0
  %3806 = vmatmul.mubr.bf16.gmra.mrb[0].mxu0 %v3482
  %v3807 = vpop.f32.mrb[0].mxu0
  %v3808 = vadd.f32 %v3394, %v3807
  %v3809 = vpop.f32.mrb[0].mxu0
  %v3810 = vpop.f32.mrb[0].mxu0
  %v3811 = vadd.f32 %v3394, %v3810
  %v3812 = vpop.f32.mrb[0].mxu0
  %3813 = vmatprep.mubr.bf16.mxu0 0
  %3814 = vmatmul.mubr.bf16.gmra.mrb[0].mxu0 %v3485
  %v3815 = vpop.f32.mrb[0].mxu0
  %v3816 = vadd.f32 %v3394, %v3815
  %v3817 = vpop.f32.mrb[0].mxu0
  %v3818 = vpop.f32.mrb[0].mxu0
  %v3819 = vadd.f32 %v3394, %v3818
  %v3820 = vpop.f32.mrb[0].mxu0
  %3821 = vmatprep.mubr.bf16.mxu0 0
  %3822 = vmatmul.mubr.bf16.gmra.mrb[0].mxu0 %v3488
  %v3823 = vpop.f32.mrb[0].mxu0
  %v3824 = vadd.f32 %v3394, %v3823
  %v3825 = vpop.f32.mrb[0].mxu0
  %v3826 = vpop.f32.mrb[0].mxu0
  %v3827 = vadd.f32 %v3394, %v3826
  %v3828 = vpop.f32.mrb[0].mxu0
  %3829 = vmatprep.mubr.bf16.mxu0 0
  %3830 = vmatmul.mubr.bf16.gmra.mrb[0].mxu0 %v3491
  %v3831 = vpop.f32.mrb[0].mxu0
  %v3832 = vadd.f32 %v3394, %v3831
  %v3833 = vpop.f32.mrb[0].mxu0
  %v3834 = vpop.f32.mrb[0].mxu0
  %v3835 = vadd.f32 %v3394, %v3834
  %v3836 = vpop.f32.mrb[0].mxu0
  %3837 = vmatprep.mubr.bf16.mxu0 0
  %3838 = vmatmul.mubr.bf16.gmra.mrb[0].mxu0 %v3494
  %v3839 = vpop.f32.mrb[0].mxu0
  %v3840 = vadd.f32 %v3394, %v3839
  %v3841 = vpop.f32.mrb[0].mxu0
  %v3842 = vpop.f32.mrb[0].mxu0
  %v3843 = vadd.f32 %v3394, %v3842
  %v3844 = vpop.f32.mrb[0].mxu0
  %3845 = vmatprep.mubr.bf16.mxu0 0
  %3846 = vmatmul.mubr.bf16.gmra.mrb[0].mxu0 %v3497
  %v3847 = vpop.f32.mrb[0].mxu0
  %v3848 = vadd.f32 %v3394, %v3847
  %v3849 = vpop.f32.mrb[0].mxu0
  %v3850 = vpop.f32.mrb[0].mxu0
  %v3851 = vadd.f32 %v3394, %v3850
  %v3852 = vpop.f32.mrb[0].mxu0
  %3853 = vmatprep.mubr.bf16.mxu0 0
  %3854 = vmatmul.mubr.bf16.gmra.mrb[0].mxu0 %v3500
  %v3855 = vpop.f32.mrb[0].mxu0
  %v3856 = vadd.f32 %v3394, %v3855
  %v3857 = vpop.f32.mrb[0].mxu0
  %v3858 = vpop.f32.mrb[0].mxu0
  %v3859 = vadd.f32 %v3394, %v3858
  %v3860 = vpop.f32.mrb[0].mxu0
  %3861 = vmatprep.mubr.bf16.mxu0 0
  %3862 = vmatmul.mubr.bf16.gmra.mrb[0].mxu0 %v3503
  %v3863 = vpop.f32.mrb[0].mxu0
  %v3864 = vadd.f32 %v3394, %v3863
  %v3865 = vpop.f32.mrb[0].mxu0
  %v3866 = vpop.f32.mrb[0].mxu0
  %v3867 = vadd.f32 %v3394, %v3866
  %v3868 = vpop.f32.mrb[0].mxu0
  %3869 = vmatprep.mubr.bf16.mxu0 0
  %3870 = vmatmul.mubr.bf16.gmra.mrb[0].mxu0 %v3506
  %v3871 = vpop.f32.mrb[0].mxu0
  %v3872 = vadd.f32 %v3394, %v3871
  %v3873 = vpop.f32.mrb[0].mxu0
  %v3874 = vpop.f32.mrb[0].mxu0
  %v3875 = vadd.f32 %v3394, %v3874
  %v3876 = vpop.f32.mrb[0].mxu0
  %3877 = vmatprep.mubr.bf16.mxu0 0
  %3878 = vmatmul.mubr.bf16.gmra.mrb[0].mxu0 %v3509
  %v3879 = vpop.f32.mrb[0].mxu0
  %v3880 = vadd.f32 %v3394, %v3879
  %v3881 = vpop.f32.mrb[0].mxu0
  %v3882 = vpop.f32.mrb[0].mxu0
  %v3883 = vadd.f32 %v3394, %v3882
  %v3884 = vpop.f32.mrb[0].mxu0
  %3885 = vmatprep.mubr.bf16.mxu0 0
  %3886 = vmatmul.mubr.bf16.gmra.mrb[0].mxu0 %v3512
  %v3887 = vpop.f32.mrb[0].mxu0
  %v3888 = vadd.f32 %v3394, %v3887
  %v3889 = vpop.f32.mrb[0].mxu0
  %v3890 = vpop.f32.mrb[0].mxu0
  %v3891 = vadd.f32 %v3394, %v3890
  %v3892 = vpop.f32.mrb[0].mxu0
  %3893 = vmatprep.mubr.bf16.mxu0 0
  %3894 = vmatmul.mubr.bf16.gmra.mrb[0].mxu0 %v3515
  %v3895 = vpop.f32.mrb[0].mxu0
  %v3896 = vadd.f32 %v3394, %v3895
  %v3897 = vpop.f32.mrb[0].mxu0
  %v3898 = vpop.f32.mrb[0].mxu0
  %v3899 = vadd.f32 %v3394, %v3898
  %v3900 = vpop.f32.mrb[0].mxu0
  %3901 = vmatprep.mubr.bf16.mxu0 0
  %3902 = vmatmul.mubr.bf16.gmra.mrb[0].mxu0 %v3518
  %v3903 = vpop.f32.mrb[0].mxu0
  %v3904 = vadd.f32 %v3394, %v3903
  %v3905 = vpop.f32.mrb[0].mxu0
  %v3906 = vpop.f32.mrb[0].mxu0
  %v3907 = vadd.f32 %v3394, %v3906
  %v3908 = vpop.f32.mrb[0].mxu0
  %3909 = vmatprep.mubr.bf16.mxu0 0
  %3910 = vmatmul.mubr.bf16.gmra.mrb[0].mxu0 %v3521
  %v3911 = vpop.f32.mrb[0].mxu0
  %v3912 = vadd.f32 %v3394, %v3911
  %v3913 = vpop.f32.mrb[0].mxu0
  %v3914 = vpop.f32.mrb[0].mxu0
  %v3915 = vadd.f32 %v3394, %v3914
  %v3916 = vpop.f32.mrb[0].mxu0
  %3917 = vmatprep.mubr.bf16.mxu0 0
  %3918 = vmatmul.mubr.bf16.gmra.mrb[0].mxu0 %v3524
  %v3919 = vpop.f32.mrb[0].mxu0
  %v3920 = vadd.f32 %v3394, %v3919
  %v3921 = vpop.f32.mrb[0].mxu0
  %v3922 = vpop.f32.mrb[0].mxu0
  %v3923 = vadd.f32 %v3394, %v3922
  %v3924 = vpop.f32.mrb[0].mxu0
  %3925 = vmatprep.mubr.bf16.mxu0 0
  %3926 = vmatmul.mubr.bf16.gmra.mrb[0].mxu0 %v3527
  %v3927 = vpop.f32.mrb[0].mxu0
  %v3928 = vadd.f32 %v3394, %v3927
  %v3929 = vpop.f32.mrb[0].mxu0
  %v3930 = vpop.f32.mrb[0].mxu0
  %v3931 = vadd.f32 %v3394, %v3930
  %v3932 = vpop.f32.mrb[0].mxu0
  %3933 = vmatprep.mubr.bf16.mxu0 0
  %3934 = vmatmul.mubr.bf16.gmra.mrb[0].mxu0 %v3530
  %v3935 = vpop.f32.mrb[0].mxu0
  %v3936 = vadd.f32 %v3394, %v3935
  %v3937 = vpop.f32.mrb[0].mxu0
  %v3938 = vpop.f32.mrb[0].mxu0
  %v3939 = vadd.f32 %v3394, %v3938
  %v3940 = vpop.f32.mrb[0].mxu0
  %3941 = vmatprep.mubr.bf16.mxu0 0
  %3942 = vmatmul.mubr.bf16.gmra.mrb[0].mxu0 %v3533
  %v3943 = vpop.f32.mrb[0].mxu0
  %v3944 = vadd.f32 %v3394, %v3943
  %v3945 = vpop.f32.mrb[0].mxu0
  %v3946 = vpop.f32.mrb[0].mxu0
  %v3947 = vadd.f32 %v3394, %v3946
  %v3948 = vpop.f32.mrb[0].mxu0
  %3949 = vmatprep.mubr.bf16.mxu0 0
  %3950 = vmatmul.mubr.bf16.gmra.mrb[0].mxu0 %v3536
  %v3951 = vpop.f32.mrb[0].mxu0
  %v3952 = vadd.f32 %v3394, %v3951
  %v3953 = vpop.f32.mrb[0].mxu0
  %v3954 = vpop.f32.mrb[0].mxu0
  %v3955 = vadd.f32 %v3394, %v3954
  %v3956 = vpop.f32.mrb[0].mxu0
  %3957 = vmatprep.mubr.bf16.mxu0 0
  %3958 = vmatmul.mubr.bf16.gmra.mrb[0].mxu0 %v3539
  %v3959 = vpop.f32.mrb[0].mxu0
  %v3960 = vadd.f32 %v3394, %v3959
  %v3961 = vpop.f32.mrb[0].mxu0
  %v3962 = vpop.f32.mrb[0].mxu0
  %v3963 = vadd.f32 %v3394, %v3962
  %v3964 = vpop.f32.mrb[0].mxu0
  %3965 = vmatprep.mubr.bf16.mxu0 0
  %3966 = vmatmul.mubr.bf16.gmra.mrb[0].mxu0 %v3542
  %v3967 = vpop.f32.mrb[0].mxu0
  %v3968 = vadd.f32 %v3394, %v3967
  %v3969 = vpop.f32.mrb[0].mxu0
  %v3970 = vpop.f32.mrb[0].mxu0
  %v3971 = vadd.f32 %v3394, %v3970
  %v3972 = vpop.f32.mrb[0].mxu0
  %3973 = vmatprep.mubr.bf16.mxu0 0
  %3974 = vmatmul.mubr.bf16.gmra.mrb[0].mxu0 %v3545
  %v3975 = vpop.f32.mrb[0].mxu0
  %v3976 = vadd.f32 %v3394, %v3975
  %v3977 = vpop.f32.mrb[0].mxu0
  %v3978 = vpop.f32.mrb[0].mxu0
  %v3979 = vadd.f32 %v3394, %v3978
  %v3980 = vpop.f32.mrb[0].mxu0
  %3981 = vmatprep.mubr.bf16.mxu0 0
  %3982 = vmatmul.mubr.bf16.gmra.mrb[0].mxu0 %v3548
  %v3983 = vpop.f32.mrb[0].mxu0
  %v3984 = vadd.f32 %v3394, %v3983
  %v3985 = vpop.f32.mrb[0].mxu0
  %v3986 = vpop.f32.mrb[0].mxu0
  %v3987 = vadd.f32 %v3394, %v3986
  %v3988 = vpop.f32.mrb[0].mxu0
  %3989 = vmatprep.mubr.bf16.mxu0 0
  %3990 = vmatmul.mubr.bf16.gmra.mrb[0].mxu0 %v3551
  %v3991 = vpop.f32.mrb[0].mxu0
  %v3992 = vadd.f32 %v3394, %v3991
  %v3993 = vpop.f32.mrb[0].mxu0
  %v3994 = vpop.f32.mrb[0].mxu0
  %v3995 = vadd.f32 %v3394, %v3994
  %v3996 = vpop.f32.mrb[0].mxu0
  %3997 = vmatprep.mubr.bf16.mxu0 0
  %3998 = vmatmul.mubr.bf16.gmra.mrb[0].mxu0 %v3554
  %v3999 = vpop.f32.mrb[0].mxu0
  %v4000 = vadd.f32 %v3394, %v3999
  %v4001 = vpop.f32.mrb[0].mxu0
  %v4002 = vpop.f32.mrb[0].mxu0
  %v4003 = vadd.f32 %v3394, %v4002
  %v4004 = vpop.f32.mrb[0].mxu0
  %4005 = vmatprep.mubr.bf16.mxu0 0
  %4006 = vmatmul.mubr.bf16.gmra.mrb[0].mxu0 %v3557
  %v4007 = vpop.f32.mrb[0].mxu0
  %v4008 = vadd.f32 %v3394, %v4007
  %v4009 = vpop.f32.mrb[0].mxu0
  %v4010 = vpop.f32.mrb[0].mxu0
  %v4011 = vadd.f32 %v3394, %v4010
  %v4012 = vpop.f32.mrb[0].mxu0
  %4013 = vmatprep.mubr.bf16.mxu0 0
  %4014 = vmatmul.mubr.bf16.gmra.mrb[0].mxu0 %v3560
  %v4015 = vpop.f32.mrb[0].mxu0
  %v4016 = vadd.f32 %v3394, %v4015
  %v4017 = vpop.f32.mrb[0].mxu0
  %v4018 = vpop.f32.mrb[0].mxu0
  %v4019 = vadd.f32 %v3394, %v4018
  %v4020 = vpop.f32.mrb[0].mxu0
  %4021 = vmatprep.mubr.bf16.mxu0 0
  %4022 = vmatmul.mubr.bf16.gmra.mrb[0].mxu0 %v3563
  %v4023 = vpop.f32.mrb[0].mxu0
  %v4024 = vadd.f32 %v3394, %v4023
  %v4025 = vpop.f32.mrb[0].mxu0
  %v4026 = vpop.f32.mrb[0].mxu0
  %v4027 = vadd.f32 %v3394, %v4026
  %v4028 = vpop.f32.mrb[0].mxu0
  %4029 = vmatprep.mubr.bf16.mxu0 0
  %4030 = vmatmul.mubr.bf16.gmra.mrb[0].mxu0 %v3566
  %v4031 = vpop.f32.mrb[0].mxu0
  %v4032 = vadd.f32 %v3394, %v4031
  %v4033 = vpop.f32.mrb[0].mxu0
  %v4034 = vpop.f32.mrb[0].mxu0
  %v4035 = vadd.f32 %v3394, %v4034
  %v4036 = vpop.f32.mrb[0].mxu0
  %4037 = vmatprep.mubr.bf16.mxu0 0
  %4038 = vmatmul.mubr.bf16.gmra.mrb[0].mxu0 %v3569
  %v4039 = vpop.f32.mrb[0].mxu0
  %v4040 = vadd.f32 %v3394, %v4039
  %v4041 = vpop.f32.mrb[0].mxu0
  %v4042 = vpop.f32.mrb[0].mxu0
  %v4043 = vadd.f32 %v3394, %v4042
  %v4044 = vpop.f32.mrb[0].mxu0
  %4045 = vmatprep.mubr.bf16.mxu0 0
  %4046 = vmatmul.mubr.bf16.gmra.mrb[0].mxu0 %v3572
  %v4047 = vpop.f32.mrb[0].mxu0
  %v4048 = vadd.f32 %v3394, %v4047
  %v4049 = vpop.f32.mrb[0].mxu0
  %v4050 = vpop.f32.mrb[0].mxu0
  %v4051 = vadd.f32 %v3394, %v4050
  %v4052 = vpop.f32.mrb[0].mxu0
  %4053 = vmatprep.mubr.bf16.mxu0 0
  %4054 = vmatmul.mubr.bf16.gmra.mrb[0].mxu0 %v3575
  %v4055 = vpop.f32.mrb[0].mxu0
  %v4056 = vadd.f32 %v3394, %v4055
  %v4057 = vpop.f32.mrb[0].mxu0
  %v4058 = vpop.f32.mrb[0].mxu0
  %v4059 = vadd.f32 %v3394, %v4058
  %v4060 = vpop.f32.mrb[0].mxu0
  %4061 = vmatprep.mubr.bf16.mxu0 0
  %4062 = vmatmul.mubr.bf16.gmra.mrb[0].mxu0 %v3578
  %v4063 = vpop.f32.mrb[0].mxu0
  %v4064 = vadd.f32 %v3394, %v4063
  %v4065 = vpop.f32.mrb[0].mxu0
  %v4066 = vpop.f32.mrb[0].mxu0
  %v4067 = vadd.f32 %v3394, %v4066
  %v4068 = vpop.f32.mrb[0].mxu0
  %4069 = vmatprep.mubr.bf16.mxu0 0
  %4070 = vmatmul.mubr.bf16.gmra.mrb[0].mxu0 %v3581
  %v4071 = vpop.f32.mrb[0].mxu0
  %v4072 = vadd.f32 %v3394, %v4071
  %v4073 = vpop.f32.mrb[0].mxu0
  %v4074 = vpop.f32.mrb[0].mxu0
  %v4075 = vadd.f32 %v3394, %v4074
  %v4076 = vpop.f32.mrb[0].mxu0
  %4077 = vmatprep.mubr.bf16.mxu0 0
  %4078 = vmatmul.mubr.bf16.gmra.mrb[0].mxu0 %v3584
  %v4079 = vpop.f32.mrb[0].mxu0
  %v4080 = vadd.f32 %v3394, %v4079
  %v4081 = vpop.f32.mrb[0].mxu0
  %v4082 = vpop.f32.mrb[0].mxu0
  %v4083 = vadd.f32 %v3394, %v4082
  %v4084 = vpop.f32.mrb[0].mxu0
  %4085 = vmatprep.mubr.bf16.mxu0 0
  %4086 = vmatmul.mubr.bf16.gmra.mrb[0].mxu0 %v3587
  %v4087 = vpop.f32.mrb[0].mxu0
  %v4088 = vadd.f32 %v3394, %v4087
  %v4089 = vpop.f32.mrb[0].mxu0
  %v4090 = vpop.f32.mrb[0].mxu0
  %v4091 = vadd.f32 %v3394, %v4090
  %v4092 = vpop.f32.mrb[0].mxu0
  %4093 = vmatprep.mubr.bf16.mxu0 0
  %4094 = vmatmul.mubr.bf16.gmra.mrb[0].mxu0 %v3590
  %v4095 = vpop.f32.mrb[0].mxu0
  %v4096 = vadd.f32 %v3394, %v4095
  %v4097 = vpop.f32.mrb[0].mxu0
  %v4098 = vpop.f32.mrb[0].mxu0
  %v4099 = vadd.f32 %v3394, %v4098
  %v4100 = vpop.f32.mrb[0].mxu0
  %4101 = vmatprep.mubr.bf16.mxu0 0
  %4102 = vmatmul.mubr.bf16.gmra.mrb[0].mxu0 %v3593
  %v4103 = vpop.f32.mrb[0].mxu0
  %v4104 = vadd.f32 %v3394, %v4103
  %v4105 = vpop.f32.mrb[0].mxu0
  %v4106 = vpop.f32.mrb[0].mxu0
  %v4107 = vadd.f32 %v3394, %v4106
  %v4108 = vpop.f32.mrb[0].mxu0
  %4109 = vmatprep.mubr.bf16.mxu0 0
  %4110 = vmatmul.mubr.bf16.gmra.mrb[0].mxu0 %v3596
  %v4111 = vpop.f32.mrb[0].mxu0
  %v4112 = vadd.f32 %v3394, %v4111
  %v4113 = vpop.f32.mrb[0].mxu0
  %v4114 = vpop.f32.mrb[0].mxu0
  %v4115 = vadd.f32 %v3394, %v4114
  %v4116 = vpop.f32.mrb[0].mxu0
  %4117 = vmatprep.mubr.bf16.mxu0 0
  %4118 = vmatmul.mubr.bf16.gmra.mrb[0].mxu0 %v3599
  %v4119 = vpop.f32.mrb[0].mxu0
  %v4120 = vadd.f32 %v3394, %v4119
  %v4121 = vpop.f32.mrb[0].mxu0
  %v4122 = vpop.f32.mrb[0].mxu0
  %v4123 = vadd.f32 %v3394, %v4122
  %v4124 = vpop.f32.mrb[0].mxu0
  %4125 = vmatprep.mubr.bf16.mxu0 0
  %4126 = vmatmul.mubr.bf16.gmra.mrb[0].mxu0 %v3602
  %v4127 = vpop.f32.mrb[0].mxu0
  %v4128 = vadd.f32 %v3394, %v4127
  %v4129 = vpop.f32.mrb[0].mxu0
  %v4130 = vpop.f32.mrb[0].mxu0
  %v4131 = vadd.f32 %v3394, %v4130
  %v4132 = vpop.f32.mrb[0].mxu0
  %4133 = vmatprep.mubr.bf16.mxu0 0
  %4134 = vmatmul.mubr.bf16.gmra.mrb[0].mxu0 %v3605
  %v4135 = vpop.f32.mrb[0].mxu0
  %v4136 = vadd.f32 %v3394, %v4135
  %v4137 = vpop.f32.mrb[0].mxu0
  %v4138 = vpop.f32.mrb[0].mxu0
  %v4139 = vadd.f32 %v3394, %v4138
  %v4140 = vpop.f32.mrb[0].mxu0
  %4141 = vmatprep.mubr.bf16.mxu0 0
  %4142 = vmatmul.mubr.bf16.gmra.mrb[0].mxu0 %v3608
  %v4143 = vpop.f32.mrb[0].mxu0
  %v4144 = vadd.f32 %v3394, %v4143
  %v4145 = vpop.f32.mrb[0].mxu0
  %v4146 = vpop.f32.mrb[0].mxu0
  %v4147 = vadd.f32 %v3394, %v4146
  %v4148 = vpop.f32.mrb[0].mxu0
  %4149 = vmatprep.mubr.bf16.mxu0 0
  %4150 = vmatmul.mubr.bf16.gmra.mrb[0].mxu0 %v3611
  %v4151 = vpop.f32.mrb[0].mxu0
  %v4152 = vadd.f32 %v3394, %v4151
  %v4153 = vpop.f32.mrb[0].mxu0
  %v4154 = vpop.f32.mrb[0].mxu0
  %v4155 = vadd.f32 %v3394, %v4154
  %v4156 = vpop.f32.mrb[0].mxu0
  %4157 = vdwg.mxu0
  %v4158 = vld [vmem:[%s2] sm:$0xff]
  %v4159 = vld [vmem:[%s2 + $0x8] sm:$0xff]
  %v4160 = vld [vmem:[%s2 + $0x10] sm:$0xff]
  %v4161 = vld [vmem:[%s2 + $0x18] sm:$0xff]
  %v4162 = vlaneseq
  %v4163 = vshrl.u32 %v4162, 7
  %v4164 = vsub.s32 0, %v4163
  %v4165 = vrot.slane %v4158, %v4164
  %4167 = vbcast.lane.b32.xlu0 %v4165, 256
  %v4168 = vpop.permute.xlu0 %4167
  %s4170 = sor.u32 256, 8
  %4171 = vbcast.lane.b32.xlu0 %v4165, %s4170
  %v4172 = vpop.permute.xlu0 %4171
  %s4174 = sor.u32 256, 16
  %4175 = vbcast.lane.b32.xlu0 %v4165, %s4174
  %v4176 = vpop.permute.xlu0 %4175
  %s4178 = sor.u32 256, 24
  %4179 = vbcast.lane.b32.xlu0 %v4165, %s4178
  %v4180 = vpop.permute.xlu0 %4179
  %v4181 = vlaneseq
  %v4182 = vshrl.u32 %v4181, 7
  %v4183 = vsub.s32 1, %v4182
  %v4184 = vrot.slane %v4158, %v4183
  %4186 = vbcast.lane.b32.xlu0 %v4184, 256
  %v4187 = vpop.permute.xlu0 %4186
  %s4189 = sor.u32 256, 8
  %4190 = vbcast.lane.b32.xlu0 %v4184, %s4189
  %v4191 = vpop.permute.xlu0 %4190
  %s4193 = sor.u32 256, 16
  %4194 = vbcast.lane.b32.xlu0 %v4184, %s4193
  %v4195 = vpop.permute.xlu0 %4194
  %s4197 = sor.u32 256, 24
  %4198 = vbcast.lane.b32.xlu0 %v4184, %s4197
  %v4199 = vpop.permute.xlu0 %4198
  %v4200 = vlaneseq
  %v4201 = vshrl.u32 %v4200, 7
  %v4202 = vsub.s32 2, %v4201
  %v4203 = vrot.slane %v4158, %v4202
  %4205 = vbcast.lane.b32.xlu0 %v4203, 256
  %v4206 = vpop.permute.xlu0 %4205
  %s4208 = sor.u32 256, 8
  %4209 = vbcast.lane.b32.xlu0 %v4203, %s4208
  %v4210 = vpop.permute.xlu0 %4209
  %s4212 = sor.u32 256, 16
  %4213 = vbcast.lane.b32.xlu0 %v4203, %s4212
  %v4214 = vpop.permute.xlu0 %4213
  %s4216 = sor.u32 256, 24
  %4217 = vbcast.lane.b32.xlu0 %v4203, %s4216
  %v4218 = vpop.permute.xlu0 %4217
  %v4219 = vlaneseq
  %v4220 = vshrl.u32 %v4219, 7
  %v4221 = vsub.s32 3, %v4220
  %v4222 = vrot.slane %v4158, %v4221
  %4224 = vbcast.lane.b32.xlu0 %v4222, 256
  %v4225 = vpop.permute.xlu0 %4224
  %s4227 = sor.u32 256, 8
  %4228 = vbcast.lane.b32.xlu0 %v4222, %s4227
  %v4229 = vpop.permute.xlu0 %4228
  %s4231 = sor.u32 256, 16
  %4232 = vbcast.lane.b32.xlu0 %v4222, %s4231
  %v4233 = vpop.permute.xlu0 %4232
  %s4235 = sor.u32 256, 24
  %4236 = vbcast.lane.b32.xlu0 %v4222, %s4235
  %v4237 = vpop.permute.xlu0 %4236
  %v4238 = vlaneseq
  %v4239 = vshrl.u32 %v4238, 7
  %v4240 = vsub.s32 4, %v4239
  %v4241 = vrot.slane %v4158, %v4240
  %4243 = vbcast.lane.b32.xlu0 %v4241, 256
  %v4244 = vpop.permute.xlu0 %4243
  %s4246 = sor.u32 256, 8
  %4247 = vbcast.lane.b32.xlu0 %v4241, %s4246
  %v4248 = vpop.permute.xlu0 %4247
  %s4250 = sor.u32 256, 16
  %4251 = vbcast.lane.b32.xlu0 %v4241, %s4250
  %v4252 = vpop.permute.xlu0 %4251
  %s4254 = sor.u32 256, 24
  %4255 = vbcast.lane.b32.xlu0 %v4241, %s4254
  %v4256 = vpop.permute.xlu0 %4255
  %v4257 = vlaneseq
  %v4258 = vshrl.u32 %v4257, 7
  %v4259 = vsub.s32 5, %v4258
  %v4260 = vrot.slane %v4158, %v4259
  %4262 = vbcast.lane.b32.xlu0 %v4260, 256
  %v4263 = vpop.permute.xlu0 %4262
  %s4265 = sor.u32 256, 8
  %4266 = vbcast.lane.b32.xlu0 %v4260, %s4265
  %v4267 = vpop.permute.xlu0 %4266
  %s4269 = sor.u32 256, 16
  %4270 = vbcast.lane.b32.xlu0 %v4260, %s4269
  %v4271 = vpop.permute.xlu0 %4270
  %s4273 = sor.u32 256, 24
  %4274 = vbcast.lane.b32.xlu0 %v4260, %s4273
  %v4275 = vpop.permute.xlu0 %4274
  %v4276 = vlaneseq
  %v4277 = vshrl.u32 %v4276, 7
  %v4278 = vsub.s32 6, %v4277
  %v4279 = vrot.slane %v4158, %v4278
  %4281 = vbcast.lane.b32.xlu0 %v4279, 256
  %v4282 = vpop.permute.xlu0 %4281
  %s4284 = sor.u32 256, 8
  %4285 = vbcast.lane.b32.xlu0 %v4279, %s4284
  %v4286 = vpop.permute.xlu0 %4285
  %s4288 = sor.u32 256, 16
  %4289 = vbcast.lane.b32.xlu0 %v4279, %s4288
  %v4290 = vpop.permute.xlu0 %4289
  %s4292 = sor.u32 256, 24
  %4293 = vbcast.lane.b32.xlu0 %v4279, %s4292
  %v4294 = vpop.permute.xlu0 %4293
  %v4295 = vlaneseq
  %v4296 = vshrl.u32 %v4295, 7
  %v4297 = vsub.s32 7, %v4296
  %v4298 = vrot.slane %v4158, %v4297
  %4300 = vbcast.lane.b32.xlu0 %v4298, 256
  %v4301 = vpop.permute.xlu0 %4300
  %s4303 = sor.u32 256, 8
  %4304 = vbcast.lane.b32.xlu0 %v4298, %s4303
  %v4305 = vpop.permute.xlu0 %4304
  %s4307 = sor.u32 256, 16
  %4308 = vbcast.lane.b32.xlu0 %v4298, %s4307
  %v4309 = vpop.permute.xlu0 %4308
  %s4311 = sor.u32 256, 24
  %4312 = vbcast.lane.b32.xlu0 %v4298, %s4311
  %v4313 = vpop.permute.xlu0 %4312
  %v4314 = vlaneseq
  %v4315 = vshrl.u32 %v4314, 7
  %v4316 = vsub.s32 0, %v4315
  %v4317 = vrot.slane %v4159, %v4316
  %4319 = vbcast.lane.b32.xlu0 %v4317, 256
  %v4320 = vpop.permute.xlu0 %4319
  %s4322 = sor.u32 256, 8
  %4323 = vbcast.lane.b32.xlu0 %v4317, %s4322
  %v4324 = vpop.permute.xlu0 %4323
  %s4326 = sor.u32 256, 16
  %4327 = vbcast.lane.b32.xlu0 %v4317, %s4326
  %v4328 = vpop.permute.xlu0 %4327
  %s4330 = sor.u32 256, 24
  %4331 = vbcast.lane.b32.xlu0 %v4317, %s4330
  %v4332 = vpop.permute.xlu0 %4331
  %v4333 = vlaneseq
  %v4334 = vshrl.u32 %v4333, 7
  %v4335 = vsub.s32 1, %v4334
  %v4336 = vrot.slane %v4159, %v4335
  %4338 = vbcast.lane.b32.xlu0 %v4336, 256
  %v4339 = vpop.permute.xlu0 %4338
  %s4341 = sor.u32 256, 8
  %4342 = vbcast.lane.b32.xlu0 %v4336, %s4341
  %v4343 = vpop.permute.xlu0 %4342
  %s4345 = sor.u32 256, 16
  %4346 = vbcast.lane.b32.xlu0 %v4336, %s4345
  %v4347 = vpop.permute.xlu0 %4346
  %s4349 = sor.u32 256, 24
  %4350 = vbcast.lane.b32.xlu0 %v4336, %s4349
  %v4351 = vpop.permute.xlu0 %4350
  %v4352 = vlaneseq
  %v4353 = vshrl.u32 %v4352, 7
  %v4354 = vsub.s32 2, %v4353
  %v4355 = vrot.slane %v4159, %v4354
  %4357 = vbcast.lane.b32.xlu0 %v4355, 256
  %v4358 = vpop.permute.xlu0 %4357
  %s4360 = sor.u32 256, 8
  %4361 = vbcast.lane.b32.xlu0 %v4355, %s4360
  %v4362 = vpop.permute.xlu0 %4361
  %s4364 = sor.u32 256, 16
  %4365 = vbcast.lane.b32.xlu0 %v4355, %s4364
  %v4366 = vpop.permute.xlu0 %4365
  %s4368 = sor.u32 256, 24
  %4369 = vbcast.lane.b32.xlu0 %v4355, %s4368
  %v4370 = vpop.permute.xlu0 %4369
  %v4371 = vlaneseq
  %v4372 = vshrl.u32 %v4371, 7
  %v4373 = vsub.s32 3, %v4372
  %v4374 = vrot.slane %v4159, %v4373
  %4376 = vbcast.lane.b32.xlu0 %v4374, 256
  %v4377 = vpop.permute.xlu0 %4376
  %s4379 = sor.u32 256, 8
  %4380 = vbcast.lane.b32.xlu0 %v4374, %s4379
  %v4381 = vpop.permute.xlu0 %4380
  %s4383 = sor.u32 256, 16
  %4384 = vbcast.lane.b32.xlu0 %v4374, %s4383
  %v4385 = vpop.permute.xlu0 %4384
  %s4387 = sor.u32 256, 24
  %4388 = vbcast.lane.b32.xlu0 %v4374, %s4387
  %v4389 = vpop.permute.xlu0 %4388
  %v4390 = vlaneseq
  %v4391 = vshrl.u32 %v4390, 7
  %v4392 = vsub.s32 4, %v4391
  %v4393 = vrot.slane %v4159, %v4392
  %4395 = vbcast.lane.b32.xlu0 %v4393, 256
  %v4396 = vpop.permute.xlu0 %4395
  %s4398 = sor.u32 256, 8
  %4399 = vbcast.lane.b32.xlu0 %v4393, %s4398
  %v4400 = vpop.permute.xlu0 %4399
  %s4402 = sor.u32 256, 16
  %4403 = vbcast.lane.b32.xlu0 %v4393, %s4402
  %v4404 = vpop.permute.xlu0 %4403
  %s4406 = sor.u32 256, 24
  %4407 = vbcast.lane.b32.xlu0 %v4393, %s4406
  %v4408 = vpop.permute.xlu0 %4407
  %v4409 = vlaneseq
  %v4410 = vshrl.u32 %v4409, 7
  %v4411 = vsub.s32 5, %v4410
  %v4412 = vrot.slane %v4159, %v4411
  %4414 = vbcast.lane.b32.xlu0 %v4412, 256
  %v4415 = vpop.permute.xlu0 %4414
  %s4417 = sor.u32 256, 8
  %4418 = vbcast.lane.b32.xlu0 %v4412, %s4417
  %v4419 = vpop.permute.xlu0 %4418
  %s4421 = sor.u32 256, 16
  %4422 = vbcast.lane.b32.xlu0 %v4412, %s4421
  %v4423 = vpop.permute.xlu0 %4422
  %s4425 = sor.u32 256, 24
  %4426 = vbcast.lane.b32.xlu0 %v4412, %s4425
  %v4427 = vpop.permute.xlu0 %4426
  %v4428 = vlaneseq
  %v4429 = vshrl.u32 %v4428, 7
  %v4430 = vsub.s32 6, %v4429
  %v4431 = vrot.slane %v4159, %v4430
  %4433 = vbcast.lane.b32.xlu0 %v4431, 256
  %v4434 = vpop.permute.xlu0 %4433
  %s4436 = sor.u32 256, 8
  %4437 = vbcast.lane.b32.xlu0 %v4431, %s4436
  %v4438 = vpop.permute.xlu0 %4437
  %s4440 = sor.u32 256, 16
  %4441 = vbcast.lane.b32.xlu0 %v4431, %s4440
  %v4442 = vpop.permute.xlu0 %4441
  %s4444 = sor.u32 256, 24
  %4445 = vbcast.lane.b32.xlu0 %v4431, %s4444
  %v4446 = vpop.permute.xlu0 %4445
  %v4447 = vlaneseq
  %v4448 = vshrl.u32 %v4447, 7
  %v4449 = vsub.s32 7, %v4448
  %v4450 = vrot.slane %v4159, %v4449
  %4452 = vbcast.lane.b32.xlu0 %v4450, 256
  %v4453 = vpop.permute.xlu0 %4452
  %s4455 = sor.u32 256, 8
  %4456 = vbcast.lane.b32.xlu0 %v4450, %s4455
  %v4457 = vpop.permute.xlu0 %4456
  %s4459 = sor.u32 256, 16
  %4460 = vbcast.lane.b32.xlu0 %v4450, %s4459
  %v4461 = vpop.permute.xlu0 %4460
  %s4463 = sor.u32 256, 24
  %4464 = vbcast.lane.b32.xlu0 %v4450, %s4463
  %v4465 = vpop.permute.xlu0 %4464
  %v4466 = vlaneseq
  %v4467 = vshrl.u32 %v4466, 7
  %v4468 = vsub.s32 0, %v4467
  %v4469 = vrot.slane %v4160, %v4468
  %4471 = vbcast.lane.b32.xlu0 %v4469, 256
  %v4472 = vpop.permute.xlu0 %4471
  %s4474 = sor.u32 256, 8
  %4475 = vbcast.lane.b32.xlu0 %v4469, %s4474
  %v4476 = vpop.permute.xlu0 %4475
  %s4478 = sor.u32 256, 16
  %4479 = vbcast.lane.b32.xlu0 %v4469, %s4478
  %v4480 = vpop.permute.xlu0 %4479
  %s4482 = sor.u32 256, 24
  %4483 = vbcast.lane.b32.xlu0 %v4469, %s4482
  %v4484 = vpop.permute.xlu0 %4483
  %v4485 = vlaneseq
  %v4486 = vshrl.u32 %v4485, 7
  %v4487 = vsub.s32 1, %v4486
  %v4488 = vrot.slane %v4160, %v4487
  %4490 = vbcast.lane.b32.xlu0 %v4488, 256
  %v4491 = vpop.permute.xlu0 %4490
  %s4493 = sor.u32 256, 8
  %4494 = vbcast.lane.b32.xlu0 %v4488, %s4493
  %v4495 = vpop.permute.xlu0 %4494
  %s4497 = sor.u32 256, 16
  %4498 = vbcast.lane.b32.xlu0 %v4488, %s4497
  %v4499 = vpop.permute.xlu0 %4498
  %s4501 = sor.u32 256, 24
  %4502 = vbcast.lane.b32.xlu0 %v4488, %s4501
  %v4503 = vpop.permute.xlu0 %4502
  %v4504 = vlaneseq
  %v4505 = vshrl.u32 %v4504, 7
  %v4506 = vsub.s32 2, %v4505
  %v4507 = vrot.slane %v4160, %v4506
  %4509 = vbcast.lane.b32.xlu0 %v4507, 256
  %v4510 = vpop.permute.xlu0 %4509
  %s4512 = sor.u32 256, 8
  %4513 = vbcast.lane.b32.xlu0 %v4507, %s4512
  %v4514 = vpop.permute.xlu0 %4513
  %s4516 = sor.u32 256, 16
  %4517 = vbcast.lane.b32.xlu0 %v4507, %s4516
  %v4518 = vpop.permute.xlu0 %4517
  %s4520 = sor.u32 256, 24
  %4521 = vbcast.lane.b32.xlu0 %v4507, %s4520
  %v4522 = vpop.permute.xlu0 %4521
  %v4523 = vlaneseq
  %v4524 = vshrl.u32 %v4523, 7
  %v4525 = vsub.s32 3, %v4524
  %v4526 = vrot.slane %v4160, %v4525
  %4528 = vbcast.lane.b32.xlu0 %v4526, 256
  %v4529 = vpop.permute.xlu0 %4528
  %s4531 = sor.u32 256, 8
  %4532 = vbcast.lane.b32.xlu0 %v4526, %s4531
  %v4533 = vpop.permute.xlu0 %4532
  %s4535 = sor.u32 256, 16
  %4536 = vbcast.lane.b32.xlu0 %v4526, %s4535
  %v4537 = vpop.permute.xlu0 %4536
  %s4539 = sor.u32 256, 24
  %4540 = vbcast.lane.b32.xlu0 %v4526, %s4539
  %v4541 = vpop.permute.xlu0 %4540
  %v4542 = vlaneseq
  %v4543 = vshrl.u32 %v4542, 7
  %v4544 = vsub.s32 4, %v4543
  %v4545 = vrot.slane %v4160, %v4544
  %4547 = vbcast.lane.b32.xlu0 %v4545, 256
  %v4548 = vpop.permute.xlu0 %4547
  %s4550 = sor.u32 256, 8
  %4551 = vbcast.lane.b32.xlu0 %v4545, %s4550
  %v4552 = vpop.permute.xlu0 %4551
  %s4554 = sor.u32 256, 16
  %4555 = vbcast.lane.b32.xlu0 %v4545, %s4554
  %v4556 = vpop.permute.xlu0 %4555
  %s4558 = sor.u32 256, 24
  %4559 = vbcast.lane.b32.xlu0 %v4545, %s4558
  %v4560 = vpop.permute.xlu0 %4559
  %v4561 = vlaneseq
  %v4562 = vshrl.u32 %v4561, 7
  %v4563 = vsub.s32 5, %v4562
  %v4564 = vrot.slane %v4160, %v4563
  %4566 = vbcast.lane.b32.xlu0 %v4564, 256
  %v4567 = vpop.permute.xlu0 %4566
  %s4569 = sor.u32 256, 8
  %4570 = vbcast.lane.b32.xlu0 %v4564, %s4569
  %v4571 = vpop.permute.xlu0 %4570
  %s4573 = sor.u32 256, 16
  %4574 = vbcast.lane.b32.xlu0 %v4564, %s4573
  %v4575 = vpop.permute.xlu0 %4574
  %s4577 = sor.u32 256, 24
  %4578 = vbcast.lane.b32.xlu0 %v4564, %s4577
  %v4579 = vpop.permute.xlu0 %4578
  %v4580 = vlaneseq
  %v4581 = vshrl.u32 %v4580, 7
  %v4582 = vsub.s32 6, %v4581
  %v4583 = vrot.slane %v4160, %v4582
  %4585 = vbcast.lane.b32.xlu0 %v4583, 256
  %v4586 = vpop.permute.xlu0 %4585
  %s4588 = sor.u32 256, 8
  %4589 = vbcast.lane.b32.xlu0 %v4583, %s4588
  %v4590 = vpop.permute.xlu0 %4589
  %s4592 = sor.u32 256, 16
  %4593 = vbcast.lane.b32.xlu0 %v4583, %s4592
  %v4594 = vpop.permute.xlu0 %4593
  %s4596 = sor.u32 256, 24
  %4597 = vbcast.lane.b32.xlu0 %v4583, %s4596
  %v4598 = vpop.permute.xlu0 %4597
  %v4599 = vlaneseq
  %v4600 = vshrl.u32 %v4599, 7
  %v4601 = vsub.s32 7, %v4600
  %v4602 = vrot.slane %v4160, %v4601
  %4604 = vbcast.lane.b32.xlu0 %v4602, 256
  %v4605 = vpop.permute.xlu0 %4604
  %s4607 = sor.u32 256, 8
  %4608 = vbcast.lane.b32.xlu0 %v4602, %s4607
  %v4609 = vpop.permute.xlu0 %4608
  %s4611 = sor.u32 256, 16
  %4612 = vbcast.lane.b32.xlu0 %v4602, %s4611
  %v4613 = vpop.permute.xlu0 %4612
  %s4615 = sor.u32 256, 24
  %4616 = vbcast.lane.b32.xlu0 %v4602, %s4615
  %v4617 = vpop.permute.xlu0 %4616
  %v4618 = vlaneseq
  %v4619 = vshrl.u32 %v4618, 7
  %v4620 = vsub.s32 0, %v4619
  %v4621 = vrot.slane %v4161, %v4620
  %4623 = vbcast.lane.b32.xlu0 %v4621, 256
  %v4624 = vpop.permute.xlu0 %4623
  %s4626 = sor.u32 256, 8
  %4627 = vbcast.lane.b32.xlu0 %v4621, %s4626
  %v4628 = vpop.permute.xlu0 %4627
  %s4630 = sor.u32 256, 16
  %4631 = vbcast.lane.b32.xlu0 %v4621, %s4630
  %v4632 = vpop.permute.xlu0 %4631
  %s4634 = sor.u32 256, 24
  %4635 = vbcast.lane.b32.xlu0 %v4621, %s4634
  %v4636 = vpop.permute.xlu0 %4635
  %v4637 = vlaneseq
  %v4638 = vshrl.u32 %v4637, 7
  %v4639 = vsub.s32 1, %v4638
  %v4640 = vrot.slane %v4161, %v4639
  %4642 = vbcast.lane.b32.xlu0 %v4640, 256
  %v4643 = vpop.permute.xlu0 %4642
  %s4645 = sor.u32 256, 8
  %4646 = vbcast.lane.b32.xlu0 %v4640, %s4645
  %v4647 = vpop.permute.xlu0 %4646
  %s4649 = sor.u32 256, 16
  %4650 = vbcast.lane.b32.xlu0 %v4640, %s4649
  %v4651 = vpop.permute.xlu0 %4650
  %s4653 = sor.u32 256, 24
  %4654 = vbcast.lane.b32.xlu0 %v4640, %s4653
  %v4655 = vpop.permute.xlu0 %4654
  %v4656 = vlaneseq
  %v4657 = vshrl.u32 %v4656, 7
  %v4658 = vsub.s32 2, %v4657
  %v4659 = vrot.slane %v4161, %v4658
  %4661 = vbcast.lane.b32.xlu0 %v4659, 256
  %v4662 = vpop.permute.xlu0 %4661
  %s4664 = sor.u32 256, 8
  %4665 = vbcast.lane.b32.xlu0 %v4659, %s4664
  %v4666 = vpop.permute.xlu0 %4665
  %s4668 = sor.u32 256, 16
  %4669 = vbcast.lane.b32.xlu0 %v4659, %s4668
  %v4670 = vpop.permute.xlu0 %4669
  %s4672 = sor.u32 256, 24
  %4673 = vbcast.lane.b32.xlu0 %v4659, %s4672
  %v4674 = vpop.permute.xlu0 %4673
  %v4675 = vlaneseq
  %v4676 = vshrl.u32 %v4675, 7
  %v4677 = vsub.s32 3, %v4676
  %v4678 = vrot.slane %v4161, %v4677
  %4680 = vbcast.lane.b32.xlu0 %v4678, 256
  %v4681 = vpop.permute.xlu0 %4680
  %s4683 = sor.u32 256, 8
  %4684 = vbcast.lane.b32.xlu0 %v4678, %s4683
  %v4685 = vpop.permute.xlu0 %4684
  %s4687 = sor.u32 256, 16
  %4688 = vbcast.lane.b32.xlu0 %v4678, %s4687
  %v4689 = vpop.permute.xlu0 %4688
  %s4691 = sor.u32 256, 24
  %4692 = vbcast.lane.b32.xlu0 %v4678, %s4691
  %v4693 = vpop.permute.xlu0 %4692
  %v4694 = vlaneseq
  %v4695 = vshrl.u32 %v4694, 7
  %v4696 = vsub.s32 4, %v4695
  %v4697 = vrot.slane %v4161, %v4696
  %4699 = vbcast.lane.b32.xlu0 %v4697, 256
  %v4700 = vpop.permute.xlu0 %4699
  %s4702 = sor.u32 256, 8
  %4703 = vbcast.lane.b32.xlu0 %v4697, %s4702
  %v4704 = vpop.permute.xlu0 %4703
  %s4706 = sor.u32 256, 16
  %4707 = vbcast.lane.b32.xlu0 %v4697, %s4706
  %v4708 = vpop.permute.xlu0 %4707
  %s4710 = sor.u32 256, 24
  %4711 = vbcast.lane.b32.xlu0 %v4697, %s4710
  %v4712 = vpop.permute.xlu0 %4711
  %v4713 = vlaneseq
  %v4714 = vshrl.u32 %v4713, 7
  %v4715 = vsub.s32 5, %v4714
  %v4716 = vrot.slane %v4161, %v4715
  %4718 = vbcast.lane.b32.xlu0 %v4716, 256
  %v4719 = vpop.permute.xlu0 %4718
  %s4721 = sor.u32 256, 8
  %4722 = vbcast.lane.b32.xlu0 %v4716, %s4721
  %v4723 = vpop.permute.xlu0 %4722
  %s4725 = sor.u32 256, 16
  %4726 = vbcast.lane.b32.xlu0 %v4716, %s4725
  %v4727 = vpop.permute.xlu0 %4726
  %s4729 = sor.u32 256, 24
  %4730 = vbcast.lane.b32.xlu0 %v4716, %s4729
  %v4731 = vpop.permute.xlu0 %4730
  %v4732 = vlaneseq
  %v4733 = vshrl.u32 %v4732, 7
  %v4734 = vsub.s32 6, %v4733
  %v4735 = vrot.slane %v4161, %v4734
  %4737 = vbcast.lane.b32.xlu0 %v4735, 256
  %v4738 = vpop.permute.xlu0 %4737
  %s4740 = sor.u32 256, 8
  %4741 = vbcast.lane.b32.xlu0 %v4735, %s4740
  %v4742 = vpop.permute.xlu0 %4741
  %s4744 = sor.u32 256, 16
  %4745 = vbcast.lane.b32.xlu0 %v4735, %s4744
  %v4746 = vpop.permute.xlu0 %4745
  %s4748 = sor.u32 256, 24
  %4749 = vbcast.lane.b32.xlu0 %v4735, %s4748
  %v4750 = vpop.permute.xlu0 %4749
  %v4751 = vlaneseq
  %v4752 = vshrl.u32 %v4751, 7
  %v4753 = vsub.s32 7, %v4752
  %v4754 = vrot.slane %v4161, %v4753
  %4756 = vbcast.lane.b32.xlu0 %v4754, 256
  %v4757 = vpop.permute.xlu0 %4756
  %s4759 = sor.u32 256, 8
  %4760 = vbcast.lane.b32.xlu0 %v4754, %s4759
  %v4761 = vpop.permute.xlu0 %4760
  %s4763 = sor.u32 256, 16
  %4764 = vbcast.lane.b32.xlu0 %v4754, %s4763
  %v4765 = vpop.permute.xlu0 %4764
  %s4767 = sor.u32 256, 24
  %4768 = vbcast.lane.b32.xlu0 %v4754, %s4767
  %v4769 = vpop.permute.xlu0 %4768
  %v4770 = vadd.f32 %v3648, %v4168
  %v4771 = vadd.f32 %v3651, %v4172
  %v4772 = vadd.f32 %v3656, %v4176
  %v4773 = vadd.f32 %v3659, %v4180
  %v4774 = vadd.f32 %v3664, %v4187
  %v4775 = vadd.f32 %v3667, %v4191
  %v4776 = vadd.f32 %v3672, %v4195
  %v4777 = vadd.f32 %v3675, %v4199
  %v4778 = vadd.f32 %v3680, %v4206
  %v4779 = vadd.f32 %v3683, %v4210
  %v4780 = vadd.f32 %v3688, %v4214
  %v4781 = vadd.f32 %v3691, %v4218
  %v4782 = vadd.f32 %v3696, %v4225
  %v4783 = vadd.f32 %v3699, %v4229
  %v4784 = vadd.f32 %v3704, %v4233
  %v4785 = vadd.f32 %v3707, %v4237
  %v4786 = vadd.f32 %v3712, %v4244
  %v4787 = vadd.f32 %v3715, %v4248
  %v4788 = vadd.f32 %v3720, %v4252
  %v4789 = vadd.f32 %v3723, %v4256
  %v4790 = vadd.f32 %v3728, %v4263
  %v4791 = vadd.f32 %v3731, %v4267
  %v4792 = vadd.f32 %v3736, %v4271
  %v4793 = vadd.f32 %v3739, %v4275
  %v4794 = vadd.f32 %v3744, %v4282
  %v4795 = vadd.f32 %v3747, %v4286
  %v4796 = vadd.f32 %v3752, %v4290
  %v4797 = vadd.f32 %v3755, %v4294
  %v4798 = vadd.f32 %v3760, %v4301
  %v4799 = vadd.f32 %v3763, %v4305
  %v4800 = vadd.f32 %v3768, %v4309
  %v4801 = vadd.f32 %v3771, %v4313
  %v4802 = vadd.f32 %v3776, %v4320
  %v4803 = vadd.f32 %v3779, %v4324
  %v4804 = vadd.f32 %v3784, %v4328
  %v4805 = vadd.f32 %v3787, %v4332
  %v4806 = vadd.f32 %v3792, %v4339
  %v4807 = vadd.f32 %v3795, %v4343
  %v4808 = vadd.f32 %v3800, %v4347
  %v4809 = vadd.f32 %v3803, %v4351
  %v4810 = vadd.f32 %v3808, %v4358
  %v4811 = vadd.f32 %v3811, %v4362
  %v4812 = vadd.f32 %v3816, %v4366
  %v4813 = vadd.f32 %v3819, %v4370
  %v4814 = vadd.f32 %v3824, %v4377
  %v4815 = vadd.f32 %v3827, %v4381
  %v4816 = vadd.f32 %v3832, %v4385
  %v4817 = vadd.f32 %v3835, %v4389
  %v4818 = vadd.f32 %v3840, %v4396
  %v4819 = vadd.f32 %v3843, %v4400
  %v4820 = vadd.f32 %v3848, %v4404
  %v4821 = vadd.f32 %v3851, %v4408
  %v4822 = vadd.f32 %v3856, %v4415
  %v4823 = vadd.f32 %v3859, %v4419
  %v4824 = vadd.f32 %v3864, %v4423
  %v4825 = vadd.f32 %v3867, %v4427
  %v4826 = vadd.f32 %v3872, %v4434
  %v4827 = vadd.f32 %v3875, %v4438
  %v4828 = vadd.f32 %v3880, %v4442
  %v4829 = vadd.f32 %v3883, %v4446
  %v4830 = vadd.f32 %v3888, %v4453
  %v4831 = vadd.f32 %v3891, %v4457
  %v4832 = vadd.f32 %v3896, %v4461
  %v4833 = vadd.f32 %v3899, %v4465
  %v4834 = vadd.f32 %v3904, %v4472
  %v4835 = vadd.f32 %v3907, %v4476
  %v4836 = vadd.f32 %v3912, %v4480
  %v4837 = vadd.f32 %v3915, %v4484
  %v4838 = vadd.f32 %v3920, %v4491
  %v4839 = vadd.f32 %v3923, %v4495
  %v4840 = vadd.f32 %v3928, %v4499
  %v4841 = vadd.f32 %v3931, %v4503
  %v4842 = vadd.f32 %v3936, %v4510
  %v4843 = vadd.f32 %v3939, %v4514
  %v4844 = vadd.f32 %v3944, %v4518
  %v4845 = vadd.f32 %v3947, %v4522
  %v4846 = vadd.f32 %v3952, %v4529
  %v4847 = vadd.f32 %v3955, %v4533
  %v4848 = vadd.f32 %v3960, %v4537
  %v4849 = vadd.f32 %v3963, %v4541
  %v4850 = vadd.f32 %v3968, %v4548
  %v4851 = vadd.f32 %v3971, %v4552
  %v4852 = vadd.f32 %v3976, %v4556
  %v4853 = vadd.f32 %v3979, %v4560
  %v4854 = vadd.f32 %v3984, %v4567
  %v4855 = vadd.f32 %v3987, %v4571
  %v4856 = vadd.f32 %v3992, %v4575
  %v4857 = vadd.f32 %v3995, %v4579
  %v4858 = vadd.f32 %v4000, %v4586
  %v4859 = vadd.f32 %v4003, %v4590
  %v4860 = vadd.f32 %v4008, %v4594
  %v4861 = vadd.f32 %v4011, %v4598
  %v4862 = vadd.f32 %v4016, %v4605
  %v4863 = vadd.f32 %v4019, %v4609
  %v4864 = vadd.f32 %v4024, %v4613
  %v4865 = vadd.f32 %v4027, %v4617
  %v4866 = vadd.f32 %v4032, %v4624
  %v4867 = vadd.f32 %v4035, %v4628
  %v4868 = vadd.f32 %v4040, %v4632
  %v4869 = vadd.f32 %v4043, %v4636
  %v4870 = vadd.f32 %v4048, %v4643
  %v4871 = vadd.f32 %v4051, %v4647
  %v4872 = vadd.f32 %v4056, %v4651
  %v4873 = vadd.f32 %v4059, %v4655
  %v4874 = vadd.f32 %v4064, %v4662
  %v4875 = vadd.f32 %v4067, %v4666
  %v4876 = vadd.f32 %v4072, %v4670
  %v4877 = vadd.f32 %v4075, %v4674
  %v4878 = vadd.f32 %v4080, %v4681
  %v4879 = vadd.f32 %v4083, %v4685
  %v4880 = vadd.f32 %v4088, %v4689
  %v4881 = vadd.f32 %v4091, %v4693
  %v4882 = vadd.f32 %v4096, %v4700
  %v4883 = vadd.f32 %v4099, %v4704
  %v4884 = vadd.f32 %v4104, %v4708
  %v4885 = vadd.f32 %v4107, %v4712
  %v4886 = vadd.f32 %v4112, %v4719
  %v4887 = vadd.f32 %v4115, %v4723
  %v4888 = vadd.f32 %v4120, %v4727
  %v4889 = vadd.f32 %v4123, %v4731
  %v4890 = vadd.f32 %v4128, %v4738
  %v4891 = vadd.f32 %v4131, %v4742
  %v4892 = vadd.f32 %v4136, %v4746
  %v4893 = vadd.f32 %v4139, %v4750
  %v4894 = vadd.f32 %v4144, %v4757
  %v4895 = vadd.f32 %v4147, %v4761
  %v4896 = vadd.f32 %v4152, %v4765
  %v4897 = vadd.f32 %v4155, %v4769
  %v4898 = vmax.f32 %v4770, %v4771
  %v4899 = vmax.f32 %v4898, %v4772
  %v4900 = vmax.f32 %v4899, %v4773
  %v4901 = vrot.slane %v4900, 4
  %v4902 = vmax.f32 %v4900, %v4901
  %v4903 = vrot.slane %v4902, 2
  %v4904 = vmax.f32 %v4902, %v4903
  %v4905 = vrot.slane %v4904, 1
  %v4906 = vmax.f32 %v4904, %v4905
  %v4907 = vmax.f32 %v4774, %v4775
  %v4908 = vmax.f32 %v4907, %v4776
  %v4909 = vmax.f32 %v4908, %v4777
  %v4910 = vrot.slane %v4909, 4
  %v4911 = vmax.f32 %v4909, %v4910
  %v4912 = vrot.slane %v4911, 2
  %v4913 = vmax.f32 %v4911, %v4912
  %v4914 = vrot.slane %v4913, 1
  %v4915 = vmax.f32 %v4913, %v4914
  %v4916 = vmax.f32 %v4778, %v4779
  %v4917 = vmax.f32 %v4916, %v4780
  %v4918 = vmax.f32 %v4917, %v4781
  %v4919 = vrot.slane %v4918, 4
  %v4920 = vmax.f32 %v4918, %v4919
  %v4921 = vrot.slane %v4920, 2
  %v4922 = vmax.f32 %v4920, %v4921
  %v4923 = vrot.slane %v4922, 1
  %v4924 = vmax.f32 %v4922, %v4923
  %v4925 = vmax.f32 %v4782, %v4783
  %v4926 = vmax.f32 %v4925, %v4784
  %v4927 = vmax.f32 %v4926, %v4785
  %v4928 = vrot.slane %v4927, 4
  %v4929 = vmax.f32 %v4927, %v4928
  %v4930 = vrot.slane %v4929, 2
  %v4931 = vmax.f32 %v4929, %v4930
  %v4932 = vrot.slane %v4931, 1
  %v4933 = vmax.f32 %v4931, %v4932
  %v4934 = vmax.f32 %v4786, %v4787
  %v4935 = vmax.f32 %v4934, %v4788
  %v4936 = vmax.f32 %v4935, %v4789
  %v4937 = vrot.slane %v4936, 4
  %v4938 = vmax.f32 %v4936, %v4937
  %v4939 = vrot.slane %v4938, 2
  %v4940 = vmax.f32 %v4938, %v4939
  %v4941 = vrot.slane %v4940, 1
  %v4942 = vmax.f32 %v4940, %v4941
  %v4943 = vmax.f32 %v4790, %v4791
  %v4944 = vmax.f32 %v4943, %v4792
  %v4945 = vmax.f32 %v4944, %v4793
  %v4946 = vrot.slane %v4945, 4
  %v4947 = vmax.f32 %v4945, %v4946
  %v4948 = vrot.slane %v4947, 2
  %v4949 = vmax.f32 %v4947, %v4948
  %v4950 = vrot.slane %v4949, 1
  %v4951 = vmax.f32 %v4949, %v4950
  %v4952 = vmax.f32 %v4794, %v4795
  %v4953 = vmax.f32 %v4952, %v4796
  %v4954 = vmax.f32 %v4953, %v4797
  %v4955 = vrot.slane %v4954, 4
  %v4956 = vmax.f32 %v4954, %v4955
  %v4957 = vrot.slane %v4956, 2
  %v4958 = vmax.f32 %v4956, %v4957
  %v4959 = vrot.slane %v4958, 1
  %v4960 = vmax.f32 %v4958, %v4959
  %v4961 = vmax.f32 %v4798, %v4799
  %v4962 = vmax.f32 %v4961, %v4800
  %v4963 = vmax.f32 %v4962, %v4801
  %v4964 = vrot.slane %v4963, 4
  %v4965 = vmax.f32 %v4963, %v4964
  %v4966 = vrot.slane %v4965, 2
  %v4967 = vmax.f32 %v4965, %v4966
  %v4968 = vrot.slane %v4967, 1
  %v4969 = vmax.f32 %v4967, %v4968
  %v4970 = vmax.f32 %v4802, %v4803
  %v4971 = vmax.f32 %v4970, %v4804
  %v4972 = vmax.f32 %v4971, %v4805
  %v4973 = vrot.slane %v4972, 4
  %v4974 = vmax.f32 %v4972, %v4973
  %v4975 = vrot.slane %v4974, 2
  %v4976 = vmax.f32 %v4974, %v4975
  %v4977 = vrot.slane %v4976, 1
  %v4978 = vmax.f32 %v4976, %v4977
  %v4979 = vmax.f32 %v4806, %v4807
  %v4980 = vmax.f32 %v4979, %v4808
  %v4981 = vmax.f32 %v4980, %v4809
  %v4982 = vrot.slane %v4981, 4
  %v4983 = vmax.f32 %v4981, %v4982
  %v4984 = vrot.slane %v4983, 2
  %v4985 = vmax.f32 %v4983, %v4984
  %v4986 = vrot.slane %v4985, 1
  %v4987 = vmax.f32 %v4985, %v4986
  %v4988 = vmax.f32 %v4810, %v4811
  %v4989 = vmax.f32 %v4988, %v4812
  %v4990 = vmax.f32 %v4989, %v4813
  %v4991 = vrot.slane %v4990, 4
  %v4992 = vmax.f32 %v4990, %v4991
  %v4993 = vrot.slane %v4992, 2
  %v4994 = vmax.f32 %v4992, %v4993
  %v4995 = vrot.slane %v4994, 1
  %v4996 = vmax.f32 %v4994, %v4995
  %v4997 = vmax.f32 %v4814, %v4815
  %v4998 = vmax.f32 %v4997, %v4816
  %v4999 = vmax.f32 %v4998, %v4817
  %v5000 = vrot.slane %v4999, 4
  %v5001 = vmax.f32 %v4999, %v5000
  %v5002 = vrot.slane %v5001, 2
  %v5003 = vmax.f32 %v5001, %v5002
  %v5004 = vrot.slane %v5003, 1
  %v5005 = vmax.f32 %v5003, %v5004
  %v5006 = vmax.f32 %v4818, %v4819
  %v5007 = vmax.f32 %v5006, %v4820
  %v5008 = vmax.f32 %v5007, %v4821
  %v5009 = vrot.slane %v5008, 4
  %v5010 = vmax.f32 %v5008, %v5009
  %v5011 = vrot.slane %v5010, 2
  %v5012 = vmax.f32 %v5010, %v5011
  %v5013 = vrot.slane %v5012, 1
  %v5014 = vmax.f32 %v5012, %v5013
  %v5015 = vmax.f32 %v4822, %v4823
  %v5016 = vmax.f32 %v5015, %v4824
  %v5017 = vmax.f32 %v5016, %v4825
  %v5018 = vrot.slane %v5017, 4
  %v5019 = vmax.f32 %v5017, %v5018
  %v5020 = vrot.slane %v5019, 2
  %v5021 = vmax.f32 %v5019, %v5020
  %v5022 = vrot.slane %v5021, 1
  %v5023 = vmax.f32 %v5021, %v5022
  %v5024 = vmax.f32 %v4826, %v4827
  %v5025 = vmax.f32 %v5024, %v4828
  %v5026 = vmax.f32 %v5025, %v4829
  %v5027 = vrot.slane %v5026, 4
  %v5028 = vmax.f32 %v5026, %v5027
  %v5029 = vrot.slane %v5028, 2
  %v5030 = vmax.f32 %v5028, %v5029
  %v5031 = vrot.slane %v5030, 1
  %v5032 = vmax.f32 %v5030, %v5031
  %v5033 = vmax.f32 %v4830, %v4831
  %v5034 = vmax.f32 %v5033, %v4832
  %v5035 = vmax.f32 %v5034, %v4833
  %v5036 = vrot.slane %v5035, 4
  %v5037 = vmax.f32 %v5035, %v5036
  %v5038 = vrot.slane %v5037, 2
  %v5039 = vmax.f32 %v5037, %v5038
  %v5040 = vrot.slane %v5039, 1
  %v5041 = vmax.f32 %v5039, %v5040
  %v5042 = vmax.f32 %v4834, %v4835
  %v5043 = vmax.f32 %v5042, %v4836
  %v5044 = vmax.f32 %v5043, %v4837
  %v5045 = vrot.slane %v5044, 4
  %v5046 = vmax.f32 %v5044, %v5045
  %v5047 = vrot.slane %v5046, 2
  %v5048 = vmax.f32 %v5046, %v5047
  %v5049 = vrot.slane %v5048, 1
  %v5050 = vmax.f32 %v5048, %v5049
  %v5051 = vmax.f32 %v4838, %v4839
  %v5052 = vmax.f32 %v5051, %v4840
  %v5053 = vmax.f32 %v5052, %v4841
  %v5054 = vrot.slane %v5053, 4
  %v5055 = vmax.f32 %v5053, %v5054
  %v5056 = vrot.slane %v5055, 2
  %v5057 = vmax.f32 %v5055, %v5056
  %v5058 = vrot.slane %v5057, 1
  %v5059 = vmax.f32 %v5057, %v5058
  %v5060 = vmax.f32 %v4842, %v4843
  %v5061 = vmax.f32 %v5060, %v4844
  %v5062 = vmax.f32 %v5061, %v4845
  %v5063 = vrot.slane %v5062, 4
  %v5064 = vmax.f32 %v5062, %v5063
  %v5065 = vrot.slane %v5064, 2
  %v5066 = vmax.f32 %v5064, %v5065
  %v5067 = vrot.slane %v5066, 1
  %v5068 = vmax.f32 %v5066, %v5067
  %v5069 = vmax.f32 %v4846, %v4847
  %v5070 = vmax.f32 %v5069, %v4848
  %v5071 = vmax.f32 %v5070, %v4849
  %v5072 = vrot.slane %v5071, 4
  %v5073 = vmax.f32 %v5071, %v5072
  %v5074 = vrot.slane %v5073, 2
  %v5075 = vmax.f32 %v5073, %v5074
  %v5076 = vrot.slane %v5075, 1
  %v5077 = vmax.f32 %v5075, %v5076
  %v5078 = vmax.f32 %v4850, %v4851
  %v5079 = vmax.f32 %v5078, %v4852
  %v5080 = vmax.f32 %v5079, %v4853
  %v5081 = vrot.slane %v5080, 4
  %v5082 = vmax.f32 %v5080, %v5081
  %v5083 = vrot.slane %v5082, 2
  %v5084 = vmax.f32 %v5082, %v5083
  %v5085 = vrot.slane %v5084, 1
  %v5086 = vmax.f32 %v5084, %v5085
  %v5087 = vmax.f32 %v4854, %v4855
  %v5088 = vmax.f32 %v5087, %v4856
  %v5089 = vmax.f32 %v5088, %v4857
  %v5090 = vrot.slane %v5089, 4
  %v5091 = vmax.f32 %v5089, %v5090
  %v5092 = vrot.slane %v5091, 2
  %v5093 = vmax.f32 %v5091, %v5092
  %v5094 = vrot.slane %v5093, 1
  %v5095 = vmax.f32 %v5093, %v5094
  %v5096 = vmax.f32 %v4858, %v4859
  %v5097 = vmax.f32 %v5096, %v4860
  %v5098 = vmax.f32 %v5097, %v4861
  %v5099 = vrot.slane %v5098, 4
  %v5100 = vmax.f32 %v5098, %v5099
  %v5101 = vrot.slane %v5100, 2
  %v5102 = vmax.f32 %v5100, %v5101
  %v5103 = vrot.slane %v5102, 1
  %v5104 = vmax.f32 %v5102, %v5103
  %v5105 = vmax.f32 %v4862, %v4863
  %v5106 = vmax.f32 %v5105, %v4864
  %v5107 = vmax.f32 %v5106, %v4865
  %v5108 = vrot.slane %v5107, 4
  %v5109 = vmax.f32 %v5107, %v5108
  %v5110 = vrot.slane %v5109, 2
  %v5111 = vmax.f32 %v5109, %v5110
  %v5112 = vrot.slane %v5111, 1
  %v5113 = vmax.f32 %v5111, %v5112
  %v5114 = vmax.f32 %v4866, %v4867
  %v5115 = vmax.f32 %v5114, %v4868
  %v5116 = vmax.f32 %v5115, %v4869
  %v5117 = vrot.slane %v5116, 4
  %v5118 = vmax.f32 %v5116, %v5117
  %v5119 = vrot.slane %v5118, 2
  %v5120 = vmax.f32 %v5118, %v5119
  %v5121 = vrot.slane %v5120, 1
  %v5122 = vmax.f32 %v5120, %v5121
  %v5123 = vmax.f32 %v4870, %v4871
  %v5124 = vmax.f32 %v5123, %v4872
  %v5125 = vmax.f32 %v5124, %v4873
  %v5126 = vrot.slane %v5125, 4
  %v5127 = vmax.f32 %v5125, %v5126
  %v5128 = vrot.slane %v5127, 2
  %v5129 = vmax.f32 %v5127, %v5128
  %v5130 = vrot.slane %v5129, 1
  %v5131 = vmax.f32 %v5129, %v5130
  %v5132 = vmax.f32 %v4874, %v4875
  %v5133 = vmax.f32 %v5132, %v4876
  %v5134 = vmax.f32 %v5133, %v4877
  %v5135 = vrot.slane %v5134, 4
  %v5136 = vmax.f32 %v5134, %v5135
  %v5137 = vrot.slane %v5136, 2
  %v5138 = vmax.f32 %v5136, %v5137
  %v5139 = vrot.slane %v5138, 1
  %v5140 = vmax.f32 %v5138, %v5139
  %v5141 = vmax.f32 %v4878, %v4879
  %v5142 = vmax.f32 %v5141, %v4880
  %v5143 = vmax.f32 %v5142, %v4881
  %v5144 = vrot.slane %v5143, 4
  %v5145 = vmax.f32 %v5143, %v5144
  %v5146 = vrot.slane %v5145, 2
  %v5147 = vmax.f32 %v5145, %v5146
  %v5148 = vrot.slane %v5147, 1
  %v5149 = vmax.f32 %v5147, %v5148
  %v5150 = vmax.f32 %v4882, %v4883
  %v5151 = vmax.f32 %v5150, %v4884
  %v5152 = vmax.f32 %v5151, %v4885
  %v5153 = vrot.slane %v5152, 4
  %v5154 = vmax.f32 %v5152, %v5153
  %v5155 = vrot.slane %v5154, 2
  %v5156 = vmax.f32 %v5154, %v5155
  %v5157 = vrot.slane %v5156, 1
  %v5158 = vmax.f32 %v5156, %v5157
  %v5159 = vmax.f32 %v4886, %v4887
  %v5160 = vmax.f32 %v5159, %v4888
  %v5161 = vmax.f32 %v5160, %v4889
  %v5162 = vrot.slane %v5161, 4
  %v5163 = vmax.f32 %v5161, %v5162
  %v5164 = vrot.slane %v5163, 2
  %v5165 = vmax.f32 %v5163, %v5164
  %v5166 = vrot.slane %v5165, 1
  %v5167 = vmax.f32 %v5165, %v5166
  %v5168 = vmax.f32 %v4890, %v4891
  %v5169 = vmax.f32 %v5168, %v4892
  %v5170 = vmax.f32 %v5169, %v4893
  %v5171 = vrot.slane %v5170, 4
  %v5172 = vmax.f32 %v5170, %v5171
  %v5173 = vrot.slane %v5172, 2
  %v5174 = vmax.f32 %v5172, %v5173
  %v5175 = vrot.slane %v5174, 1
  %v5176 = vmax.f32 %v5174, %v5175
  %v5177 = vmax.f32 %v4894, %v4895
  %v5178 = vmax.f32 %v5177, %v4896
  %v5179 = vmax.f32 %v5178, %v4897
  %v5180 = vrot.slane %v5179, 4
  %v5181 = vmax.f32 %v5179, %v5180
  %v5182 = vrot.slane %v5181, 2
  %v5183 = vmax.f32 %v5181, %v5182
  %v5184 = vrot.slane %v5183, 1
  %v5185 = vmax.f32 %v5183, %v5184
  %v5186 = vmax.f32 %v4906, 0.0
  %v5187 = vmax.f32 %v4915, 0.0
  %v5188 = vmax.f32 %v4924, 0.0
  %v5189 = vmax.f32 %v4933, 0.0
  %v5190 = vmax.f32 %v4942, 0.0
  %v5191 = vmax.f32 %v4951, 0.0
  %v5192 = vmax.f32 %v4960, 0.0
  %v5193 = vmax.f32 %v4969, 0.0
  %v5194 = vmax.f32 %v4978, 0.0
  %v5195 = vmax.f32 %v4987, 0.0
  %v5196 = vmax.f32 %v4996, 0.0
  %v5197 = vmax.f32 %v5005, 0.0
  %v5198 = vmax.f32 %v5014, 0.0
  %v5199 = vmax.f32 %v5023, 0.0
  %v5200 = vmax.f32 %v5032, 0.0
  %v5201 = vmax.f32 %v5041, 0.0
  %v5202 = vmax.f32 %v5050, 0.0
  %v5203 = vmax.f32 %v5059, 0.0
  %v5204 = vmax.f32 %v5068, 0.0
  %v5205 = vmax.f32 %v5077, 0.0
  %v5206 = vmax.f32 %v5086, 0.0
  %v5207 = vmax.f32 %v5095, 0.0
  %v5208 = vmax.f32 %v5104, 0.0
  %v5209 = vmax.f32 %v5113, 0.0
  %v5210 = vmax.f32 %v5122, 0.0
  %v5211 = vmax.f32 %v5131, 0.0
  %v5212 = vmax.f32 %v5140, 0.0
  %v5213 = vmax.f32 %v5149, 0.0
  %v5214 = vmax.f32 %v5158, 0.0
  %v5215 = vmax.f32 %v5167, 0.0
  %v5216 = vmax.f32 %v5176, 0.0
  %v5217 = vmax.f32 %v5185, 0.0
  %vm5250 = vcmask 1041409
  %v5251 = vsel %vm5250, %v5187, %v5186
  %vm5252 = vcmask 1042434
  %v5253 = vsel %vm5252, %v5188, %v5251
  %vm5254 = vcmask 1043459
  %v5255 = vsel %vm5254, %v5189, %v5253
  %vm5256 = vcmask 1044484
  %v5257 = vsel %vm5256, %v5190, %v5255
  %vm5258 = vcmask 1045509
  %v5259 = vsel %vm5258, %v5191, %v5257
  %vm5260 = vcmask 1046534
  %v5261 = vsel %vm5260, %v5192, %v5259
  %vm5262 = vcmask 1047559
  %v5263 = vsel %vm5262, %v5193, %v5261
  %v5264 = vsel %vm5250, %v5195, %v5194
  %v5265 = vsel %vm5252, %v5196, %v5264
  %v5266 = vsel %vm5254, %v5197, %v5265
  %v5267 = vsel %vm5256, %v5198, %v5266
  %v5268 = vsel %vm5258, %v5199, %v5267
  %v5269 = vsel %vm5260, %v5200, %v5268
  %v5270 = vsel %vm5262, %v5201, %v5269
  %v5271 = vsel %vm5250, %v5203, %v5202
  %v5272 = vsel %vm5252, %v5204, %v5271
  %v5273 = vsel %vm5254, %v5205, %v5272
  %v5274 = vsel %vm5256, %v5206, %v5273
  %v5275 = vsel %vm5258, %v5207, %v5274
  %v5276 = vsel %vm5260, %v5208, %v5275
  %v5277 = vsel %vm5262, %v5209, %v5276
  %v5278 = vsel %vm5250, %v5211, %v5210
  %v5279 = vsel %vm5252, %v5212, %v5278
  %v5280 = vsel %vm5254, %v5213, %v5279
  %v5281 = vsel %vm5256, %v5214, %v5280
  %v5282 = vsel %vm5258, %v5215, %v5281
  %v5283 = vsel %vm5260, %v5216, %v5282
  %v5284 = vsel %vm5262, %v5217, %v5283
  %5289 = vst [vmem:[%s8] sm:$0xff] %v5263
  %5290 = vst [vmem:[%s8 + $0x8] sm:$0xff] %v5270
  %5291 = vst [vmem:[%s8 + $0x10] sm:$0xff] %v5277
  %5292 = vst [vmem:[%s8 + $0x18] sm:$0xff] %v5284
  // Predicated region
  $region34: #{feature_model_v3_forward.3} parent=0 // pred_check
    _
  $region35: #{feature_model_v3_forward.3} parent=0 // pred_check_branch
    %5294 = sbr.rel (0) target = $region37
  $region36: #{feature_model_v3_forward.3} parent=0 // pred_region
    _
  $region37: #{feature_model_v3_forward.3} parent=0 // pred_fallthru
    _
  // Predicated region
  $region38: #{feature_model_v3_forward.3} parent=0 // pred_check
    _
  $region39: #{feature_model_v3_forward.3} parent=0 // pred_check_branch
    %5296 = sbr.rel (0) target = $region41
  $region40: #{feature_model_v3_forward.3} parent=0 // pred_region
    _
  $region41: #{feature_model_v3_forward.3} parent=0 // pred_fallthru
    _

</llo_original>
